<compile_context>
chip_gen: v5e
topology: v5e:2x2
jax: 0.10.0
libtpu: 0.0.40
codegen_flags: <defaults>
</compile_context>

<pallas_src>
import functools

import numpy as np
import jax
import jax.numpy as jnp
from jax.experimental import pallas as pl
from jax.experimental.pallas import tpu as pltpu


# ----------------------------------------------------------------------------
# helpers
# ----------------------------------------------------------------------------
def _row_tile(total_rows, lane_width, dtype_bytes=4, target_bytes=2 << 20,
              min_grid=2):
    """Row tile that divides total_rows, is a multiple of 8 (or the full
    extent), keeps one buffer near target_bytes and, if possible, gives the
    grid at least `min_grid` steps (so both v7x TensorCores get work)."""
    row_bytes = max(1, lane_width * dtype_bytes)
    target = max(8, target_bytes // row_bytes)
    divs = [d for d in range(8, total_rows + 1, 8) if total_rows % d == 0]
    if not divs:
        return total_rows                      # tiny row count: full extent
    cand = [d for d in divs if total_rows // d >= min_grid] or divs
    under = [d for d in cand if d <= target]
    # If every divisor exceeds the target, take the *smallest* one (bounded
    # VMEM) instead of silently falling back to one giant block.
    return max(under) if under else min(cand)


def _pack_factor(n_pixels, channels, target_lanes=128):
    """Pixels packed per row so the packed lane width is ~128 and divides M."""
    p = max(1, target_lanes // channels)
    while p > 1 and n_pixels % p:
        p -= 1
    return p


def _block_diag(w, p):
    """(a,b) -> (p*a, p*b) block-diagonal replication (host-side, numpy)."""
    a, b = w.shape
    out = np.zeros((p * a, p * b), np.float32)
    for q in range(p):
        out[q * a:(q + 1) * a, q * b:(q + 1) * b] = w
    return out


def _vmem_limit(*buffer_bytes):
    """Explicit scoped-VMEM request sized from the actual block bytes
    (double-buffering + headroom), clamped to stay under v7x's 64 MiB."""
    est = 2 * int(sum(buffer_bytes)) + (4 << 20)
    return int(min(max(est, 32 << 20), 56 << 20))


# ----------------------------------------------------------------------------
# Pallas kernels
# ----------------------------------------------------------------------------
def _freq_gate0_kernel(xr_ref, xi_ref, w1_ref, w2_ref, b2_ref, yr_ref, yi_ref):
    """FrequencyPerception weighting (stage 0), pixel-packed lane-dense:
       g = sigmoid(relu(Xr @ W1) @ W2 + b2);  Yr = g*Xr;  Yi = g*Xi."""
    xr = xr_ref[...]
    hid = jnp.maximum(
        jnp.dot(xr, w1_ref[...], preferred_element_type=jnp.float32), 0.0)
    g = jax.nn.sigmoid(
        jnp.dot(hid, w2_ref[...], preferred_element_type=jnp.float32)
        + b2_ref[...])
    yr_ref[...] = g * xr
    yi_ref[...] = g * xi_ref[...]


def _freq_gate1_kernel(xr0_ref, xi0_ref, xr1_ref, xi1_ref,
                       w1a_ref, w1b_ref, w2a_ref, w2b_ref, b2a_ref, b2b_ref,
                       yr0_ref, yi0_ref, yr1_ref, yi1_ref):
    """FrequencyPerception weighting (stage 1) on the branch-split layout:
       hid = relu(Xr0 @ W1a + Xr1 @ W1b);  g0/g1 = sigmoid(hid @ W2a/b + b2)."""
    xr0 = xr0_ref[...]
    xr1 = xr1_ref[...]
    hid = jnp.maximum(
        jnp.dot(xr0, w1a_ref[...], preferred_element_type=jnp.float32)
        + jnp.dot(xr1, w1b_ref[...], preferred_element_type=jnp.float32), 0.0)
    g0 = jax.nn.sigmoid(
        jnp.dot(hid, w2a_ref[...], preferred_element_type=jnp.float32)
        + b2a_ref[...])
    g1 = jax.nn.sigmoid(
        jnp.dot(hid, w2b_ref[...], preferred_element_type=jnp.float32)
        + b2b_ref[...])
    yr0_ref[...] = g0 * xr0
    yi0_ref[...] = g0 * xi0_ref[...]
    yr1_ref[...] = g1 * xr1
    yi1_ref[...] = g1 * xi1_ref[...]


def _abs_gate_kernel(re_ref, im_ref, o_ref):
    """f = |ifft2(.)| followed by gelu(f)*f (tanh approx -> EUP), fused."""
    re = re_ref[...]
    im = im_ref[...]
    a = jnp.sqrt(re * re + im * im)
    o_ref[...] = jax.nn.gelu(a, approximate=True) * a


def _conv3x3_kernel(*refs, H, W, Cio, grouped, apply_gate):
    """3x3 depthwise / pair-grouped conv as a VPU multiply-accumulate.

    The input block is the *unpadded* (1, H, W*Cio) image.  The (1,1) spatial
    halo and the zero lanes are built in VMEM (aligned 128-lane pad blocks).
    Lane slices are hoisted per kx (3, or 9 with the +-1 pair-partner views);
    the ky loop then only takes cheap sublane row windows.
    """
    if grouped:
        x_ref, ws_ref, wn_ref, wp_ref, b_ref, o_ref = refs
    else:
        x_ref, ws_ref, b_ref, o_ref = refs

    L = W * Cio
    PADL = 128                                   # aligned lane pad, >= Cio + 1
    x = x_ref[0]                                 # (H, L)
    zr = jnp.zeros((1, L), jnp.float32)
    zc = jnp.zeros((H + 2, PADL), jnp.float32)
    xp = jnp.concatenate(
        [zc, jnp.concatenate([zr, x, zr], axis=0), zc], axis=1)  # (H+2, L+256)

    ws = ws_ref[...]
    if grouped:
        wn = wn_ref[...]
        wp = wp_ref[...]

    acc = jnp.zeros((H, L), jnp.float32) + b_ref[...]
    for kx in range(3):
        base = PADL + (kx - 1) * Cio
        v_s = xp[:, base:base + L]               # hoisted lane slice (1 per kx)
        if grouped:
            v_n = xp[:, base + 1:base + 1 + L]   # pair partner, even out-lanes
            v_p = xp[:, base - 1:base - 1 + L]   # pair partner, odd out-lanes
        for ky in range(3):
            t = ky * 3 + kx
            rows = slice(ky, ky + H)             # cheap sublane window
            acc = acc + v_s[rows] * ws[t:t + 1]
            if grouped:
                acc = acc + v_n[rows] * wn[t:t + 1]
                acc = acc + v_p[rows] * wp[t:t + 1]
    if apply_gate:
        acc = jax.nn.gelu(acc, approximate=True) * acc
    o_ref[0] = acc


def _proj_kernel(re0_ref, im0_ref, re1_ref, im1_ref, s0_ref, s1_ref,
                 w_ref, o_ref):
    """out = [|f1_0|, |f1_1|, s1_0, s1_1] @ W_stacked: the |ifft| of freq_1 is
    fused in-kernel and the four K segments are lane-concatenated in VMEM
    (128-aligned), so a single bf16 MXU matmul replaces four small ones."""
    re0 = re0_ref[...]
    im0 = im0_ref[...]
    re1 = re1_ref[...]
    im1 = im1_ref[...]
    f0 = jnp.sqrt(re0 * re0 + im0 * im0).astype(jnp.bfloat16)
    f1 = jnp.sqrt(re1 * re1 + im1 * im1).astype(jnp.bfloat16)
    k = jnp.concatenate(
        [f0, f1, s0_ref[...].astype(jnp.bfloat16),
         s1_ref[...].astype(jnp.bfloat16)], axis=1)
    o_ref[...] = jnp.dot(k, w_ref[...], preferred_element_type=jnp.float32)


# ----------------------------------------------------------------------------
# pallas_call wrappers
# ----------------------------------------------------------------------------
def _freq_gate0(xr, xi, w1, w2, b2):
    R, L = xr.shape
    Lh = w1.shape[1]
    tr = _row_tile(R, L)
    dspec = pl.BlockSpec((tr, L), lambda i: (i, 0))
    data_b = 4 * tr * L * 4
    w_b = 4 * (L * Lh * 2 + L)
    return pl.pallas_call(
        _freq_gate0_kernel,
        out_shape=(jax.ShapeDtypeStruct((R, L), jnp.float32),
                   jax.ShapeDtypeStruct((R, L), jnp.float32)),
        grid=(R // tr,),
        in_specs=[dspec, dspec,
                  pl.BlockSpec((L, Lh), lambda i: (0, 0)),
                  pl.BlockSpec((Lh, L), lambda i: (0, 0)),
                  pl.BlockSpec((1, L), lambda i: (0, 0))],
        out_specs=(dspec, dspec),
        compiler_params=pltpu.CompilerParams(
            dimension_semantics=("parallel",),
            vmem_limit_bytes=_vmem_limit(data_b, w_b)),
    )(xr, xi, w1, w2, b2)


def _freq_gate1(xr0, xi0, xr1, xi1, w1a, w1b, w2a, w2b, b2a, b2b):
    R, L = xr0.shape
    Lh = w1a.shape[1]
    tr = _row_tile(R, L)
    dspec = pl.BlockSpec((tr, L), lambda i: (i, 0))
    data_b = 4 * tr * L * 8
    w_b = 4 * (L * Lh * 4 + 2 * L)
    return pl.pallas_call(
        _freq_gate1_kernel,
        out_shape=tuple(jax.ShapeDtypeStruct((R, L), jnp.float32)
                        for _ in range(4)),
        grid=(R // tr,),
        in_specs=[dspec, dspec, dspec, dspec,
                  pl.BlockSpec((L, Lh), lambda i: (0, 0)),
                  pl.BlockSpec((L, Lh), lambda i: (0, 0)),
                  pl.BlockSpec((Lh, L), lambda i: (0, 0)),
                  pl.BlockSpec((Lh, L), lambda i: (0, 0)),
                  pl.BlockSpec((1, L), lambda i: (0, 0)),
                  pl.BlockSpec((1, L), lambda i: (0, 0))],
        out_specs=(dspec, dspec, dspec, dspec),
        compiler_params=pltpu.CompilerParams(
            dimension_semantics=("parallel",),
            vmem_limit_bytes=_vmem_limit(data_b, w_b)),
    )(xr0, xi0, xr1, xi1, w1a, w1b, w2a, w2b, b2a, b2b)


def _abs_gate(re, im):
    R, L = re.shape
    tr = _row_tile(R, L)
    spec = pl.BlockSpec((tr, L), lambda i: (i, 0))
    data_b = 4 * tr * L * 3
    return pl.pallas_call(
        _abs_gate_kernel,
        out_shape=jax.ShapeDtypeStruct((R, L), jnp.float32),
        grid=(R // tr,),
        in_specs=[spec, spec],
        out_specs=spec,
        compiler_params=pltpu.CompilerParams(
            dimension_semantics=("parallel",),
            vmem_limit_bytes=_vmem_limit(data_b)),
    )(re, im)


def _conv3x3(x_slab, taps, bias_t, *, H, W, Cio, apply_gate):
    """x_slab: (N, H, W*Cio) f32, unpadded (halo + zero lanes built in-kernel).
    taps: (ws,) for depthwise, (ws, wn, wp) for pair-grouped."""
    N = x_slab.shape[0]
    L = W * Cio
    grouped = len(taps) == 3
    kern = functools.partial(_conv3x3_kernel, H=H, W=W, Cio=Cio,
                             grouped=grouped, apply_gate=apply_gate)
    w_spec = pl.BlockSpec((9, L), lambda n: (0, 0))
    blk = (1, H, L)
    data_b = 4 * H * L * 2                               # in + out block
    pad_b = 4 * (H + 2) * (L + 256) * (9 if grouped else 3)
    w_b = 4 * (9 * L * len(taps) + L)
    return pl.pallas_call(
        kern,
        out_shape=jax.ShapeDtypeStruct((N, H, L), jnp.float32),
        grid=(N,),
        in_specs=[pl.BlockSpec(blk, lambda n: (n, 0, 0))]
                 + [w_spec] * len(taps)
                 + [pl.BlockSpec((1, L), lambda n: (0, 0))],
        out_specs=pl.BlockSpec(blk, lambda n: (n, 0, 0)),
        compiler_params=pltpu.CompilerParams(
            dimension_semantics=("parallel",),
            vmem_limit_bytes=_vmem_limit(data_b, pad_b, w_b)),
    )(x_slab, *taps, bias_t)


def _proj(re0, im0, re1, im1, s0, s1, w_stacked):
    R, L = re0.shape
    tr = _row_tile(R, L)
    dspec = pl.BlockSpec((tr, L), lambda i: (i, 0))
    data_b = 4 * tr * L * 7
    w_b = 2 * (4 * L) * L
    return pl.pallas_call(
        _proj_kernel,
        out_shape=jax.ShapeDtypeStruct((R, L), jnp.float32),
        grid=(R // tr,),
        in_specs=[dspec, dspec, dspec, dspec, dspec, dspec,
                  pl.BlockSpec((4 * L, L), lambda i: (0, 0))],
        out_specs=dspec,
        compiler_params=pltpu.CompilerParams(
            dimension_semantics=("parallel",),
            vmem_limit_bytes=_vmem_limit(data_b, w_b)),
    )(re0, im0, re1, im1, s0, s1, w_stacked)


# ----------------------------------------------------------------------------
# forward pass (NHWC glue around the kernels; FFTs run in XLA)
# ----------------------------------------------------------------------------
def effn_forward(x_nchw, kp):
    N, C, H, W = x_nchw.shape
    M = N * H * W
    P = _pack_factor(M, C)
    L = W * C
    x = jnp.transpose(x_nchw, (0, 2, 3, 1)).astype(jnp.float32)      # NHWC
    rs = lambda a: a.reshape(M // P, P * C)                          # pixel pack

    # --- stage 0: frequency branch ------------------------------------------
    xf = jnp.fft.fft2(x, axes=(1, 2))
    yr, yi = _freq_gate0(rs(jnp.real(xf)), rs(jnp.imag(xf)),
                         kp['f0_w1'], kp['f0_w2'], kp['f0_b2'])
    fi = jnp.fft.ifft2((yr + 1j * yi).reshape(N, H, W, C), axes=(1, 2))
    gf = _abs_gate(jnp.real(fi).reshape(N * H, L),
                   jnp.imag(fi).reshape(N * H, L))                   # (N*H, L)

    # --- stage 0: spatial branch (depthwise 3x3, gelu gate fused) ------------
    gs = _conv3x3(x.reshape(N, H, L), (kp['dw0_ws'],), kp['dw0_bt'],
                  H=H, W=W, Cio=C, apply_gate=True)                  # (N, H, L)

    # branch-split "x2": gf == torch channels [0,C), gs == [C,2C); never
    # concatenated in HBM -- every consumer reads the two slabs directly.
    gf4 = gf.reshape(N, H, W, C)
    gs4 = gs.reshape(N, H, W, C)

    # --- stage 1: frequency branch (freq_1 mixes all 2C channels) ------------
    xf0 = jnp.fft.fft2(gf4, axes=(1, 2))
    xf1 = jnp.fft.fft2(gs4, axes=(1, 2))
    yr0, yi0, yr1, yi1 = _freq_gate1(
        rs(jnp.real(xf0)), rs(jnp.imag(xf0)),
        rs(jnp.real(xf1)), rs(jnp.imag(xf1)),
        kp['f1_w1a'], kp['f1_w1b'], kp['f1_w2a'], kp['f1_w2b'],
        kp['f1_b2a'], kp['f1_b2b'])
    fi0 = jnp.fft.ifft2((yr0 + 1j * yi0).reshape(N, H, W, C), axes=(1, 2))
    fi1 = jnp.fft.ifft2((yr1 + 1j * yi1).reshape(N, H, W, C), axes=(1, 2))

    # --- stage 1: spatial branch (dconv_1 splits exactly per branch) ---------
    s1_0 = _conv3x3(gf.reshape(N, H, L),
                    (kp['dw1a_ws'], kp['dw1a_wn'], kp['dw1a_wp']),
                    kp['dw1a_bt'], H=H, W=W, Cio=C, apply_gate=False)
    s1_1 = _conv3x3(gs.reshape(N, H, L),
                    (kp['dw1b_ws'], kp['dw1b_wn'], kp['dw1b_wp']),
                    kp['dw1b_bt'], H=H, W=W, Cio=C, apply_gate=False)

    # --- projection: |ifft| fused, single K-concatenated bf16 MXU matmul -----
    out = _proj(rs(jnp.real(fi0)), rs(jnp.imag(fi0)),
                rs(jnp.real(fi1)), rs(jnp.imag(fi1)),
                rs(s1_0), rs(s1_1), kp['proj_w'])
    out = out.reshape(N, H, W, C)
    return jnp.transpose(out, (0, 3, 1, 2))                          # NCHW


# ----------------------------------------------------------------------------
# parameters: raw (torch-shaped) + kernel-side derived forms
# ----------------------------------------------------------------------------
def make_raw_params(C, key):
    ks = jax.random.split(key, 11)
    h = max(C // 16, 1)
    C2 = 2 * C
    rn = lambda k, shp, s=0.1: s * jax.random.normal(k, shp, dtype=jnp.float32)
    return dict(
        f0_w1=rn(ks[0], (C, h)), f0_w2=rn(ks[1], (h, C)), f0_b2=rn(ks[2], (C,)),
        dw0_w=rn(ks[3], (C, 1, 3, 3)), dw0_b=rn(ks[4], (C,)),
        f1_w1=rn(ks[5], (C2, h)), f1_w2=rn(ks[6], (h, C2)), f1_b2=rn(ks[7], (C2,)),
        dw1_w=rn(ks[8], (C2, 2, 3, 3)), dw1_b=rn(ks[9], (C2,)),
        proj_w=rn(ks[10], (C, 4 * C)),                   # torch (C,4C,1,1) squeezed
    )


def prepare_kernel_params(raw, *, N, C, H, W):
    # Layout assumptions the kernels rely on (per review correctness note).
    assert C % 2 == 0, "pair-grouped conv / branch split requires even C"
    assert C + 1 <= 128, "in-kernel 128-lane halo pad requires C <= 127"
    M = N * H * W
    P = _pack_factor(M, C)
    assert M % P == 0
    kp = {}

    # frequency gate 0: block-diag pixel packing (P-fold, P<=4)
    kp['f0_w1'] = jnp.asarray(_block_diag(np.asarray(raw['f0_w1']), P))
    kp['f0_w2'] = jnp.asarray(_block_diag(np.asarray(raw['f0_w2']), P))
    kp['f0_b2'] = jnp.asarray(np.tile(np.asarray(raw['f0_b2']), P)[None, :])

    # frequency gate 1, split across the two branches of the (never-built) x2
    w1 = np.asarray(raw['f1_w1'])                                    # (2C, h)
    w2 = np.asarray(raw['f1_w2'])                                    # (h, 2C)
    b2 = np.asarray(raw['f1_b2'])                                    # (2C,)
    kp['f1_w1a'] = jnp.asarray(_block_diag(w1[:C], P))
    kp['f1_w1b'] = jnp.asarray(_block_diag(w1[C:], P))
    kp['f1_w2a'] = jnp.asarray(_block_diag(np.ascontiguousarray(w2[:, :C]), P))
    kp['f1_w2b'] = jnp.asarray(_block_diag(np.ascontiguousarray(w2[:, C:]), P))
    kp['f1_b2a'] = jnp.asarray(np.tile(b2[:C], P)[None, :])
    kp['f1_b2b'] = jnp.asarray(np.tile(b2[C:], P)[None, :])

    # dconv_0 (depthwise): per-tap per-lane weight vectors tiled across W
    dw0 = np.asarray(raw['dw0_w'])[:, 0].reshape(C, 9).T             # (9, C)
    kp['dw0_ws'] = jnp.asarray(np.tile(dw0, (1, W)))                 # (9, W*C)
    kp['dw0_bt'] = jnp.asarray(np.tile(np.asarray(raw['dw0_b']), W)[None, :])

    # dconv_1 (groups of 2 channels): exactly two independent per-branch convs.
    dw1 = np.asarray(raw['dw1_w'])                                   # (2C,2,3,3)
    db1 = np.asarray(raw['dw1_b'])
    oc = np.arange(C)
    even = (oc % 2 == 0).astype(np.float32)[None, :]
    for b, tag in enumerate(('a', 'b')):
        wsub = dw1[b * C:(b + 1) * C]                                # (C,2,3,3)
        same = wsub[oc, oc % 2].reshape(C, 9).T                      # (9, C)
        other = wsub[oc, 1 - oc % 2].reshape(C, 9).T                 # (9, C)
        kp[f'dw1{tag}_ws'] = jnp.asarray(np.tile(same, (1, W)))
        kp[f'dw1{tag}_wn'] = jnp.asarray(np.tile(other * even, (1, W)))
        kp[f'dw1{tag}_wp'] = jnp.asarray(np.tile(other * (1.0 - even), (1, W)))
        kp[f'dw1{tag}_bt'] = jnp.asarray(
            np.tile(db1[b * C:(b + 1) * C], W)[None, :])

    # projection: stacked K = [f1_0 | f1_1 | s1_0 | s1_1] block-diag, bf16
    pw = np.asarray(raw['proj_w'])                                   # (C, 4C)
    segs = [_block_diag(np.ascontiguousarray(pw[:, q * C:(q + 1) * C].T), P)
            for q in range(4)]
    kp['proj_w'] = jnp.asarray(np.concatenate(segs, axis=0),
                               dtype=jnp.bfloat16)                   # (4PC, PC)
    return kp


# ----------------------------------------------------------------------------
# pure-JAX/XLA reference of the PyTorch module (for a correctness check)
# ----------------------------------------------------------------------------
def effn_reference(x_nchw, rp):
    C = x_nchw.shape[1]

    def freq(x, w1, w2, b2):
        xf = jnp.fft.fft2(x.astype(jnp.float32), axes=(-2, -1))
        hid = jnp.maximum(jnp.einsum('nchw,cd->ndhw', jnp.real(xf), w1), 0.0)
        g = jax.nn.sigmoid(jnp.einsum('ndhw,dc->nchw', hid, w2)
                           + b2[None, :, None, None])
        return jnp.abs(jnp.fft.ifft2(g * xf, axes=(-2, -1)))

    def gconv(x, w, b, groups):
        y = jax.lax.conv_general_dilated(
            x, w, (1, 1), ((1, 1), (1, 1)),
            dimension_numbers=('NCHW', 'OIHW', 'NCHW'),
            feature_group_count=groups)
        return y + b[None, :, None, None]

    gelu = lambda t: jax.nn.gelu(t, approximate=False)
    xf32 = x_nchw.astype(jnp.float32)
    f = freq(xf32, rp['f0_w1'], rp['f0_w2'], rp['f0_b2'])
    s = gconv(xf32, rp['dw0_w'], rp['dw0_b'], C)
    x2 = jnp.concatenate([gelu(f) * f, gelu(s) * s], axis=1)
    f1 = freq(x2, rp['f1_w1'], rp['f1_w2'], rp['f1_b2'])
    s1 = gconv(x2, rp['dw1_w'], rp['dw1_b'], C)
    cat = jnp.concatenate([f1, s1], axis=1)
    return jnp.einsum('nchw,oc->nohw', cat, rp['proj_w'])


# ----------------------------------------------------------------------------
if __name__ == "__main__":
    key = jax.random.PRNGKey(0)
    k_x, k_p = jax.random.split(key)

    N, C, H, W = 2, 32, 16, 16            # in_channels=32 -> hidden = 32//16 = 2
    x = jax.random.normal(k_x, (N, C, H, W), dtype=jnp.float32)
    raw = make_raw_params(C, k_p)
    kparams = prepare_kernel_params(raw, N=N, C=C, H=H, W=W)

    out = jax.jit(effn_forward)(x, kparams)
    out = jax.block_until_ready(out)
    assert out.shape == (N, C, H, W) and out.dtype == jnp.float32

    ref = jax.block_until_ready(jax.jit(effn_reference)(x, raw))
    rel = float(jnp.linalg.norm(out - ref) / (jnp.linalg.norm(ref) + 1e-6))
    # bf16 projection weights + tanh-approximate GELU vs exact erf GELU in the
    # reference: observed deviation is O(1e-3); 3e-2 leaves generous margin.
    assert rel < 3e-2, f"relative error too large: {rel}"

    print("KERNEL_OK")
</pallas_src>

<mosaic_0001>
module attributes {stable_mosaic.version = 11 : i64} {
  func.func @_freq_gate0_kernel(%arg0: i32, %arg1: memref<64x128xf32, #tpu.memory_space<vmem>>, %arg2: memref<64x128xf32, #tpu.memory_space<vmem>>, %arg3: memref<128x8xf32, #tpu.memory_space<vmem>>, %arg4: memref<8x128xf32, #tpu.memory_space<vmem>>, %arg5: memref<1x128xf32, #tpu.memory_space<vmem>>, %arg6: memref<64x128xf32, #tpu.memory_space<vmem>>, %arg7: memref<64x128xf32, #tpu.memory_space<vmem>>) attributes {dimension_semantics = [#tpu.dimension_semantics<parallel>], iteration_bounds = array<i64: 2>, scalar_prefetch = 0 : i64, scratch_operands = 0 : i64, tpu.core_type = #tpu.core_type<tc>, window_params = [{transform_indices = @transform_0, window_bounds = array<i64: 64, 128>}, {transform_indices = @transform_1, window_bounds = array<i64: 64, 128>}, {pipeline_mode = #tpu.pipeline_mode<synchronous>, transform_indices = @transform_2, window_bounds = array<i64: 128, 8>}, {pipeline_mode = #tpu.pipeline_mode<synchronous>, transform_indices = @transform_3, window_bounds = array<i64: 8, 128>}, {pipeline_mode = #tpu.pipeline_mode<synchronous>, transform_indices = @transform_4, window_bounds = array<i64: 1, 128>}, {transform_indices = @transform_5, window_bounds = array<i64: 64, 128>}, {transform_indices = @transform_6, window_bounds = array<i64: 64, 128>}]} {
    %c0 = arith.constant 0 : index
    %c0_0 = arith.constant 0 : index
    %0 = vector.load %arg1[%c0, %c0_0] : memref<64x128xf32, #tpu.memory_space<vmem>>, vector<64x128xf32>
    %c0_1 = arith.constant 0 : index
    %c0_2 = arith.constant 0 : index
    %1 = vector.load %arg3[%c0_1, %c0_2] : memref<128x8xf32, #tpu.memory_space<vmem>>, vector<128x8xf32>
    %cst = arith.constant dense<0.000000e+00> : vector<64x8xf32>
    %2 = tpu.matmul %0, %1, %cst {dimension_numbers = #tpu.dot_dimension_numbers<[1], [0], [0], [1], [0, 0, 1, 1], [], []>} : vector<64x128xf32>, vector<128x8xf32>, vector<64x8xf32> -> vector<64x8xf32>
    %cst_3 = arith.constant 0.000000e+00 : f32
    %3 = vector.broadcast %cst_3 : f32 to vector<64x8xf32>
    %4 = arith.maximumf %2, %3 : vector<64x8xf32>
    %c0_4 = arith.constant 0 : index
    %c0_5 = arith.constant 0 : index
    %5 = vector.load %arg4[%c0_4, %c0_5] : memref<8x128xf32, #tpu.memory_space<vmem>>, vector<8x128xf32>
    %cst_6 = arith.constant dense<0.000000e+00> : vector<64x128xf32>
    %6 = tpu.matmul %4, %5, %cst_6 {dimension_numbers = #tpu.dot_dimension_numbers<[1], [0], [0], [1], [0, 0, 1, 1], [], []>} : vector<64x8xf32>, vector<8x128xf32>, vector<64x128xf32> -> vector<64x128xf32>
    %c0_7 = arith.constant 0 : index
    %c0_8 = arith.constant 0 : index
    %7 = vector.load %arg5[%c0_7, %c0_8] : memref<1x128xf32, #tpu.memory_space<vmem>>, vector<1x128xf32>
    %8 = vector.broadcast %7 : vector<1x128xf32> to vector<64x128xf32>
    %9 = arith.addf %6, %8 : vector<64x128xf32>
    %10 = arith.negf %9 : vector<64x128xf32>
    %11 = math.exp %10 : vector<64x128xf32>
    %cst_9 = arith.constant 1.000000e+00 : f32
    %12 = vector.broadcast %cst_9 : f32 to vector<64x128xf32>
    %13 = arith.addf %12, %11 : vector<64x128xf32>
    %14 = arith.divf %12, %13 : vector<64x128xf32>
    %15 = arith.mulf %14, %0 : vector<64x128xf32>
    %c0_10 = arith.constant 0 : index
    %c0_11 = arith.constant 0 : index
    %16 = vector.load %arg6[%c0_10, %c0_11] : memref<64x128xf32, #tpu.memory_space<vmem>>, vector<64x128xf32>
    tpu.vector_store %arg6[%c0_10, %c0_11], %15 {strides = array<i32>} : memref<64x128xf32, #tpu.memory_space<vmem>>, vector<64x128xf32>,
    %c0_12 = arith.constant 0 : index
    %c0_13 = arith.constant 0 : index
    %17 = vector.load %arg2[%c0_12, %c0_13] : memref<64x128xf32, #tpu.memory_space<vmem>>, vector<64x128xf32>
    %18 = arith.mulf %14, %17 : vector<64x128xf32>
    %c0_14 = arith.constant 0 : index
    %c0_15 = arith.constant 0 : index
    %19 = vector.load %arg7[%c0_14, %c0_15] : memref<64x128xf32, #tpu.memory_space<vmem>>, vector<64x128xf32>
    tpu.vector_store %arg7[%c0_14, %c0_15], %18 {strides = array<i32>} : memref<64x128xf32, #tpu.memory_space<vmem>>, vector<64x128xf32>,
    return
  }
  func.func @transform_0(%arg0: i32) -> (i32, i32) {
    %c0_i32 = arith.constant 0 : i32
    %c0_i32_0 = arith.constant 0 : i32
    return %arg0, %c0_i32 : i32, i32
  }
  func.func @transform_1(%arg0: i32) -> (i32, i32) {
    %c0_i32 = arith.constant 0 : i32
    %c0_i32_0 = arith.constant 0 : i32
    return %arg0, %c0_i32 : i32, i32
  }
  func.func @transform_2(%arg0: i32) -> (i32, i32) {
    %c0_i32 = arith.constant 0 : i32
    %c0_i32_0 = arith.constant 0 : i32
    %c0_i32_1 = arith.constant 0 : i32
    return %c0_i32, %c0_i32_0 : i32, i32
  }
  func.func @transform_3(%arg0: i32) -> (i32, i32) {
    %c0_i32 = arith.constant 0 : i32
    %c0_i32_0 = arith.constant 0 : i32
    %c0_i32_1 = arith.constant 0 : i32
    return %c0_i32, %c0_i32_0 : i32, i32
  }
  func.func @transform_4(%arg0: i32) -> (i32, i32) {
    %c0_i32 = arith.constant 0 : i32
    %c0_i32_0 = arith.constant 0 : i32
    %c0_i32_1 = arith.constant 0 : i32
    return %c0_i32, %c0_i32_0 : i32, i32
  }
  func.func @transform_5(%arg0: i32) -> (i32, i32) {
    %c0_i32 = arith.constant 0 : i32
    %c0_i32_0 = arith.constant 0 : i32
    return %arg0, %c0_i32 : i32, i32
  }
  func.func @transform_6(%arg0: i32) -> (i32, i32) {
    %c0_i32 = arith.constant 0 : i32
    %c0_i32_0 = arith.constant 0 : i32
    return %arg0, %c0_i32 : i32, i32
  }
}

module attributes {stable_mosaic.version = 11 : i64} {
  func.func @_abs_gate_kernel(%arg0: i32, %arg1: memref<16x512xf32, #tpu.memory_space<vmem>>, %arg2: memref<16x512xf32, #tpu.memory_space<vmem>>, %arg3: memref<16x512xf32, #tpu.memory_space<vmem>>) attributes {dimension_semantics = [#tpu.dimension_semantics<parallel>], iteration_bounds = array<i64: 2>, scalar_prefetch = 0 : i64, scratch_operands = 0 : i64, tpu.core_type = #tpu.core_type<tc>, window_params = [{transform_indices = @transform_0, window_bounds = array<i64: 16, 512>}, {transform_indices = @transform_1, window_bounds = array<i64: 16, 512>}, {transform_indices = @transform_2, window_bounds = array<i64: 16, 512>}]} {
    %c0 = arith.constant 0 : index
    %c0_0 = arith.constant 0 : index
    %0 = vector.load %arg1[%c0, %c0_0] : memref<16x512xf32, #tpu.memory_space<vmem>>, vector<16x512xf32>
    %c0_1 = arith.constant 0 : index
    %c0_2 = arith.constant 0 : index
    %1 = vector.load %arg2[%c0_1, %c0_2] : memref<16x512xf32, #tpu.memory_space<vmem>>, vector<16x512xf32>
    %2 = arith.mulf %0, %0 : vector<16x512xf32>
    %3 = arith.mulf %1, %1 : vector<16x512xf32>
    %4 = arith.addf %2, %3 : vector<16x512xf32>
    %5 = math.sqrt %4 : vector<16x512xf32>
    %6 = arith.mulf %5, %5 : vector<16x512xf32>
    %7 = arith.mulf %5, %6 : vector<16x512xf32>
    %cst = arith.constant 4.471500e-02 : f32
    %8 = vector.broadcast %cst : f32 to vector<16x512xf32>
    %9 = arith.mulf %8, %7 : vector<16x512xf32>
    %10 = arith.addf %5, %9 : vector<16x512xf32>
    %cst_3 = arith.constant 0.797884583 : f32
    %11 = vector.broadcast %cst_3 : f32 to vector<16x512xf32>
    %12 = arith.mulf %11, %10 : vector<16x512xf32>
    %13 = math.tanh %12 : vector<16x512xf32>
    %cst_4 = arith.constant 1.000000e+00 : f32
    %14 = vector.broadcast %cst_4 : f32 to vector<16x512xf32>
    %15 = arith.addf %14, %13 : vector<16x512xf32>
    %cst_5 = arith.constant 5.000000e-01 : f32
    %16 = vector.broadcast %cst_5 : f32 to vector<16x512xf32>
    %17 = arith.mulf %16, %15 : vector<16x512xf32>
    %18 = arith.mulf %5, %17 : vector<16x512xf32>
    %19 = arith.mulf %18, %5 : vector<16x512xf32>
    %c0_6 = arith.constant 0 : index
    %c0_7 = arith.constant 0 : index
    %20 = vector.load %arg3[%c0_6, %c0_7] : memref<16x512xf32, #tpu.memory_space<vmem>>, vector<16x512xf32>
    tpu.vector_store %arg3[%c0_6, %c0_7], %19 {strides = array<i32>} : memref<16x512xf32, #tpu.memory_space<vmem>>, vector<16x512xf32>,
    return
  }
  func.func @transform_0(%arg0: i32) -> (i32, i32) {
    %c0_i32 = arith.constant 0 : i32
    %c0_i32_0 = arith.constant 0 : i32
    return %arg0, %c0_i32 : i32, i32
  }
  func.func @transform_1(%arg0: i32) -> (i32, i32) {
    %c0_i32 = arith.constant 0 : i32
    %c0_i32_0 = arith.constant 0 : i32
    return %arg0, %c0_i32 : i32, i32
  }
  func.func @transform_2(%arg0: i32) -> (i32, i32) {
    %c0_i32 = arith.constant 0 : i32
    %c0_i32_0 = arith.constant 0 : i32
    return %arg0, %c0_i32 : i32, i32
  }
}

module attributes {stable_mosaic.version = 11 : i64} {
  func.func @_conv3x3_kernel(%arg0: i32, %arg1: memref<1x16x512xf32, #tpu.memory_space<vmem>>, %arg2: memref<9x512xf32, #tpu.memory_space<vmem>>, %arg3: memref<1x512xf32, #tpu.memory_space<vmem>>, %arg4: memref<1x16x512xf32, #tpu.memory_space<vmem>>) attributes {dimension_semantics = [#tpu.dimension_semantics<parallel>], iteration_bounds = array<i64: 2>, scalar_prefetch = 0 : i64, scratch_operands = 0 : i64, tpu.core_type = #tpu.core_type<tc>, window_params = [{transform_indices = @transform_0, window_bounds = array<i64: 1, 16, 512>}, {pipeline_mode = #tpu.pipeline_mode<synchronous>, transform_indices = @transform_1, window_bounds = array<i64: 9, 512>}, {pipeline_mode = #tpu.pipeline_mode<synchronous>, transform_indices = @transform_2, window_bounds = array<i64: 1, 512>}, {transform_indices = @transform_3, window_bounds = array<i64: 1, 16, 512>}]} {
    %c0 = arith.constant 0 : index
    %c0_0 = arith.constant 0 : index
    %c0_1 = arith.constant 0 : index
    %0 = vector.load %arg1[%c0, %c0_0, %c0_1] : memref<1x16x512xf32, #tpu.memory_space<vmem>>, vector<1x16x512xf32>
    %1 = vector.shape_cast %0 : vector<1x16x512xf32> to vector<16x512xf32>
    %cst = arith.constant 0.000000e+00 : f32
    %2 = vector.broadcast %cst : f32 to vector<1x512xf32>
    %cst_2 = arith.constant 0.000000e+00 : f32
    %3 = vector.broadcast %cst_2 : f32 to vector<18x128xf32>
    %4 = tpu.concatenate %2, %1, %2 in 0 : vector<1x512xf32>, vector<16x512xf32>, vector<1x512xf32> -> vector<18x512xf32>
    %5 = tpu.concatenate %3, %4, %3 in 1 : vector<18x128xf32>, vector<18x512xf32>, vector<18x128xf32> -> vector<18x768xf32>
    %c0_3 = arith.constant 0 : index
    %c0_4 = arith.constant 0 : index
    %6 = vector.load %arg2[%c0_3, %c0_4] : memref<9x512xf32, #tpu.memory_space<vmem>>, vector<9x512xf32>
    %cst_5 = arith.constant 0.000000e+00 : f32
    %7 = vector.broadcast %cst_5 : f32 to vector<16x512xf32>
    %c0_6 = arith.constant 0 : index
    %c0_7 = arith.constant 0 : index
    %8 = vector.load %arg3[%c0_6, %c0_7] : memref<1x512xf32, #tpu.memory_space<vmem>>, vector<1x512xf32>
    %9 = vector.broadcast %8 : vector<1x512xf32> to vector<16x512xf32>
    %10 = arith.addf %7, %9 : vector<16x512xf32>
    %11 = vector.extract_strided_slice %5 {offsets = [0, 96], sizes = [18, 512], strides = [1, 1]} : vector<18x768xf32> to vector<18x512xf32>
    %12 = vector.extract_strided_slice %11 {offsets = [0, 0], sizes = [16, 512], strides = [1, 1]} : vector<18x512xf32> to vector<16x512xf32>
    %13 = vector.extract_strided_slice %6 {offsets = [0, 0], sizes = [1, 512], strides = [1, 1]} : vector<9x512xf32> to vector<1x512xf32>
    %14 = vector.broadcast %13 : vector<1x512xf32> to vector<16x512xf32>
    %15 = arith.mulf %12, %14 : vector<16x512xf32>
    %16 = arith.addf %10, %15 : vector<16x512xf32>
    %17 = vector.extract_strided_slice %11 {offsets = [1, 0], sizes = [16, 512], strides = [1, 1]} : vector<18x512xf32> to vector<16x512xf32>
    %18 = vector.extract_strided_slice %6 {offsets = [3, 0], sizes = [1, 512], strides = [1, 1]} : vector<9x512xf32> to vector<1x512xf32>
    %19 = vector.broadcast %18 : vector<1x512xf32> to vector<16x512xf32>
    %20 = arith.mulf %17, %19 : vector<16x512xf32>
    %21 = arith.addf %16, %20 : vector<16x512xf32>
    %22 = vector.extract_strided_slice %11 {offsets = [2, 0], sizes = [16, 512], strides = [1, 1]} : vector<18x512xf32> to vector<16x512xf32>
    %23 = vector.extract_strided_slice %6 {offsets = [6, 0], sizes = [1, 512], strides = [1, 1]} : vector<9x512xf32> to vector<1x512xf32>
    %24 = vector.broadcast %23 : vector<1x512xf32> to vector<16x512xf32>
    %25 = arith.mulf %22, %24 : vector<16x512xf32>
    %26 = arith.addf %21, %25 : vector<16x512xf32>
    %27 = vector.extract_strided_slice %5 {offsets = [0, 128], sizes = [18, 512], strides = [1, 1]} : vector<18x768xf32> to vector<18x512xf32>
    %28 = vector.extract_strided_slice %27 {offsets = [0, 0], sizes = [16, 512], strides = [1, 1]} : vector<18x512xf32> to vector<16x512xf32>
    %29 = vector.extract_strided_slice %6 {offsets = [1, 0], sizes = [1, 512], strides = [1, 1]} : vector<9x512xf32> to vector<1x512xf32>
    %30 = vector.broadcast %29 : vector<1x512xf32> to vector<16x512xf32>
    %31 = arith.mulf %28, %30 : vector<16x512xf32>
    %32 = arith.addf %26, %31 : vector<16x512xf32>
    %33 = vector.extract_strided_slice %27 {offsets = [1, 0], sizes = [16, 512], strides = [1, 1]} : vector<18x512xf32> to vector<16x512xf32>
    %34 = vector.extract_strided_slice %6 {offsets = [4, 0], sizes = [1, 512], strides = [1, 1]} : vector<9x512xf32> to vector<1x512xf32>
    %35 = vector.broadcast %34 : vector<1x512xf32> to vector<16x512xf32>
    %36 = arith.mulf %33, %35 : vector<16x512xf32>
    %37 = arith.addf %32, %36 : vector<16x512xf32>
    %38 = vector.extract_strided_slice %27 {offsets = [2, 0], sizes = [16, 512], strides = [1, 1]} : vector<18x512xf32> to vector<16x512xf32>
    %39 = vector.extract_strided_slice %6 {offsets = [7, 0], sizes = [1, 512], strides = [1, 1]} : vector<9x512xf32> to vector<1x512xf32>
    %40 = vector.broadcast %39 : vector<1x512xf32> to vector<16x512xf32>
    %41 = arith.mulf %38, %40 : vector<16x512xf32>
    %42 = arith.addf %37, %41 : vector<16x512xf32>
    %43 = vector.extract_strided_slice %5 {offsets = [0, 160], sizes = [18, 512], strides = [1, 1]} : vector<18x768xf32> to vector<18x512xf32>
    %44 = vector.extract_strided_slice %43 {offsets = [0, 0], sizes = [16, 512], strides = [1, 1]} : vector<18x512xf32> to vector<16x512xf32>
    %45 = vector.extract_strided_slice %6 {offsets = [2, 0], sizes = [1, 512], strides = [1, 1]} : vector<9x512xf32> to vector<1x512xf32>
    %46 = vector.broadcast %45 : vector<1x512xf32> to vector<16x512xf32>
    %47 = arith.mulf %44, %46 : vector<16x512xf32>
    %48 = arith.addf %42, %47 : vector<16x512xf32>
    %49 = vector.extract_strided_slice %43 {offsets = [1, 0], sizes = [16, 512], strides = [1, 1]} : vector<18x512xf32> to vector<16x512xf32>
    %50 = vector.extract_strided_slice %6 {offsets = [5, 0], sizes = [1, 512], strides = [1, 1]} : vector<9x512xf32> to vector<1x512xf32>
    %51 = vector.broadcast %50 : vector<1x512xf32> to vector<16x512xf32>
    %52 = arith.mulf %49, %51 : vector<16x512xf32>
    %53 = arith.addf %48, %52 : vector<16x512xf32>
    %54 = vector.extract_strided_slice %43 {offsets = [2, 0], sizes = [16, 512], strides = [1, 1]} : vector<18x512xf32> to vector<16x512xf32>
    %55 = vector.extract_strided_slice %6 {offsets = [8, 0], sizes = [1, 512], strides = [1, 1]} : vector<9x512xf32> to vector<1x512xf32>
    %56 = vector.broadcast %55 : vector<1x512xf32> to vector<16x512xf32>
    %57 = arith.mulf %54, %56 : vector<16x512xf32>
    %58 = arith.addf %53, %57 : vector<16x512xf32>
    %59 = arith.mulf %58, %58 : vector<16x512xf32>
    %60 = arith.mulf %58, %59 : vector<16x512xf32>
    %cst_8 = arith.constant 4.471500e-02 : f32
    %61 = vector.broadcast %cst_8 : f32 to vector<16x512xf32>
    %62 = arith.mulf %61, %60 : vector<16x512xf32>
    %63 = arith.addf %58, %62 : vector<16x512xf32>
    %cst_9 = arith.constant 0.797884583 : f32
    %64 = vector.broadcast %cst_9 : f32 to vector<16x512xf32>
    %65 = arith.mulf %64, %63 : vector<16x512xf32>
    %66 = math.tanh %65 : vector<16x512xf32>
    %cst_10 = arith.constant 1.000000e+00 : f32
    %67 = vector.broadcast %cst_10 : f32 to vector<16x512xf32>
    %68 = arith.addf %67, %66 : vector<16x512xf32>
    %cst_11 = arith.constant 5.000000e-01 : f32
    %69 = vector.broadcast %cst_11 : f32 to vector<16x512xf32>
    %70 = arith.mulf %69, %68 : vector<16x512xf32>
    %71 = arith.mulf %58, %70 : vector<16x512xf32>
    %72 = arith.mulf %71, %58 : vector<16x512xf32>
    %c0_12 = arith.constant 0 : index
    %c0_13 = arith.constant 0 : index
    %c0_14 = arith.constant 0 : index
    %73 = vector.load %arg4[%c0_12, %c0_13, %c0_14] : memref<1x16x512xf32, #tpu.memory_space<vmem>>, vector<1x16x512xf32>
    %74 = vector.shape_cast %73 : vector<1x16x512xf32> to vector<16x512xf32>
    %75 = vector.shape_cast %72 : vector<16x512xf32> to vector<1x16x512xf32>
    tpu.vector_store %arg4[%c0_12, %c0_13, %c0_14], %75 {strides = array<i32>} : memref<1x16x512xf32, #tpu.memory_space<vmem>>, vector<1x16x512xf32>,
    return
  }
  func.func @transform_0(%arg0: i32) -> (i32, i32, i32) {
    %c0_i32 = arith.constant 0 : i32
    %c0_i32_0 = arith.constant 0 : i32
    %c0_i32_1 = arith.constant 0 : i32
    return %arg0, %c0_i32, %c0_i32_0 : i32, i32, i32
  }
  func.func @transform_1(%arg0: i32) -> (i32, i32) {
    %c0_i32 = arith.constant 0 : i32
    %c0_i32_0 = arith.constant 0 : i32
    %c0_i32_1 = arith.constant 0 : i32
    return %c0_i32, %c0_i32_0 : i32, i32
  }
  func.func @transform_2(%arg0: i32) -> (i32, i32) {
    %c0_i32 = arith.constant 0 : i32
    %c0_i32_0 = arith.constant 0 : i32
    %c0_i32_1 = arith.constant 0 : i32
    return %c0_i32, %c0_i32_0 : i32, i32
  }
  func.func @transform_3(%arg0: i32) -> (i32, i32, i32) {
    %c0_i32 = arith.constant 0 : i32
    %c0_i32_0 = arith.constant 0 : i32
    %c0_i32_1 = arith.constant 0 : i32
    return %arg0, %c0_i32, %c0_i32_0 : i32, i32, i32
  }
}

module attributes {stable_mosaic.version = 11 : i64} {
  func.func @_freq_gate1_kernel(%arg0: i32, %arg1: memref<64x128xf32, #tpu.memory_space<vmem>>, %arg2: memref<64x128xf32, #tpu.memory_space<vmem>>, %arg3: memref<64x128xf32, #tpu.memory_space<vmem>>, %arg4: memref<64x128xf32, #tpu.memory_space<vmem>>, %arg5: memref<128x8xf32, #tpu.memory_space<vmem>>, %arg6: memref<128x8xf32, #tpu.memory_space<vmem>>, %arg7: memref<8x128xf32, #tpu.memory_space<vmem>>, %arg8: memref<8x128xf32, #tpu.memory_space<vmem>>, %arg9: memref<1x128xf32, #tpu.memory_space<vmem>>, %arg10: memref<1x128xf32, #tpu.memory_space<vmem>>, %arg11: memref<64x128xf32, #tpu.memory_space<vmem>>, %arg12: memref<64x128xf32, #tpu.memory_space<vmem>>, %arg13: memref<64x128xf32, #tpu.memory_space<vmem>>, %arg14: memref<64x128xf32, #tpu.memory_space<vmem>>) attributes {dimension_semantics = [#tpu.dimension_semantics<parallel>], iteration_bounds = array<i64: 2>, scalar_prefetch = 0 : i64, scratch_operands = 0 : i64, tpu.core_type = #tpu.core_type<tc>, window_params = [{transform_indices = @transform_0, window_bounds = array<i64: 64, 128>}, {transform_indices = @transform_1, window_bounds = array<i64: 64, 128>}, {transform_indices = @transform_2, window_bounds = array<i64: 64, 128>}, {transform_indices = @transform_3, window_bounds = array<i64: 64, 128>}, {pipeline_mode = #tpu.pipeline_mode<synchronous>, transform_indices = @transform_4, window_bounds = array<i64: 128, 8>}, {pipeline_mode = #tpu.pipeline_mode<synchronous>, transform_indices = @transform_5, window_bounds = array<i64: 128, 8>}, {pipeline_mode = #tpu.pipeline_mode<synchronous>, transform_indices = @transform_6, window_bounds = array<i64: 8, 128>}, {pipeline_mode = #tpu.pipeline_mode<synchronous>, transform_indices = @transform_7, window_bounds = array<i64: 8, 128>}, {pipeline_mode = #tpu.pipeline_mode<synchronous>, transform_indices = @transform_8, window_bounds = array<i64: 1, 128>}, {pipeline_mode = #tpu.pipeline_mode<synchronous>, transform_indices = @transform_9, window_bounds = array<i64: 1, 128>}, {transform_indices = @transform_10, window_bounds = array<i64: 64, 128>}, {transform_indices = @transform_11, window_bounds = array<i64: 64, 128>}, {transform_indices = @transform_12, window_bounds = array<i64: 64, 128>}, {transform_indices = @transform_13, window_bounds = array<i64: 64, 128>}]} {
    %c0 = arith.constant 0 : index
    %c0_0 = arith.constant 0 : index
    %0 = vector.load %arg1[%c0, %c0_0] : memref<64x128xf32, #tpu.memory_space<vmem>>, vector<64x128xf32>
    %c0_1 = arith.constant 0 : index
    %c0_2 = arith.constant 0 : index
    %1 = vector.load %arg3[%c0_1, %c0_2] : memref<64x128xf32, #tpu.memory_space<vmem>>, vector<64x128xf32>
    %c0_3 = arith.constant 0 : index
    %c0_4 = arith.constant 0 : index
    %2 = vector.load %arg5[%c0_3, %c0_4] : memref<128x8xf32, #tpu.memory_space<vmem>>, vector<128x8xf32>
    %cst = arith.constant dense<0.000000e+00> : vector<64x8xf32>
    %3 = tpu.matmul %0, %2, %cst {dimension_numbers = #tpu.dot_dimension_numbers<[1], [0], [0], [1], [0, 0, 1, 1], [], []>} : vector<64x128xf32>, vector<128x8xf32>, vector<64x8xf32> -> vector<64x8xf32>
    %c0_5 = arith.constant 0 : index
    %c0_6 = arith.constant 0 : index
    %4 = vector.load %arg6[%c0_5, %c0_6] : memref<128x8xf32, #tpu.memory_space<vmem>>, vector<128x8xf32>
    %cst_7 = arith.constant dense<0.000000e+00> : vector<64x8xf32>
    %5 = tpu.matmul %1, %4, %cst_7 {dimension_numbers = #tpu.dot_dimension_numbers<[1], [0], [0], [1], [0, 0, 1, 1], [], []>} : vector<64x128xf32>, vector<128x8xf32>, vector<64x8xf32> -> vector<64x8xf32>
    %6 = arith.addf %3, %5 : vector<64x8xf32>
    %cst_8 = arith.constant 0.000000e+00 : f32
    %7 = vector.broadcast %cst_8 : f32 to vector<64x8xf32>
    %8 = arith.maximumf %6, %7 : vector<64x8xf32>
    %c0_9 = arith.constant 0 : index
    %c0_10 = arith.constant 0 : index
    %9 = vector.load %arg7[%c0_9, %c0_10] : memref<8x128xf32, #tpu.memory_space<vmem>>, vector<8x128xf32>
    %cst_11 = arith.constant dense<0.000000e+00> : vector<64x128xf32>
    %10 = tpu.matmul %8, %9, %cst_11 {dimension_numbers = #tpu.dot_dimension_numbers<[1], [0], [0], [1], [0, 0, 1, 1], [], []>} : vector<64x8xf32>, vector<8x128xf32>, vector<64x128xf32> -> vector<64x128xf32>
    %c0_12 = arith.constant 0 : index
    %c0_13 = arith.constant 0 : index
    %11 = vector.load %arg9[%c0_12, %c0_13] : memref<1x128xf32, #tpu.memory_space<vmem>>, vector<1x128xf32>
    %12 = vector.broadcast %11 : vector<1x128xf32> to vector<64x128xf32>
    %13 = arith.addf %10, %12 : vector<64x128xf32>
    %14 = arith.negf %13 : vector<64x128xf32>
    %15 = math.exp %14 : vector<64x128xf32>
    %cst_14 = arith.constant 1.000000e+00 : f32
    %16 = vector.broadcast %cst_14 : f32 to vector<64x128xf32>
    %17 = arith.addf %16, %15 : vector<64x128xf32>
    %18 = arith.divf %16, %17 : vector<64x128xf32>
    %c0_15 = arith.constant 0 : index
    %c0_16 = arith.constant 0 : index
    %19 = vector.load %arg8[%c0_15, %c0_16] : memref<8x128xf32, #tpu.memory_space<vmem>>, vector<8x128xf32>
    %cst_17 = arith.constant dense<0.000000e+00> : vector<64x128xf32>
    %20 = tpu.matmul %8, %19, %cst_17 {dimension_numbers = #tpu.dot_dimension_numbers<[1], [0], [0], [1], [0, 0, 1, 1], [], []>} : vector<64x8xf32>, vector<8x128xf32>, vector<64x128xf32> -> vector<64x128xf32>
    %c0_18 = arith.constant 0 : index
    %c0_19 = arith.constant 0 : index
    %21 = vector.load %arg10[%c0_18, %c0_19] : memref<1x128xf32, #tpu.memory_space<vmem>>, vector<1x128xf32>
    %22 = vector.broadcast %21 : vector<1x128xf32> to vector<64x128xf32>
    %23 = arith.addf %20, %22 : vector<64x128xf32>
    %24 = arith.negf %23 : vector<64x128xf32>
    %25 = math.exp %24 : vector<64x128xf32>
    %cst_20 = arith.constant 1.000000e+00 : f32
    %26 = vector.broadcast %cst_20 : f32 to vector<64x128xf32>
    %27 = arith.addf %26, %25 : vector<64x128xf32>
    %28 = arith.divf %26, %27 : vector<64x128xf32>
    %29 = arith.mulf %18, %0 : vector<64x128xf32>
    %c0_21 = arith.constant 0 : index
    %c0_22 = arith.constant 0 : index
    %30 = vector.load %arg11[%c0_21, %c0_22] : memref<64x128xf32, #tpu.memory_space<vmem>>, vector<64x128xf32>
    tpu.vector_store %arg11[%c0_21, %c0_22], %29 {strides = array<i32>} : memref<64x128xf32, #tpu.memory_space<vmem>>, vector<64x128xf32>,
    %c0_23 = arith.constant 0 : index
    %c0_24 = arith.constant 0 : index
    %31 = vector.load %arg2[%c0_23, %c0_24] : memref<64x128xf32, #tpu.memory_space<vmem>>, vector<64x128xf32>
    %32 = arith.mulf %18, %31 : vector<64x128xf32>
    %c0_25 = arith.constant 0 : index
    %c0_26 = arith.constant 0 : index
    %33 = vector.load %arg12[%c0_25, %c0_26] : memref<64x128xf32, #tpu.memory_space<vmem>>, vector<64x128xf32>
    tpu.vector_store %arg12[%c0_25, %c0_26], %32 {strides = array<i32>} : memref<64x128xf32, #tpu.memory_space<vmem>>, vector<64x128xf32>,
    %34 = arith.mulf %28, %1 : vector<64x128xf32>
    %c0_27 = arith.constant 0 : index
    %c0_28 = arith.constant 0 : index
    %35 = vector.load %arg13[%c0_27, %c0_28] : memref<64x128xf32, #tpu.memory_space<vmem>>, vector<64x128xf32>
    tpu.vector_store %arg13[%c0_27, %c0_28], %34 {strides = array<i32>} : memref<64x128xf32, #tpu.memory_space<vmem>>, vector<64x128xf32>,
    %c0_29 = arith.constant 0 : index
    %c0_30 = arith.constant 0 : index
    %36 = vector.load %arg4[%c0_29, %c0_30] : memref<64x128xf32, #tpu.memory_space<vmem>>, vector<64x128xf32>
    %37 = arith.mulf %28, %36 : vector<64x128xf32>
    %c0_31 = arith.constant 0 : index
    %c0_32 = arith.constant 0 : index
    %38 = vector.load %arg14[%c0_31, %c0_32] : memref<64x128xf32, #tpu.memory_space<vmem>>, vector<64x128xf32>
    tpu.vector_store %arg14[%c0_31, %c0_32], %37 {strides = array<i32>} : memref<64x128xf32, #tpu.memory_space<vmem>>, vector<64x128xf32>,
    return
  }
  func.func @transform_0(%arg0: i32) -> (i32, i32) {
    %c0_i32 = arith.constant 0 : i32
    %c0_i32_0 = arith.constant 0 : i32
    return %arg0, %c0_i32 : i32, i32
  }
  func.func @transform_1(%arg0: i32) -> (i32, i32) {
    %c0_i32 = arith.constant 0 : i32
    %c0_i32_0 = arith.constant 0 : i32
    return %arg0, %c0_i32 : i32, i32
  }
  func.func @transform_2(%arg0: i32) -> (i32, i32) {
    %c0_i32 = arith.constant 0 : i32
    %c0_i32_0 = arith.constant 0 : i32
    return %arg0, %c0_i32 : i32, i32
  }
  func.func @transform_3(%arg0: i32) -> (i32, i32) {
    %c0_i32 = arith.constant 0 : i32
    %c0_i32_0 = arith.constant 0 : i32
    return %arg0, %c0_i32 : i32, i32
  }
  func.func @transform_4(%arg0: i32) -> (i32, i32) {
    %c0_i32 = arith.constant 0 : i32
    %c0_i32_0 = arith.constant 0 : i32
    %c0_i32_1 = arith.constant 0 : i32
    return %c0_i32, %c0_i32_0 : i32, i32
  }
  func.func @transform_5(%arg0: i32) -> (i32, i32) {
    %c0_i32 = arith.constant 0 : i32
    %c0_i32_0 = arith.constant 0 : i32
    %c0_i32_1 = arith.constant 0 : i32
    return %c0_i32, %c0_i32_0 : i32, i32
  }
  func.func @transform_6(%arg0: i32) -> (i32, i32) {
    %c0_i32 = arith.constant 0 : i32
    %c0_i32_0 = arith.constant 0 : i32
    %c0_i32_1 = arith.constant 0 : i32
    return %c0_i32, %c0_i32_0 : i32, i32
  }
  func.func @transform_7(%arg0: i32) -> (i32, i32) {
    %c0_i32 = arith.constant 0 : i32
    %c0_i32_0 = arith.constant 0 : i32
    %c0_i32_1 = arith.constant 0 : i32
    return %c0_i32, %c0_i32_0 : i32, i32
  }
  func.func @transform_8(%arg0: i32) -> (i32, i32) {
    %c0_i32 = arith.constant 0 : i32
    %c0_i32_0 = arith.constant 0 : i32
    %c0_i32_1 = arith.constant 0 : i32
    return %c0_i32, %c0_i32_0 : i32, i32
  }
  func.func @transform_9(%arg0: i32) -> (i32, i32) {
    %c0_i32 = arith.constant 0 : i32
    %c0_i32_0 = arith.constant 0 : i32
    %c0_i32_1 = arith.constant 0 : i32
    return %c0_i32, %c0_i32_0 : i32, i32
  }
  func.func @transform_10(%arg0: i32) -> (i32, i32) {
    %c0_i32 = arith.constant 0 : i32
    %c0_i32_0 = arith.constant 0 : i32
    return %arg0, %c0_i32 : i32, i32
  }
  func.func @transform_11(%arg0: i32) -> (i32, i32) {
    %c0_i32 = arith.constant 0 : i32
    %c0_i32_0 = arith.constant 0 : i32
    return %arg0, %c0_i32 : i32, i32
  }
  func.func @transform_12(%arg0: i32) -> (i32, i32) {
    %c0_i32 = arith.constant 0 : i32
    %c0_i32_0 = arith.constant 0 : i32
    return %arg0, %c0_i32 : i32, i32
  }
  func.func @transform_13(%arg0: i32) -> (i32, i32) {
    %c0_i32 = arith.constant 0 : i32
    %c0_i32_0 = arith.constant 0 : i32
    return %arg0, %c0_i32 : i32, i32
  }
}

module attributes {stable_mosaic.version = 11 : i64} {
  func.func @_proj_kernel(%arg0: i32, %arg1: memref<64x128xf32, #tpu.memory_space<vmem>>, %arg2: memref<64x128xf32, #tpu.memory_space<vmem>>, %arg3: memref<64x128xf32, #tpu.memory_space<vmem>>, %arg4: memref<64x128xf32, #tpu.memory_space<vmem>>, %arg5: memref<64x128xf32, #tpu.memory_space<vmem>>, %arg6: memref<64x128xf32, #tpu.memory_space<vmem>>, %arg7: memref<512x128xbf16, #tpu.memory_space<vmem>>, %arg8: memref<64x128xf32, #tpu.memory_space<vmem>>) attributes {dimension_semantics = [#tpu.dimension_semantics<parallel>], iteration_bounds = array<i64: 2>, scalar_prefetch = 0 : i64, scratch_operands = 0 : i64, tpu.core_type = #tpu.core_type<tc>, window_params = [{transform_indices = @transform_0, window_bounds = array<i64: 64, 128>}, {transform_indices = @transform_1, window_bounds = array<i64: 64, 128>}, {transform_indices = @transform_2, window_bounds = array<i64: 64, 128>}, {transform_indices = @transform_3, window_bounds = array<i64: 64, 128>}, {transform_indices = @transform_4, window_bounds = array<i64: 64, 128>}, {transform_indices = @transform_5, window_bounds = array<i64: 64, 128>}, {pipeline_mode = #tpu.pipeline_mode<synchronous>, transform_indices = @transform_6, window_bounds = array<i64: 512, 128>}, {transform_indices = @transform_7, window_bounds = array<i64: 64, 128>}]} {
    %c0 = arith.constant 0 : index
    %c0_0 = arith.constant 0 : index
    %0 = vector.load %arg1[%c0, %c0_0] : memref<64x128xf32, #tpu.memory_space<vmem>>, vector<64x128xf32>
    %c0_1 = arith.constant 0 : index
    %c0_2 = arith.constant 0 : index
    %1 = vector.load %arg2[%c0_1, %c0_2] : memref<64x128xf32, #tpu.memory_space<vmem>>, vector<64x128xf32>
    %c0_3 = arith.constant 0 : index
    %c0_4 = arith.constant 0 : index
    %2 = vector.load %arg3[%c0_3, %c0_4] : memref<64x128xf32, #tpu.memory_space<vmem>>, vector<64x128xf32>
    %c0_5 = arith.constant 0 : index
    %c0_6 = arith.constant 0 : index
    %3 = vector.load %arg4[%c0_5, %c0_6] : memref<64x128xf32, #tpu.memory_space<vmem>>, vector<64x128xf32>
    %4 = arith.mulf %0, %0 : vector<64x128xf32>
    %5 = arith.mulf %1, %1 : vector<64x128xf32>
    %6 = arith.addf %4, %5 : vector<64x128xf32>
    %7 = math.sqrt %6 : vector<64x128xf32>
    %8 = arith.truncf %7 : vector<64x128xf32> to vector<64x128xbf16>
    %9 = arith.mulf %2, %2 : vector<64x128xf32>
    %10 = arith.mulf %3, %3 : vector<64x128xf32>
    %11 = arith.addf %9, %10 : vector<64x128xf32>
    %12 = math.sqrt %11 : vector<64x128xf32>
    %13 = arith.truncf %12 : vector<64x128xf32> to vector<64x128xbf16>
    %c0_7 = arith.constant 0 : index
    %c0_8 = arith.constant 0 : index
    %14 = vector.load %arg5[%c0_7, %c0_8] : memref<64x128xf32, #tpu.memory_space<vmem>>, vector<64x128xf32>
    %15 = arith.truncf %14 : vector<64x128xf32> to vector<64x128xbf16>
    %c0_9 = arith.constant 0 : index
    %c0_10 = arith.constant 0 : index
    %16 = vector.load %arg6[%c0_9, %c0_10] : memref<64x128xf32, #tpu.memory_space<vmem>>, vector<64x128xf32>
    %17 = arith.truncf %16 : vector<64x128xf32> to vector<64x128xbf16>
    %18 = tpu.concatenate %8, %13, %15, %17 in 1 : vector<64x128xbf16>, vector<64x128xbf16>, vector<64x128xbf16>, vector<64x128xbf16> -> vector<64x512xbf16>
    %c0_11 = arith.constant 0 : index
    %c0_12 = arith.constant 0 : index
    %19 = vector.load %arg7[%c0_11, %c0_12] : memref<512x128xbf16, #tpu.memory_space<vmem>>, vector<512x128xbf16>
    %cst = arith.constant dense<0.000000e+00> : vector<64x128xf32>
    %20 = tpu.matmul %18, %19, %cst {dimension_numbers = #tpu.dot_dimension_numbers<[1], [0], [0], [1], [0, 0, 1, 1], [], []>} : vector<64x512xbf16>, vector<512x128xbf16>, vector<64x128xf32> -> vector<64x128xf32>
    %c0_13 = arith.constant 0 : index
    %c0_14 = arith.constant 0 : index
    %21 = vector.load %arg8[%c0_13, %c0_14] : memref<64x128xf32, #tpu.memory_space<vmem>>, vector<64x128xf32>
    tpu.vector_store %arg8[%c0_13, %c0_14], %20 {strides = array<i32>} : memref<64x128xf32, #tpu.memory_space<vmem>>, vector<64x128xf32>,
    return
  }
  func.func @transform_0(%arg0: i32) -> (i32, i32) {
    %c0_i32 = arith.constant 0 : i32
    %c0_i32_0 = arith.constant 0 : i32
    return %arg0, %c0_i32 : i32, i32
  }
  func.func @transform_1(%arg0: i32) -> (i32, i32) {
    %c0_i32 = arith.constant 0 : i32
    %c0_i32_0 = arith.constant 0 : i32
    return %arg0, %c0_i32 : i32, i32
  }
  func.func @transform_2(%arg0: i32) -> (i32, i32) {
    %c0_i32 = arith.constant 0 : i32
    %c0_i32_0 = arith.constant 0 : i32
    return %arg0, %c0_i32 : i32, i32
  }
  func.func @transform_3(%arg0: i32) -> (i32, i32) {
    %c0_i32 = arith.constant 0 : i32
    %c0_i32_0 = arith.constant 0 : i32
    return %arg0, %c0_i32 : i32, i32
  }
  func.func @transform_4(%arg0: i32) -> (i32, i32) {
    %c0_i32 = arith.constant 0 : i32
    %c0_i32_0 = arith.constant 0 : i32
    return %arg0, %c0_i32 : i32, i32
  }
  func.func @transform_5(%arg0: i32) -> (i32, i32) {
    %c0_i32 = arith.constant 0 : i32
    %c0_i32_0 = arith.constant 0 : i32
    return %arg0, %c0_i32 : i32, i32
  }
  func.func @transform_6(%arg0: i32) -> (i32, i32) {
    %c0_i32 = arith.constant 0 : i32
    %c0_i32_0 = arith.constant 0 : i32
    %c0_i32_1 = arith.constant 0 : i32
    return %c0_i32, %c0_i32_0 : i32, i32
  }
  func.func @transform_7(%arg0: i32) -> (i32, i32) {
    %c0_i32 = arith.constant 0 : i32
    %c0_i32_0 = arith.constant 0 : i32
    return %arg0, %c0_i32 : i32, i32
  }
}

module attributes {stable_mosaic.version = 11 : i64} {
  func.func @_conv3x3_kernel(%arg0: i32, %arg1: memref<1x16x512xf32, #tpu.memory_space<vmem>>, %arg2: memref<9x512xf32, #tpu.memory_space<vmem>>, %arg3: memref<9x512xf32, #tpu.memory_space<vmem>>, %arg4: memref<9x512xf32, #tpu.memory_space<vmem>>, %arg5: memref<1x512xf32, #tpu.memory_space<vmem>>, %arg6: memref<1x16x512xf32, #tpu.memory_space<vmem>>) attributes {dimension_semantics = [#tpu.dimension_semantics<parallel>], iteration_bounds = array<i64: 2>, scalar_prefetch = 0 : i64, scratch_operands = 0 : i64, tpu.core_type = #tpu.core_type<tc>, window_params = [{transform_indices = @transform_0, window_bounds = array<i64: 1, 16, 512>}, {pipeline_mode = #tpu.pipeline_mode<synchronous>, transform_indices = @transform_1, window_bounds = array<i64: 9, 512>}, {pipeline_mode = #tpu.pipeline_mode<synchronous>, transform_indices = @transform_2, window_bounds = array<i64: 9, 512>}, {pipeline_mode = #tpu.pipeline_mode<synchronous>, transform_indices = @transform_3, window_bounds = array<i64: 9, 512>}, {pipeline_mode = #tpu.pipeline_mode<synchronous>, transform_indices = @transform_4, window_bounds = array<i64: 1, 512>}, {transform_indices = @transform_5, window_bounds = array<i64: 1, 16, 512>}]} {
    %c0 = arith.constant 0 : index
    %c0_0 = arith.constant 0 : index
    %c0_1 = arith.constant 0 : index
    %0 = vector.load %arg1[%c0, %c0_0, %c0_1] : memref<1x16x512xf32, #tpu.memory_space<vmem>>, vector<1x16x512xf32>
    %1 = vector.shape_cast %0 : vector<1x16x512xf32> to vector<16x512xf32>
    %cst = arith.constant 0.000000e+00 : f32
    %2 = vector.broadcast %cst : f32 to vector<1x512xf32>
    %cst_2 = arith.constant 0.000000e+00 : f32
    %3 = vector.broadcast %cst_2 : f32 to vector<18x128xf32>
    %4 = tpu.concatenate %2, %1, %2 in 0 : vector<1x512xf32>, vector<16x512xf32>, vector<1x512xf32> -> vector<18x512xf32>
    %5 = tpu.concatenate %3, %4, %3 in 1 : vector<18x128xf32>, vector<18x512xf32>, vector<18x128xf32> -> vector<18x768xf32>
    %c0_3 = arith.constant 0 : index
    %c0_4 = arith.constant 0 : index
    %6 = vector.load %arg2[%c0_3, %c0_4] : memref<9x512xf32, #tpu.memory_space<vmem>>, vector<9x512xf32>
    %c0_5 = arith.constant 0 : index
    %c0_6 = arith.constant 0 : index
    %7 = vector.load %arg3[%c0_5, %c0_6] : memref<9x512xf32, #tpu.memory_space<vmem>>, vector<9x512xf32>
    %c0_7 = arith.constant 0 : index
    %c0_8 = arith.constant 0 : index
    %8 = vector.load %arg4[%c0_7, %c0_8] : memref<9x512xf32, #tpu.memory_space<vmem>>, vector<9x512xf32>
    %cst_9 = arith.constant 0.000000e+00 : f32
    %9 = vector.broadcast %cst_9 : f32 to vector<16x512xf32>
    %c0_10 = arith.constant 0 : index
    %c0_11 = arith.constant 0 : index
    %10 = vector.load %arg5[%c0_10, %c0_11] : memref<1x512xf32, #tpu.memory_space<vmem>>, vector<1x512xf32>
    %11 = vector.broadcast %10 : vector<1x512xf32> to vector<16x512xf32>
    %12 = arith.addf %9, %11 : vector<16x512xf32>
    %13 = vector.extract_strided_slice %5 {offsets = [0, 96], sizes = [18, 512], strides = [1, 1]} : vector<18x768xf32> to vector<18x512xf32>
    %14 = vector.extract_strided_slice %5 {offsets = [0, 97], sizes = [18, 512], strides = [1, 1]} : vector<18x768xf32> to vector<18x512xf32>
    %15 = vector.extract_strided_slice %5 {offsets = [0, 95], sizes = [18, 512], strides = [1, 1]} : vector<18x768xf32> to vector<18x512xf32>
    %16 = vector.extract_strided_slice %13 {offsets = [0, 0], sizes = [16, 512], strides = [1, 1]} : vector<18x512xf32> to vector<16x512xf32>
    %17 = vector.extract_strided_slice %6 {offsets = [0, 0], sizes = [1, 512], strides = [1, 1]} : vector<9x512xf32> to vector<1x512xf32>
    %18 = vector.broadcast %17 : vector<1x512xf32> to vector<16x512xf32>
    %19 = arith.mulf %16, %18 : vector<16x512xf32>
    %20 = arith.addf %12, %19 : vector<16x512xf32>
    %21 = vector.extract_strided_slice %14 {offsets = [0, 0], sizes = [16, 512], strides = [1, 1]} : vector<18x512xf32> to vector<16x512xf32>
    %22 = vector.extract_strided_slice %7 {offsets = [0, 0], sizes = [1, 512], strides = [1, 1]} : vector<9x512xf32> to vector<1x512xf32>
    %23 = vector.broadcast %22 : vector<1x512xf32> to vector<16x512xf32>
    %24 = arith.mulf %21, %23 : vector<16x512xf32>
    %25 = arith.addf %20, %24 : vector<16x512xf32>
    %26 = vector.extract_strided_slice %15 {offsets = [0, 0], sizes = [16, 512], strides = [1, 1]} : vector<18x512xf32> to vector<16x512xf32>
    %27 = vector.extract_strided_slice %8 {offsets = [0, 0], sizes = [1, 512], strides = [1, 1]} : vector<9x512xf32> to vector<1x512xf32>
    %28 = vector.broadcast %27 : vector<1x512xf32> to vector<16x512xf32>
    %29 = arith.mulf %26, %28 : vector<16x512xf32>
    %30 = arith.addf %25, %29 : vector<16x512xf32>
    %31 = vector.extract_strided_slice %13 {offsets = [1, 0], sizes = [16, 512], strides = [1, 1]} : vector<18x512xf32> to vector<16x512xf32>
    %32 = vector.extract_strided_slice %6 {offsets = [3, 0], sizes = [1, 512], strides = [1, 1]} : vector<9x512xf32> to vector<1x512xf32>
    %33 = vector.broadcast %32 : vector<1x512xf32> to vector<16x512xf32>
    %34 = arith.mulf %31, %33 : vector<16x512xf32>
    %35 = arith.addf %30, %34 : vector<16x512xf32>
    %36 = vector.extract_strided_slice %14 {offsets = [1, 0], sizes = [16, 512], strides = [1, 1]} : vector<18x512xf32> to vector<16x512xf32>
    %37 = vector.extract_strided_slice %7 {offsets = [3, 0], sizes = [1, 512], strides = [1, 1]} : vector<9x512xf32> to vector<1x512xf32>
    %38 = vector.broadcast %37 : vector<1x512xf32> to vector<16x512xf32>
    %39 = arith.mulf %36, %38 : vector<16x512xf32>
    %40 = arith.addf %35, %39 : vector<16x512xf32>
    %41 = vector.extract_strided_slice %15 {offsets = [1, 0], sizes = [16, 512], strides = [1, 1]} : vector<18x512xf32> to vector<16x512xf32>
    %42 = vector.extract_strided_slice %8 {offsets = [3, 0], sizes = [1, 512], strides = [1, 1]} : vector<9x512xf32> to vector<1x512xf32>
    %43 = vector.broadcast %42 : vector<1x512xf32> to vector<16x512xf32>
    %44 = arith.mulf %41, %43 : vector<16x512xf32>
    %45 = arith.addf %40, %44 : vector<16x512xf32>
    %46 = vector.extract_strided_slice %13 {offsets = [2, 0], sizes = [16, 512], strides = [1, 1]} : vector<18x512xf32> to vector<16x512xf32>
    %47 = vector.extract_strided_slice %6 {offsets = [6, 0], sizes = [1, 512], strides = [1, 1]} : vector<9x512xf32> to vector<1x512xf32>
    %48 = vector.broadcast %47 : vector<1x512xf32> to vector<16x512xf32>
    %49 = arith.mulf %46, %48 : vector<16x512xf32>
    %50 = arith.addf %45, %49 : vector<16x512xf32>
    %51 = vector.extract_strided_slice %14 {offsets = [2, 0], sizes = [16, 512], strides = [1, 1]} : vector<18x512xf32> to vector<16x512xf32>
    %52 = vector.extract_strided_slice %7 {offsets = [6, 0], sizes = [1, 512], strides = [1, 1]} : vector<9x512xf32> to vector<1x512xf32>
    %53 = vector.broadcast %52 : vector<1x512xf32> to vector<16x512xf32>
    %54 = arith.mulf %51, %53 : vector<16x512xf32>
    %55 = arith.addf %50, %54 : vector<16x512xf32>
    %56 = vector.extract_strided_slice %15 {offsets = [2, 0], sizes = [16, 512], strides = [1, 1]} : vector<18x512xf32> to vector<16x512xf32>
    %57 = vector.extract_strided_slice %8 {offsets = [6, 0], sizes = [1, 512], strides = [1, 1]} : vector<9x512xf32> to vector<1x512xf32>
    %58 = vector.broadcast %57 : vector<1x512xf32> to vector<16x512xf32>
    %59 = arith.mulf %56, %58 : vector<16x512xf32>
    %60 = arith.addf %55, %59 : vector<16x512xf32>
    %61 = vector.extract_strided_slice %5 {offsets = [0, 128], sizes = [18, 512], strides = [1, 1]} : vector<18x768xf32> to vector<18x512xf32>
    %62 = vector.extract_strided_slice %5 {offsets = [0, 129], sizes = [18, 512], strides = [1, 1]} : vector<18x768xf32> to vector<18x512xf32>
    %63 = vector.extract_strided_slice %5 {offsets = [0, 127], sizes = [18, 512], strides = [1, 1]} : vector<18x768xf32> to vector<18x512xf32>
    %64 = vector.extract_strided_slice %61 {offsets = [0, 0], sizes = [16, 512], strides = [1, 1]} : vector<18x512xf32> to vector<16x512xf32>
    %65 = vector.extract_strided_slice %6 {offsets = [1, 0], sizes = [1, 512], strides = [1, 1]} : vector<9x512xf32> to vector<1x512xf32>
    %66 = vector.broadcast %65 : vector<1x512xf32> to vector<16x512xf32>
    %67 = arith.mulf %64, %66 : vector<16x512xf32>
    %68 = arith.addf %60, %67 : vector<16x512xf32>
    %69 = vector.extract_strided_slice %62 {offsets = [0, 0], sizes = [16, 512], strides = [1, 1]} : vector<18x512xf32> to vector<16x512xf32>
    %70 = vector.extract_strided_slice %7 {offsets = [1, 0], sizes = [1, 512], strides = [1, 1]} : vector<9x512xf32> to vector<1x512xf32>
    %71 = vector.broadcast %70 : vector<1x512xf32> to vector<16x512xf32>
    %72 = arith.mulf %69, %71 : vector<16x512xf32>
    %73 = arith.addf %68, %72 : vector<16x512xf32>
    %74 = vector.extract_strided_slice %63 {offsets = [0, 0], sizes = [16, 512], strides = [1, 1]} : vector<18x512xf32> to vector<16x512xf32>
    %75 = vector.extract_strided_slice %8 {offsets = [1, 0], sizes = [1, 512], strides = [1, 1]} : vector<9x512xf32> to vector<1x512xf32>
    %76 = vector.broadcast %75 : vector<1x512xf32> to vector<16x512xf32>
    %77 = arith.mulf %74, %76 : vector<16x512xf32>
    %78 = arith.addf %73, %77 : vector<16x512xf32>
    %79 = vector.extract_strided_slice %61 {offsets = [1, 0], sizes = [16, 512], strides = [1, 1]} : vector<18x512xf32> to vector<16x512xf32>
    %80 = vector.extract_strided_slice %6 {offsets = [4, 0], sizes = [1, 512], strides = [1, 1]} : vector<9x512xf32> to vector<1x512xf32>
    %81 = vector.broadcast %80 : vector<1x512xf32> to vector<16x512xf32>
    %82 = arith.mulf %79, %81 : vector<16x512xf32>
    %83 = arith.addf %78, %82 : vector<16x512xf32>
    %84 = vector.extract_strided_slice %62 {offsets = [1, 0], sizes = [16, 512], strides = [1, 1]} : vector<18x512xf32> to vector<16x512xf32>
    %85 = vector.extract_strided_slice %7 {offsets = [4, 0], sizes = [1, 512], strides = [1, 1]} : vector<9x512xf32> to vector<1x512xf32>
    %86 = vector.broadcast %85 : vector<1x512xf32> to vector<16x512xf32>
    %87 = arith.mulf %84, %86 : vector<16x512xf32>
    %88 = arith.addf %83, %87 : vector<16x512xf32>
    %89 = vector.extract_strided_slice %63 {offsets = [1, 0], sizes = [16, 512], strides = [1, 1]} : vector<18x512xf32> to vector<16x512xf32>
    %90 = vector.extract_strided_slice %8 {offsets = [4, 0], sizes = [1, 512], strides = [1, 1]} : vector<9x512xf32> to vector<1x512xf32>
    %91 = vector.broadcast %90 : vector<1x512xf32> to vector<16x512xf32>
    %92 = arith.mulf %89, %91 : vector<16x512xf32>
    %93 = arith.addf %88, %92 : vector<16x512xf32>
    %94 = vector.extract_strided_slice %61 {offsets = [2, 0], sizes = [16, 512], strides = [1, 1]} : vector<18x512xf32> to vector<16x512xf32>
    %95 = vector.extract_strided_slice %6 {offsets = [7, 0], sizes = [1, 512], strides = [1, 1]} : vector<9x512xf32> to vector<1x512xf32>
    %96 = vector.broadcast %95 : vector<1x512xf32> to vector<16x512xf32>
    %97 = arith.mulf %94, %96 : vector<16x512xf32>
    %98 = arith.addf %93, %97 : vector<16x512xf32>
    %99 = vector.extract_strided_slice %62 {offsets = [2, 0], sizes = [16, 512], strides = [1, 1]} : vector<18x512xf32> to vector<16x512xf32>
    %100 = vector.extract_strided_slice %7 {offsets = [7, 0], sizes = [1, 512], strides = [1, 1]} : vector<9x512xf32> to vector<1x512xf32>
    %101 = vector.broadcast %100 : vector<1x512xf32> to vector<16x512xf32>
    %102 = arith.mulf %99, %101 : vector<16x512xf32>
    %103 = arith.addf %98, %102 : vector<16x512xf32>
    %104 = vector.extract_strided_slice %63 {offsets = [2, 0], sizes = [16, 512], strides = [1, 1]} : vector<18x512xf32> to vector<16x512xf32>
    %105 = vector.extract_strided_slice %8 {offsets = [7, 0], sizes = [1, 512], strides = [1, 1]} : vector<9x512xf32> to vector<1x512xf32>
    %106 = vector.broadcast %105 : vector<1x512xf32> to vector<16x512xf32>
    %107 = arith.mulf %104, %106 : vector<16x512xf32>
    %108 = arith.addf %103, %107 : vector<16x512xf32>
    %109 = vector.extract_strided_slice %5 {offsets = [0, 160], sizes = [18, 512], strides = [1, 1]} : vector<18x768xf32> to vector<18x512xf32>
    %110 = vector.extract_strided_slice %5 {offsets = [0, 161], sizes = [18, 512], strides = [1, 1]} : vector<18x768xf32> to vector<18x512xf32>
    %111 = vector.extract_strided_slice %5 {offsets = [0, 159], sizes = [18, 512], strides = [1, 1]} : vector<18x768xf32> to vector<18x512xf32>
    %112 = vector.extract_strided_slice %109 {offsets = [0, 0], sizes = [16, 512], strides = [1, 1]} : vector<18x512xf32> to vector<16x512xf32>
    %113 = vector.extract_strided_slice %6 {offsets = [2, 0], sizes = [1, 512], strides = [1, 1]} : vector<9x512xf32> to vector<1x512xf32>
    %114 = vector.broadcast %113 : vector<1x512xf32> to vector<16x512xf32>
    %115 = arith.mulf %112, %114 : vector<16x512xf32>
    %116 = arith.addf %108, %115 : vector<16x512xf32>
    %117 = vector.extract_strided_slice %110 {offsets = [0, 0], sizes = [16, 512], strides = [1, 1]} : vector<18x512xf32> to vector<16x512xf32>
    %118 = vector.extract_strided_slice %7 {offsets = [2, 0], sizes = [1, 512], strides = [1, 1]} : vector<9x512xf32> to vector<1x512xf32>
    %119 = vector.broadcast %118 : vector<1x512xf32> to vector<16x512xf32>
    %120 = arith.mulf %117, %119 : vector<16x512xf32>
    %121 = arith.addf %116, %120 : vector<16x512xf32>
    %122 = vector.extract_strided_slice %111 {offsets = [0, 0], sizes = [16, 512], strides = [1, 1]} : vector<18x512xf32> to vector<16x512xf32>
    %123 = vector.extract_strided_slice %8 {offsets = [2, 0], sizes = [1, 512], strides = [1, 1]} : vector<9x512xf32> to vector<1x512xf32>
    %124 = vector.broadcast %123 : vector<1x512xf32> to vector<16x512xf32>
    %125 = arith.mulf %122, %124 : vector<16x512xf32>
    %126 = arith.addf %121, %125 : vector<16x512xf32>
    %127 = vector.extract_strided_slice %109 {offsets = [1, 0], sizes = [16, 512], strides = [1, 1]} : vector<18x512xf32> to vector<16x512xf32>
    %128 = vector.extract_strided_slice %6 {offsets = [5, 0], sizes = [1, 512], strides = [1, 1]} : vector<9x512xf32> to vector<1x512xf32>
    %129 = vector.broadcast %128 : vector<1x512xf32> to vector<16x512xf32>
    %130 = arith.mulf %127, %129 : vector<16x512xf32>
    %131 = arith.addf %126, %130 : vector<16x512xf32>
    %132 = vector.extract_strided_slice %110 {offsets = [1, 0], sizes = [16, 512], strides = [1, 1]} : vector<18x512xf32> to vector<16x512xf32>
    %133 = vector.extract_strided_slice %7 {offsets = [5, 0], sizes = [1, 512], strides = [1, 1]} : vector<9x512xf32> to vector<1x512xf32>
    %134 = vector.broadcast %133 : vector<1x512xf32> to vector<16x512xf32>
    %135 = arith.mulf %132, %134 : vector<16x512xf32>
    %136 = arith.addf %131, %135 : vector<16x512xf32>
    %137 = vector.extract_strided_slice %111 {offsets = [1, 0], sizes = [16, 512], strides = [1, 1]} : vector<18x512xf32> to vector<16x512xf32>
    %138 = vector.extract_strided_slice %8 {offsets = [5, 0], sizes = [1, 512], strides = [1, 1]} : vector<9x512xf32> to vector<1x512xf32>
    %139 = vector.broadcast %138 : vector<1x512xf32> to vector<16x512xf32>
    %140 = arith.mulf %137, %139 : vector<16x512xf32>
    %141 = arith.addf %136, %140 : vector<16x512xf32>
    %142 = vector.extract_strided_slice %109 {offsets = [2, 0], sizes = [16, 512], strides = [1, 1]} : vector<18x512xf32> to vector<16x512xf32>
    %143 = vector.extract_strided_slice %6 {offsets = [8, 0], sizes = [1, 512], strides = [1, 1]} : vector<9x512xf32> to vector<1x512xf32>
    %144 = vector.broadcast %143 : vector<1x512xf32> to vector<16x512xf32>
    %145 = arith.mulf %142, %144 : vector<16x512xf32>
    %146 = arith.addf %141, %145 : vector<16x512xf32>
    %147 = vector.extract_strided_slice %110 {offsets = [2, 0], sizes = [16, 512], strides = [1, 1]} : vector<18x512xf32> to vector<16x512xf32>
    %148 = vector.extract_strided_slice %7 {offsets = [8, 0], sizes = [1, 512], strides = [1, 1]} : vector<9x512xf32> to vector<1x512xf32>
    %149 = vector.broadcast %148 : vector<1x512xf32> to vector<16x512xf32>
    %150 = arith.mulf %147, %149 : vector<16x512xf32>
    %151 = arith.addf %146, %150 : vector<16x512xf32>
    %152 = vector.extract_strided_slice %111 {offsets = [2, 0], sizes = [16, 512], strides = [1, 1]} : vector<18x512xf32> to vector<16x512xf32>
    %153 = vector.extract_strided_slice %8 {offsets = [8, 0], sizes = [1, 512], strides = [1, 1]} : vector<9x512xf32> to vector<1x512xf32>
    %154 = vector.broadcast %153 : vector<1x512xf32> to vector<16x512xf32>
    %155 = arith.mulf %152, %154 : vector<16x512xf32>
    %156 = arith.addf %151, %155 : vector<16x512xf32>
    %c0_12 = arith.constant 0 : index
    %c0_13 = arith.constant 0 : index
    %c0_14 = arith.constant 0 : index
    %157 = vector.load %arg6[%c0_12, %c0_13, %c0_14] : memref<1x16x512xf32, #tpu.memory_space<vmem>>, vector<1x16x512xf32>
    %158 = vector.shape_cast %157 : vector<1x16x512xf32> to vector<16x512xf32>
    %159 = vector.shape_cast %156 : vector<16x512xf32> to vector<1x16x512xf32>
    tpu.vector_store %arg6[%c0_12, %c0_13, %c0_14], %159 {strides = array<i32>} : memref<1x16x512xf32, #tpu.memory_space<vmem>>, vector<1x16x512xf32>,
    return
  }
  func.func @transform_0(%arg0: i32) -> (i32, i32, i32) {
    %c0_i32 = arith.constant 0 : i32
    %c0_i32_0 = arith.constant 0 : i32
    %c0_i32_1 = arith.constant 0 : i32
    return %arg0, %c0_i32, %c0_i32_0 : i32, i32, i32
  }
  func.func @transform_1(%arg0: i32) -> (i32, i32) {
    %c0_i32 = arith.constant 0 : i32
    %c0_i32_0 = arith.constant 0 : i32
    %c0_i32_1 = arith.constant 0 : i32
    return %c0_i32, %c0_i32_0 : i32, i32
  }
  func.func @transform_2(%arg0: i32) -> (i32, i32) {
    %c0_i32 = arith.constant 0 : i32
    %c0_i32_0 = arith.constant 0 : i32
    %c0_i32_1 = arith.constant 0 : i32
    return %c0_i32, %c0_i32_0 : i32, i32
  }
  func.func @transform_3(%arg0: i32) -> (i32, i32) {
    %c0_i32 = arith.constant 0 : i32
    %c0_i32_0 = arith.constant 0 : i32
    %c0_i32_1 = arith.constant 0 : i32
    return %c0_i32, %c0_i32_0 : i32, i32
  }
  func.func @transform_4(%arg0: i32) -> (i32, i32) {
    %c0_i32 = arith.constant 0 : i32
    %c0_i32_0 = arith.constant 0 : i32
    %c0_i32_1 = arith.constant 0 : i32
    return %c0_i32, %c0_i32_0 : i32, i32
  }
  func.func @transform_5(%arg0: i32) -> (i32, i32, i32) {
    %c0_i32 = arith.constant 0 : i32
    %c0_i32_0 = arith.constant 0 : i32
    %c0_i32_1 = arith.constant 0 : i32
    return %arg0, %c0_i32, %c0_i32_0 : i32, i32, i32
  }
}

</mosaic_0001>

<llo_original>
// kernel: effn_forward.7
$region0: #{effn_forward.7}
  #allocation0 [shape = 'u32[]', space=smem, size = 0x4, offset = 0x4, fixed_abs, tag = 'smem constant byte address 0x4 - core index']
  #allocation1 [shape = 'u32[72,128]{1,0:T(1,128)}', space=vmem, size = 0x9000, scoped, tag = 'internal scratch']
  %s0 = inlined_call_operand.vmem [shape: f32[128,128], index: 0, kind: input, shape index: {}]
  %s1 = inlined_call_operand.vmem [shape: f32[128,128], index: 1, kind: input, shape index: {}]
  %s2 = inlined_call_operand.vmem [shape: f32[128,8], index: 2, kind: input, shape index: {}]
  %s3 = inlined_call_operand.vmem [shape: f32[8,128], index: 3, kind: input, shape index: {}]
  %s4 = inlined_call_operand.vmem [shape: f32[1,128], index: 4, kind: input, shape index: {}]
  %s5 = inlined_call_operand.vmem [shape: f32[128,128], index: 5, kind: output, shape index: {0}]
  %s6 = inlined_call_operand.vmem [shape: f32[128,128], index: 6, kind: output, shape index: {1}]
  %7 = xla_tuple %s5, %s6
  %s8 = sld [smem:[#allocation0]]
  $region61: #{effn_forward.7} parent=0
    _
  %s10 = ssub.s32 1, %s8
  %s11 = scalar_select 0, %s10, %s8
  loop: start=0, step=1, limit=4
  $region2: #{effn_forward.7} parent=0 // loop_pre_header
    _
  $region3: #{effn_forward.7} parent=0 // loop_header
    %s13 = sphi 0, %s17
    %p14 = scmp.ge.s32.totalorder %s13, 4
    %s23 = sphi 0, %s25
    %s26 = sphi 0, %s23
    %s27 = sphi 0, %s26
    %s43 = sphi 0, %s27
    %s49 = sphi 0, %s51
    %s52 = sphi 0, %s49
    %s53 = sphi 0, %s52
    %s69 = sphi 0, %s53
    %s73 = sphi 0, %s73
    %s75 = sphi 0, %s73
    %s76 = sphi 0, %s75
    %s90 = sphi 0, %s76
    %s94 = sphi 0, %s94
    %s96 = sphi 0, %s94
    %s97 = sphi 0, %s96
    %s111 = sphi 0, %s97
    %s115 = sphi 0, %s115
    %s117 = sphi 0, %s115
    %s118 = sphi 0, %s117
    %s132 = sphi 0, %s118
    %s138 = sphi 0, %s140
    %s141 = sphi 0, %s138
    %s142 = sphi 0, %s141
    %s158 = sphi 0, %s142
    %s164 = sphi 0, %s166
    %s167 = sphi 0, %s164
    %s168 = sphi 0, %s167
    %s184 = sphi 0, %s168
  $region4: #{effn_forward.7} parent=0 // loop_header_branch
    %16 = sbr.rel (%p14) target = $region8
  $region5: #{effn_forward.7} parent=0 // loop_body
    %s18 = ssub.s32 %s13, 1
    %s19 = ssub.s32 %s13, 2
    %s20 = sadd.s32 %s13, 1
    %s21 = ssub.s32 %s13, %s20
    %p22 = scmp.eq.s32.totalorder %s21, 0
    %s24 = sadd.s32 %s23, 1
    %s25 = scalar_select %p22, %s23, %s24
    %p28 = pneg %p22
    %p29 = scmp.eq.s32.totalorder %s13, 1
    %p30 = por %p28, %p29
    %p31 = scmp.ne.s32.totalorder %s23, %s26
    %p32 = scmp.eq.s32.totalorder %s13, 0
    %p33 = por %p31, %p32
    %p34 = scmp.ne.s32.totalorder %s23, %s26
    %p35 = scmp.eq.s32.totalorder %s18, 1
    %p36 = por %p34, %p35
    %p37 = scmp.ne.s32.totalorder %s26, %s27
    %p38 = scmp.eq.s32.totalorder %s18, 0
    %p39 = por %p37, %p38
    %p40 = scmp.ne.s32.totalorder %s26, %s27
    %p41 = scmp.eq.s32.totalorder %s19, 1
    %p42 = por %p40, %p41
    %p44 = scmp.ne.s32.totalorder %s27, %s43
    %p45 = scmp.eq.s32.totalorder %s19, 0
    %p46 = por %p44, %p45
    %s47 = ssub.s32 %s13, %s20
    %p48 = scmp.eq.s32.totalorder %s47, 0
    %s50 = sadd.s32 %s49, 1
    %s51 = scalar_select %p48, %s49, %s50
    %p54 = pneg %p48
    %p55 = scmp.eq.s32.totalorder %s13, 1
    %p56 = por %p54, %p55
    %p57 = scmp.ne.s32.totalorder %s49, %s52
    %p58 = scmp.eq.s32.totalorder %s13, 0
    %p59 = por %p57, %p58
    %p60 = scmp.ne.s32.totalorder %s49, %s52
    %p61 = scmp.eq.s32.totalorder %s18, 1
    %p62 = por %p60, %p61
    %p63 = scmp.ne.s32.totalorder %s52, %s53
    %p64 = scmp.eq.s32.totalorder %s18, 0
    %p65 = por %p63, %p64
    %p66 = scmp.ne.s32.totalorder %s52, %s53
    %p67 = scmp.eq.s32.totalorder %s19, 1
    %p68 = por %p66, %p67
    %p70 = scmp.ne.s32.totalorder %s53, %s69
    %p71 = scmp.eq.s32.totalorder %s19, 0
    %p72 = por %p70, %p71
    %s74 = sadd.s32 %s73, 1
    %p77 = scmp.eq.s32.totalorder %s13, 1
    %p78 = scmp.ne.s32.totalorder %s73, %s75
    %p79 = scmp.eq.s32.totalorder %s13, 0
    %p80 = por %p78, %p79
    %p81 = scmp.ne.s32.totalorder %s73, %s75
    %p82 = scmp.eq.s32.totalorder %s18, 1
    %p83 = por %p81, %p82
    %p84 = scmp.ne.s32.totalorder %s75, %s76
    %p85 = scmp.eq.s32.totalorder %s18, 0
    %p86 = por %p84, %p85
    %p87 = scmp.ne.s32.totalorder %s75, %s76
    %p88 = scmp.eq.s32.totalorder %s19, 1
    %p89 = por %p87, %p88
    %p91 = scmp.ne.s32.totalorder %s76, %s90
    %p92 = scmp.eq.s32.totalorder %s19, 0
    %p93 = por %p91, %p92
    %s95 = sadd.s32 %s94, 1
    %p98 = scmp.eq.s32.totalorder %s13, 1
    %p99 = scmp.ne.s32.totalorder %s94, %s96
    %p100 = scmp.eq.s32.totalorder %s13, 0
    %p101 = por %p99, %p100
    %p102 = scmp.ne.s32.totalorder %s94, %s96
    %p103 = scmp.eq.s32.totalorder %s18, 1
    %p104 = por %p102, %p103
    %p105 = scmp.ne.s32.totalorder %s96, %s97
    %p106 = scmp.eq.s32.totalorder %s18, 0
    %p107 = por %p105, %p106
    %p108 = scmp.ne.s32.totalorder %s96, %s97
    %p109 = scmp.eq.s32.totalorder %s19, 1
    %p110 = por %p108, %p109
    %p112 = scmp.ne.s32.totalorder %s97, %s111
    %p113 = scmp.eq.s32.totalorder %s19, 0
    %p114 = por %p112, %p113
    %s116 = sadd.s32 %s115, 1
    %p119 = scmp.eq.s32.totalorder %s13, 1
    %p120 = scmp.ne.s32.totalorder %s115, %s117
    %p121 = scmp.eq.s32.totalorder %s13, 0
    %p122 = por %p120, %p121
    %p123 = scmp.ne.s32.totalorder %s115, %s117
    %p124 = scmp.eq.s32.totalorder %s18, 1
    %p125 = por %p123, %p124
    %p126 = scmp.ne.s32.totalorder %s117, %s118
    %p127 = scmp.eq.s32.totalorder %s18, 0
    %p128 = por %p126, %p127
    %p129 = scmp.ne.s32.totalorder %s117, %s118
    %p130 = scmp.eq.s32.totalorder %s19, 1
    %p131 = por %p129, %p130
    %p133 = scmp.ne.s32.totalorder %s118, %s132
    %p134 = scmp.eq.s32.totalorder %s19, 0
    %p135 = por %p133, %p134
    %s136 = ssub.s32 %s13, %s20
    %p137 = scmp.eq.s32.totalorder %s136, 0
    %s139 = sadd.s32 %s138, 1
    %s140 = scalar_select %p137, %s138, %s139
    %p143 = pneg %p137
    %p144 = scmp.eq.s32.totalorder %s13, 1
    %p145 = por %p143, %p144
    %p146 = scmp.ne.s32.totalorder %s138, %s141
    %p147 = scmp.eq.s32.totalorder %s13, 0
    %p148 = por %p146, %p147
    %p149 = scmp.ne.s32.totalorder %s138, %s141
    %p150 = scmp.eq.s32.totalorder %s18, 1
    %p151 = por %p149, %p150
    %p152 = scmp.ne.s32.totalorder %s141, %s142
    %p153 = scmp.eq.s32.totalorder %s18, 0
    %p154 = por %p152, %p153
    %p155 = scmp.ne.s32.totalorder %s141, %s142
    %p156 = scmp.eq.s32.totalorder %s19, 1
    %p157 = por %p155, %p156
    %p159 = scmp.ne.s32.totalorder %s142, %s158
    %p160 = scmp.eq.s32.totalorder %s19, 0
    %p161 = por %p159, %p160
    %s162 = ssub.s32 %s13, %s20
    %p163 = scmp.eq.s32.totalorder %s162, 0
    %s165 = sadd.s32 %s164, 1
    %s166 = scalar_select %p163, %s164, %s165
    %p169 = pneg %p163
    %p170 = scmp.eq.s32.totalorder %s13, 1
    %p171 = por %p169, %p170
    %p172 = scmp.ne.s32.totalorder %s164, %s167
    %p173 = scmp.eq.s32.totalorder %s13, 0
    %p174 = por %p172, %p173
    %p175 = scmp.ne.s32.totalorder %s164, %s167
    %p176 = scmp.eq.s32.totalorder %s18, 1
    %p177 = por %p175, %p176
    %p178 = scmp.ne.s32.totalorder %s167, %s168
    %p179 = scmp.eq.s32.totalorder %s18, 0
    %p180 = por %p178, %p179
    %p181 = scmp.ne.s32.totalorder %s167, %s168
    %p182 = scmp.eq.s32.totalorder %s19, 1
    %p183 = por %p181, %p182
    %p185 = scmp.ne.s32.totalorder %s168, %s184
    %p186 = scmp.eq.s32.totalorder %s19, 0
    %p187 = por %p185, %p186
    %p188 = scmp.le.s32.totalorder 1, %s13
    %p189 = scmp.lt.s32.totalorder %s13, 3
    %p190 = pnand %p188, %p189
    %p191 = pneg %p190
    // Predicated region
    $region9: #{effn_forward.7} parent=5 // pred_check
      _
    $region10: #{effn_forward.7} parent=5 // pred_check_branch
      %193 = sbr.rel (%p190) target = $region12
    $region11: #{effn_forward.7} parent=5 // pred_region
      %s194 = ssub.s32 %s13, 1
      // Predicated region
      $region13: #{effn_forward.7} parent=11 // pred_check
        %p195 = pneg %p86
      $region14: #{effn_forward.7} parent=11 // pred_check_branch
        %197 = sbr.rel (%p195) target = $region16
      $region15: #{effn_forward.7} parent=11 // pred_region
        _
      $region16: #{effn_forward.7} parent=11 // pred_fallthru
        _
      // Predicated region
      $region17: #{effn_forward.7} parent=11 // pred_check
        %p198 = pneg %p107
      $region18: #{effn_forward.7} parent=11 // pred_check_branch
        %200 = sbr.rel (%p198) target = $region20
      $region19: #{effn_forward.7} parent=11 // pred_region
        _
      $region20: #{effn_forward.7} parent=11 // pred_fallthru
        _
      // Predicated region
      $region21: #{effn_forward.7} parent=11 // pred_check
        %p201 = pneg %p128
      $region22: #{effn_forward.7} parent=11 // pred_check_branch
        %203 = sbr.rel (%p201) target = $region24
      $region23: #{effn_forward.7} parent=11 // pred_region
        _
      $region24: #{effn_forward.7} parent=11 // pred_fallthru
        _
    $region12: #{effn_forward.7} parent=5 // pred_fallthru
      _
    %p204 = scmp.lt.s32.totalorder %s13, 2
    // Predicated region
    $region25: #{effn_forward.7} parent=5 // pred_check
      %p205 = pneg %p204
    $region26: #{effn_forward.7} parent=5 // pred_check_branch
      %207 = sbr.rel (%p205) target = $region28
    $region27: #{effn_forward.7} parent=5 // pred_region
      // Predicated region
      $region29: #{effn_forward.7} parent=27 // pred_check
        %p208 = pneg %p33
      $region30: #{effn_forward.7} parent=27 // pred_check_branch
        %210 = sbr.rel (%p208) target = $region32
      $region31: #{effn_forward.7} parent=27 // pred_region
        %s211 = smul.u32 8, %s13
        %p212 = scmp.lt.s32.totalorder %s211, 15
        %s213 = scalar_select %p212, %s211, 15
        %s214 = smul.addr %s213, 8
        %s215 = scalar_lea.vmem %s0, %s214
        %s216 = smul.u32 8, %s13
      $region32: #{effn_forward.7} parent=27 // pred_fallthru
        _
      // Predicated region
      $region33: #{effn_forward.7} parent=27 // pred_check
        %p217 = pneg %p59
      $region34: #{effn_forward.7} parent=27 // pred_check_branch
        %219 = sbr.rel (%p217) target = $region36
      $region35: #{effn_forward.7} parent=27 // pred_region
        %s220 = smul.u32 8, %s13
        %p221 = scmp.lt.s32.totalorder %s220, 15
        %s222 = scalar_select %p221, %s220, 15
        %s223 = smul.addr %s222, 8
        %s224 = scalar_lea.vmem %s1, %s223
        %s225 = smul.u32 8, %s13
      $region36: #{effn_forward.7} parent=27 // pred_fallthru
        _
    $region28: #{effn_forward.7} parent=5 // pred_fallthru
      _
    %p226 = scmp.le.s32.totalorder 1, %s13
    %p227 = scmp.lt.s32.totalorder %s13, 3
    %p228 = pnand %p226, %p227
    %p229 = pneg %p228
    // Predicated region
    $region37: #{effn_forward.7} parent=5 // pred_check
      _
    $region38: #{effn_forward.7} parent=5 // pred_check_branch
      %231 = sbr.rel (%p228) target = $region40
    $region39: #{effn_forward.7} parent=5 // pred_region
      %s232 = ssub.s32 %s13, 1
      %s233 = smul.u32 8, %s18
      %p234 = scmp.lt.s32.totalorder %s233, 15
      %s235 = scalar_select %p234, %s233, 15
      %s236 = smul.addr %s235, 8
      %s237 = scalar_lea.vmem %s0, %s236
      %p238 = pneg %p39
      %p239 = pneg %p36
      %s240 = smul.u32 8, %s18
      %p241 = scmp.lt.s32.totalorder %s240, 15
      %s242 = scalar_select %p241, %s240, 15
      %s243 = smul.addr %s242, 8
      %s244 = scalar_lea.vmem %s1, %s243
      %p245 = pneg %p65
      %p246 = pneg %p62
      %p247 = pneg %p86
      %p248 = pneg %p83
      %p249 = pneg %p107
      %p250 = pneg %p104
      %p251 = pneg %p128
      %p252 = pneg %p125
      %p253 = pneg %p154
      %p254 = pneg %p151
      %s255 = smul.u32 8, %s18
      %p256 = scmp.lt.s32.totalorder %s255, 15
      %s257 = scalar_select %p256, %s255, 15
      %s258 = smul.addr %s257, 8
      %s259 = scalar_lea.vmem %s5, %s258
      %p260 = pneg %p180
      %p261 = pneg %p177
      %s262 = smul.u32 8, %s18
      %p263 = scmp.lt.s32.totalorder %s262, 15
      %s264 = scalar_select %p263, %s262, 15
      %s265 = smul.addr %s264, 8
      %s266 = scalar_lea.vmem %s6, %s265
      %s267 = smul.u32 8, %s18
      %p268 = scmp.lt.s32.totalorder %s267, 15
      %s269 = scalar_select %p268, %s267, 15
      %s270 = smul.addr %s269, 8
      %s271 = scalar_lea.vmem %s0, %s270
      %s272 = smul.u32 8, %s18
      %s273 = smul.u32 8, %s18
      %p274 = scmp.lt.s32.totalorder %s273, 15
      %s275 = scalar_select %p274, %s273, 15
      %s276 = smul.addr %s275, 8
      %s277 = scalar_lea.vmem %s1, %s276
      %s278 = smul.u32 8, %s18
      %s279 = smul.u32 8, %s18
      %p280 = scmp.lt.s32.totalorder %s279, 15
      %s281 = scalar_select %p280, %s279, 15
      %s282 = smul.addr %s281, 8
      %s283 = scalar_lea.vmem %s5, %s282
      %s284 = smul.u32 8, %s18
      %s285 = smul.u32 8, %s18
      %p286 = scmp.lt.s32.totalorder %s285, 15
      %s287 = scalar_select %p286, %s285, 15
      %s288 = smul.addr %s287, 8
      %s289 = scalar_lea.vmem %s6, %s288
      %s290 = smul.u32 8, %s18
      %v291 = vld [vmem:[%s271] sm:$0xff]
      %v292 = vld [vmem:[%s271 + $0x8] sm:$0xff]
      %v293 = vld [vmem:[%s271 + $0x10] sm:$0xff]
      %v294 = vld [vmem:[%s271 + $0x18] sm:$0xff]
      %v295 = vld [vmem:[%s271 + $0x20] sm:$0xff]
      %v296 = vld [vmem:[%s271 + $0x28] sm:$0xff]
      %v297 = vld [vmem:[%s271 + $0x30] sm:$0xff]
      %v298 = vld [vmem:[%s271 + $0x38] sm:$0xff]
      %v299 = vld [vmem:[%s2] sm:$0xff]
      %v300 = vld [vmem:[%s2 + $0x8] sm:$0xff]
      %v301 = vld [vmem:[%s2 + $0x10] sm:$0xff]
      %v302 = vld [vmem:[%s2 + $0x18] sm:$0xff]
      %v303 = vld [vmem:[%s2 + $0x20] sm:$0xff]
      %v304 = vld [vmem:[%s2 + $0x28] sm:$0xff]
      %v305 = vld [vmem:[%s2 + $0x30] sm:$0xff]
      %v306 = vld [vmem:[%s2 + $0x38] sm:$0xff]
      %v307 = vld [vmem:[%s2 + $0x40] sm:$0xff]
      %v308 = vld [vmem:[%s2 + $0x48] sm:$0xff]
      %v309 = vld [vmem:[%s2 + $0x50] sm:$0xff]
      %v310 = vld [vmem:[%s2 + $0x58] sm:$0xff]
      %v311 = vld [vmem:[%s2 + $0x60] sm:$0xff]
      %v312 = vld [vmem:[%s2 + $0x68] sm:$0xff]
      %v313 = vld [vmem:[%s2 + $0x70] sm:$0xff]
      %v314 = vld [vmem:[%s2 + $0x78] sm:$0xff]
      %315 = vmatpush.msra.mxu0 %v314
      %316 = vmatpush.msra.mxu0 %v313
      %317 = vmatpush.msra.mxu0 %v312
      %318 = vmatpush.msra.mxu0 %v311
      %319 = vmatpush.msra.mxu0 %v310
      %320 = vmatpush.msra.mxu0 %v309
      %321 = vmatpush.msra.mxu0 %v308
      %322 = vmatpush.msra.mxu0 %v307
      %323 = vmatpush.msra.mxu0 %v306
      %324 = vmatpush.msra.mxu0 %v305
      %325 = vmatpush.msra.mxu0 %v304
      %326 = vmatpush.msra.mxu0 %v303
      %327 = vmatpush.msra.mxu0 %v302
      %328 = vmatpush.msra.mxu0 %v301
      %329 = vmatpush.msra.mxu0 %v300
      %330 = vmatpush.msra.mxu0 %v299
      %331 = vmatmul.f32.gmra.mxu0 %v291
      %v332 = vpop.f32.mrf.mxu0
      %v333 = vadd.f32 0.0, %v332
      %334 = vmatmul.f32.gmra.mxu0 %v292
      %v335 = vpop.f32.mrf.mxu0
      %v336 = vadd.f32 0.0, %v335
      %337 = vmatmul.f32.gmra.mxu0 %v293
      %v338 = vpop.f32.mrf.mxu0
      %v339 = vadd.f32 0.0, %v338
      %340 = vmatmul.f32.gmra.mxu0 %v294
      %v341 = vpop.f32.mrf.mxu0
      %v342 = vadd.f32 0.0, %v341
      %343 = vmatmul.f32.gmra.mxu0 %v295
      %v344 = vpop.f32.mrf.mxu0
      %v345 = vadd.f32 0.0, %v344
      %346 = vmatmul.f32.gmra.mxu0 %v296
      %v347 = vpop.f32.mrf.mxu0
      %v348 = vadd.f32 0.0, %v347
      %349 = vmatmul.f32.gmra.mxu0 %v297
      %v350 = vpop.f32.mrf.mxu0
      %v351 = vadd.f32 0.0, %v350
      %352 = vmatmul.f32.gmra.mxu0 %v298
      %v353 = vpop.f32.mrf.mxu0
      %v354 = vadd.f32 0.0, %v353
      %355 = vdwg.mxu0
      %v356 = vmax.f32 %v333, 0.0
      %v357 = vmax.f32 %v336, 0.0
      %v358 = vmax.f32 %v339, 0.0
      %v359 = vmax.f32 %v342, 0.0
      %v360 = vmax.f32 %v345, 0.0
      %v361 = vmax.f32 %v348, 0.0
      %v362 = vmax.f32 %v351, 0.0
      %v363 = vmax.f32 %v354, 0.0
      %v364 = vld [vmem:[%s3] sm:$0xff]
      %v365 = vld [vmem:[%s4] sm:$0x1]
      %v367 = vperm.slane %v365, 0
      %vm369 = vcmask 64512
      %v371 = vsel %vm369, %v356, 0
      %v374 = vsel %vm369, %v357, 0
      %v377 = vsel %vm369, %v358, 0
      %v380 = vsel %vm369, %v359, 0
      %v383 = vsel %vm369, %v360, 0
      %v386 = vsel %vm369, %v361, 0
      %v389 = vsel %vm369, %v362, 0
      %v392 = vsel %vm369, %v363, 0
      %394 = vmatpush.msra.mxu0 0.0
      %395 = vmatpush.msra.mxu0 0.0
      %396 = vmatpush.msra.mxu0 0.0
      %397 = vmatpush.msra.mxu0 0.0
      %398 = vmatpush.msra.mxu0 0.0
      %399 = vmatpush.msra.mxu0 0.0
      %400 = vmatpush.msra.mxu0 0.0
      %401 = vmatpush.msra.mxu0 0.0
      %402 = vmatpush.msra.mxu0 0.0
      %403 = vmatpush.msra.mxu0 0.0
      %404 = vmatpush.msra.mxu0 0.0
      %405 = vmatpush.msra.mxu0 0.0
      %406 = vmatpush.msra.mxu0 0.0
      %407 = vmatpush.msra.mxu0 0.0
      %408 = vmatpush.msra.mxu0 0.0
      %409 = vmatpush.msra.mxu0 %v364
      %410 = vmatmul.f32.gmra.mxu0 %v371
      %v411 = vpop.f32.mrf.mxu0
      %v412 = vadd.f32 %v367, %v411
      %413 = vmatmul.f32.gmra.mxu0 %v374
      %v414 = vpop.f32.mrf.mxu0
      %v415 = vadd.f32 %v367, %v414
      %416 = vmatmul.f32.gmra.mxu0 %v377
      %v417 = vpop.f32.mrf.mxu0
      %v418 = vadd.f32 %v367, %v417
      %419 = vmatmul.f32.gmra.mxu0 %v380
      %v420 = vpop.f32.mrf.mxu0
      %v421 = vadd.f32 %v367, %v420
      %422 = vmatmul.f32.gmra.mxu0 %v383
      %v423 = vpop.f32.mrf.mxu0
      %v424 = vadd.f32 %v367, %v423
      %425 = vmatmul.f32.gmra.mxu0 %v386
      %v426 = vpop.f32.mrf.mxu0
      %v427 = vadd.f32 %v367, %v426
      %428 = vmatmul.f32.gmra.mxu0 %v389
      %v429 = vpop.f32.mrf.mxu0
      %v430 = vadd.f32 %v367, %v429
      %431 = vmatmul.f32.gmra.mxu0 %v392
      %v432 = vpop.f32.mrf.mxu0
      %v433 = vadd.f32 %v367, %v432
      %434 = vdwg.mxu0
      %v435 = vxor.u32 %v412, 2147483648
      %v436 = vxor.u32 %v415, 2147483648
      %v437 = vxor.u32 %v418, 2147483648
      %v438 = vxor.u32 %v421, 2147483648
      %v439 = vxor.u32 %v424, 2147483648
      %v440 = vxor.u32 %v427, 2147483648
      %v441 = vxor.u32 %v430, 2147483648
      %v442 = vxor.u32 %v433, 2147483648
      %v443 = vmul.f32 %v435, 1.442695
      %v444 = vpow.pop %v443
      %v445 = vmul.f32 %v436, 1.442695
      %v446 = vpow.pop %v445
      %v447 = vmul.f32 %v437, 1.442695
      %v448 = vpow.pop %v447
      %v449 = vmul.f32 %v438, 1.442695
      %v450 = vpow.pop %v449
      %v451 = vmul.f32 %v439, 1.442695
      %v452 = vpow.pop %v451
      %v453 = vmul.f32 %v440, 1.442695
      %v454 = vpow.pop %v453
      %v455 = vmul.f32 %v441, 1.442695
      %v456 = vpow.pop %v455
      %v457 = vmul.f32 %v442, 1.442695
      %v458 = vpow.pop %v457
      %v459 = vadd.f32 %v444, 1.0
      %v460 = vadd.f32 %v446, 1.0
      %v461 = vadd.f32 %v448, 1.0
      %v462 = vadd.f32 %v450, 1.0
      %v463 = vadd.f32 %v452, 1.0
      %v464 = vadd.f32 %v454, 1.0
      %v465 = vadd.f32 %v456, 1.0
      %v466 = vadd.f32 %v458, 1.0
      %v467 = vrcp.pop %v459
      %v468 = vmul.f32 %v459, %v467
      %v469 = vsub.f32 1.0, %v468
      %v470 = vmul.f32 %v467, %v469
      %v471 = vadd.f32 %v467, %v470
      %vm472 = vweird.f32 %v459
      %vm473 = vweird.f32 %v467
      %vm474 = vmor %vm472, %vm473
      %v475 = vsel %vm474, %v467, %v471
      %v476 = vand.u32 2147483647, %v459
      %vm477 = vcmp.eq.f32.partialorder %v476, 8.507059e+37
      %v478 = vand.u32 %v459, 2147483648
      %v479 = vor.u32 1.1754944e-38, %v478
      %v480 = vsel %vm477, %v479, %v475
      %v481 = vmul.f32 1.0, %v480
      %v482 = vrcp.pop %v460
      %v483 = vmul.f32 %v460, %v482
      %v484 = vsub.f32 1.0, %v483
      %v485 = vmul.f32 %v482, %v484
      %v486 = vadd.f32 %v482, %v485
      %vm487 = vweird.f32 %v460
      %vm488 = vweird.f32 %v482
      %vm489 = vmor %vm487, %vm488
      %v490 = vsel %vm489, %v482, %v486
      %v491 = vand.u32 2147483647, %v460
      %vm492 = vcmp.eq.f32.partialorder %v491, 8.507059e+37
      %v493 = vand.u32 %v460, 2147483648
      %v494 = vor.u32 1.1754944e-38, %v493
      %v495 = vsel %vm492, %v494, %v490
      %v496 = vmul.f32 1.0, %v495
      %v497 = vrcp.pop %v461
      %v498 = vmul.f32 %v461, %v497
      %v499 = vsub.f32 1.0, %v498
      %v500 = vmul.f32 %v497, %v499
      %v501 = vadd.f32 %v497, %v500
      %vm502 = vweird.f32 %v461
      %vm503 = vweird.f32 %v497
      %vm504 = vmor %vm502, %vm503
      %v505 = vsel %vm504, %v497, %v501
      %v506 = vand.u32 2147483647, %v461
      %vm507 = vcmp.eq.f32.partialorder %v506, 8.507059e+37
      %v508 = vand.u32 %v461, 2147483648
      %v509 = vor.u32 1.1754944e-38, %v508
      %v510 = vsel %vm507, %v509, %v505
      %v511 = vmul.f32 1.0, %v510
      %v512 = vrcp.pop %v462
      %v513 = vmul.f32 %v462, %v512
      %v514 = vsub.f32 1.0, %v513
      %v515 = vmul.f32 %v512, %v514
      %v516 = vadd.f32 %v512, %v515
      %vm517 = vweird.f32 %v462
      %vm518 = vweird.f32 %v512
      %vm519 = vmor %vm517, %vm518
      %v520 = vsel %vm519, %v512, %v516
      %v521 = vand.u32 2147483647, %v462
      %vm522 = vcmp.eq.f32.partialorder %v521, 8.507059e+37
      %v523 = vand.u32 %v462, 2147483648
      %v524 = vor.u32 1.1754944e-38, %v523
      %v525 = vsel %vm522, %v524, %v520
      %v526 = vmul.f32 1.0, %v525
      %v527 = vrcp.pop %v463
      %v528 = vmul.f32 %v463, %v527
      %v529 = vsub.f32 1.0, %v528
      %v530 = vmul.f32 %v527, %v529
      %v531 = vadd.f32 %v527, %v530
      %vm532 = vweird.f32 %v463
      %vm533 = vweird.f32 %v527
      %vm534 = vmor %vm532, %vm533
      %v535 = vsel %vm534, %v527, %v531
      %v536 = vand.u32 2147483647, %v463
      %vm537 = vcmp.eq.f32.partialorder %v536, 8.507059e+37
      %v538 = vand.u32 %v463, 2147483648
      %v539 = vor.u32 1.1754944e-38, %v538
      %v540 = vsel %vm537, %v539, %v535
      %v541 = vmul.f32 1.0, %v540
      %v542 = vrcp.pop %v464
      %v543 = vmul.f32 %v464, %v542
      %v544 = vsub.f32 1.0, %v543
      %v545 = vmul.f32 %v542, %v544
      %v546 = vadd.f32 %v542, %v545
      %vm547 = vweird.f32 %v464
      %vm548 = vweird.f32 %v542
      %vm549 = vmor %vm547, %vm548
      %v550 = vsel %vm549, %v542, %v546
      %v551 = vand.u32 2147483647, %v464
      %vm552 = vcmp.eq.f32.partialorder %v551, 8.507059e+37
      %v553 = vand.u32 %v464, 2147483648
      %v554 = vor.u32 1.1754944e-38, %v553
      %v555 = vsel %vm552, %v554, %v550
      %v556 = vmul.f32 1.0, %v555
      %v557 = vrcp.pop %v465
      %v558 = vmul.f32 %v465, %v557
      %v559 = vsub.f32 1.0, %v558
      %v560 = vmul.f32 %v557, %v559
      %v561 = vadd.f32 %v557, %v560
      %vm562 = vweird.f32 %v465
      %vm563 = vweird.f32 %v557
      %vm564 = vmor %vm562, %vm563
      %v565 = vsel %vm564, %v557, %v561
      %v566 = vand.u32 2147483647, %v465
      %vm567 = vcmp.eq.f32.partialorder %v566, 8.507059e+37
      %v568 = vand.u32 %v465, 2147483648
      %v569 = vor.u32 1.1754944e-38, %v568
      %v570 = vsel %vm567, %v569, %v565
      %v571 = vmul.f32 1.0, %v570
      %v572 = vrcp.pop %v466
      %v573 = vmul.f32 %v466, %v572
      %v574 = vsub.f32 1.0, %v573
      %v575 = vmul.f32 %v572, %v574
      %v576 = vadd.f32 %v572, %v575
      %vm577 = vweird.f32 %v466
      %vm578 = vweird.f32 %v572
      %vm579 = vmor %vm577, %vm578
      %v580 = vsel %vm579, %v572, %v576
      %v581 = vand.u32 2147483647, %v466
      %vm582 = vcmp.eq.f32.partialorder %v581, 8.507059e+37
      %v583 = vand.u32 %v466, 2147483648
      %v584 = vor.u32 1.1754944e-38, %v583
      %v585 = vsel %vm582, %v584, %v580
      %v586 = vmul.f32 1.0, %v585
      %v587 = vmul.f32 %v481, %v291
      %v588 = vmul.f32 %v496, %v292
      %v589 = vmul.f32 %v511, %v293
      %v590 = vmul.f32 %v526, %v294
      %v591 = vmul.f32 %v541, %v295
      %v592 = vmul.f32 %v556, %v296
      %v593 = vmul.f32 %v571, %v297
      %v594 = vmul.f32 %v586, %v298
      %595 = vst [vmem:[%s283] sm:$0xff] %v587
      %596 = vst [vmem:[%s283 + $0x8] sm:$0xff] %v588
      %597 = vst [vmem:[%s283 + $0x10] sm:$0xff] %v589
      %598 = vst [vmem:[%s283 + $0x18] sm:$0xff] %v590
      %599 = vst [vmem:[%s283 + $0x20] sm:$0xff] %v591
      %600 = vst [vmem:[%s283 + $0x28] sm:$0xff] %v592
      %601 = vst [vmem:[%s283 + $0x30] sm:$0xff] %v593
      %602 = vst [vmem:[%s283 + $0x38] sm:$0xff] %v594
      %v603 = vld [vmem:[%s277] sm:$0xff]
      %v604 = vld [vmem:[%s277 + $0x8] sm:$0xff]
      %v605 = vld [vmem:[%s277 + $0x10] sm:$0xff]
      %v606 = vld [vmem:[%s277 + $0x18] sm:$0xff]
      %v607 = vld [vmem:[%s277 + $0x20] sm:$0xff]
      %v608 = vld [vmem:[%s277 + $0x28] sm:$0xff]
      %v609 = vld [vmem:[%s277 + $0x30] sm:$0xff]
      %v610 = vld [vmem:[%s277 + $0x38] sm:$0xff]
      %v611 = vmul.f32 %v481, %v603
      %v612 = vmul.f32 %v496, %v604
      %v613 = vmul.f32 %v511, %v605
      %v614 = vmul.f32 %v526, %v606
      %v615 = vmul.f32 %v541, %v607
      %v616 = vmul.f32 %v556, %v608
      %v617 = vmul.f32 %v571, %v609
      %v618 = vmul.f32 %v586, %v610
      %619 = vst [vmem:[%s289] sm:$0xff] %v611
      %620 = vst [vmem:[%s289 + $0x8] sm:$0xff] %v612
      %621 = vst [vmem:[%s289 + $0x10] sm:$0xff] %v613
      %622 = vst [vmem:[%s289 + $0x18] sm:$0xff] %v614
      %623 = vst [vmem:[%s289 + $0x20] sm:$0xff] %v615
      %624 = vst [vmem:[%s289 + $0x28] sm:$0xff] %v616
      %625 = vst [vmem:[%s289 + $0x30] sm:$0xff] %v617
      %626 = vst [vmem:[%s289 + $0x38] sm:$0xff] %v618
      %s627 = smul.u32 8, %s18
      %p628 = scmp.lt.s32.totalorder %s627, 15
      %s629 = scalar_select %p628, %s627, 15
      %s630 = smul.addr %s629, 8
      %s631 = scalar_lea.vmem %s5, %s630
      %s632 = smul.u32 8, %s18
      %p633 = scmp.lt.s32.totalorder %s632, 15
      %s634 = scalar_select %p633, %s632, 15
      %s635 = smul.addr %s634, 8
      %s636 = scalar_lea.vmem %s6, %s635
      // Predicated region
      $region41: #{effn_forward.7} parent=39 // pred_check
        %p637 = pneg %p151
      $region42: #{effn_forward.7} parent=39 // pred_check_branch
        %639 = sbr.rel (%p637) target = $region44
      $region43: #{effn_forward.7} parent=39 // pred_region
        %s640 = smul.u32 8, %s18
      $region44: #{effn_forward.7} parent=39 // pred_fallthru
        _
      // Predicated region
      $region45: #{effn_forward.7} parent=39 // pred_check
        %p641 = pneg %p177
      $region46: #{effn_forward.7} parent=39 // pred_check_branch
        %643 = sbr.rel (%p641) target = $region48
      $region47: #{effn_forward.7} parent=39 // pred_region
        %s644 = smul.u32 8, %s18
      $region48: #{effn_forward.7} parent=39 // pred_fallthru
        _
    $region40: #{effn_forward.7} parent=5 // pred_fallthru
      _
    %p645 = scmp.le.s32.totalorder 2, %s13
    // Predicated region
    $region49: #{effn_forward.7} parent=5 // pred_check
      %p646 = pneg %p645
    $region50: #{effn_forward.7} parent=5 // pred_check_branch
      %648 = sbr.rel (%p646) target = $region52
    $region51: #{effn_forward.7} parent=5 // pred_region
      %s649 = ssub.s32 %s13, 2
      // Predicated region
      $region53: #{effn_forward.7} parent=51 // pred_check
        %p650 = pneg %p157
      $region54: #{effn_forward.7} parent=51 // pred_check_branch
        %652 = sbr.rel (%p650) target = $region56
      $region55: #{effn_forward.7} parent=51 // pred_region
        %s653 = smul.u32 8, %s19
        %p654 = scmp.lt.s32.totalorder %s653, 15
        %s655 = scalar_select %p654, %s653, 15
        %s656 = smul.addr %s655, 8
        %s657 = scalar_lea.vmem %s5, %s656
      $region56: #{effn_forward.7} parent=51 // pred_fallthru
        _
      // Predicated region
      $region57: #{effn_forward.7} parent=51 // pred_check
        %p658 = pneg %p183
      $region58: #{effn_forward.7} parent=51 // pred_check_branch
        %660 = sbr.rel (%p658) target = $region60
      $region59: #{effn_forward.7} parent=51 // pred_region
        %s661 = smul.u32 8, %s19
        %p662 = scmp.lt.s32.totalorder %s661, 15
        %s663 = scalar_select %p662, %s661, 15
        %s664 = smul.addr %s663, 8
        %s665 = scalar_lea.vmem %s6, %s664
      $region60: #{effn_forward.7} parent=51 // pred_fallthru
        _
    $region52: #{effn_forward.7} parent=5 // pred_fallthru
      _
  $region6: #{effn_forward.7} parent=0 // loop_footer
    %s17 = sadd.s32 1, %s13
  $region7: #{effn_forward.7} parent=0 // loop_footer_branch
    %12 = sbr.rel target = $region3
  $region8: #{effn_forward.7} parent=0 // loop_exit
    _

// kernel: effn_forward.8
$region0: #{effn_forward.8}
  #allocation0 [shape = 'u32[]', space=smem, size = 0x4, offset = 0x4, fixed_abs, tag = 'smem constant byte address 0x4 - core index']
  #allocation1 [shape = 'u32[72,128]{1,0:T(1,128)}', space=vmem, size = 0x9000, scoped, tag = 'internal scratch']
  %s0 = inlined_call_operand.vmem [shape: f32[32,512], index: 0, kind: input, shape index: {}]
  %s1 = inlined_call_operand.vmem [shape: f32[32,512], index: 1, kind: input, shape index: {}]
  %s2 = inlined_call_operand.vmem [shape: f32[32,512], index: 2, kind: output, shape index: {}]
  %s3 = sld [smem:[#allocation0]]
  $region41: #{effn_forward.8} parent=0
    _
  %s5 = ssub.s32 1, %s3
  %s6 = scalar_select 0, %s5, %s3
  loop: start=0, step=1, limit=4
  $region2: #{effn_forward.8} parent=0 // loop_pre_header
    _
  $region3: #{effn_forward.8} parent=0 // loop_header
    %s8 = sphi 0, %s12
    %p9 = scmp.ge.s32.totalorder %s8, 4
    %s18 = sphi 0, %s20
    %s21 = sphi 0, %s18
    %s22 = sphi 0, %s21
    %s38 = sphi 0, %s22
    %s44 = sphi 0, %s46
    %s47 = sphi 0, %s44
    %s48 = sphi 0, %s47
    %s64 = sphi 0, %s48
    %s70 = sphi 0, %s72
    %s73 = sphi 0, %s70
    %s74 = sphi 0, %s73
    %s90 = sphi 0, %s74
  $region4: #{effn_forward.8} parent=0 // loop_header_branch
    %11 = sbr.rel (%p9) target = $region8
  $region5: #{effn_forward.8} parent=0 // loop_body
    %s13 = ssub.s32 %s8, 1
    %s14 = ssub.s32 %s8, 2
    %s15 = sadd.s32 %s8, 1
    %s16 = ssub.s32 %s8, %s15
    %p17 = scmp.eq.s32.totalorder %s16, 0
    %s19 = sadd.s32 %s18, 1
    %s20 = scalar_select %p17, %s18, %s19
    %p23 = pneg %p17
    %p24 = scmp.eq.s32.totalorder %s8, 1
    %p25 = por %p23, %p24
    %p26 = scmp.ne.s32.totalorder %s18, %s21
    %p27 = scmp.eq.s32.totalorder %s8, 0
    %p28 = por %p26, %p27
    %p29 = scmp.ne.s32.totalorder %s18, %s21
    %p30 = scmp.eq.s32.totalorder %s13, 1
    %p31 = por %p29, %p30
    %p32 = scmp.ne.s32.totalorder %s21, %s22
    %p33 = scmp.eq.s32.totalorder %s13, 0
    %p34 = por %p32, %p33
    %p35 = scmp.ne.s32.totalorder %s21, %s22
    %p36 = scmp.eq.s32.totalorder %s14, 1
    %p37 = por %p35, %p36
    %p39 = scmp.ne.s32.totalorder %s22, %s38
    %p40 = scmp.eq.s32.totalorder %s14, 0
    %p41 = por %p39, %p40
    %s42 = ssub.s32 %s8, %s15
    %p43 = scmp.eq.s32.totalorder %s42, 0
    %s45 = sadd.s32 %s44, 1
    %s46 = scalar_select %p43, %s44, %s45
    %p49 = pneg %p43
    %p50 = scmp.eq.s32.totalorder %s8, 1
    %p51 = por %p49, %p50
    %p52 = scmp.ne.s32.totalorder %s44, %s47
    %p53 = scmp.eq.s32.totalorder %s8, 0
    %p54 = por %p52, %p53
    %p55 = scmp.ne.s32.totalorder %s44, %s47
    %p56 = scmp.eq.s32.totalorder %s13, 1
    %p57 = por %p55, %p56
    %p58 = scmp.ne.s32.totalorder %s47, %s48
    %p59 = scmp.eq.s32.totalorder %s13, 0
    %p60 = por %p58, %p59
    %p61 = scmp.ne.s32.totalorder %s47, %s48
    %p62 = scmp.eq.s32.totalorder %s14, 1
    %p63 = por %p61, %p62
    %p65 = scmp.ne.s32.totalorder %s48, %s64
    %p66 = scmp.eq.s32.totalorder %s14, 0
    %p67 = por %p65, %p66
    %s68 = ssub.s32 %s8, %s15
    %p69 = scmp.eq.s32.totalorder %s68, 0
    %s71 = sadd.s32 %s70, 1
    %s72 = scalar_select %p69, %s70, %s71
    %p75 = pneg %p69
    %p76 = scmp.eq.s32.totalorder %s8, 1
    %p77 = por %p75, %p76
    %p78 = scmp.ne.s32.totalorder %s70, %s73
    %p79 = scmp.eq.s32.totalorder %s8, 0
    %p80 = por %p78, %p79
    %p81 = scmp.ne.s32.totalorder %s70, %s73
    %p82 = scmp.eq.s32.totalorder %s13, 1
    %p83 = por %p81, %p82
    %p84 = scmp.ne.s32.totalorder %s73, %s74
    %p85 = scmp.eq.s32.totalorder %s13, 0
    %p86 = por %p84, %p85
    %p87 = scmp.ne.s32.totalorder %s73, %s74
    %p88 = scmp.eq.s32.totalorder %s14, 1
    %p89 = por %p87, %p88
    %p91 = scmp.ne.s32.totalorder %s74, %s90
    %p92 = scmp.eq.s32.totalorder %s14, 0
    %p93 = por %p91, %p92
    %p94 = scmp.le.s32.totalorder 1, %s8
    %p95 = scmp.lt.s32.totalorder %s8, 3
    %p96 = pnand %p94, %p95
    %p97 = pneg %p96
    // Predicated region
    $region9: #{effn_forward.8} parent=5 // pred_check
      _
    $region10: #{effn_forward.8} parent=5 // pred_check_branch
      %99 = sbr.rel (%p96) target = $region12
    $region11: #{effn_forward.8} parent=5 // pred_region
      %s100 = ssub.s32 %s8, 1
    $region12: #{effn_forward.8} parent=5 // pred_fallthru
      _
    %p101 = scmp.lt.s32.totalorder %s8, 2
    // Predicated region
    $region13: #{effn_forward.8} parent=5 // pred_check
      %p102 = pneg %p101
    $region14: #{effn_forward.8} parent=5 // pred_check_branch
      %104 = sbr.rel (%p102) target = $region16
    $region15: #{effn_forward.8} parent=5 // pred_region
      // Predicated region
      $region17: #{effn_forward.8} parent=15 // pred_check
        %p105 = pneg %p28
      $region18: #{effn_forward.8} parent=15 // pred_check_branch
        %107 = sbr.rel (%p105) target = $region20
      $region19: #{effn_forward.8} parent=15 // pred_region
        %s108 = smul.u32 2, %s8
        %p109 = scmp.lt.s32.totalorder %s108, 3
        %s110 = scalar_select %p109, %s108, 3
        %s111 = smul.addr %s110, 4
        %s112 = smul.addr %s111, 8
        %s113 = scalar_lea.vmem %s0, %s112
        %s114 = smul.u32 2, %s8
      $region20: #{effn_forward.8} parent=15 // pred_fallthru
        _
      // Predicated region
      $region21: #{effn_forward.8} parent=15 // pred_check
        %p115 = pneg %p54
      $region22: #{effn_forward.8} parent=15 // pred_check_branch
        %117 = sbr.rel (%p115) target = $region24
      $region23: #{effn_forward.8} parent=15 // pred_region
        %s118 = smul.u32 2, %s8
        %p119 = scmp.lt.s32.totalorder %s118, 3
        %s120 = scalar_select %p119, %s118, 3
        %s121 = smul.addr %s120, 4
        %s122 = smul.addr %s121, 8
        %s123 = scalar_lea.vmem %s1, %s122
        %s124 = smul.u32 2, %s8
      $region24: #{effn_forward.8} parent=15 // pred_fallthru
        _
    $region16: #{effn_forward.8} parent=5 // pred_fallthru
      _
    %p125 = scmp.le.s32.totalorder 1, %s8
    %p126 = scmp.lt.s32.totalorder %s8, 3
    %p127 = pnand %p125, %p126
    %p128 = pneg %p127
    // Predicated region
    $region25: #{effn_forward.8} parent=5 // pred_check
      _
    $region26: #{effn_forward.8} parent=5 // pred_check_branch
      %130 = sbr.rel (%p127) target = $region28
    $region27: #{effn_forward.8} parent=5 // pred_region
      %s131 = ssub.s32 %s8, 1
      %s132 = smul.u32 2, %s13
      %p133 = scmp.lt.s32.totalorder %s132, 3
      %s134 = scalar_select %p133, %s132, 3
      %s135 = smul.addr %s134, 4
      %s136 = smul.addr %s135, 8
      %s137 = scalar_lea.vmem %s0, %s136
      %p138 = pneg %p34
      %p139 = pneg %p31
      %s140 = smul.u32 2, %s13
      %p141 = scmp.lt.s32.totalorder %s140, 3
      %s142 = scalar_select %p141, %s140, 3
      %s143 = smul.addr %s142, 4
      %s144 = smul.addr %s143, 8
      %s145 = scalar_lea.vmem %s1, %s144
      %p146 = pneg %p60
      %p147 = pneg %p57
      %p148 = pneg %p86
      %p149 = pneg %p83
      %s150 = smul.u32 2, %s13
      %p151 = scmp.lt.s32.totalorder %s150, 3
      %s152 = scalar_select %p151, %s150, 3
      %s153 = smul.addr %s152, 4
      %s154 = smul.addr %s153, 8
      %s155 = scalar_lea.vmem %s2, %s154
      %s156 = smul.u32 2, %s13
      %p157 = scmp.lt.s32.totalorder %s156, 3
      %s158 = scalar_select %p157, %s156, 3
      %s159 = smul.addr %s158, 4
      %s160 = smul.addr %s159, 8
      %s161 = scalar_lea.vmem %s0, %s160
      %s162 = smul.u32 2, %s13
      %s163 = smul.u32 2, %s13
      %p164 = scmp.lt.s32.totalorder %s163, 3
      %s165 = scalar_select %p164, %s163, 3
      %s166 = smul.addr %s165, 4
      %s167 = smul.addr %s166, 8
      %s168 = scalar_lea.vmem %s1, %s167
      %s169 = smul.u32 2, %s13
      %s170 = smul.u32 2, %s13
      %p171 = scmp.lt.s32.totalorder %s170, 3
      %s172 = scalar_select %p171, %s170, 3
      %s173 = smul.addr %s172, 4
      %s174 = smul.addr %s173, 8
      %s175 = scalar_lea.vmem %s2, %s174
      %s176 = smul.u32 2, %s13
      %v177 = vld [vmem:[%s161] sm:$0xff]
      %v178 = vld [vmem:[%s161 + $0x8] sm:$0xff]
      %v179 = vld [vmem:[%s161 + $0x10] sm:$0xff]
      %v180 = vld [vmem:[%s161 + $0x18] sm:$0xff]
      %v181 = vld [vmem:[%s161 + $0x20] sm:$0xff]
      %v182 = vld [vmem:[%s161 + $0x28] sm:$0xff]
      %v183 = vld [vmem:[%s161 + $0x30] sm:$0xff]
      %v184 = vld [vmem:[%s161 + $0x38] sm:$0xff]
      %v185 = vld [vmem:[%s168] sm:$0xff]
      %v186 = vld [vmem:[%s168 + $0x8] sm:$0xff]
      %v187 = vld [vmem:[%s168 + $0x10] sm:$0xff]
      %v188 = vld [vmem:[%s168 + $0x18] sm:$0xff]
      %v189 = vld [vmem:[%s168 + $0x20] sm:$0xff]
      %v190 = vld [vmem:[%s168 + $0x28] sm:$0xff]
      %v191 = vld [vmem:[%s168 + $0x30] sm:$0xff]
      %v192 = vld [vmem:[%s168 + $0x38] sm:$0xff]
      %v193 = vmul.f32 %v177, %v177
      %v194 = vmul.f32 %v178, %v178
      %v195 = vmul.f32 %v179, %v179
      %v196 = vmul.f32 %v180, %v180
      %v197 = vmul.f32 %v181, %v181
      %v198 = vmul.f32 %v182, %v182
      %v199 = vmul.f32 %v183, %v183
      %v200 = vmul.f32 %v184, %v184
      %v201 = vmul.f32 %v185, %v185
      %v202 = vmul.f32 %v186, %v186
      %v203 = vmul.f32 %v187, %v187
      %v204 = vmul.f32 %v188, %v188
      %v205 = vmul.f32 %v189, %v189
      %v206 = vmul.f32 %v190, %v190
      %v207 = vmul.f32 %v191, %v191
      %v208 = vmul.f32 %v192, %v192
      %v209 = vadd.f32 %v193, %v201
      %v210 = vadd.f32 %v194, %v202
      %v211 = vadd.f32 %v195, %v203
      %v212 = vadd.f32 %v196, %v204
      %v213 = vadd.f32 %v197, %v205
      %v214 = vadd.f32 %v198, %v206
      %v215 = vadd.f32 %v199, %v207
      %v216 = vadd.f32 %v200, %v208
      %v217 = vrsqrt.pop %v209
      %v218 = vmul.f32 %v217, %v209
      %v219 = vmul.f32 %v218, %v217
      %v220 = vmul.f32 0.5, %v219
      %v221 = vsub.f32 1.5, %v220
      %v222 = vmul.f32 %v217, %v221
      %v223 = vmul.f32 %v209, %v222
      %vm224 = vcmp.eq.f32.partialorder %v209, inf
      %v225 = vsel %vm224, %v209, %v223
      %vm226 = vcmp.eq.f32.partialorder %v209, 0.0
      %v227 = vand.u32 %v209, 2147483648
      %v228 = vsel %vm226, %v227, %v225
      %v229 = vrsqrt.pop %v210
      %v230 = vmul.f32 %v229, %v210
      %v231 = vmul.f32 %v230, %v229
      %v232 = vmul.f32 0.5, %v231
      %v233 = vsub.f32 1.5, %v232
      %v234 = vmul.f32 %v229, %v233
      %v235 = vmul.f32 %v210, %v234
      %vm236 = vcmp.eq.f32.partialorder %v210, inf
      %v237 = vsel %vm236, %v210, %v235
      %vm238 = vcmp.eq.f32.partialorder %v210, 0.0
      %v239 = vand.u32 %v210, 2147483648
      %v240 = vsel %vm238, %v239, %v237
      %v241 = vrsqrt.pop %v211
      %v242 = vmul.f32 %v241, %v211
      %v243 = vmul.f32 %v242, %v241
      %v244 = vmul.f32 0.5, %v243
      %v245 = vsub.f32 1.5, %v244
      %v246 = vmul.f32 %v241, %v245
      %v247 = vmul.f32 %v211, %v246
      %vm248 = vcmp.eq.f32.partialorder %v211, inf
      %v249 = vsel %vm248, %v211, %v247
      %vm250 = vcmp.eq.f32.partialorder %v211, 0.0
      %v251 = vand.u32 %v211, 2147483648
      %v252 = vsel %vm250, %v251, %v249
      %v253 = vrsqrt.pop %v212
      %v254 = vmul.f32 %v253, %v212
      %v255 = vmul.f32 %v254, %v253
      %v256 = vmul.f32 0.5, %v255
      %v257 = vsub.f32 1.5, %v256
      %v258 = vmul.f32 %v253, %v257
      %v259 = vmul.f32 %v212, %v258
      %vm260 = vcmp.eq.f32.partialorder %v212, inf
      %v261 = vsel %vm260, %v212, %v259
      %vm262 = vcmp.eq.f32.partialorder %v212, 0.0
      %v263 = vand.u32 %v212, 2147483648
      %v264 = vsel %vm262, %v263, %v261
      %v265 = vrsqrt.pop %v213
      %v266 = vmul.f32 %v265, %v213
      %v267 = vmul.f32 %v266, %v265
      %v268 = vmul.f32 0.5, %v267
      %v269 = vsub.f32 1.5, %v268
      %v270 = vmul.f32 %v265, %v269
      %v271 = vmul.f32 %v213, %v270
      %vm272 = vcmp.eq.f32.partialorder %v213, inf
      %v273 = vsel %vm272, %v213, %v271
      %vm274 = vcmp.eq.f32.partialorder %v213, 0.0
      %v275 = vand.u32 %v213, 2147483648
      %v276 = vsel %vm274, %v275, %v273
      %v277 = vrsqrt.pop %v214
      %v278 = vmul.f32 %v277, %v214
      %v279 = vmul.f32 %v278, %v277
      %v280 = vmul.f32 0.5, %v279
      %v281 = vsub.f32 1.5, %v280
      %v282 = vmul.f32 %v277, %v281
      %v283 = vmul.f32 %v214, %v282
      %vm284 = vcmp.eq.f32.partialorder %v214, inf
      %v285 = vsel %vm284, %v214, %v283
      %vm286 = vcmp.eq.f32.partialorder %v214, 0.0
      %v287 = vand.u32 %v214, 2147483648
      %v288 = vsel %vm286, %v287, %v285
      %v289 = vrsqrt.pop %v215
      %v290 = vmul.f32 %v289, %v215
      %v291 = vmul.f32 %v290, %v289
      %v292 = vmul.f32 0.5, %v291
      %v293 = vsub.f32 1.5, %v292
      %v294 = vmul.f32 %v289, %v293
      %v295 = vmul.f32 %v215, %v294
      %vm296 = vcmp.eq.f32.partialorder %v215, inf
      %v297 = vsel %vm296, %v215, %v295
      %vm298 = vcmp.eq.f32.partialorder %v215, 0.0
      %v299 = vand.u32 %v215, 2147483648
      %v300 = vsel %vm298, %v299, %v297
      %v301 = vrsqrt.pop %v216
      %v302 = vmul.f32 %v301, %v216
      %v303 = vmul.f32 %v302, %v301
      %v304 = vmul.f32 0.5, %v303
      %v305 = vsub.f32 1.5, %v304
      %v306 = vmul.f32 %v301, %v305
      %v307 = vmul.f32 %v216, %v306
      %vm308 = vcmp.eq.f32.partialorder %v216, inf
      %v309 = vsel %vm308, %v216, %v307
      %vm310 = vcmp.eq.f32.partialorder %v216, 0.0
      %v311 = vand.u32 %v216, 2147483648
      %v312 = vsel %vm310, %v311, %v309
      %v313 = vmul.f32 %v228, %v228
      %v314 = vmul.f32 %v240, %v240
      %v315 = vmul.f32 %v252, %v252
      %v316 = vmul.f32 %v264, %v264
      %v317 = vmul.f32 %v276, %v276
      %v318 = vmul.f32 %v288, %v288
      %v319 = vmul.f32 %v300, %v300
      %v320 = vmul.f32 %v312, %v312
      %v321 = vmul.f32 %v228, %v313
      %v322 = vmul.f32 %v240, %v314
      %v323 = vmul.f32 %v252, %v315
      %v324 = vmul.f32 %v264, %v316
      %v325 = vmul.f32 %v276, %v317
      %v326 = vmul.f32 %v288, %v318
      %v327 = vmul.f32 %v300, %v319
      %v328 = vmul.f32 %v312, %v320
      %v329 = vmul.f32 %v321, 0.044715
      %v330 = vmul.f32 %v322, 0.044715
      %v331 = vmul.f32 %v323, 0.044715
      %v332 = vmul.f32 %v324, 0.044715
      %v333 = vmul.f32 %v325, 0.044715
      %v334 = vmul.f32 %v326, 0.044715
      %v335 = vmul.f32 %v327, 0.044715
      %v336 = vmul.f32 %v328, 0.044715
      %v337 = vadd.f32 %v228, %v329
      %v338 = vadd.f32 %v240, %v330
      %v339 = vadd.f32 %v252, %v331
      %v340 = vadd.f32 %v264, %v332
      %v341 = vadd.f32 %v276, %v333
      %v342 = vadd.f32 %v288, %v334
      %v343 = vadd.f32 %v300, %v335
      %v344 = vadd.f32 %v312, %v336
      %v345 = vmul.f32 %v337, 0.7978846
      %v346 = vmul.f32 %v338, 0.7978846
      %v347 = vmul.f32 %v339, 0.7978846
      %v348 = vmul.f32 %v340, 0.7978846
      %v349 = vmul.f32 %v341, 0.7978846
      %v350 = vmul.f32 %v342, 0.7978846
      %v351 = vmul.f32 %v343, 0.7978846
      %v352 = vmul.f32 %v344, 0.7978846
      %v353 = vtanh.pop %v345
      %v354 = vtanh.pop %v346
      %v355 = vtanh.pop %v347
      %v356 = vtanh.pop %v348
      %v357 = vtanh.pop %v349
      %v358 = vtanh.pop %v350
      %v359 = vtanh.pop %v351
      %v360 = vtanh.pop %v352
      %v361 = vadd.f32 %v353, 1.0
      %v362 = vadd.f32 %v354, 1.0
      %v363 = vadd.f32 %v355, 1.0
      %v364 = vadd.f32 %v356, 1.0
      %v365 = vadd.f32 %v357, 1.0
      %v366 = vadd.f32 %v358, 1.0
      %v367 = vadd.f32 %v359, 1.0
      %v368 = vadd.f32 %v360, 1.0
      %v369 = vmul.f32 %v361, 0.5
      %v370 = vmul.f32 %v362, 0.5
      %v371 = vmul.f32 %v363, 0.5
      %v372 = vmul.f32 %v364, 0.5
      %v373 = vmul.f32 %v365, 0.5
      %v374 = vmul.f32 %v366, 0.5
      %v375 = vmul.f32 %v367, 0.5
      %v376 = vmul.f32 %v368, 0.5
      %v377 = vmul.f32 %v228, %v369
      %v378 = vmul.f32 %v240, %v370
      %v379 = vmul.f32 %v252, %v371
      %v380 = vmul.f32 %v264, %v372
      %v381 = vmul.f32 %v276, %v373
      %v382 = vmul.f32 %v288, %v374
      %v383 = vmul.f32 %v300, %v375
      %v384 = vmul.f32 %v312, %v376
      %v385 = vmul.f32 %v377, %v228
      %v386 = vmul.f32 %v378, %v240
      %v387 = vmul.f32 %v379, %v252
      %v388 = vmul.f32 %v380, %v264
      %v389 = vmul.f32 %v381, %v276
      %v390 = vmul.f32 %v382, %v288
      %v391 = vmul.f32 %v383, %v300
      %v392 = vmul.f32 %v384, %v312
      %393 = vst [vmem:[%s175] sm:$0xff] %v385
      %394 = vst [vmem:[%s175 + $0x8] sm:$0xff] %v386
      %395 = vst [vmem:[%s175 + $0x10] sm:$0xff] %v387
      %396 = vst [vmem:[%s175 + $0x18] sm:$0xff] %v388
      %397 = vst [vmem:[%s175 + $0x20] sm:$0xff] %v389
      %398 = vst [vmem:[%s175 + $0x28] sm:$0xff] %v390
      %399 = vst [vmem:[%s175 + $0x30] sm:$0xff] %v391
      %400 = vst [vmem:[%s175 + $0x38] sm:$0xff] %v392
      %s401 = smul.u32 2, %s13
      %p402 = scmp.lt.s32.totalorder %s401, 3
      %s403 = scalar_select %p402, %s401, 3
      %s404 = smul.addr %s403, 4
      %s405 = smul.addr %s404, 8
      %s406 = scalar_lea.vmem %s2, %s405
      // Predicated region
      $region29: #{effn_forward.8} parent=27 // pred_check
        %p407 = pneg %p83
      $region30: #{effn_forward.8} parent=27 // pred_check_branch
        %409 = sbr.rel (%p407) target = $region32
      $region31: #{effn_forward.8} parent=27 // pred_region
        %s410 = smul.u32 2, %s13
      $region32: #{effn_forward.8} parent=27 // pred_fallthru
        _
    $region28: #{effn_forward.8} parent=5 // pred_fallthru
      _
    %p411 = scmp.le.s32.totalorder 2, %s8
    // Predicated region
    $region33: #{effn_forward.8} parent=5 // pred_check
      %p412 = pneg %p411
    $region34: #{effn_forward.8} parent=5 // pred_check_branch
      %414 = sbr.rel (%p412) target = $region36
    $region35: #{effn_forward.8} parent=5 // pred_region
      %s415 = ssub.s32 %s8, 2
      // Predicated region
      $region37: #{effn_forward.8} parent=35 // pred_check
        %p416 = pneg %p89
      $region38: #{effn_forward.8} parent=35 // pred_check_branch
        %418 = sbr.rel (%p416) target = $region40
      $region39: #{effn_forward.8} parent=35 // pred_region
        %s419 = smul.u32 2, %s14
        %p420 = scmp.lt.s32.totalorder %s419, 3
        %s421 = scalar_select %p420, %s419, 3
        %s422 = smul.addr %s421, 4
        %s423 = smul.addr %s422, 8
        %s424 = scalar_lea.vmem %s2, %s423
      $region40: #{effn_forward.8} parent=35 // pred_fallthru
        _
    $region36: #{effn_forward.8} parent=5 // pred_fallthru
      _
  $region6: #{effn_forward.8} parent=0 // loop_footer
    %s12 = sadd.s32 1, %s8
  $region7: #{effn_forward.8} parent=0 // loop_footer_branch
    %7 = sbr.rel target = $region3
  $region8: #{effn_forward.8} parent=0 // loop_exit
    _

// kernel: effn_forward.9
$region0: #{effn_forward.9}
  #allocation0 [shape = 'u32[]', space=smem, size = 0x4, offset = 0x4, fixed_abs, tag = 'smem constant byte address 0x4 - core index']
  #allocation1 [shape = 'u32[72,128]{1,0:T(1,128)}', space=vmem, size = 0x9000, scoped, tag = 'internal scratch']
  %s0 = inlined_call_operand.vmem [shape: f32[2,16,512], index: 0, kind: input, shape index: {}]
  %s1 = inlined_call_operand.vmem [shape: f32[9,512], index: 1, kind: input, shape index: {}]
  %s2 = inlined_call_operand.vmem [shape: f32[1,512], index: 2, kind: input, shape index: {}]
  %s3 = inlined_call_operand.vmem [shape: f32[2,16,512], index: 3, kind: output, shape index: {}]
  %s4 = sld [smem:[#allocation0]]
  $region45: #{effn_forward.9} parent=0
    _
  %s6 = ssub.s32 1, %s4
  %s7 = scalar_select 0, %s6, %s4
  loop: start=0, step=1, limit=4
  $region2: #{effn_forward.9} parent=0 // loop_pre_header
    _
  $region3: #{effn_forward.9} parent=0 // loop_header
    %s9 = sphi 0, %s13
    %p10 = scmp.ge.s32.totalorder %s9, 4
    %s19 = sphi 0, %s21
    %s22 = sphi 0, %s19
    %s23 = sphi 0, %s22
    %s39 = sphi 0, %s23
    %s43 = sphi 0, %s43
    %s45 = sphi 0, %s43
    %s46 = sphi 0, %s45
    %s60 = sphi 0, %s46
    %s64 = sphi 0, %s64
    %s66 = sphi 0, %s64
    %s67 = sphi 0, %s66
    %s81 = sphi 0, %s67
    %s87 = sphi 0, %s89
    %s90 = sphi 0, %s87
    %s91 = sphi 0, %s90
    %s107 = sphi 0, %s91
  $region4: #{effn_forward.9} parent=0 // loop_header_branch
    %12 = sbr.rel (%p10) target = $region8
  $region5: #{effn_forward.9} parent=0 // loop_body
    %s14 = ssub.s32 %s9, 1
    %s15 = ssub.s32 %s9, 2
    %s16 = sadd.s32 %s9, 1
    %s17 = ssub.s32 %s9, %s16
    %p18 = scmp.eq.s32.totalorder %s17, 0
    %s20 = sadd.s32 %s19, 1
    %s21 = scalar_select %p18, %s19, %s20
    %p24 = pneg %p18
    %p25 = scmp.eq.s32.totalorder %s9, 1
    %p26 = por %p24, %p25
    %p27 = scmp.ne.s32.totalorder %s19, %s22
    %p28 = scmp.eq.s32.totalorder %s9, 0
    %p29 = por %p27, %p28
    %p30 = scmp.ne.s32.totalorder %s19, %s22
    %p31 = scmp.eq.s32.totalorder %s14, 1
    %p32 = por %p30, %p31
    %p33 = scmp.ne.s32.totalorder %s22, %s23
    %p34 = scmp.eq.s32.totalorder %s14, 0
    %p35 = por %p33, %p34
    %p36 = scmp.ne.s32.totalorder %s22, %s23
    %p37 = scmp.eq.s32.totalorder %s15, 1
    %p38 = por %p36, %p37
    %p40 = scmp.ne.s32.totalorder %s23, %s39
    %p41 = scmp.eq.s32.totalorder %s15, 0
    %p42 = por %p40, %p41
    %s44 = sadd.s32 %s43, 1
    %p47 = scmp.eq.s32.totalorder %s9, 1
    %p48 = scmp.ne.s32.totalorder %s43, %s45
    %p49 = scmp.eq.s32.totalorder %s9, 0
    %p50 = por %p48, %p49
    %p51 = scmp.ne.s32.totalorder %s43, %s45
    %p52 = scmp.eq.s32.totalorder %s14, 1
    %p53 = por %p51, %p52
    %p54 = scmp.ne.s32.totalorder %s45, %s46
    %p55 = scmp.eq.s32.totalorder %s14, 0
    %p56 = por %p54, %p55
    %p57 = scmp.ne.s32.totalorder %s45, %s46
    %p58 = scmp.eq.s32.totalorder %s15, 1
    %p59 = por %p57, %p58
    %p61 = scmp.ne.s32.totalorder %s46, %s60
    %p62 = scmp.eq.s32.totalorder %s15, 0
    %p63 = por %p61, %p62
    %s65 = sadd.s32 %s64, 1
    %p68 = scmp.eq.s32.totalorder %s9, 1
    %p69 = scmp.ne.s32.totalorder %s64, %s66
    %p70 = scmp.eq.s32.totalorder %s9, 0
    %p71 = por %p69, %p70
    %p72 = scmp.ne.s32.totalorder %s64, %s66
    %p73 = scmp.eq.s32.totalorder %s14, 1
    %p74 = por %p72, %p73
    %p75 = scmp.ne.s32.totalorder %s66, %s67
    %p76 = scmp.eq.s32.totalorder %s14, 0
    %p77 = por %p75, %p76
    %p78 = scmp.ne.s32.totalorder %s66, %s67
    %p79 = scmp.eq.s32.totalorder %s15, 1
    %p80 = por %p78, %p79
    %p82 = scmp.ne.s32.totalorder %s67, %s81
    %p83 = scmp.eq.s32.totalorder %s15, 0
    %p84 = por %p82, %p83
    %s85 = ssub.s32 %s9, %s16
    %p86 = scmp.eq.s32.totalorder %s85, 0
    %s88 = sadd.s32 %s87, 1
    %s89 = scalar_select %p86, %s87, %s88
    %p92 = pneg %p86
    %p93 = scmp.eq.s32.totalorder %s9, 1
    %p94 = por %p92, %p93
    %p95 = scmp.ne.s32.totalorder %s87, %s90
    %p96 = scmp.eq.s32.totalorder %s9, 0
    %p97 = por %p95, %p96
    %p98 = scmp.ne.s32.totalorder %s87, %s90
    %p99 = scmp.eq.s32.totalorder %s14, 1
    %p100 = por %p98, %p99
    %p101 = scmp.ne.s32.totalorder %s90, %s91
    %p102 = scmp.eq.s32.totalorder %s14, 0
    %p103 = por %p101, %p102
    %p104 = scmp.ne.s32.totalorder %s90, %s91
    %p105 = scmp.eq.s32.totalorder %s15, 1
    %p106 = por %p104, %p105
    %p108 = scmp.ne.s32.totalorder %s91, %s107
    %p109 = scmp.eq.s32.totalorder %s15, 0
    %p110 = por %p108, %p109
    %p111 = scmp.le.s32.totalorder 1, %s9
    %p112 = scmp.lt.s32.totalorder %s9, 3
    %p113 = pnand %p111, %p112
    %p114 = pneg %p113
    // Predicated region
    $region9: #{effn_forward.9} parent=5 // pred_check
      _
    $region10: #{effn_forward.9} parent=5 // pred_check_branch
      %116 = sbr.rel (%p113) target = $region12
    $region11: #{effn_forward.9} parent=5 // pred_region
      %s117 = ssub.s32 %s9, 1
      // Predicated region
      $region13: #{effn_forward.9} parent=11 // pred_check
        %p118 = pneg %p56
      $region14: #{effn_forward.9} parent=11 // pred_check_branch
        %120 = sbr.rel (%p118) target = $region16
      $region15: #{effn_forward.9} parent=11 // pred_region
        _
      $region16: #{effn_forward.9} parent=11 // pred_fallthru
        _
      // Predicated region
      $region17: #{effn_forward.9} parent=11 // pred_check
        %p121 = pneg %p77
      $region18: #{effn_forward.9} parent=11 // pred_check_branch
        %123 = sbr.rel (%p121) target = $region20
      $region19: #{effn_forward.9} parent=11 // pred_region
        _
      $region20: #{effn_forward.9} parent=11 // pred_fallthru
        _
    $region12: #{effn_forward.9} parent=5 // pred_fallthru
      _
    %p124 = scmp.lt.s32.totalorder %s9, 2
    // Predicated region
    $region21: #{effn_forward.9} parent=5 // pred_check
      %p125 = pneg %p124
    $region22: #{effn_forward.9} parent=5 // pred_check_branch
      %127 = sbr.rel (%p125) target = $region24
    $region23: #{effn_forward.9} parent=5 // pred_region
      // Predicated region
      $region25: #{effn_forward.9} parent=23 // pred_check
        %p128 = pneg %p29
      $region26: #{effn_forward.9} parent=23 // pred_check_branch
        %130 = sbr.rel (%p128) target = $region28
      $region27: #{effn_forward.9} parent=23 // pred_region
        %p131 = scmp.lt.s32.totalorder %s9, 1
        %s132 = scalar_select %p131, %s9, 1
        %s133 = smul.addr %s132, 8
        %s134 = smul.addr %s133, 8
        %s135 = scalar_lea.vmem %s0, %s134
      $region28: #{effn_forward.9} parent=23 // pred_fallthru
        _
    $region24: #{effn_forward.9} parent=5 // pred_fallthru
      _
    %p136 = scmp.le.s32.totalorder 1, %s9
    %p137 = scmp.lt.s32.totalorder %s9, 3
    %p138 = pnand %p136, %p137
    %p139 = pneg %p138
    // Predicated region
    $region29: #{effn_forward.9} parent=5 // pred_check
      _
    $region30: #{effn_forward.9} parent=5 // pred_check_branch
      %141 = sbr.rel (%p138) target = $region32
    $region31: #{effn_forward.9} parent=5 // pred_region
      %s142 = ssub.s32 %s9, 1
      %p143 = scmp.lt.s32.totalorder %s14, 1
      %s144 = scalar_select %p143, %s14, 1
      %s145 = smul.addr %s144, 8
      %s146 = smul.addr %s145, 8
      %s147 = scalar_lea.vmem %s0, %s146
      %p148 = pneg %p35
      %p149 = pneg %p32
      %p150 = pneg %p56
      %p151 = pneg %p53
      %p152 = pneg %p77
      %p153 = pneg %p74
      %p154 = pneg %p103
      %p155 = pneg %p100
      %p156 = scmp.lt.s32.totalorder %s14, 1
      %s157 = scalar_select %p156, %s14, 1
      %s158 = smul.addr %s157, 8
      %s159 = smul.addr %s158, 8
      %s160 = scalar_lea.vmem %s3, %s159
      %p161 = scmp.lt.s32.totalorder %s14, 1
      %s162 = scalar_select %p161, %s14, 1
      %s163 = smul.addr %s162, 8
      %s164 = smul.addr %s163, 8
      %s165 = scalar_lea.vmem %s0, %s164
      %p166 = scmp.lt.s32.totalorder %s14, 1
      %s167 = scalar_select %p166, %s14, 1
      %s168 = smul.addr %s167, 8
      %s169 = smul.addr %s168, 8
      %s170 = scalar_lea.vmem %s3, %s169
      %v171 = vld [vmem:[%s165] sm:$0xff]
      %v172 = vld [vmem:[%s165 + $0x8] sm:$0xff]
      %v173 = vld [vmem:[%s165 + $0x10] sm:$0xff]
      %v174 = vld [vmem:[%s165 + $0x18] sm:$0xff]
      %v175 = vld [vmem:[%s165 + $0x20] sm:$0xff]
      %v176 = vld [vmem:[%s165 + $0x28] sm:$0xff]
      %v177 = vld [vmem:[%s165 + $0x30] sm:$0xff]
      %v178 = vld [vmem:[%s165 + $0x38] sm:$0xff]
      %vm187 = vcmask 1040384
      %v188 = vrot.slane %v171, 7
      %v189 = vrot.slane %v172, 7
      %v190 = vrot.slane %v173, 7
      %v191 = vrot.slane %v174, 7
      %v192 = vrot.slane %v175, 7
      %v193 = vsel %vm187, %v188, %v192
      %v194 = vrot.slane %v176, 7
      %v195 = vsel %vm187, %v189, %v194
      %v196 = vrot.slane %v177, 7
      %v197 = vsel %vm187, %v190, %v196
      %v198 = vrot.slane %v178, 7
      %v199 = vsel %vm187, %v191, %v198
      %v212 = vsel %vm187, 0.0, %v188
      %v213 = vsel %vm187, 0.0, %v189
      %v214 = vsel %vm187, 0.0, %v190
      %v215 = vsel %vm187, 0.0, %v191
      %v216 = vsel %vm187, %v192, 0.0
      %v217 = vsel %vm187, %v194, 0.0
      %v218 = vsel %vm187, %v196, 0.0
      %v219 = vsel %vm187, %v198, 0.0
      %v220 = vld [vmem:[%s1] sm:$0xff]
      %v221 = vld [vmem:[%s1 + $0x8] sm:$0xff]
      %v222 = vld [vmem:[%s1 + $0x10] sm:$0xff]
      %v223 = vld [vmem:[%s1 + $0x18] sm:$0xff]
      %v224 = vld [vmem:[%s1 + $0x20] sm:$0x1]
      %v225 = vld [vmem:[%s1 + $0x28] sm:$0x1]
      %v226 = vld [vmem:[%s1 + $0x30] sm:$0x1]
      %v227 = vld [vmem:[%s1 + $0x38] sm:$0x1]
      %v228 = vld [vmem:[%s2] sm:$0xf]
      %v230 = vperm.slane %v228, 0
      %v231 = vperm.slane %v228, 1
      %v232 = vperm.slane %v228, 2
      %v233 = vperm.slane %v228, 3
      %v238 = vadd.f32 %v230, 0.0
      %v239 = vadd.f32 %v231, 0.0
      %v240 = vadd.f32 %v232, 0.0
      %v241 = vadd.f32 %v233, 0.0
      %v242 = vperm.slane %v220, 0
      %v243 = vperm.slane %v221, 0
      %v244 = vperm.slane %v222, 0
      %v245 = vperm.slane %v223, 0
      %250 = vrot.lane.b32.xlu0 %v242, 96
      %v251 = vpop.permute.xlu0 %250
      %252 = vrot.lane.b32.xlu0 %v243, 96
      %v253 = vpop.permute.xlu0 %252
      %254 = vrot.lane.b32.xlu0 %v244, 96
      %v255 = vpop.permute.xlu0 %254
      %256 = vrot.lane.b32.xlu0 %v245, 96
      %v257 = vpop.permute.xlu0 %256
      %vm258 = vcmask 785408
      %v259 = vsel %vm258, %v251, %v253
      %v260 = vsel %vm258, %v253, %v255
      %v261 = vsel %vm258, %v255, %v257
      %v267 = vmul.f32 %v251, 0.0
      %v268 = vmul.f32 %v212, %v259
      %v269 = vmul.f32 %v213, %v260
      %v270 = vmul.f32 %v214, %v261
      %v271 = vmul.f32 %v215, %v257
      %v272 = vmul.f32 %v193, %v259
      %v273 = vmul.f32 %v195, %v260
      %v274 = vmul.f32 %v197, %v261
      %v275 = vmul.f32 %v199, %v257
      %285 = vrot.lane.b32.xlu0 %v267, 32
      %v286 = vpop.permute.xlu0 %285
      %287 = vrot.lane.b32.xlu0 %v268, 32
      %v288 = vpop.permute.xlu0 %287
      %289 = vrot.lane.b32.xlu0 %v269, 32
      %v290 = vpop.permute.xlu0 %289
      %291 = vrot.lane.b32.xlu0 %v270, 32
      %v292 = vpop.permute.xlu0 %291
      %293 = vrot.lane.b32.xlu0 %v271, 32
      %v294 = vpop.permute.xlu0 %293
      %295 = vrot.lane.b32.xlu0 %v272, 32
      %v296 = vpop.permute.xlu0 %295
      %297 = vrot.lane.b32.xlu0 %v273, 32
      %v298 = vpop.permute.xlu0 %297
      %299 = vrot.lane.b32.xlu0 %v274, 32
      %v300 = vpop.permute.xlu0 %299
      %301 = vrot.lane.b32.xlu0 %v275, 32
      %v302 = vpop.permute.xlu0 %301
      %vm303 = vcmask 261120
      %v304 = vsel %vm303, %v286, %v288
      %v305 = vsel %vm303, %v288, %v290
      %v306 = vsel %vm303, %v290, %v292
      %v307 = vsel %vm303, %v292, %v294
      %v308 = vsel %vm303, %v286, %v296
      %v309 = vsel %vm303, %v296, %v298
      %v310 = vsel %vm303, %v298, %v300
      %v311 = vsel %vm303, %v300, %v302
      %v320 = vadd.f32 %v238, %v304
      %v321 = vadd.f32 %v239, %v305
      %v322 = vadd.f32 %v240, %v306
      %v323 = vadd.f32 %v241, %v307
      %v324 = vadd.f32 %v238, %v308
      %v325 = vadd.f32 %v239, %v309
      %v326 = vadd.f32 %v240, %v310
      %v327 = vadd.f32 %v241, %v311
      %v328 = vperm.slane %v220, 3
      %v329 = vperm.slane %v221, 3
      %v330 = vperm.slane %v222, 3
      %v331 = vperm.slane %v223, 3
      %336 = vrot.lane.b32.xlu0 %v328, 96
      %v337 = vpop.permute.xlu0 %336
      %338 = vrot.lane.b32.xlu0 %v329, 96
      %v339 = vpop.permute.xlu0 %338
      %340 = vrot.lane.b32.xlu0 %v330, 96
      %v341 = vpop.permute.xlu0 %340
      %342 = vrot.lane.b32.xlu0 %v331, 96
      %v343 = vpop.permute.xlu0 %342
      %v344 = vsel %vm258, %v337, %v339
      %v345 = vsel %vm258, %v339, %v341
      %v346 = vsel %vm258, %v341, %v343
      %v352 = vmul.f32 %v337, 0.0
      %v353 = vmul.f32 %v212, %v344
      %v354 = vmul.f32 %v213, %v345
      %v355 = vmul.f32 %v214, %v346
      %v356 = vmul.f32 %v215, %v343
      %v357 = vmul.f32 %v193, %v344
      %v358 = vmul.f32 %v195, %v345
      %v359 = vmul.f32 %v197, %v346
      %v360 = vmul.f32 %v199, %v343
      %v361 = vmul.f32 %v216, %v344
      %v362 = vmul.f32 %v217, %v345
      %v363 = vmul.f32 %v218, %v346
      %v364 = vmul.f32 %v219, %v343
      %vm378 = vcmask 1046528
      %v379 = vrot.slane %v352, 1
      %v380 = vsel %vm378, %v379, %v379
      %v381 = vrot.slane %v353, 1
      %v382 = vrot.slane %v357, 1
      %v383 = vsel %vm378, %v381, %v382
      %v384 = vrot.slane %v354, 1
      %v385 = vrot.slane %v358, 1
      %v386 = vsel %vm378, %v384, %v385
      %v387 = vrot.slane %v355, 1
      %v388 = vrot.slane %v359, 1
      %v389 = vsel %vm378, %v387, %v388
      %v390 = vrot.slane %v356, 1
      %v391 = vrot.slane %v360, 1
      %v392 = vsel %vm378, %v390, %v391
      %v393 = vrot.slane %v361, 1
      %v394 = vsel %vm378, %v382, %v393
      %v395 = vrot.slane %v362, 1
      %v396 = vsel %vm378, %v385, %v395
      %v397 = vrot.slane %v363, 1
      %v398 = vsel %vm378, %v388, %v397
      %v399 = vrot.slane %v364, 1
      %v400 = vsel %vm378, %v391, %v399
      %401 = vrot.lane.b32.xlu0 %v380, 32
      %v402 = vpop.permute.xlu0 %401
      %403 = vrot.lane.b32.xlu0 %v383, 32
      %v404 = vpop.permute.xlu0 %403
      %405 = vrot.lane.b32.xlu0 %v386, 32
      %v406 = vpop.permute.xlu0 %405
      %407 = vrot.lane.b32.xlu0 %v389, 32
      %v408 = vpop.permute.xlu0 %407
      %409 = vrot.lane.b32.xlu0 %v392, 32
      %v410 = vpop.permute.xlu0 %409
      %411 = vrot.lane.b32.xlu0 %v394, 32
      %v412 = vpop.permute.xlu0 %411
      %413 = vrot.lane.b32.xlu0 %v396, 32
      %v414 = vpop.permute.xlu0 %413
      %415 = vrot.lane.b32.xlu0 %v398, 32
      %v416 = vpop.permute.xlu0 %415
      %417 = vrot.lane.b32.xlu0 %v400, 32
      %v418 = vpop.permute.xlu0 %417
      %v419 = vsel %vm303, %v402, %v404
      %v420 = vsel %vm303, %v404, %v406
      %v421 = vsel %vm303, %v406, %v408
      %v422 = vsel %vm303, %v408, %v410
      %v423 = vsel %vm303, %v402, %v412
      %v424 = vsel %vm303, %v412, %v414
      %v425 = vsel %vm303, %v414, %v416
      %v426 = vsel %vm303, %v416, %v418
      %v435 = vadd.f32 %v320, %v419
      %v436 = vadd.f32 %v321, %v420
      %v437 = vadd.f32 %v322, %v421
      %v438 = vadd.f32 %v323, %v422
      %v439 = vadd.f32 %v324, %v423
      %v440 = vadd.f32 %v325, %v424
      %v441 = vadd.f32 %v326, %v425
      %v442 = vadd.f32 %v327, %v426
      %v443 = vperm.slane %v220, 6
      %v444 = vperm.slane %v221, 6
      %v445 = vperm.slane %v222, 6
      %v446 = vperm.slane %v223, 6
      %451 = vrot.lane.b32.xlu0 %v443, 96
      %v452 = vpop.permute.xlu0 %451
      %453 = vrot.lane.b32.xlu0 %v444, 96
      %v454 = vpop.permute.xlu0 %453
      %455 = vrot.lane.b32.xlu0 %v445, 96
      %v456 = vpop.permute.xlu0 %455
      %457 = vrot.lane.b32.xlu0 %v446, 96
      %v458 = vpop.permute.xlu0 %457
      %v459 = vsel %vm258, %v452, %v454
      %v460 = vsel %vm258, %v454, %v456
      %v461 = vsel %vm258, %v456, %v458
      %v467 = vmul.f32 %v452, 0.0
      %v468 = vmul.f32 %v212, %v459
      %v469 = vmul.f32 %v213, %v460
      %v470 = vmul.f32 %v214, %v461
      %v471 = vmul.f32 %v215, %v458
      %v472 = vmul.f32 %v193, %v459
      %v473 = vmul.f32 %v195, %v460
      %v474 = vmul.f32 %v197, %v461
      %v475 = vmul.f32 %v199, %v458
      %v476 = vmul.f32 %v216, %v459
      %v477 = vmul.f32 %v217, %v460
      %v478 = vmul.f32 %v218, %v461
      %v479 = vmul.f32 %v219, %v458
      %vm493 = vcmask 1045504
      %v494 = vrot.slane %v467, 2
      %v495 = vsel %vm493, %v494, %v494
      %v496 = vrot.slane %v468, 2
      %v497 = vrot.slane %v472, 2
      %v498 = vsel %vm493, %v496, %v497
      %v499 = vrot.slane %v469, 2
      %v500 = vrot.slane %v473, 2
      %v501 = vsel %vm493, %v499, %v500
      %v502 = vrot.slane %v470, 2
      %v503 = vrot.slane %v474, 2
      %v504 = vsel %vm493, %v502, %v503
      %v505 = vrot.slane %v471, 2
      %v506 = vrot.slane %v475, 2
      %v507 = vsel %vm493, %v505, %v506
      %v508 = vrot.slane %v476, 2
      %v509 = vsel %vm493, %v497, %v508
      %v510 = vrot.slane %v477, 2
      %v511 = vsel %vm493, %v500, %v510
      %v512 = vrot.slane %v478, 2
      %v513 = vsel %vm493, %v503, %v512
      %v514 = vrot.slane %v479, 2
      %v515 = vsel %vm493, %v506, %v514
      %516 = vrot.lane.b32.xlu0 %v495, 32
      %v517 = vpop.permute.xlu0 %516
      %518 = vrot.lane.b32.xlu0 %v498, 32
      %v519 = vpop.permute.xlu0 %518
      %520 = vrot.lane.b32.xlu0 %v501, 32
      %v521 = vpop.permute.xlu0 %520
      %522 = vrot.lane.b32.xlu0 %v504, 32
      %v523 = vpop.permute.xlu0 %522
      %524 = vrot.lane.b32.xlu0 %v507, 32
      %v525 = vpop.permute.xlu0 %524
      %526 = vrot.lane.b32.xlu0 %v509, 32
      %v527 = vpop.permute.xlu0 %526
      %528 = vrot.lane.b32.xlu0 %v511, 32
      %v529 = vpop.permute.xlu0 %528
      %530 = vrot.lane.b32.xlu0 %v513, 32
      %v531 = vpop.permute.xlu0 %530
      %532 = vrot.lane.b32.xlu0 %v515, 32
      %v533 = vpop.permute.xlu0 %532
      %v534 = vsel %vm303, %v517, %v519
      %v535 = vsel %vm303, %v519, %v521
      %v536 = vsel %vm303, %v521, %v523
      %v537 = vsel %vm303, %v523, %v525
      %v538 = vsel %vm303, %v517, %v527
      %v539 = vsel %vm303, %v527, %v529
      %v540 = vsel %vm303, %v529, %v531
      %v541 = vsel %vm303, %v531, %v533
      %v550 = vadd.f32 %v435, %v534
      %v551 = vadd.f32 %v436, %v535
      %v552 = vadd.f32 %v437, %v536
      %v553 = vadd.f32 %v438, %v537
      %v554 = vadd.f32 %v439, %v538
      %v555 = vadd.f32 %v440, %v539
      %v556 = vadd.f32 %v441, %v540
      %v557 = vadd.f32 %v442, %v541
      %v558 = vperm.slane %v220, 1
      %v559 = vperm.slane %v221, 1
      %v560 = vperm.slane %v222, 1
      %v561 = vperm.slane %v223, 1
      %v562 = vmul.f32 %v212, %v558
      %v563 = vmul.f32 %v213, %v559
      %v564 = vmul.f32 %v214, %v560
      %v565 = vmul.f32 %v215, %v561
      %v566 = vmul.f32 %v193, %v558
      %v567 = vmul.f32 %v195, %v559
      %v568 = vmul.f32 %v197, %v560
      %v569 = vmul.f32 %v199, %v561
      %v570 = vadd.f32 %v550, %v562
      %v571 = vadd.f32 %v551, %v563
      %v572 = vadd.f32 %v552, %v564
      %v573 = vadd.f32 %v553, %v565
      %v574 = vadd.f32 %v554, %v566
      %v575 = vadd.f32 %v555, %v567
      %v576 = vadd.f32 %v556, %v568
      %v577 = vadd.f32 %v557, %v569
      %v578 = vperm.slane %v220, 4
      %v579 = vperm.slane %v221, 4
      %v580 = vperm.slane %v222, 4
      %v581 = vperm.slane %v223, 4
      %v582 = vmul.f32 %v212, %v578
      %v583 = vmul.f32 %v213, %v579
      %v584 = vmul.f32 %v214, %v580
      %v585 = vmul.f32 %v215, %v581
      %v586 = vmul.f32 %v193, %v578
      %v587 = vmul.f32 %v195, %v579
      %v588 = vmul.f32 %v197, %v580
      %v589 = vmul.f32 %v199, %v581
      %v590 = vmul.f32 %v216, %v578
      %v591 = vmul.f32 %v217, %v579
      %v592 = vmul.f32 %v218, %v580
      %v593 = vmul.f32 %v219, %v581
      %v606 = vrot.slane %v582, 1
      %v607 = vrot.slane %v586, 1
      %v608 = vsel %vm378, %v606, %v607
      %v609 = vrot.slane %v583, 1
      %v610 = vrot.slane %v587, 1
      %v611 = vsel %vm378, %v609, %v610
      %v612 = vrot.slane %v584, 1
      %v613 = vrot.slane %v588, 1
      %v614 = vsel %vm378, %v612, %v613
      %v615 = vrot.slane %v585, 1
      %v616 = vrot.slane %v589, 1
      %v617 = vsel %vm378, %v615, %v616
      %v618 = vrot.slane %v590, 1
      %v619 = vsel %vm378, %v607, %v618
      %v620 = vrot.slane %v591, 1
      %v621 = vsel %vm378, %v610, %v620
      %v622 = vrot.slane %v592, 1
      %v623 = vsel %vm378, %v613, %v622
      %v624 = vrot.slane %v593, 1
      %v625 = vsel %vm378, %v616, %v624
      %v634 = vadd.f32 %v570, %v608
      %v635 = vadd.f32 %v571, %v611
      %v636 = vadd.f32 %v572, %v614
      %v637 = vadd.f32 %v573, %v617
      %v638 = vadd.f32 %v574, %v619
      %v639 = vadd.f32 %v575, %v621
      %v640 = vadd.f32 %v576, %v623
      %v641 = vadd.f32 %v577, %v625
      %v642 = vperm.slane %v220, 7
      %v643 = vperm.slane %v221, 7
      %v644 = vperm.slane %v222, 7
      %v645 = vperm.slane %v223, 7
      %v646 = vmul.f32 %v212, %v642
      %v647 = vmul.f32 %v213, %v643
      %v648 = vmul.f32 %v214, %v644
      %v649 = vmul.f32 %v215, %v645
      %v650 = vmul.f32 %v193, %v642
      %v651 = vmul.f32 %v195, %v643
      %v652 = vmul.f32 %v197, %v644
      %v653 = vmul.f32 %v199, %v645
      %v654 = vmul.f32 %v216, %v642
      %v655 = vmul.f32 %v217, %v643
      %v656 = vmul.f32 %v218, %v644
      %v657 = vmul.f32 %v219, %v645
      %v670 = vrot.slane %v646, 2
      %v671 = vrot.slane %v650, 2
      %v672 = vsel %vm493, %v670, %v671
      %v673 = vrot.slane %v647, 2
      %v674 = vrot.slane %v651, 2
      %v675 = vsel %vm493, %v673, %v674
      %v676 = vrot.slane %v648, 2
      %v677 = vrot.slane %v652, 2
      %v678 = vsel %vm493, %v676, %v677
      %v679 = vrot.slane %v649, 2
      %v680 = vrot.slane %v653, 2
      %v681 = vsel %vm493, %v679, %v680
      %v682 = vrot.slane %v654, 2
      %v683 = vsel %vm493, %v671, %v682
      %v684 = vrot.slane %v655, 2
      %v685 = vsel %vm493, %v674, %v684
      %v686 = vrot.slane %v656, 2
      %v687 = vsel %vm493, %v677, %v686
      %v688 = vrot.slane %v657, 2
      %v689 = vsel %vm493, %v680, %v688
      %v698 = vadd.f32 %v634, %v672
      %v699 = vadd.f32 %v635, %v675
      %v700 = vadd.f32 %v636, %v678
      %v701 = vadd.f32 %v637, %v681
      %v702 = vadd.f32 %v638, %v683
      %v703 = vadd.f32 %v639, %v685
      %v704 = vadd.f32 %v640, %v687
      %v705 = vadd.f32 %v641, %v689
      %v706 = vperm.slane %v220, 2
      %v707 = vperm.slane %v221, 2
      %v708 = vperm.slane %v222, 2
      %v709 = vperm.slane %v223, 2
      %714 = vrot.lane.b32.xlu0 %v706, 32
      %v715 = vpop.permute.xlu0 %714
      %716 = vrot.lane.b32.xlu0 %v707, 32
      %v717 = vpop.permute.xlu0 %716
      %718 = vrot.lane.b32.xlu0 %v708, 32
      %v719 = vpop.permute.xlu0 %718
      %720 = vrot.lane.b32.xlu0 %v709, 32
      %v721 = vpop.permute.xlu0 %720
      %v722 = vsel %vm303, %v715, %v717
      %v723 = vsel %vm303, %v717, %v719
      %v724 = vsel %vm303, %v719, %v721
      %v730 = vmul.f32 %v212, %v715
      %v731 = vmul.f32 %v213, %v722
      %v732 = vmul.f32 %v214, %v723
      %v733 = vmul.f32 %v215, %v724
      %v734 = vmul.f32 %v721, 0.0
      %v735 = vmul.f32 %v193, %v715
      %v736 = vmul.f32 %v195, %v722
      %v737 = vmul.f32 %v197, %v723
      %v738 = vmul.f32 %v199, %v724
      %748 = vrot.lane.b32.xlu0 %v730, 96
      %v749 = vpop.permute.xlu0 %748
      %750 = vrot.lane.b32.xlu0 %v731, 96
      %v751 = vpop.permute.xlu0 %750
      %752 = vrot.lane.b32.xlu0 %v732, 96
      %v753 = vpop.permute.xlu0 %752
      %754 = vrot.lane.b32.xlu0 %v733, 96
      %v755 = vpop.permute.xlu0 %754
      %756 = vrot.lane.b32.xlu0 %v734, 96
      %v757 = vpop.permute.xlu0 %756
      %758 = vrot.lane.b32.xlu0 %v735, 96
      %v759 = vpop.permute.xlu0 %758
      %760 = vrot.lane.b32.xlu0 %v736, 96
      %v761 = vpop.permute.xlu0 %760
      %762 = vrot.lane.b32.xlu0 %v737, 96
      %v763 = vpop.permute.xlu0 %762
      %764 = vrot.lane.b32.xlu0 %v738, 96
      %v765 = vpop.permute.xlu0 %764
      %v766 = vsel %vm258, %v749, %v751
      %v767 = vsel %vm258, %v751, %v753
      %v768 = vsel %vm258, %v753, %v755
      %v769 = vsel %vm258, %v755, %v757
      %v770 = vsel %vm258, %v759, %v761
      %v771 = vsel %vm258, %v761, %v763
      %v772 = vsel %vm258, %v763, %v765
      %v773 = vsel %vm258, %v765, %v757
      %v782 = vadd.f32 %v698, %v766
      %v783 = vadd.f32 %v699, %v767
      %v784 = vadd.f32 %v700, %v768
      %v785 = vadd.f32 %v701, %v769
      %v786 = vadd.f32 %v702, %v770
      %v787 = vadd.f32 %v703, %v771
      %v788 = vadd.f32 %v704, %v772
      %v789 = vadd.f32 %v705, %v773
      %v790 = vperm.slane %v220, 5
      %v791 = vperm.slane %v221, 5
      %v792 = vperm.slane %v222, 5
      %v793 = vperm.slane %v223, 5
      %798 = vrot.lane.b32.xlu0 %v790, 32
      %v799 = vpop.permute.xlu0 %798
      %800 = vrot.lane.b32.xlu0 %v791, 32
      %v801 = vpop.permute.xlu0 %800
      %802 = vrot.lane.b32.xlu0 %v792, 32
      %v803 = vpop.permute.xlu0 %802
      %804 = vrot.lane.b32.xlu0 %v793, 32
      %v805 = vpop.permute.xlu0 %804
      %v806 = vsel %vm303, %v799, %v801
      %v807 = vsel %vm303, %v801, %v803
      %v808 = vsel %vm303, %v803, %v805
      %v814 = vmul.f32 %v212, %v799
      %v815 = vmul.f32 %v213, %v806
      %v816 = vmul.f32 %v214, %v807
      %v817 = vmul.f32 %v215, %v808
      %v818 = vmul.f32 %v805, 0.0
      %v819 = vmul.f32 %v193, %v799
      %v820 = vmul.f32 %v195, %v806
      %v821 = vmul.f32 %v197, %v807
      %v822 = vmul.f32 %v199, %v808
      %v823 = vmul.f32 %v216, %v799
      %v824 = vmul.f32 %v217, %v806
      %v825 = vmul.f32 %v218, %v807
      %v826 = vmul.f32 %v219, %v808
      %v840 = vrot.slane %v814, 1
      %v841 = vrot.slane %v819, 1
      %v842 = vsel %vm378, %v840, %v841
      %v843 = vrot.slane %v815, 1
      %v844 = vrot.slane %v820, 1
      %v845 = vsel %vm378, %v843, %v844
      %v846 = vrot.slane %v816, 1
      %v847 = vrot.slane %v821, 1
      %v848 = vsel %vm378, %v846, %v847
      %v849 = vrot.slane %v817, 1
      %v850 = vrot.slane %v822, 1
      %v851 = vsel %vm378, %v849, %v850
      %v852 = vrot.slane %v818, 1
      %v853 = vsel %vm378, %v852, %v852
      %v854 = vrot.slane %v823, 1
      %v855 = vsel %vm378, %v841, %v854
      %v856 = vrot.slane %v824, 1
      %v857 = vsel %vm378, %v844, %v856
      %v858 = vrot.slane %v825, 1
      %v859 = vsel %vm378, %v847, %v858
      %v860 = vrot.slane %v826, 1
      %v861 = vsel %vm378, %v850, %v860
      %862 = vrot.lane.b32.xlu0 %v842, 96
      %v863 = vpop.permute.xlu0 %862
      %864 = vrot.lane.b32.xlu0 %v845, 96
      %v865 = vpop.permute.xlu0 %864
      %866 = vrot.lane.b32.xlu0 %v848, 96
      %v867 = vpop.permute.xlu0 %866
      %868 = vrot.lane.b32.xlu0 %v851, 96
      %v869 = vpop.permute.xlu0 %868
      %870 = vrot.lane.b32.xlu0 %v853, 96
      %v871 = vpop.permute.xlu0 %870
      %872 = vrot.lane.b32.xlu0 %v855, 96
      %v873 = vpop.permute.xlu0 %872
      %874 = vrot.lane.b32.xlu0 %v857, 96
      %v875 = vpop.permute.xlu0 %874
      %876 = vrot.lane.b32.xlu0 %v859, 96
      %v877 = vpop.permute.xlu0 %876
      %878 = vrot.lane.b32.xlu0 %v861, 96
      %v879 = vpop.permute.xlu0 %878
      %v880 = vsel %vm258, %v863, %v865
      %v881 = vsel %vm258, %v865, %v867
      %v882 = vsel %vm258, %v867, %v869
      %v883 = vsel %vm258, %v869, %v871
      %v884 = vsel %vm258, %v873, %v875
      %v885 = vsel %vm258, %v875, %v877
      %v886 = vsel %vm258, %v877, %v879
      %v887 = vsel %vm258, %v879, %v871
      %v896 = vadd.f32 %v782, %v880
      %v897 = vadd.f32 %v783, %v881
      %v898 = vadd.f32 %v784, %v882
      %v899 = vadd.f32 %v785, %v883
      %v900 = vadd.f32 %v786, %v884
      %v901 = vadd.f32 %v787, %v885
      %v902 = vadd.f32 %v788, %v886
      %v903 = vadd.f32 %v789, %v887
      %v904 = vperm.slane %v224, 0
      %v905 = vperm.slane %v225, 0
      %v906 = vperm.slane %v226, 0
      %v907 = vperm.slane %v227, 0
      %912 = vrot.lane.b32.xlu0 %v904, 32
      %v913 = vpop.permute.xlu0 %912
      %914 = vrot.lane.b32.xlu0 %v905, 32
      %v915 = vpop.permute.xlu0 %914
      %916 = vrot.lane.b32.xlu0 %v906, 32
      %v917 = vpop.permute.xlu0 %916
      %918 = vrot.lane.b32.xlu0 %v907, 32
      %v919 = vpop.permute.xlu0 %918
      %v920 = vsel %vm303, %v913, %v915
      %v921 = vsel %vm303, %v915, %v917
      %v922 = vsel %vm303, %v917, %v919
      %v928 = vmul.f32 %v212, %v913
      %v929 = vmul.f32 %v213, %v920
      %v930 = vmul.f32 %v214, %v921
      %v931 = vmul.f32 %v215, %v922
      %v932 = vmul.f32 %v919, 0.0
      %v933 = vmul.f32 %v193, %v913
      %v934 = vmul.f32 %v195, %v920
      %v935 = vmul.f32 %v197, %v921
      %v936 = vmul.f32 %v199, %v922
      %v937 = vmul.f32 %v216, %v913
      %v938 = vmul.f32 %v217, %v920
      %v939 = vmul.f32 %v218, %v921
      %v940 = vmul.f32 %v219, %v922
      %v954 = vrot.slane %v928, 2
      %v955 = vrot.slane %v933, 2
      %v956 = vsel %vm493, %v954, %v955
      %v957 = vrot.slane %v929, 2
      %v958 = vrot.slane %v934, 2
      %v959 = vsel %vm493, %v957, %v958
      %v960 = vrot.slane %v930, 2
      %v961 = vrot.slane %v935, 2
      %v962 = vsel %vm493, %v960, %v961
      %v963 = vrot.slane %v931, 2
      %v964 = vrot.slane %v936, 2
      %v965 = vsel %vm493, %v963, %v964
      %v966 = vrot.slane %v932, 2
      %v967 = vsel %vm493, %v966, %v966
      %v968 = vrot.slane %v937, 2
      %v969 = vsel %vm493, %v955, %v968
      %v970 = vrot.slane %v938, 2
      %v971 = vsel %vm493, %v958, %v970
      %v972 = vrot.slane %v939, 2
      %v973 = vsel %vm493, %v961, %v972
      %v974 = vrot.slane %v940, 2
      %v975 = vsel %vm493, %v964, %v974
      %976 = vrot.lane.b32.xlu0 %v956, 96
      %v977 = vpop.permute.xlu0 %976
      %978 = vrot.lane.b32.xlu0 %v959, 96
      %v979 = vpop.permute.xlu0 %978
      %980 = vrot.lane.b32.xlu0 %v962, 96
      %v981 = vpop.permute.xlu0 %980
      %982 = vrot.lane.b32.xlu0 %v965, 96
      %v983 = vpop.permute.xlu0 %982
      %984 = vrot.lane.b32.xlu0 %v967, 96
      %v985 = vpop.permute.xlu0 %984
      %986 = vrot.lane.b32.xlu0 %v969, 96
      %v987 = vpop.permute.xlu0 %986
      %988 = vrot.lane.b32.xlu0 %v971, 96
      %v989 = vpop.permute.xlu0 %988
      %990 = vrot.lane.b32.xlu0 %v973, 96
      %v991 = vpop.permute.xlu0 %990
      %992 = vrot.lane.b32.xlu0 %v975, 96
      %v993 = vpop.permute.xlu0 %992
      %v994 = vsel %vm258, %v977, %v979
      %v995 = vsel %vm258, %v979, %v981
      %v996 = vsel %vm258, %v981, %v983
      %v997 = vsel %vm258, %v983, %v985
      %v998 = vsel %vm258, %v987, %v989
      %v999 = vsel %vm258, %v989, %v991
      %v1000 = vsel %vm258, %v991, %v993
      %v1001 = vsel %vm258, %v993, %v985
      %v1010 = vadd.f32 %v896, %v994
      %v1011 = vadd.f32 %v897, %v995
      %v1012 = vadd.f32 %v898, %v996
      %v1013 = vadd.f32 %v899, %v997
      %v1014 = vadd.f32 %v900, %v998
      %v1015 = vadd.f32 %v901, %v999
      %v1016 = vadd.f32 %v902, %v1000
      %v1017 = vadd.f32 %v903, %v1001
      %v1018 = vmul.f32 %v1010, %v1010
      %v1019 = vmul.f32 %v1011, %v1011
      %v1020 = vmul.f32 %v1012, %v1012
      %v1021 = vmul.f32 %v1013, %v1013
      %v1022 = vmul.f32 %v1014, %v1014
      %v1023 = vmul.f32 %v1015, %v1015
      %v1024 = vmul.f32 %v1016, %v1016
      %v1025 = vmul.f32 %v1017, %v1017
      %v1026 = vmul.f32 %v1010, %v1018
      %v1027 = vmul.f32 %v1011, %v1019
      %v1028 = vmul.f32 %v1012, %v1020
      %v1029 = vmul.f32 %v1013, %v1021
      %v1030 = vmul.f32 %v1014, %v1022
      %v1031 = vmul.f32 %v1015, %v1023
      %v1032 = vmul.f32 %v1016, %v1024
      %v1033 = vmul.f32 %v1017, %v1025
      %v1034 = vmul.f32 %v1026, 0.044715
      %v1035 = vmul.f32 %v1027, 0.044715
      %v1036 = vmul.f32 %v1028, 0.044715
      %v1037 = vmul.f32 %v1029, 0.044715
      %v1038 = vmul.f32 %v1030, 0.044715
      %v1039 = vmul.f32 %v1031, 0.044715
      %v1040 = vmul.f32 %v1032, 0.044715
      %v1041 = vmul.f32 %v1033, 0.044715
      %v1042 = vadd.f32 %v1010, %v1034
      %v1043 = vadd.f32 %v1011, %v1035
      %v1044 = vadd.f32 %v1012, %v1036
      %v1045 = vadd.f32 %v1013, %v1037
      %v1046 = vadd.f32 %v1014, %v1038
      %v1047 = vadd.f32 %v1015, %v1039
      %v1048 = vadd.f32 %v1016, %v1040
      %v1049 = vadd.f32 %v1017, %v1041
      %v1050 = vmul.f32 %v1042, 0.7978846
      %v1051 = vmul.f32 %v1043, 0.7978846
      %v1052 = vmul.f32 %v1044, 0.7978846
      %v1053 = vmul.f32 %v1045, 0.7978846
      %v1054 = vmul.f32 %v1046, 0.7978846
      %v1055 = vmul.f32 %v1047, 0.7978846
      %v1056 = vmul.f32 %v1048, 0.7978846
      %v1057 = vmul.f32 %v1049, 0.7978846
      %v1058 = vtanh.pop %v1050
      %v1059 = vtanh.pop %v1051
      %v1060 = vtanh.pop %v1052
      %v1061 = vtanh.pop %v1053
      %v1062 = vtanh.pop %v1054
      %v1063 = vtanh.pop %v1055
      %v1064 = vtanh.pop %v1056
      %v1065 = vtanh.pop %v1057
      %v1066 = vadd.f32 %v1058, 1.0
      %v1067 = vadd.f32 %v1059, 1.0
      %v1068 = vadd.f32 %v1060, 1.0
      %v1069 = vadd.f32 %v1061, 1.0
      %v1070 = vadd.f32 %v1062, 1.0
      %v1071 = vadd.f32 %v1063, 1.0
      %v1072 = vadd.f32 %v1064, 1.0
      %v1073 = vadd.f32 %v1065, 1.0
      %v1074 = vmul.f32 %v1066, 0.5
      %v1075 = vmul.f32 %v1067, 0.5
      %v1076 = vmul.f32 %v1068, 0.5
      %v1077 = vmul.f32 %v1069, 0.5
      %v1078 = vmul.f32 %v1070, 0.5
      %v1079 = vmul.f32 %v1071, 0.5
      %v1080 = vmul.f32 %v1072, 0.5
      %v1081 = vmul.f32 %v1073, 0.5
      %v1082 = vmul.f32 %v1010, %v1074
      %v1083 = vmul.f32 %v1011, %v1075
      %v1084 = vmul.f32 %v1012, %v1076
      %v1085 = vmul.f32 %v1013, %v1077
      %v1086 = vmul.f32 %v1014, %v1078
      %v1087 = vmul.f32 %v1015, %v1079
      %v1088 = vmul.f32 %v1016, %v1080
      %v1089 = vmul.f32 %v1017, %v1081
      %v1090 = vmul.f32 %v1082, %v1010
      %v1091 = vmul.f32 %v1083, %v1011
      %v1092 = vmul.f32 %v1084, %v1012
      %v1093 = vmul.f32 %v1085, %v1013
      %v1094 = vmul.f32 %v1086, %v1014
      %v1095 = vmul.f32 %v1087, %v1015
      %v1096 = vmul.f32 %v1088, %v1016
      %v1097 = vmul.f32 %v1089, %v1017
      %1098 = vst [vmem:[%s170] sm:$0xff] %v1090
      %1099 = vst [vmem:[%s170 + $0x8] sm:$0xff] %v1091
      %1100 = vst [vmem:[%s170 + $0x10] sm:$0xff] %v1092
      %1101 = vst [vmem:[%s170 + $0x18] sm:$0xff] %v1093
      %1102 = vst [vmem:[%s170 + $0x20] sm:$0xff] %v1094
      %1103 = vst [vmem:[%s170 + $0x28] sm:$0xff] %v1095
      %1104 = vst [vmem:[%s170 + $0x30] sm:$0xff] %v1096
      %1105 = vst [vmem:[%s170 + $0x38] sm:$0xff] %v1097
      %p1106 = scmp.lt.s32.totalorder %s14, 1
      %s1107 = scalar_select %p1106, %s14, 1
      %s1108 = smul.addr %s1107, 8
      %s1109 = smul.addr %s1108, 8
      %s1110 = scalar_lea.vmem %s3, %s1109
      // Predicated region
      $region33: #{effn_forward.9} parent=31 // pred_check
        %p1111 = pneg %p100
      $region34: #{effn_forward.9} parent=31 // pred_check_branch
        %1113 = sbr.rel (%p1111) target = $region36
      $region35: #{effn_forward.9} parent=31 // pred_region
        _
      $region36: #{effn_forward.9} parent=31 // pred_fallthru
        _
    $region32: #{effn_forward.9} parent=5 // pred_fallthru
      _
    %p1114 = scmp.le.s32.totalorder 2, %s9
    // Predicated region
    $region37: #{effn_forward.9} parent=5 // pred_check
      %p1115 = pneg %p1114
    $region38: #{effn_forward.9} parent=5 // pred_check_branch
      %1117 = sbr.rel (%p1115) target = $region40
    $region39: #{effn_forward.9} parent=5 // pred_region
      %s1118 = ssub.s32 %s9, 2
      // Predicated region
      $region41: #{effn_forward.9} parent=39 // pred_check
        %p1119 = pneg %p106
      $region42: #{effn_forward.9} parent=39 // pred_check_branch
        %1121 = sbr.rel (%p1119) target = $region44
      $region43: #{effn_forward.9} parent=39 // pred_region
        %p1122 = scmp.lt.s32.totalorder %s15, 1
        %s1123 = scalar_select %p1122, %s15, 1
        %s1124 = smul.addr %s1123, 8
        %s1125 = smul.addr %s1124, 8
        %s1126 = scalar_lea.vmem %s3, %s1125
      $region44: #{effn_forward.9} parent=39 // pred_fallthru
        _
    $region40: #{effn_forward.9} parent=5 // pred_fallthru
      _
  $region6: #{effn_forward.9} parent=0 // loop_footer
    %s13 = sadd.s32 1, %s9
  $region7: #{effn_forward.9} parent=0 // loop_footer_branch
    %8 = sbr.rel target = $region3
  $region8: #{effn_forward.9} parent=0 // loop_exit
    _

// kernel: effn_forward.10
$region0: #{effn_forward.10}
  #allocation0 [shape = 'u32[]', space=smem, size = 0x4, offset = 0x4, fixed_abs, tag = 'smem constant byte address 0x4 - core index']
  #allocation1 [shape = 'u32[72,128]{1,0:T(1,128)}', space=vmem, size = 0x9000, scoped, tag = 'internal scratch']
  %s0 = inlined_call_operand.vmem [shape: f32[128,128], index: 0, kind: input, shape index: {}]
  %s1 = inlined_call_operand.vmem [shape: f32[128,128], index: 1, kind: input, shape index: {}]
  %s2 = inlined_call_operand.vmem [shape: f32[128,128], index: 2, kind: input, shape index: {}]
  %s3 = inlined_call_operand.vmem [shape: f32[128,128], index: 3, kind: input, shape index: {}]
  %s4 = inlined_call_operand.vmem [shape: f32[128,8], index: 4, kind: input, shape index: {}]
  %s5 = inlined_call_operand.vmem [shape: f32[128,8], index: 5, kind: input, shape index: {}]
  %s6 = inlined_call_operand.vmem [shape: f32[8,128], index: 6, kind: input, shape index: {}]
  %s7 = inlined_call_operand.vmem [shape: f32[8,128], index: 7, kind: input, shape index: {}]
  %s8 = inlined_call_operand.vmem [shape: f32[1,128], index: 8, kind: input, shape index: {}]
  %s9 = inlined_call_operand.vmem [shape: f32[1,128], index: 9, kind: input, shape index: {}]
  %s10 = inlined_call_operand.vmem [shape: f32[128,128], index: 10, kind: output, shape index: {0}]
  %s11 = inlined_call_operand.vmem [shape: f32[128,128], index: 11, kind: output, shape index: {1}]
  %s12 = inlined_call_operand.vmem [shape: f32[128,128], index: 12, kind: output, shape index: {2}]
  %s13 = inlined_call_operand.vmem [shape: f32[128,128], index: 13, kind: output, shape index: {3}]
  %14 = xla_tuple %s10, %s11, %s12, %s13
  %s15 = sld [smem:[#allocation0]]
  $region97: #{effn_forward.10} parent=0
    _
  %s17 = ssub.s32 1, %s15
  %s18 = scalar_select 0, %s17, %s15
  loop: start=0, step=1, limit=4
  $region2: #{effn_forward.10} parent=0 // loop_pre_header
    _
  $region3: #{effn_forward.10} parent=0 // loop_header
    %s20 = sphi 0, %s24
    %p21 = scmp.ge.s32.totalorder %s20, 4
    %s30 = sphi 0, %s32
    %s33 = sphi 0, %s30
    %s34 = sphi 0, %s33
    %s50 = sphi 0, %s34
    %s56 = sphi 0, %s58
    %s59 = sphi 0, %s56
    %s60 = sphi 0, %s59
    %s76 = sphi 0, %s60
    %s82 = sphi 0, %s84
    %s85 = sphi 0, %s82
    %s86 = sphi 0, %s85
    %s102 = sphi 0, %s86
    %s108 = sphi 0, %s110
    %s111 = sphi 0, %s108
    %s112 = sphi 0, %s111
    %s128 = sphi 0, %s112
    %s132 = sphi 0, %s132
    %s134 = sphi 0, %s132
    %s135 = sphi 0, %s134
    %s149 = sphi 0, %s135
    %s153 = sphi 0, %s153
    %s155 = sphi 0, %s153
    %s156 = sphi 0, %s155
    %s170 = sphi 0, %s156
    %s174 = sphi 0, %s174
    %s176 = sphi 0, %s174
    %s177 = sphi 0, %s176
    %s191 = sphi 0, %s177
    %s195 = sphi 0, %s195
    %s197 = sphi 0, %s195
    %s198 = sphi 0, %s197
    %s212 = sphi 0, %s198
    %s216 = sphi 0, %s216
    %s218 = sphi 0, %s216
    %s219 = sphi 0, %s218
    %s233 = sphi 0, %s219
    %s237 = sphi 0, %s237
    %s239 = sphi 0, %s237
    %s240 = sphi 0, %s239
    %s254 = sphi 0, %s240
    %s260 = sphi 0, %s262
    %s263 = sphi 0, %s260
    %s264 = sphi 0, %s263
    %s280 = sphi 0, %s264
    %s286 = sphi 0, %s288
    %s289 = sphi 0, %s286
    %s290 = sphi 0, %s289
    %s306 = sphi 0, %s290
    %s312 = sphi 0, %s314
    %s315 = sphi 0, %s312
    %s316 = sphi 0, %s315
    %s332 = sphi 0, %s316
    %s338 = sphi 0, %s340
    %s341 = sphi 0, %s338
    %s342 = sphi 0, %s341
    %s358 = sphi 0, %s342
  $region4: #{effn_forward.10} parent=0 // loop_header_branch
    %23 = sbr.rel (%p21) target = $region8
  $region5: #{effn_forward.10} parent=0 // loop_body
    %s25 = ssub.s32 %s20, 1
    %s26 = ssub.s32 %s20, 2
    %s27 = sadd.s32 %s20, 1
    %s28 = ssub.s32 %s20, %s27
    %p29 = scmp.eq.s32.totalorder %s28, 0
    %s31 = sadd.s32 %s30, 1
    %s32 = scalar_select %p29, %s30, %s31
    %p35 = pneg %p29
    %p36 = scmp.eq.s32.totalorder %s20, 1
    %p37 = por %p35, %p36
    %p38 = scmp.ne.s32.totalorder %s30, %s33
    %p39 = scmp.eq.s32.totalorder %s20, 0
    %p40 = por %p38, %p39
    %p41 = scmp.ne.s32.totalorder %s30, %s33
    %p42 = scmp.eq.s32.totalorder %s25, 1
    %p43 = por %p41, %p42
    %p44 = scmp.ne.s32.totalorder %s33, %s34
    %p45 = scmp.eq.s32.totalorder %s25, 0
    %p46 = por %p44, %p45
    %p47 = scmp.ne.s32.totalorder %s33, %s34
    %p48 = scmp.eq.s32.totalorder %s26, 1
    %p49 = por %p47, %p48
    %p51 = scmp.ne.s32.totalorder %s34, %s50
    %p52 = scmp.eq.s32.totalorder %s26, 0
    %p53 = por %p51, %p52
    %s54 = ssub.s32 %s20, %s27
    %p55 = scmp.eq.s32.totalorder %s54, 0
    %s57 = sadd.s32 %s56, 1
    %s58 = scalar_select %p55, %s56, %s57
    %p61 = pneg %p55
    %p62 = scmp.eq.s32.totalorder %s20, 1
    %p63 = por %p61, %p62
    %p64 = scmp.ne.s32.totalorder %s56, %s59
    %p65 = scmp.eq.s32.totalorder %s20, 0
    %p66 = por %p64, %p65
    %p67 = scmp.ne.s32.totalorder %s56, %s59
    %p68 = scmp.eq.s32.totalorder %s25, 1
    %p69 = por %p67, %p68
    %p70 = scmp.ne.s32.totalorder %s59, %s60
    %p71 = scmp.eq.s32.totalorder %s25, 0
    %p72 = por %p70, %p71
    %p73 = scmp.ne.s32.totalorder %s59, %s60
    %p74 = scmp.eq.s32.totalorder %s26, 1
    %p75 = por %p73, %p74
    %p77 = scmp.ne.s32.totalorder %s60, %s76
    %p78 = scmp.eq.s32.totalorder %s26, 0
    %p79 = por %p77, %p78
    %s80 = ssub.s32 %s20, %s27
    %p81 = scmp.eq.s32.totalorder %s80, 0
    %s83 = sadd.s32 %s82, 1
    %s84 = scalar_select %p81, %s82, %s83
    %p87 = pneg %p81
    %p88 = scmp.eq.s32.totalorder %s20, 1
    %p89 = por %p87, %p88
    %p90 = scmp.ne.s32.totalorder %s82, %s85
    %p91 = scmp.eq.s32.totalorder %s20, 0
    %p92 = por %p90, %p91
    %p93 = scmp.ne.s32.totalorder %s82, %s85
    %p94 = scmp.eq.s32.totalorder %s25, 1
    %p95 = por %p93, %p94
    %p96 = scmp.ne.s32.totalorder %s85, %s86
    %p97 = scmp.eq.s32.totalorder %s25, 0
    %p98 = por %p96, %p97
    %p99 = scmp.ne.s32.totalorder %s85, %s86
    %p100 = scmp.eq.s32.totalorder %s26, 1
    %p101 = por %p99, %p100
    %p103 = scmp.ne.s32.totalorder %s86, %s102
    %p104 = scmp.eq.s32.totalorder %s26, 0
    %p105 = por %p103, %p104
    %s106 = ssub.s32 %s20, %s27
    %p107 = scmp.eq.s32.totalorder %s106, 0
    %s109 = sadd.s32 %s108, 1
    %s110 = scalar_select %p107, %s108, %s109
    %p113 = pneg %p107
    %p114 = scmp.eq.s32.totalorder %s20, 1
    %p115 = por %p113, %p114
    %p116 = scmp.ne.s32.totalorder %s108, %s111
    %p117 = scmp.eq.s32.totalorder %s20, 0
    %p118 = por %p116, %p117
    %p119 = scmp.ne.s32.totalorder %s108, %s111
    %p120 = scmp.eq.s32.totalorder %s25, 1
    %p121 = por %p119, %p120
    %p122 = scmp.ne.s32.totalorder %s111, %s112
    %p123 = scmp.eq.s32.totalorder %s25, 0
    %p124 = por %p122, %p123
    %p125 = scmp.ne.s32.totalorder %s111, %s112
    %p126 = scmp.eq.s32.totalorder %s26, 1
    %p127 = por %p125, %p126
    %p129 = scmp.ne.s32.totalorder %s112, %s128
    %p130 = scmp.eq.s32.totalorder %s26, 0
    %p131 = por %p129, %p130
    %s133 = sadd.s32 %s132, 1
    %p136 = scmp.eq.s32.totalorder %s20, 1
    %p137 = scmp.ne.s32.totalorder %s132, %s134
    %p138 = scmp.eq.s32.totalorder %s20, 0
    %p139 = por %p137, %p138
    %p140 = scmp.ne.s32.totalorder %s132, %s134
    %p141 = scmp.eq.s32.totalorder %s25, 1
    %p142 = por %p140, %p141
    %p143 = scmp.ne.s32.totalorder %s134, %s135
    %p144 = scmp.eq.s32.totalorder %s25, 0
    %p145 = por %p143, %p144
    %p146 = scmp.ne.s32.totalorder %s134, %s135
    %p147 = scmp.eq.s32.totalorder %s26, 1
    %p148 = por %p146, %p147
    %p150 = scmp.ne.s32.totalorder %s135, %s149
    %p151 = scmp.eq.s32.totalorder %s26, 0
    %p152 = por %p150, %p151
    %s154 = sadd.s32 %s153, 1
    %p157 = scmp.eq.s32.totalorder %s20, 1
    %p158 = scmp.ne.s32.totalorder %s153, %s155
    %p159 = scmp.eq.s32.totalorder %s20, 0
    %p160 = por %p158, %p159
    %p161 = scmp.ne.s32.totalorder %s153, %s155
    %p162 = scmp.eq.s32.totalorder %s25, 1
    %p163 = por %p161, %p162
    %p164 = scmp.ne.s32.totalorder %s155, %s156
    %p165 = scmp.eq.s32.totalorder %s25, 0
    %p166 = por %p164, %p165
    %p167 = scmp.ne.s32.totalorder %s155, %s156
    %p168 = scmp.eq.s32.totalorder %s26, 1
    %p169 = por %p167, %p168
    %p171 = scmp.ne.s32.totalorder %s156, %s170
    %p172 = scmp.eq.s32.totalorder %s26, 0
    %p173 = por %p171, %p172
    %s175 = sadd.s32 %s174, 1
    %p178 = scmp.eq.s32.totalorder %s20, 1
    %p179 = scmp.ne.s32.totalorder %s174, %s176
    %p180 = scmp.eq.s32.totalorder %s20, 0
    %p181 = por %p179, %p180
    %p182 = scmp.ne.s32.totalorder %s174, %s176
    %p183 = scmp.eq.s32.totalorder %s25, 1
    %p184 = por %p182, %p183
    %p185 = scmp.ne.s32.totalorder %s176, %s177
    %p186 = scmp.eq.s32.totalorder %s25, 0
    %p187 = por %p185, %p186
    %p188 = scmp.ne.s32.totalorder %s176, %s177
    %p189 = scmp.eq.s32.totalorder %s26, 1
    %p190 = por %p188, %p189
    %p192 = scmp.ne.s32.totalorder %s177, %s191
    %p193 = scmp.eq.s32.totalorder %s26, 0
    %p194 = por %p192, %p193
    %s196 = sadd.s32 %s195, 1
    %p199 = scmp.eq.s32.totalorder %s20, 1
    %p200 = scmp.ne.s32.totalorder %s195, %s197
    %p201 = scmp.eq.s32.totalorder %s20, 0
    %p202 = por %p200, %p201
    %p203 = scmp.ne.s32.totalorder %s195, %s197
    %p204 = scmp.eq.s32.totalorder %s25, 1
    %p205 = por %p203, %p204
    %p206 = scmp.ne.s32.totalorder %s197, %s198
    %p207 = scmp.eq.s32.totalorder %s25, 0
    %p208 = por %p206, %p207
    %p209 = scmp.ne.s32.totalorder %s197, %s198
    %p210 = scmp.eq.s32.totalorder %s26, 1
    %p211 = por %p209, %p210
    %p213 = scmp.ne.s32.totalorder %s198, %s212
    %p214 = scmp.eq.s32.totalorder %s26, 0
    %p215 = por %p213, %p214
    %s217 = sadd.s32 %s216, 1
    %p220 = scmp.eq.s32.totalorder %s20, 1
    %p221 = scmp.ne.s32.totalorder %s216, %s218
    %p222 = scmp.eq.s32.totalorder %s20, 0
    %p223 = por %p221, %p222
    %p224 = scmp.ne.s32.totalorder %s216, %s218
    %p225 = scmp.eq.s32.totalorder %s25, 1
    %p226 = por %p224, %p225
    %p227 = scmp.ne.s32.totalorder %s218, %s219
    %p228 = scmp.eq.s32.totalorder %s25, 0
    %p229 = por %p227, %p228
    %p230 = scmp.ne.s32.totalorder %s218, %s219
    %p231 = scmp.eq.s32.totalorder %s26, 1
    %p232 = por %p230, %p231
    %p234 = scmp.ne.s32.totalorder %s219, %s233
    %p235 = scmp.eq.s32.totalorder %s26, 0
    %p236 = por %p234, %p235
    %s238 = sadd.s32 %s237, 1
    %p241 = scmp.eq.s32.totalorder %s20, 1
    %p242 = scmp.ne.s32.totalorder %s237, %s239
    %p243 = scmp.eq.s32.totalorder %s20, 0
    %p244 = por %p242, %p243
    %p245 = scmp.ne.s32.totalorder %s237, %s239
    %p246 = scmp.eq.s32.totalorder %s25, 1
    %p247 = por %p245, %p246
    %p248 = scmp.ne.s32.totalorder %s239, %s240
    %p249 = scmp.eq.s32.totalorder %s25, 0
    %p250 = por %p248, %p249
    %p251 = scmp.ne.s32.totalorder %s239, %s240
    %p252 = scmp.eq.s32.totalorder %s26, 1
    %p253 = por %p251, %p252
    %p255 = scmp.ne.s32.totalorder %s240, %s254
    %p256 = scmp.eq.s32.totalorder %s26, 0
    %p257 = por %p255, %p256
    %s258 = ssub.s32 %s20, %s27
    %p259 = scmp.eq.s32.totalorder %s258, 0
    %s261 = sadd.s32 %s260, 1
    %s262 = scalar_select %p259, %s260, %s261
    %p265 = pneg %p259
    %p266 = scmp.eq.s32.totalorder %s20, 1
    %p267 = por %p265, %p266
    %p268 = scmp.ne.s32.totalorder %s260, %s263
    %p269 = scmp.eq.s32.totalorder %s20, 0
    %p270 = por %p268, %p269
    %p271 = scmp.ne.s32.totalorder %s260, %s263
    %p272 = scmp.eq.s32.totalorder %s25, 1
    %p273 = por %p271, %p272
    %p274 = scmp.ne.s32.totalorder %s263, %s264
    %p275 = scmp.eq.s32.totalorder %s25, 0
    %p276 = por %p274, %p275
    %p277 = scmp.ne.s32.totalorder %s263, %s264
    %p278 = scmp.eq.s32.totalorder %s26, 1
    %p279 = por %p277, %p278
    %p281 = scmp.ne.s32.totalorder %s264, %s280
    %p282 = scmp.eq.s32.totalorder %s26, 0
    %p283 = por %p281, %p282
    %s284 = ssub.s32 %s20, %s27
    %p285 = scmp.eq.s32.totalorder %s284, 0
    %s287 = sadd.s32 %s286, 1
    %s288 = scalar_select %p285, %s286, %s287
    %p291 = pneg %p285
    %p292 = scmp.eq.s32.totalorder %s20, 1
    %p293 = por %p291, %p292
    %p294 = scmp.ne.s32.totalorder %s286, %s289
    %p295 = scmp.eq.s32.totalorder %s20, 0
    %p296 = por %p294, %p295
    %p297 = scmp.ne.s32.totalorder %s286, %s289
    %p298 = scmp.eq.s32.totalorder %s25, 1
    %p299 = por %p297, %p298
    %p300 = scmp.ne.s32.totalorder %s289, %s290
    %p301 = scmp.eq.s32.totalorder %s25, 0
    %p302 = por %p300, %p301
    %p303 = scmp.ne.s32.totalorder %s289, %s290
    %p304 = scmp.eq.s32.totalorder %s26, 1
    %p305 = por %p303, %p304
    %p307 = scmp.ne.s32.totalorder %s290, %s306
    %p308 = scmp.eq.s32.totalorder %s26, 0
    %p309 = por %p307, %p308
    %s310 = ssub.s32 %s20, %s27
    %p311 = scmp.eq.s32.totalorder %s310, 0
    %s313 = sadd.s32 %s312, 1
    %s314 = scalar_select %p311, %s312, %s313
    %p317 = pneg %p311
    %p318 = scmp.eq.s32.totalorder %s20, 1
    %p319 = por %p317, %p318
    %p320 = scmp.ne.s32.totalorder %s312, %s315
    %p321 = scmp.eq.s32.totalorder %s20, 0
    %p322 = por %p320, %p321
    %p323 = scmp.ne.s32.totalorder %s312, %s315
    %p324 = scmp.eq.s32.totalorder %s25, 1
    %p325 = por %p323, %p324
    %p326 = scmp.ne.s32.totalorder %s315, %s316
    %p327 = scmp.eq.s32.totalorder %s25, 0
    %p328 = por %p326, %p327
    %p329 = scmp.ne.s32.totalorder %s315, %s316
    %p330 = scmp.eq.s32.totalorder %s26, 1
    %p331 = por %p329, %p330
    %p333 = scmp.ne.s32.totalorder %s316, %s332
    %p334 = scmp.eq.s32.totalorder %s26, 0
    %p335 = por %p333, %p334
    %s336 = ssub.s32 %s20, %s27
    %p337 = scmp.eq.s32.totalorder %s336, 0
    %s339 = sadd.s32 %s338, 1
    %s340 = scalar_select %p337, %s338, %s339
    %p343 = pneg %p337
    %p344 = scmp.eq.s32.totalorder %s20, 1
    %p345 = por %p343, %p344
    %p346 = scmp.ne.s32.totalorder %s338, %s341
    %p347 = scmp.eq.s32.totalorder %s20, 0
    %p348 = por %p346, %p347
    %p349 = scmp.ne.s32.totalorder %s338, %s341
    %p350 = scmp.eq.s32.totalorder %s25, 1
    %p351 = por %p349, %p350
    %p352 = scmp.ne.s32.totalorder %s341, %s342
    %p353 = scmp.eq.s32.totalorder %s25, 0
    %p354 = por %p352, %p353
    %p355 = scmp.ne.s32.totalorder %s341, %s342
    %p356 = scmp.eq.s32.totalorder %s26, 1
    %p357 = por %p355, %p356
    %p359 = scmp.ne.s32.totalorder %s342, %s358
    %p360 = scmp.eq.s32.totalorder %s26, 0
    %p361 = por %p359, %p360
    %p362 = scmp.le.s32.totalorder 1, %s20
    %p363 = scmp.lt.s32.totalorder %s20, 3
    %p364 = pnand %p362, %p363
    %p365 = pneg %p364
    // Predicated region
    $region9: #{effn_forward.10} parent=5 // pred_check
      _
    $region10: #{effn_forward.10} parent=5 // pred_check_branch
      %367 = sbr.rel (%p364) target = $region12
    $region11: #{effn_forward.10} parent=5 // pred_region
      %s368 = ssub.s32 %s20, 1
      // Predicated region
      $region13: #{effn_forward.10} parent=11 // pred_check
        %p369 = pneg %p145
      $region14: #{effn_forward.10} parent=11 // pred_check_branch
        %371 = sbr.rel (%p369) target = $region16
      $region15: #{effn_forward.10} parent=11 // pred_region
        _
      $region16: #{effn_forward.10} parent=11 // pred_fallthru
        _
      // Predicated region
      $region17: #{effn_forward.10} parent=11 // pred_check
        %p372 = pneg %p166
      $region18: #{effn_forward.10} parent=11 // pred_check_branch
        %374 = sbr.rel (%p372) target = $region20
      $region19: #{effn_forward.10} parent=11 // pred_region
        _
      $region20: #{effn_forward.10} parent=11 // pred_fallthru
        _
      // Predicated region
      $region21: #{effn_forward.10} parent=11 // pred_check
        %p375 = pneg %p187
      $region22: #{effn_forward.10} parent=11 // pred_check_branch
        %377 = sbr.rel (%p375) target = $region24
      $region23: #{effn_forward.10} parent=11 // pred_region
        _
      $region24: #{effn_forward.10} parent=11 // pred_fallthru
        _
      // Predicated region
      $region25: #{effn_forward.10} parent=11 // pred_check
        %p378 = pneg %p208
      $region26: #{effn_forward.10} parent=11 // pred_check_branch
        %380 = sbr.rel (%p378) target = $region28
      $region27: #{effn_forward.10} parent=11 // pred_region
        _
      $region28: #{effn_forward.10} parent=11 // pred_fallthru
        _
      // Predicated region
      $region29: #{effn_forward.10} parent=11 // pred_check
        %p381 = pneg %p229
      $region30: #{effn_forward.10} parent=11 // pred_check_branch
        %383 = sbr.rel (%p381) target = $region32
      $region31: #{effn_forward.10} parent=11 // pred_region
        _
      $region32: #{effn_forward.10} parent=11 // pred_fallthru
        _
      // Predicated region
      $region33: #{effn_forward.10} parent=11 // pred_check
        %p384 = pneg %p250
      $region34: #{effn_forward.10} parent=11 // pred_check_branch
        %386 = sbr.rel (%p384) target = $region36
      $region35: #{effn_forward.10} parent=11 // pred_region
        _
      $region36: #{effn_forward.10} parent=11 // pred_fallthru
        _
    $region12: #{effn_forward.10} parent=5 // pred_fallthru
      _
    %p387 = scmp.lt.s32.totalorder %s20, 2
    // Predicated region
    $region37: #{effn_forward.10} parent=5 // pred_check
      %p388 = pneg %p387
    $region38: #{effn_forward.10} parent=5 // pred_check_branch
      %390 = sbr.rel (%p388) target = $region40
    $region39: #{effn_forward.10} parent=5 // pred_region
      // Predicated region
      $region41: #{effn_forward.10} parent=39 // pred_check
        %p391 = pneg %p40
      $region42: #{effn_forward.10} parent=39 // pred_check_branch
        %393 = sbr.rel (%p391) target = $region44
      $region43: #{effn_forward.10} parent=39 // pred_region
        %s394 = smul.u32 8, %s20
        %p395 = scmp.lt.s32.totalorder %s394, 15
        %s396 = scalar_select %p395, %s394, 15
        %s397 = smul.addr %s396, 8
        %s398 = scalar_lea.vmem %s0, %s397
        %s399 = smul.u32 8, %s20
      $region44: #{effn_forward.10} parent=39 // pred_fallthru
        _
      // Predicated region
      $region45: #{effn_forward.10} parent=39 // pred_check
        %p400 = pneg %p66
      $region46: #{effn_forward.10} parent=39 // pred_check_branch
        %402 = sbr.rel (%p400) target = $region48
      $region47: #{effn_forward.10} parent=39 // pred_region
        %s403 = smul.u32 8, %s20
        %p404 = scmp.lt.s32.totalorder %s403, 15
        %s405 = scalar_select %p404, %s403, 15
        %s406 = smul.addr %s405, 8
        %s407 = scalar_lea.vmem %s1, %s406
        %s408 = smul.u32 8, %s20
      $region48: #{effn_forward.10} parent=39 // pred_fallthru
        _
      // Predicated region
      $region49: #{effn_forward.10} parent=39 // pred_check
        %p409 = pneg %p92
      $region50: #{effn_forward.10} parent=39 // pred_check_branch
        %411 = sbr.rel (%p409) target = $region52
      $region51: #{effn_forward.10} parent=39 // pred_region
        %s412 = smul.u32 8, %s20
        %p413 = scmp.lt.s32.totalorder %s412, 15
        %s414 = scalar_select %p413, %s412, 15
        %s415 = smul.addr %s414, 8
        %s416 = scalar_lea.vmem %s2, %s415
        %s417 = smul.u32 8, %s20
      $region52: #{effn_forward.10} parent=39 // pred_fallthru
        _
      // Predicated region
      $region53: #{effn_forward.10} parent=39 // pred_check
        %p418 = pneg %p118
      $region54: #{effn_forward.10} parent=39 // pred_check_branch
        %420 = sbr.rel (%p418) target = $region56
      $region55: #{effn_forward.10} parent=39 // pred_region
        %s421 = smul.u32 8, %s20
        %p422 = scmp.lt.s32.totalorder %s421, 15
        %s423 = scalar_select %p422, %s421, 15
        %s424 = smul.addr %s423, 8
        %s425 = scalar_lea.vmem %s3, %s424
        %s426 = smul.u32 8, %s20
      $region56: #{effn_forward.10} parent=39 // pred_fallthru
        _
    $region40: #{effn_forward.10} parent=5 // pred_fallthru
      _
    %p427 = scmp.le.s32.totalorder 1, %s20
    %p428 = scmp.lt.s32.totalorder %s20, 3
    %p429 = pnand %p427, %p428
    %p430 = pneg %p429
    // Predicated region
    $region57: #{effn_forward.10} parent=5 // pred_check
      _
    $region58: #{effn_forward.10} parent=5 // pred_check_branch
      %432 = sbr.rel (%p429) target = $region60
    $region59: #{effn_forward.10} parent=5 // pred_region
      %s433 = ssub.s32 %s20, 1
      %s434 = smul.u32 8, %s25
      %p435 = scmp.lt.s32.totalorder %s434, 15
      %s436 = scalar_select %p435, %s434, 15
      %s437 = smul.addr %s436, 8
      %s438 = scalar_lea.vmem %s0, %s437
      %p439 = pneg %p46
      %p440 = pneg %p43
      %s441 = smul.u32 8, %s25
      %p442 = scmp.lt.s32.totalorder %s441, 15
      %s443 = scalar_select %p442, %s441, 15
      %s444 = smul.addr %s443, 8
      %s445 = scalar_lea.vmem %s1, %s444
      %p446 = pneg %p72
      %p447 = pneg %p69
      %s448 = smul.u32 8, %s25
      %p449 = scmp.lt.s32.totalorder %s448, 15
      %s450 = scalar_select %p449, %s448, 15
      %s451 = smul.addr %s450, 8
      %s452 = scalar_lea.vmem %s2, %s451
      %p453 = pneg %p98
      %p454 = pneg %p95
      %s455 = smul.u32 8, %s25
      %p456 = scmp.lt.s32.totalorder %s455, 15
      %s457 = scalar_select %p456, %s455, 15
      %s458 = smul.addr %s457, 8
      %s459 = scalar_lea.vmem %s3, %s458
      %p460 = pneg %p124
      %p461 = pneg %p121
      %p462 = pneg %p145
      %p463 = pneg %p142
      %p464 = pneg %p166
      %p465 = pneg %p163
      %p466 = pneg %p187
      %p467 = pneg %p184
      %p468 = pneg %p208
      %p469 = pneg %p205
      %p470 = pneg %p229
      %p471 = pneg %p226
      %p472 = pneg %p250
      %p473 = pneg %p247
      %p474 = pneg %p276
      %p475 = pneg %p273
      %s476 = smul.u32 8, %s25
      %p477 = scmp.lt.s32.totalorder %s476, 15
      %s478 = scalar_select %p477, %s476, 15
      %s479 = smul.addr %s478, 8
      %s480 = scalar_lea.vmem %s10, %s479
      %p481 = pneg %p302
      %p482 = pneg %p299
      %s483 = smul.u32 8, %s25
      %p484 = scmp.lt.s32.totalorder %s483, 15
      %s485 = scalar_select %p484, %s483, 15
      %s486 = smul.addr %s485, 8
      %s487 = scalar_lea.vmem %s11, %s486
      %p488 = pneg %p328
      %p489 = pneg %p325
      %s490 = smul.u32 8, %s25
      %p491 = scmp.lt.s32.totalorder %s490, 15
      %s492 = scalar_select %p491, %s490, 15
      %s493 = smul.addr %s492, 8
      %s494 = scalar_lea.vmem %s12, %s493
      %p495 = pneg %p354
      %p496 = pneg %p351
      %s497 = smul.u32 8, %s25
      %p498 = scmp.lt.s32.totalorder %s497, 15
      %s499 = scalar_select %p498, %s497, 15
      %s500 = smul.addr %s499, 8
      %s501 = scalar_lea.vmem %s13, %s500
      %s502 = smul.u32 8, %s25
      %p503 = scmp.lt.s32.totalorder %s502, 15
      %s504 = scalar_select %p503, %s502, 15
      %s505 = smul.addr %s504, 8
      %s506 = scalar_lea.vmem %s0, %s505
      %s507 = smul.u32 8, %s25
      %s508 = smul.u32 8, %s25
      %p509 = scmp.lt.s32.totalorder %s508, 15
      %s510 = scalar_select %p509, %s508, 15
      %s511 = smul.addr %s510, 8
      %s512 = scalar_lea.vmem %s1, %s511
      %s513 = smul.u32 8, %s25
      %s514 = smul.u32 8, %s25
      %p515 = scmp.lt.s32.totalorder %s514, 15
      %s516 = scalar_select %p515, %s514, 15
      %s517 = smul.addr %s516, 8
      %s518 = scalar_lea.vmem %s2, %s517
      %s519 = smul.u32 8, %s25
      %s520 = smul.u32 8, %s25
      %p521 = scmp.lt.s32.totalorder %s520, 15
      %s522 = scalar_select %p521, %s520, 15
      %s523 = smul.addr %s522, 8
      %s524 = scalar_lea.vmem %s3, %s523
      %s525 = smul.u32 8, %s25
      %s526 = smul.u32 8, %s25
      %p527 = scmp.lt.s32.totalorder %s526, 15
      %s528 = scalar_select %p527, %s526, 15
      %s529 = smul.addr %s528, 8
      %s530 = scalar_lea.vmem %s10, %s529
      %s531 = smul.u32 8, %s25
      %s532 = smul.u32 8, %s25
      %p533 = scmp.lt.s32.totalorder %s532, 15
      %s534 = scalar_select %p533, %s532, 15
      %s535 = smul.addr %s534, 8
      %s536 = scalar_lea.vmem %s11, %s535
      %s537 = smul.u32 8, %s25
      %s538 = smul.u32 8, %s25
      %p539 = scmp.lt.s32.totalorder %s538, 15
      %s540 = scalar_select %p539, %s538, 15
      %s541 = smul.addr %s540, 8
      %s542 = scalar_lea.vmem %s12, %s541
      %s543 = smul.u32 8, %s25
      %s544 = smul.u32 8, %s25
      %p545 = scmp.lt.s32.totalorder %s544, 15
      %s546 = scalar_select %p545, %s544, 15
      %s547 = smul.addr %s546, 8
      %s548 = scalar_lea.vmem %s13, %s547
      %s549 = smul.u32 8, %s25
      %v550 = vld [vmem:[%s506] sm:$0xff]
      %v551 = vld [vmem:[%s506 + $0x8] sm:$0xff]
      %v552 = vld [vmem:[%s506 + $0x10] sm:$0xff]
      %v553 = vld [vmem:[%s506 + $0x18] sm:$0xff]
      %v554 = vld [vmem:[%s506 + $0x20] sm:$0xff]
      %v555 = vld [vmem:[%s506 + $0x28] sm:$0xff]
      %v556 = vld [vmem:[%s506 + $0x30] sm:$0xff]
      %v557 = vld [vmem:[%s506 + $0x38] sm:$0xff]
      %v558 = vld [vmem:[%s518] sm:$0xff]
      %v559 = vld [vmem:[%s518 + $0x8] sm:$0xff]
      %v560 = vld [vmem:[%s518 + $0x10] sm:$0xff]
      %v561 = vld [vmem:[%s518 + $0x18] sm:$0xff]
      %v562 = vld [vmem:[%s518 + $0x20] sm:$0xff]
      %v563 = vld [vmem:[%s518 + $0x28] sm:$0xff]
      %v564 = vld [vmem:[%s518 + $0x30] sm:$0xff]
      %v565 = vld [vmem:[%s518 + $0x38] sm:$0xff]
      %v566 = vld [vmem:[%s4] sm:$0xff]
      %v567 = vld [vmem:[%s4 + $0x8] sm:$0xff]
      %v568 = vld [vmem:[%s4 + $0x10] sm:$0xff]
      %v569 = vld [vmem:[%s4 + $0x18] sm:$0xff]
      %v570 = vld [vmem:[%s4 + $0x20] sm:$0xff]
      %v571 = vld [vmem:[%s4 + $0x28] sm:$0xff]
      %v572 = vld [vmem:[%s4 + $0x30] sm:$0xff]
      %v573 = vld [vmem:[%s4 + $0x38] sm:$0xff]
      %v574 = vld [vmem:[%s4 + $0x40] sm:$0xff]
      %v575 = vld [vmem:[%s4 + $0x48] sm:$0xff]
      %v576 = vld [vmem:[%s4 + $0x50] sm:$0xff]
      %v577 = vld [vmem:[%s4 + $0x58] sm:$0xff]
      %v578 = vld [vmem:[%s4 + $0x60] sm:$0xff]
      %v579 = vld [vmem:[%s4 + $0x68] sm:$0xff]
      %v580 = vld [vmem:[%s4 + $0x70] sm:$0xff]
      %v581 = vld [vmem:[%s4 + $0x78] sm:$0xff]
      %v582 = vld [vmem:[%s5] sm:$0xff]
      %v583 = vld [vmem:[%s5 + $0x8] sm:$0xff]
      %v584 = vld [vmem:[%s5 + $0x10] sm:$0xff]
      %v585 = vld [vmem:[%s5 + $0x18] sm:$0xff]
      %v586 = vld [vmem:[%s5 + $0x20] sm:$0xff]
      %v587 = vld [vmem:[%s5 + $0x28] sm:$0xff]
      %v588 = vld [vmem:[%s5 + $0x30] sm:$0xff]
      %v589 = vld [vmem:[%s5 + $0x38] sm:$0xff]
      %v590 = vld [vmem:[%s5 + $0x40] sm:$0xff]
      %v591 = vld [vmem:[%s5 + $0x48] sm:$0xff]
      %v592 = vld [vmem:[%s5 + $0x50] sm:$0xff]
      %v593 = vld [vmem:[%s5 + $0x58] sm:$0xff]
      %v594 = vld [vmem:[%s5 + $0x60] sm:$0xff]
      %v595 = vld [vmem:[%s5 + $0x68] sm:$0xff]
      %v596 = vld [vmem:[%s5 + $0x70] sm:$0xff]
      %v597 = vld [vmem:[%s5 + $0x78] sm:$0xff]
      %598 = vmatpush.msra.mxu0 %v597
      %599 = vmatpush.msra.mxu0 %v596
      %600 = vmatpush.msra.mxu0 %v595
      %601 = vmatpush.msra.mxu0 %v594
      %602 = vmatpush.msra.mxu0 %v593
      %603 = vmatpush.msra.mxu0 %v592
      %604 = vmatpush.msra.mxu0 %v591
      %605 = vmatpush.msra.mxu0 %v590
      %606 = vmatpush.msra.mxu0 %v589
      %607 = vmatpush.msra.mxu0 %v588
      %608 = vmatpush.msra.mxu0 %v587
      %609 = vmatpush.msra.mxu0 %v586
      %610 = vmatpush.msra.mxu0 %v585
      %611 = vmatpush.msra.mxu0 %v584
      %612 = vmatpush.msra.mxu0 %v583
      %613 = vmatpush.msra.mxu0 %v582
      %614 = vmatmul.f32.gmra.mxu0 %v558
      %v615 = vpop.f32.mrf.mxu0
      %v616 = vadd.f32 0.0, %v615
      %617 = vmatmul.f32.gmra.mxu0 %v559
      %v618 = vpop.f32.mrf.mxu0
      %v619 = vadd.f32 0.0, %v618
      %620 = vmatmul.f32.gmra.mxu0 %v560
      %v621 = vpop.f32.mrf.mxu0
      %v622 = vadd.f32 0.0, %v621
      %623 = vmatmul.f32.gmra.mxu0 %v561
      %v624 = vpop.f32.mrf.mxu0
      %v625 = vadd.f32 0.0, %v624
      %626 = vmatmul.f32.gmra.mxu0 %v562
      %v627 = vpop.f32.mrf.mxu0
      %v628 = vadd.f32 0.0, %v627
      %629 = vmatmul.f32.gmra.mxu0 %v563
      %v630 = vpop.f32.mrf.mxu0
      %v631 = vadd.f32 0.0, %v630
      %632 = vmatmul.f32.gmra.mxu0 %v564
      %v633 = vpop.f32.mrf.mxu0
      %v634 = vadd.f32 0.0, %v633
      %635 = vmatmul.f32.gmra.mxu0 %v565
      %v636 = vpop.f32.mrf.mxu0
      %v637 = vadd.f32 0.0, %v636
      %638 = vdwg.mxu0
      %639 = vmatpush.msra.mxu0 %v581
      %640 = vmatpush.msra.mxu0 %v580
      %641 = vmatpush.msra.mxu0 %v579
      %642 = vmatpush.msra.mxu0 %v578
      %643 = vmatpush.msra.mxu0 %v577
      %644 = vmatpush.msra.mxu0 %v576
      %645 = vmatpush.msra.mxu0 %v575
      %646 = vmatpush.msra.mxu0 %v574
      %647 = vmatpush.msra.mxu0 %v573
      %648 = vmatpush.msra.mxu0 %v572
      %649 = vmatpush.msra.mxu0 %v571
      %650 = vmatpush.msra.mxu0 %v570
      %651 = vmatpush.msra.mxu0 %v569
      %652 = vmatpush.msra.mxu0 %v568
      %653 = vmatpush.msra.mxu0 %v567
      %654 = vmatpush.msra.mxu0 %v566
      %655 = vmatmul.f32.gmra.mxu0 %v550
      %v656 = vpop.f32.mrf.mxu0
      %v657 = vadd.f32 %v616, %v656
      %658 = vmatmul.f32.gmra.mxu0 %v551
      %v659 = vpop.f32.mrf.mxu0
      %v660 = vadd.f32 %v619, %v659
      %661 = vmatmul.f32.gmra.mxu0 %v552
      %v662 = vpop.f32.mrf.mxu0
      %v663 = vadd.f32 %v622, %v662
      %664 = vmatmul.f32.gmra.mxu0 %v553
      %v665 = vpop.f32.mrf.mxu0
      %v666 = vadd.f32 %v625, %v665
      %667 = vmatmul.f32.gmra.mxu0 %v554
      %v668 = vpop.f32.mrf.mxu0
      %v669 = vadd.f32 %v628, %v668
      %670 = vmatmul.f32.gmra.mxu0 %v555
      %v671 = vpop.f32.mrf.mxu0
      %v672 = vadd.f32 %v631, %v671
      %673 = vmatmul.f32.gmra.mxu0 %v556
      %v674 = vpop.f32.mrf.mxu0
      %v675 = vadd.f32 %v634, %v674
      %676 = vmatmul.f32.gmra.mxu0 %v557
      %v677 = vpop.f32.mrf.mxu0
      %v678 = vadd.f32 %v637, %v677
      %679 = vdwg.mxu0
      %v680 = vmax.f32 %v657, 0.0
      %v681 = vmax.f32 %v660, 0.0
      %v682 = vmax.f32 %v663, 0.0
      %v683 = vmax.f32 %v666, 0.0
      %v684 = vmax.f32 %v669, 0.0
      %v685 = vmax.f32 %v672, 0.0
      %v686 = vmax.f32 %v675, 0.0
      %v687 = vmax.f32 %v678, 0.0
      %v688 = vld [vmem:[%s6] sm:$0xff]
      %v689 = vld [vmem:[%s8] sm:$0x1]
      %v691 = vperm.slane %v689, 0
      %vm693 = vcmask 64512
      %v695 = vsel %vm693, %v680, 0
      %v698 = vsel %vm693, %v681, 0
      %v701 = vsel %vm693, %v682, 0
      %v704 = vsel %vm693, %v683, 0
      %v707 = vsel %vm693, %v684, 0
      %v710 = vsel %vm693, %v685, 0
      %v713 = vsel %vm693, %v686, 0
      %v716 = vsel %vm693, %v687, 0
      %718 = vmatpush.msra.mxu0 0.0
      %719 = vmatpush.msra.mxu0 0.0
      %720 = vmatpush.msra.mxu0 0.0
      %721 = vmatpush.msra.mxu0 0.0
      %722 = vmatpush.msra.mxu0 0.0
      %723 = vmatpush.msra.mxu0 0.0
      %724 = vmatpush.msra.mxu0 0.0
      %725 = vmatpush.msra.mxu0 0.0
      %726 = vmatpush.msra.mxu0 0.0
      %727 = vmatpush.msra.mxu0 0.0
      %728 = vmatpush.msra.mxu0 0.0
      %729 = vmatpush.msra.mxu0 0.0
      %730 = vmatpush.msra.mxu0 0.0
      %731 = vmatpush.msra.mxu0 0.0
      %732 = vmatpush.msra.mxu0 0.0
      %733 = vmatpush.msra.mxu0 %v688
      %734 = vmatmul.f32.gmra.mxu0 %v695
      %v735 = vpop.f32.mrf.mxu0
      %v736 = vadd.f32 %v691, %v735
      %737 = vmatmul.f32.gmra.mxu0 %v698
      %v738 = vpop.f32.mrf.mxu0
      %v739 = vadd.f32 %v691, %v738
      %740 = vmatmul.f32.gmra.mxu0 %v701
      %v741 = vpop.f32.mrf.mxu0
      %v742 = vadd.f32 %v691, %v741
      %743 = vmatmul.f32.gmra.mxu0 %v704
      %v744 = vpop.f32.mrf.mxu0
      %v745 = vadd.f32 %v691, %v744
      %746 = vmatmul.f32.gmra.mxu0 %v707
      %v747 = vpop.f32.mrf.mxu0
      %v748 = vadd.f32 %v691, %v747
      %749 = vmatmul.f32.gmra.mxu0 %v710
      %v750 = vpop.f32.mrf.mxu0
      %v751 = vadd.f32 %v691, %v750
      %752 = vmatmul.f32.gmra.mxu0 %v713
      %v753 = vpop.f32.mrf.mxu0
      %v754 = vadd.f32 %v691, %v753
      %755 = vmatmul.f32.gmra.mxu0 %v716
      %v756 = vpop.f32.mrf.mxu0
      %v757 = vadd.f32 %v691, %v756
      %758 = vdwg.mxu0
      %v759 = vxor.u32 %v736, 2147483648
      %v760 = vxor.u32 %v739, 2147483648
      %v761 = vxor.u32 %v742, 2147483648
      %v762 = vxor.u32 %v745, 2147483648
      %v763 = vxor.u32 %v748, 2147483648
      %v764 = vxor.u32 %v751, 2147483648
      %v765 = vxor.u32 %v754, 2147483648
      %v766 = vxor.u32 %v757, 2147483648
      %v767 = vmul.f32 %v759, 1.442695
      %v768 = vpow.pop %v767
      %v769 = vmul.f32 %v760, 1.442695
      %v770 = vpow.pop %v769
      %v771 = vmul.f32 %v761, 1.442695
      %v772 = vpow.pop %v771
      %v773 = vmul.f32 %v762, 1.442695
      %v774 = vpow.pop %v773
      %v775 = vmul.f32 %v763, 1.442695
      %v776 = vpow.pop %v775
      %v777 = vmul.f32 %v764, 1.442695
      %v778 = vpow.pop %v777
      %v779 = vmul.f32 %v765, 1.442695
      %v780 = vpow.pop %v779
      %v781 = vmul.f32 %v766, 1.442695
      %v782 = vpow.pop %v781
      %v783 = vadd.f32 %v768, 1.0
      %v784 = vadd.f32 %v770, 1.0
      %v785 = vadd.f32 %v772, 1.0
      %v786 = vadd.f32 %v774, 1.0
      %v787 = vadd.f32 %v776, 1.0
      %v788 = vadd.f32 %v778, 1.0
      %v789 = vadd.f32 %v780, 1.0
      %v790 = vadd.f32 %v782, 1.0
      %v791 = vrcp.pop %v783
      %v792 = vmul.f32 %v783, %v791
      %v793 = vsub.f32 1.0, %v792
      %v794 = vmul.f32 %v791, %v793
      %v795 = vadd.f32 %v791, %v794
      %vm796 = vweird.f32 %v783
      %vm797 = vweird.f32 %v791
      %vm798 = vmor %vm796, %vm797
      %v799 = vsel %vm798, %v791, %v795
      %v800 = vand.u32 2147483647, %v783
      %vm801 = vcmp.eq.f32.partialorder %v800, 8.507059e+37
      %v802 = vand.u32 %v783, 2147483648
      %v803 = vor.u32 1.1754944e-38, %v802
      %v804 = vsel %vm801, %v803, %v799
      %v805 = vmul.f32 1.0, %v804
      %v806 = vrcp.pop %v784
      %v807 = vmul.f32 %v784, %v806
      %v808 = vsub.f32 1.0, %v807
      %v809 = vmul.f32 %v806, %v808
      %v810 = vadd.f32 %v806, %v809
      %vm811 = vweird.f32 %v784
      %vm812 = vweird.f32 %v806
      %vm813 = vmor %vm811, %vm812
      %v814 = vsel %vm813, %v806, %v810
      %v815 = vand.u32 2147483647, %v784
      %vm816 = vcmp.eq.f32.partialorder %v815, 8.507059e+37
      %v817 = vand.u32 %v784, 2147483648
      %v818 = vor.u32 1.1754944e-38, %v817
      %v819 = vsel %vm816, %v818, %v814
      %v820 = vmul.f32 1.0, %v819
      %v821 = vrcp.pop %v785
      %v822 = vmul.f32 %v785, %v821
      %v823 = vsub.f32 1.0, %v822
      %v824 = vmul.f32 %v821, %v823
      %v825 = vadd.f32 %v821, %v824
      %vm826 = vweird.f32 %v785
      %vm827 = vweird.f32 %v821
      %vm828 = vmor %vm826, %vm827
      %v829 = vsel %vm828, %v821, %v825
      %v830 = vand.u32 2147483647, %v785
      %vm831 = vcmp.eq.f32.partialorder %v830, 8.507059e+37
      %v832 = vand.u32 %v785, 2147483648
      %v833 = vor.u32 1.1754944e-38, %v832
      %v834 = vsel %vm831, %v833, %v829
      %v835 = vmul.f32 1.0, %v834
      %v836 = vrcp.pop %v786
      %v837 = vmul.f32 %v786, %v836
      %v838 = vsub.f32 1.0, %v837
      %v839 = vmul.f32 %v836, %v838
      %v840 = vadd.f32 %v836, %v839
      %vm841 = vweird.f32 %v786
      %vm842 = vweird.f32 %v836
      %vm843 = vmor %vm841, %vm842
      %v844 = vsel %vm843, %v836, %v840
      %v845 = vand.u32 2147483647, %v786
      %vm846 = vcmp.eq.f32.partialorder %v845, 8.507059e+37
      %v847 = vand.u32 %v786, 2147483648
      %v848 = vor.u32 1.1754944e-38, %v847
      %v849 = vsel %vm846, %v848, %v844
      %v850 = vmul.f32 1.0, %v849
      %v851 = vrcp.pop %v787
      %v852 = vmul.f32 %v787, %v851
      %v853 = vsub.f32 1.0, %v852
      %v854 = vmul.f32 %v851, %v853
      %v855 = vadd.f32 %v851, %v854
      %vm856 = vweird.f32 %v787
      %vm857 = vweird.f32 %v851
      %vm858 = vmor %vm856, %vm857
      %v859 = vsel %vm858, %v851, %v855
      %v860 = vand.u32 2147483647, %v787
      %vm861 = vcmp.eq.f32.partialorder %v860, 8.507059e+37
      %v862 = vand.u32 %v787, 2147483648
      %v863 = vor.u32 1.1754944e-38, %v862
      %v864 = vsel %vm861, %v863, %v859
      %v865 = vmul.f32 1.0, %v864
      %v866 = vrcp.pop %v788
      %v867 = vmul.f32 %v788, %v866
      %v868 = vsub.f32 1.0, %v867
      %v869 = vmul.f32 %v866, %v868
      %v870 = vadd.f32 %v866, %v869
      %vm871 = vweird.f32 %v788
      %vm872 = vweird.f32 %v866
      %vm873 = vmor %vm871, %vm872
      %v874 = vsel %vm873, %v866, %v870
      %v875 = vand.u32 2147483647, %v788
      %vm876 = vcmp.eq.f32.partialorder %v875, 8.507059e+37
      %v877 = vand.u32 %v788, 2147483648
      %v878 = vor.u32 1.1754944e-38, %v877
      %v879 = vsel %vm876, %v878, %v874
      %v880 = vmul.f32 1.0, %v879
      %v881 = vrcp.pop %v789
      %v882 = vmul.f32 %v789, %v881
      %v883 = vsub.f32 1.0, %v882
      %v884 = vmul.f32 %v881, %v883
      %v885 = vadd.f32 %v881, %v884
      %vm886 = vweird.f32 %v789
      %vm887 = vweird.f32 %v881
      %vm888 = vmor %vm886, %vm887
      %v889 = vsel %vm888, %v881, %v885
      %v890 = vand.u32 2147483647, %v789
      %vm891 = vcmp.eq.f32.partialorder %v890, 8.507059e+37
      %v892 = vand.u32 %v789, 2147483648
      %v893 = vor.u32 1.1754944e-38, %v892
      %v894 = vsel %vm891, %v893, %v889
      %v895 = vmul.f32 1.0, %v894
      %v896 = vrcp.pop %v790
      %v897 = vmul.f32 %v790, %v896
      %v898 = vsub.f32 1.0, %v897
      %v899 = vmul.f32 %v896, %v898
      %v900 = vadd.f32 %v896, %v899
      %vm901 = vweird.f32 %v790
      %vm902 = vweird.f32 %v896
      %vm903 = vmor %vm901, %vm902
      %v904 = vsel %vm903, %v896, %v900
      %v905 = vand.u32 2147483647, %v790
      %vm906 = vcmp.eq.f32.partialorder %v905, 8.507059e+37
      %v907 = vand.u32 %v790, 2147483648
      %v908 = vor.u32 1.1754944e-38, %v907
      %v909 = vsel %vm906, %v908, %v904
      %v910 = vmul.f32 1.0, %v909
      %v911 = vld [vmem:[%s7] sm:$0xff]
      %v912 = vld [vmem:[%s9] sm:$0x1]
      %v914 = vperm.slane %v912, 0
      %916 = vmatpush.msra.mxu0 0.0
      %917 = vmatpush.msra.mxu0 0.0
      %918 = vmatpush.msra.mxu0 0.0
      %919 = vmatpush.msra.mxu0 0.0
      %920 = vmatpush.msra.mxu0 0.0
      %921 = vmatpush.msra.mxu0 0.0
      %922 = vmatpush.msra.mxu0 0.0
      %923 = vmatpush.msra.mxu0 0.0
      %924 = vmatpush.msra.mxu0 0.0
      %925 = vmatpush.msra.mxu0 0.0
      %926 = vmatpush.msra.mxu0 0.0
      %927 = vmatpush.msra.mxu0 0.0
      %928 = vmatpush.msra.mxu0 0.0
      %929 = vmatpush.msra.mxu0 0.0
      %930 = vmatpush.msra.mxu0 0.0
      %931 = vmatpush.msra.mxu0 %v911
      %932 = vmatmul.f32.gmra.mxu0 %v695
      %v933 = vpop.f32.mrf.mxu0
      %v934 = vadd.f32 %v914, %v933
      %935 = vmatmul.f32.gmra.mxu0 %v698
      %v936 = vpop.f32.mrf.mxu0
      %v937 = vadd.f32 %v914, %v936
      %938 = vmatmul.f32.gmra.mxu0 %v701
      %v939 = vpop.f32.mrf.mxu0
      %v940 = vadd.f32 %v914, %v939
      %941 = vmatmul.f32.gmra.mxu0 %v704
      %v942 = vpop.f32.mrf.mxu0
      %v943 = vadd.f32 %v914, %v942
      %944 = vmatmul.f32.gmra.mxu0 %v707
      %v945 = vpop.f32.mrf.mxu0
      %v946 = vadd.f32 %v914, %v945
      %947 = vmatmul.f32.gmra.mxu0 %v710
      %v948 = vpop.f32.mrf.mxu0
      %v949 = vadd.f32 %v914, %v948
      %950 = vmatmul.f32.gmra.mxu0 %v713
      %v951 = vpop.f32.mrf.mxu0
      %v952 = vadd.f32 %v914, %v951
      %953 = vmatmul.f32.gmra.mxu0 %v716
      %v954 = vpop.f32.mrf.mxu0
      %v955 = vadd.f32 %v914, %v954
      %956 = vdwg.mxu0
      %v957 = vxor.u32 %v934, 2147483648
      %v958 = vxor.u32 %v937, 2147483648
      %v959 = vxor.u32 %v940, 2147483648
      %v960 = vxor.u32 %v943, 2147483648
      %v961 = vxor.u32 %v946, 2147483648
      %v962 = vxor.u32 %v949, 2147483648
      %v963 = vxor.u32 %v952, 2147483648
      %v964 = vxor.u32 %v955, 2147483648
      %v965 = vmul.f32 %v957, 1.442695
      %v966 = vpow.pop %v965
      %v967 = vmul.f32 %v958, 1.442695
      %v968 = vpow.pop %v967
      %v969 = vmul.f32 %v959, 1.442695
      %v970 = vpow.pop %v969
      %v971 = vmul.f32 %v960, 1.442695
      %v972 = vpow.pop %v971
      %v973 = vmul.f32 %v961, 1.442695
      %v974 = vpow.pop %v973
      %v975 = vmul.f32 %v962, 1.442695
      %v976 = vpow.pop %v975
      %v977 = vmul.f32 %v963, 1.442695
      %v978 = vpow.pop %v977
      %v979 = vmul.f32 %v964, 1.442695
      %v980 = vpow.pop %v979
      %v981 = vadd.f32 %v966, 1.0
      %v982 = vadd.f32 %v968, 1.0
      %v983 = vadd.f32 %v970, 1.0
      %v984 = vadd.f32 %v972, 1.0
      %v985 = vadd.f32 %v974, 1.0
      %v986 = vadd.f32 %v976, 1.0
      %v987 = vadd.f32 %v978, 1.0
      %v988 = vadd.f32 %v980, 1.0
      %v989 = vrcp.pop %v981
      %v990 = vmul.f32 %v981, %v989
      %v991 = vsub.f32 1.0, %v990
      %v992 = vmul.f32 %v989, %v991
      %v993 = vadd.f32 %v989, %v992
      %vm994 = vweird.f32 %v981
      %vm995 = vweird.f32 %v989
      %vm996 = vmor %vm994, %vm995
      %v997 = vsel %vm996, %v989, %v993
      %v998 = vand.u32 2147483647, %v981
      %vm999 = vcmp.eq.f32.partialorder %v998, 8.507059e+37
      %v1000 = vand.u32 %v981, 2147483648
      %v1001 = vor.u32 1.1754944e-38, %v1000
      %v1002 = vsel %vm999, %v1001, %v997
      %v1003 = vmul.f32 1.0, %v1002
      %v1004 = vrcp.pop %v982
      %v1005 = vmul.f32 %v982, %v1004
      %v1006 = vsub.f32 1.0, %v1005
      %v1007 = vmul.f32 %v1004, %v1006
      %v1008 = vadd.f32 %v1004, %v1007
      %vm1009 = vweird.f32 %v982
      %vm1010 = vweird.f32 %v1004
      %vm1011 = vmor %vm1009, %vm1010
      %v1012 = vsel %vm1011, %v1004, %v1008
      %v1013 = vand.u32 2147483647, %v982
      %vm1014 = vcmp.eq.f32.partialorder %v1013, 8.507059e+37
      %v1015 = vand.u32 %v982, 2147483648
      %v1016 = vor.u32 1.1754944e-38, %v1015
      %v1017 = vsel %vm1014, %v1016, %v1012
      %v1018 = vmul.f32 1.0, %v1017
      %v1019 = vrcp.pop %v983
      %v1020 = vmul.f32 %v983, %v1019
      %v1021 = vsub.f32 1.0, %v1020
      %v1022 = vmul.f32 %v1019, %v1021
      %v1023 = vadd.f32 %v1019, %v1022
      %vm1024 = vweird.f32 %v983
      %vm1025 = vweird.f32 %v1019
      %vm1026 = vmor %vm1024, %vm1025
      %v1027 = vsel %vm1026, %v1019, %v1023
      %v1028 = vand.u32 2147483647, %v983
      %vm1029 = vcmp.eq.f32.partialorder %v1028, 8.507059e+37
      %v1030 = vand.u32 %v983, 2147483648
      %v1031 = vor.u32 1.1754944e-38, %v1030
      %v1032 = vsel %vm1029, %v1031, %v1027
      %v1033 = vmul.f32 1.0, %v1032
      %v1034 = vrcp.pop %v984
      %v1035 = vmul.f32 %v984, %v1034
      %v1036 = vsub.f32 1.0, %v1035
      %v1037 = vmul.f32 %v1034, %v1036
      %v1038 = vadd.f32 %v1034, %v1037
      %vm1039 = vweird.f32 %v984
      %vm1040 = vweird.f32 %v1034
      %vm1041 = vmor %vm1039, %vm1040
      %v1042 = vsel %vm1041, %v1034, %v1038
      %v1043 = vand.u32 2147483647, %v984
      %vm1044 = vcmp.eq.f32.partialorder %v1043, 8.507059e+37
      %v1045 = vand.u32 %v984, 2147483648
      %v1046 = vor.u32 1.1754944e-38, %v1045
      %v1047 = vsel %vm1044, %v1046, %v1042
      %v1048 = vmul.f32 1.0, %v1047
      %v1049 = vrcp.pop %v985
      %v1050 = vmul.f32 %v985, %v1049
      %v1051 = vsub.f32 1.0, %v1050
      %v1052 = vmul.f32 %v1049, %v1051
      %v1053 = vadd.f32 %v1049, %v1052
      %vm1054 = vweird.f32 %v985
      %vm1055 = vweird.f32 %v1049
      %vm1056 = vmor %vm1054, %vm1055
      %v1057 = vsel %vm1056, %v1049, %v1053
      %v1058 = vand.u32 2147483647, %v985
      %vm1059 = vcmp.eq.f32.partialorder %v1058, 8.507059e+37
      %v1060 = vand.u32 %v985, 2147483648
      %v1061 = vor.u32 1.1754944e-38, %v1060
      %v1062 = vsel %vm1059, %v1061, %v1057
      %v1063 = vmul.f32 1.0, %v1062
      %v1064 = vrcp.pop %v986
      %v1065 = vmul.f32 %v986, %v1064
      %v1066 = vsub.f32 1.0, %v1065
      %v1067 = vmul.f32 %v1064, %v1066
      %v1068 = vadd.f32 %v1064, %v1067
      %vm1069 = vweird.f32 %v986
      %vm1070 = vweird.f32 %v1064
      %vm1071 = vmor %vm1069, %vm1070
      %v1072 = vsel %vm1071, %v1064, %v1068
      %v1073 = vand.u32 2147483647, %v986
      %vm1074 = vcmp.eq.f32.partialorder %v1073, 8.507059e+37
      %v1075 = vand.u32 %v986, 2147483648
      %v1076 = vor.u32 1.1754944e-38, %v1075
      %v1077 = vsel %vm1074, %v1076, %v1072
      %v1078 = vmul.f32 1.0, %v1077
      %v1079 = vrcp.pop %v987
      %v1080 = vmul.f32 %v987, %v1079
      %v1081 = vsub.f32 1.0, %v1080
      %v1082 = vmul.f32 %v1079, %v1081
      %v1083 = vadd.f32 %v1079, %v1082
      %vm1084 = vweird.f32 %v987
      %vm1085 = vweird.f32 %v1079
      %vm1086 = vmor %vm1084, %vm1085
      %v1087 = vsel %vm1086, %v1079, %v1083
      %v1088 = vand.u32 2147483647, %v987
      %vm1089 = vcmp.eq.f32.partialorder %v1088, 8.507059e+37
      %v1090 = vand.u32 %v987, 2147483648
      %v1091 = vor.u32 1.1754944e-38, %v1090
      %v1092 = vsel %vm1089, %v1091, %v1087
      %v1093 = vmul.f32 1.0, %v1092
      %v1094 = vrcp.pop %v988
      %v1095 = vmul.f32 %v988, %v1094
      %v1096 = vsub.f32 1.0, %v1095
      %v1097 = vmul.f32 %v1094, %v1096
      %v1098 = vadd.f32 %v1094, %v1097
      %vm1099 = vweird.f32 %v988
      %vm1100 = vweird.f32 %v1094
      %vm1101 = vmor %vm1099, %vm1100
      %v1102 = vsel %vm1101, %v1094, %v1098
      %v1103 = vand.u32 2147483647, %v988
      %vm1104 = vcmp.eq.f32.partialorder %v1103, 8.507059e+37
      %v1105 = vand.u32 %v988, 2147483648
      %v1106 = vor.u32 1.1754944e-38, %v1105
      %v1107 = vsel %vm1104, %v1106, %v1102
      %v1108 = vmul.f32 1.0, %v1107
      %v1109 = vmul.f32 %v805, %v550
      %v1110 = vmul.f32 %v820, %v551
      %v1111 = vmul.f32 %v835, %v552
      %v1112 = vmul.f32 %v850, %v553
      %v1113 = vmul.f32 %v865, %v554
      %v1114 = vmul.f32 %v880, %v555
      %v1115 = vmul.f32 %v895, %v556
      %v1116 = vmul.f32 %v910, %v557
      %1117 = vst [vmem:[%s530] sm:$0xff] %v1109
      %1118 = vst [vmem:[%s530 + $0x8] sm:$0xff] %v1110
      %1119 = vst [vmem:[%s530 + $0x10] sm:$0xff] %v1111
      %1120 = vst [vmem:[%s530 + $0x18] sm:$0xff] %v1112
      %1121 = vst [vmem:[%s530 + $0x20] sm:$0xff] %v1113
      %1122 = vst [vmem:[%s530 + $0x28] sm:$0xff] %v1114
      %1123 = vst [vmem:[%s530 + $0x30] sm:$0xff] %v1115
      %1124 = vst [vmem:[%s530 + $0x38] sm:$0xff] %v1116
      %v1125 = vld [vmem:[%s512] sm:$0xff]
      %v1126 = vld [vmem:[%s512 + $0x8] sm:$0xff]
      %v1127 = vld [vmem:[%s512 + $0x10] sm:$0xff]
      %v1128 = vld [vmem:[%s512 + $0x18] sm:$0xff]
      %v1129 = vld [vmem:[%s512 + $0x20] sm:$0xff]
      %v1130 = vld [vmem:[%s512 + $0x28] sm:$0xff]
      %v1131 = vld [vmem:[%s512 + $0x30] sm:$0xff]
      %v1132 = vld [vmem:[%s512 + $0x38] sm:$0xff]
      %v1133 = vmul.f32 %v805, %v1125
      %v1134 = vmul.f32 %v820, %v1126
      %v1135 = vmul.f32 %v835, %v1127
      %v1136 = vmul.f32 %v850, %v1128
      %v1137 = vmul.f32 %v865, %v1129
      %v1138 = vmul.f32 %v880, %v1130
      %v1139 = vmul.f32 %v895, %v1131
      %v1140 = vmul.f32 %v910, %v1132
      %1141 = vst [vmem:[%s536] sm:$0xff] %v1133
      %1142 = vst [vmem:[%s536 + $0x8] sm:$0xff] %v1134
      %1143 = vst [vmem:[%s536 + $0x10] sm:$0xff] %v1135
      %1144 = vst [vmem:[%s536 + $0x18] sm:$0xff] %v1136
      %1145 = vst [vmem:[%s536 + $0x20] sm:$0xff] %v1137
      %1146 = vst [vmem:[%s536 + $0x28] sm:$0xff] %v1138
      %1147 = vst [vmem:[%s536 + $0x30] sm:$0xff] %v1139
      %1148 = vst [vmem:[%s536 + $0x38] sm:$0xff] %v1140
      %v1149 = vmul.f32 %v1003, %v558
      %v1150 = vmul.f32 %v1018, %v559
      %v1151 = vmul.f32 %v1033, %v560
      %v1152 = vmul.f32 %v1048, %v561
      %v1153 = vmul.f32 %v1063, %v562
      %v1154 = vmul.f32 %v1078, %v563
      %v1155 = vmul.f32 %v1093, %v564
      %v1156 = vmul.f32 %v1108, %v565
      %1157 = vst [vmem:[%s542] sm:$0xff] %v1149
      %1158 = vst [vmem:[%s542 + $0x8] sm:$0xff] %v1150
      %1159 = vst [vmem:[%s542 + $0x10] sm:$0xff] %v1151
      %1160 = vst [vmem:[%s542 + $0x18] sm:$0xff] %v1152
      %1161 = vst [vmem:[%s542 + $0x20] sm:$0xff] %v1153
      %1162 = vst [vmem:[%s542 + $0x28] sm:$0xff] %v1154
      %1163 = vst [vmem:[%s542 + $0x30] sm:$0xff] %v1155
      %1164 = vst [vmem:[%s542 + $0x38] sm:$0xff] %v1156
      %v1165 = vld [vmem:[%s524] sm:$0xff]
      %v1166 = vld [vmem:[%s524 + $0x8] sm:$0xff]
      %v1167 = vld [vmem:[%s524 + $0x10] sm:$0xff]
      %v1168 = vld [vmem:[%s524 + $0x18] sm:$0xff]
      %v1169 = vld [vmem:[%s524 + $0x20] sm:$0xff]
      %v1170 = vld [vmem:[%s524 + $0x28] sm:$0xff]
      %v1171 = vld [vmem:[%s524 + $0x30] sm:$0xff]
      %v1172 = vld [vmem:[%s524 + $0x38] sm:$0xff]
      %v1173 = vmul.f32 %v1003, %v1165
      %v1174 = vmul.f32 %v1018, %v1166
      %v1175 = vmul.f32 %v1033, %v1167
      %v1176 = vmul.f32 %v1048, %v1168
      %v1177 = vmul.f32 %v1063, %v1169
      %v1178 = vmul.f32 %v1078, %v1170
      %v1179 = vmul.f32 %v1093, %v1171
      %v1180 = vmul.f32 %v1108, %v1172
      %1181 = vst [vmem:[%s548] sm:$0xff] %v1173
      %1182 = vst [vmem:[%s548 + $0x8] sm:$0xff] %v1174
      %1183 = vst [vmem:[%s548 + $0x10] sm:$0xff] %v1175
      %1184 = vst [vmem:[%s548 + $0x18] sm:$0xff] %v1176
      %1185 = vst [vmem:[%s548 + $0x20] sm:$0xff] %v1177
      %1186 = vst [vmem:[%s548 + $0x28] sm:$0xff] %v1178
      %1187 = vst [vmem:[%s548 + $0x30] sm:$0xff] %v1179
      %1188 = vst [vmem:[%s548 + $0x38] sm:$0xff] %v1180
      %s1189 = smul.u32 8, %s25
      %p1190 = scmp.lt.s32.totalorder %s1189, 15
      %s1191 = scalar_select %p1190, %s1189, 15
      %s1192 = smul.addr %s1191, 8
      %s1193 = scalar_lea.vmem %s10, %s1192
      %s1194 = smul.u32 8, %s25
      %p1195 = scmp.lt.s32.totalorder %s1194, 15
      %s1196 = scalar_select %p1195, %s1194, 15
      %s1197 = smul.addr %s1196, 8
      %s1198 = scalar_lea.vmem %s11, %s1197
      %s1199 = smul.u32 8, %s25
      %p1200 = scmp.lt.s32.totalorder %s1199, 15
      %s1201 = scalar_select %p1200, %s1199, 15
      %s1202 = smul.addr %s1201, 8
      %s1203 = scalar_lea.vmem %s12, %s1202
      %s1204 = smul.u32 8, %s25
      %p1205 = scmp.lt.s32.totalorder %s1204, 15
      %s1206 = scalar_select %p1205, %s1204, 15
      %s1207 = smul.addr %s1206, 8
      %s1208 = scalar_lea.vmem %s13, %s1207
      // Predicated region
      $region61: #{effn_forward.10} parent=59 // pred_check
        %p1209 = pneg %p273
      $region62: #{effn_forward.10} parent=59 // pred_check_branch
        %1211 = sbr.rel (%p1209) target = $region64
      $region63: #{effn_forward.10} parent=59 // pred_region
        %s1212 = smul.u32 8, %s25
      $region64: #{effn_forward.10} parent=59 // pred_fallthru
        _
      // Predicated region
      $region65: #{effn_forward.10} parent=59 // pred_check
        %p1213 = pneg %p299
      $region66: #{effn_forward.10} parent=59 // pred_check_branch
        %1215 = sbr.rel (%p1213) target = $region68
      $region67: #{effn_forward.10} parent=59 // pred_region
        %s1216 = smul.u32 8, %s25
      $region68: #{effn_forward.10} parent=59 // pred_fallthru
        _
      // Predicated region
      $region69: #{effn_forward.10} parent=59 // pred_check
        %p1217 = pneg %p325
      $region70: #{effn_forward.10} parent=59 // pred_check_branch
        %1219 = sbr.rel (%p1217) target = $region72
      $region71: #{effn_forward.10} parent=59 // pred_region
        %s1220 = smul.u32 8, %s25
      $region72: #{effn_forward.10} parent=59 // pred_fallthru
        _
      // Predicated region
      $region73: #{effn_forward.10} parent=59 // pred_check
        %p1221 = pneg %p351
      $region74: #{effn_forward.10} parent=59 // pred_check_branch
        %1223 = sbr.rel (%p1221) target = $region76
      $region75: #{effn_forward.10} parent=59 // pred_region
        %s1224 = smul.u32 8, %s25
      $region76: #{effn_forward.10} parent=59 // pred_fallthru
        _
    $region60: #{effn_forward.10} parent=5 // pred_fallthru
      _
    %p1225 = scmp.le.s32.totalorder 2, %s20
    // Predicated region
    $region77: #{effn_forward.10} parent=5 // pred_check
      %p1226 = pneg %p1225
    $region78: #{effn_forward.10} parent=5 // pred_check_branch
      %1228 = sbr.rel (%p1226) target = $region80
    $region79: #{effn_forward.10} parent=5 // pred_region
      %s1229 = ssub.s32 %s20, 2
      // Predicated region
      $region81: #{effn_forward.10} parent=79 // pred_check
        %p1230 = pneg %p279
      $region82: #{effn_forward.10} parent=79 // pred_check_branch
        %1232 = sbr.rel (%p1230) target = $region84
      $region83: #{effn_forward.10} parent=79 // pred_region
        %s1233 = smul.u32 8, %s26
        %p1234 = scmp.lt.s32.totalorder %s1233, 15
        %s1235 = scalar_select %p1234, %s1233, 15
        %s1236 = smul.addr %s1235, 8
        %s1237 = scalar_lea.vmem %s10, %s1236
      $region84: #{effn_forward.10} parent=79 // pred_fallthru
        _
      // Predicated region
      $region85: #{effn_forward.10} parent=79 // pred_check
        %p1238 = pneg %p305
      $region86: #{effn_forward.10} parent=79 // pred_check_branch
        %1240 = sbr.rel (%p1238) target = $region88
      $region87: #{effn_forward.10} parent=79 // pred_region
        %s1241 = smul.u32 8, %s26
        %p1242 = scmp.lt.s32.totalorder %s1241, 15
        %s1243 = scalar_select %p1242, %s1241, 15
        %s1244 = smul.addr %s1243, 8
        %s1245 = scalar_lea.vmem %s11, %s1244
      $region88: #{effn_forward.10} parent=79 // pred_fallthru
        _
      // Predicated region
      $region89: #{effn_forward.10} parent=79 // pred_check
        %p1246 = pneg %p331
      $region90: #{effn_forward.10} parent=79 // pred_check_branch
        %1248 = sbr.rel (%p1246) target = $region92
      $region91: #{effn_forward.10} parent=79 // pred_region
        %s1249 = smul.u32 8, %s26
        %p1250 = scmp.lt.s32.totalorder %s1249, 15
        %s1251 = scalar_select %p1250, %s1249, 15
        %s1252 = smul.addr %s1251, 8
        %s1253 = scalar_lea.vmem %s12, %s1252
      $region92: #{effn_forward.10} parent=79 // pred_fallthru
        _
      // Predicated region
      $region93: #{effn_forward.10} parent=79 // pred_check
        %p1254 = pneg %p357
      $region94: #{effn_forward.10} parent=79 // pred_check_branch
        %1256 = sbr.rel (%p1254) target = $region96
      $region95: #{effn_forward.10} parent=79 // pred_region
        %s1257 = smul.u32 8, %s26
        %p1258 = scmp.lt.s32.totalorder %s1257, 15
        %s1259 = scalar_select %p1258, %s1257, 15
        %s1260 = smul.addr %s1259, 8
        %s1261 = scalar_lea.vmem %s13, %s1260
      $region96: #{effn_forward.10} parent=79 // pred_fallthru
        _
    $region80: #{effn_forward.10} parent=5 // pred_fallthru
      _
  $region6: #{effn_forward.10} parent=0 // loop_footer
    %s24 = sadd.s32 1, %s20
  $region7: #{effn_forward.10} parent=0 // loop_footer_branch
    %19 = sbr.rel target = $region3
  $region8: #{effn_forward.10} parent=0 // loop_exit
    _

// kernel: effn_forward.13
$region0: #{effn_forward.13}
  #allocation0 [shape = 'u32[]', space=smem, size = 0x4, offset = 0x4, fixed_abs, tag = 'smem constant byte address 0x4 - core index']
  #allocation1 [shape = 'u32[72,128]{1,0:T(1,128)}', space=vmem, size = 0x9000, scoped, tag = 'internal scratch']
  %s0 = inlined_call_operand.vmem [shape: f32[128,128], index: 0, kind: input, shape index: {}]
  %s1 = inlined_call_operand.vmem [shape: f32[128,128], index: 1, kind: input, shape index: {}]
  %s2 = inlined_call_operand.vmem [shape: f32[128,128], index: 2, kind: input, shape index: {}]
  %s3 = inlined_call_operand.vmem [shape: f32[128,128], index: 3, kind: input, shape index: {}]
  %s4 = inlined_call_operand.vmem [shape: f32[128,128], index: 4, kind: input, shape index: {}]
  %s5 = inlined_call_operand.vmem [shape: f32[128,128], index: 5, kind: input, shape index: {}]
  %s6 = inlined_call_operand.vmem [shape: bf16[512,128], index: 6, kind: input, shape index: {}]
  %s7 = inlined_call_operand.vmem [shape: f32[128,128], index: 7, kind: output, shape index: {}]
  %s8 = sld [smem:[#allocation0]]
  $region61: #{effn_forward.13} parent=0
    _
  %s10 = ssub.s32 1, %s8
  %s11 = scalar_select 0, %s10, %s8
  loop: start=0, step=1, limit=4
  $region2: #{effn_forward.13} parent=0 // loop_pre_header
    _
  $region3: #{effn_forward.13} parent=0 // loop_header
    %s13 = sphi 0, %s17
    %p14 = scmp.ge.s32.totalorder %s13, 4
    %s23 = sphi 0, %s25
    %s26 = sphi 0, %s23
    %s27 = sphi 0, %s26
    %s43 = sphi 0, %s27
    %s49 = sphi 0, %s51
    %s52 = sphi 0, %s49
    %s53 = sphi 0, %s52
    %s69 = sphi 0, %s53
    %s75 = sphi 0, %s77
    %s78 = sphi 0, %s75
    %s79 = sphi 0, %s78
    %s95 = sphi 0, %s79
    %s101 = sphi 0, %s103
    %s104 = sphi 0, %s101
    %s105 = sphi 0, %s104
    %s121 = sphi 0, %s105
    %s127 = sphi 0, %s129
    %s130 = sphi 0, %s127
    %s131 = sphi 0, %s130
    %s147 = sphi 0, %s131
    %s153 = sphi 0, %s155
    %s156 = sphi 0, %s153
    %s157 = sphi 0, %s156
    %s173 = sphi 0, %s157
    %s177 = sphi 0, %s177
    %s179 = sphi 0, %s177
    %s180 = sphi 0, %s179
    %s194 = sphi 0, %s180
    %s200 = sphi 0, %s202
    %s203 = sphi 0, %s200
    %s204 = sphi 0, %s203
    %s220 = sphi 0, %s204
  $region4: #{effn_forward.13} parent=0 // loop_header_branch
    %16 = sbr.rel (%p14) target = $region8
  $region5: #{effn_forward.13} parent=0 // loop_body
    %s18 = ssub.s32 %s13, 1
    %s19 = ssub.s32 %s13, 2
    %s20 = sadd.s32 %s13, 1
    %s21 = ssub.s32 %s13, %s20
    %p22 = scmp.eq.s32.totalorder %s21, 0
    %s24 = sadd.s32 %s23, 1
    %s25 = scalar_select %p22, %s23, %s24
    %p28 = pneg %p22
    %p29 = scmp.eq.s32.totalorder %s13, 1
    %p30 = por %p28, %p29
    %p31 = scmp.ne.s32.totalorder %s23, %s26
    %p32 = scmp.eq.s32.totalorder %s13, 0
    %p33 = por %p31, %p32
    %p34 = scmp.ne.s32.totalorder %s23, %s26
    %p35 = scmp.eq.s32.totalorder %s18, 1
    %p36 = por %p34, %p35
    %p37 = scmp.ne.s32.totalorder %s26, %s27
    %p38 = scmp.eq.s32.totalorder %s18, 0
    %p39 = por %p37, %p38
    %p40 = scmp.ne.s32.totalorder %s26, %s27
    %p41 = scmp.eq.s32.totalorder %s19, 1
    %p42 = por %p40, %p41
    %p44 = scmp.ne.s32.totalorder %s27, %s43
    %p45 = scmp.eq.s32.totalorder %s19, 0
    %p46 = por %p44, %p45
    %s47 = ssub.s32 %s13, %s20
    %p48 = scmp.eq.s32.totalorder %s47, 0
    %s50 = sadd.s32 %s49, 1
    %s51 = scalar_select %p48, %s49, %s50
    %p54 = pneg %p48
    %p55 = scmp.eq.s32.totalorder %s13, 1
    %p56 = por %p54, %p55
    %p57 = scmp.ne.s32.totalorder %s49, %s52
    %p58 = scmp.eq.s32.totalorder %s13, 0
    %p59 = por %p57, %p58
    %p60 = scmp.ne.s32.totalorder %s49, %s52
    %p61 = scmp.eq.s32.totalorder %s18, 1
    %p62 = por %p60, %p61
    %p63 = scmp.ne.s32.totalorder %s52, %s53
    %p64 = scmp.eq.s32.totalorder %s18, 0
    %p65 = por %p63, %p64
    %p66 = scmp.ne.s32.totalorder %s52, %s53
    %p67 = scmp.eq.s32.totalorder %s19, 1
    %p68 = por %p66, %p67
    %p70 = scmp.ne.s32.totalorder %s53, %s69
    %p71 = scmp.eq.s32.totalorder %s19, 0
    %p72 = por %p70, %p71
    %s73 = ssub.s32 %s13, %s20
    %p74 = scmp.eq.s32.totalorder %s73, 0
    %s76 = sadd.s32 %s75, 1
    %s77 = scalar_select %p74, %s75, %s76
    %p80 = pneg %p74
    %p81 = scmp.eq.s32.totalorder %s13, 1
    %p82 = por %p80, %p81
    %p83 = scmp.ne.s32.totalorder %s75, %s78
    %p84 = scmp.eq.s32.totalorder %s13, 0
    %p85 = por %p83, %p84
    %p86 = scmp.ne.s32.totalorder %s75, %s78
    %p87 = scmp.eq.s32.totalorder %s18, 1
    %p88 = por %p86, %p87
    %p89 = scmp.ne.s32.totalorder %s78, %s79
    %p90 = scmp.eq.s32.totalorder %s18, 0
    %p91 = por %p89, %p90
    %p92 = scmp.ne.s32.totalorder %s78, %s79
    %p93 = scmp.eq.s32.totalorder %s19, 1
    %p94 = por %p92, %p93
    %p96 = scmp.ne.s32.totalorder %s79, %s95
    %p97 = scmp.eq.s32.totalorder %s19, 0
    %p98 = por %p96, %p97
    %s99 = ssub.s32 %s13, %s20
    %p100 = scmp.eq.s32.totalorder %s99, 0
    %s102 = sadd.s32 %s101, 1
    %s103 = scalar_select %p100, %s101, %s102
    %p106 = pneg %p100
    %p107 = scmp.eq.s32.totalorder %s13, 1
    %p108 = por %p106, %p107
    %p109 = scmp.ne.s32.totalorder %s101, %s104
    %p110 = scmp.eq.s32.totalorder %s13, 0
    %p111 = por %p109, %p110
    %p112 = scmp.ne.s32.totalorder %s101, %s104
    %p113 = scmp.eq.s32.totalorder %s18, 1
    %p114 = por %p112, %p113
    %p115 = scmp.ne.s32.totalorder %s104, %s105
    %p116 = scmp.eq.s32.totalorder %s18, 0
    %p117 = por %p115, %p116
    %p118 = scmp.ne.s32.totalorder %s104, %s105
    %p119 = scmp.eq.s32.totalorder %s19, 1
    %p120 = por %p118, %p119
    %p122 = scmp.ne.s32.totalorder %s105, %s121
    %p123 = scmp.eq.s32.totalorder %s19, 0
    %p124 = por %p122, %p123
    %s125 = ssub.s32 %s13, %s20
    %p126 = scmp.eq.s32.totalorder %s125, 0
    %s128 = sadd.s32 %s127, 1
    %s129 = scalar_select %p126, %s127, %s128
    %p132 = pneg %p126
    %p133 = scmp.eq.s32.totalorder %s13, 1
    %p134 = por %p132, %p133
    %p135 = scmp.ne.s32.totalorder %s127, %s130
    %p136 = scmp.eq.s32.totalorder %s13, 0
    %p137 = por %p135, %p136
    %p138 = scmp.ne.s32.totalorder %s127, %s130
    %p139 = scmp.eq.s32.totalorder %s18, 1
    %p140 = por %p138, %p139
    %p141 = scmp.ne.s32.totalorder %s130, %s131
    %p142 = scmp.eq.s32.totalorder %s18, 0
    %p143 = por %p141, %p142
    %p144 = scmp.ne.s32.totalorder %s130, %s131
    %p145 = scmp.eq.s32.totalorder %s19, 1
    %p146 = por %p144, %p145
    %p148 = scmp.ne.s32.totalorder %s131, %s147
    %p149 = scmp.eq.s32.totalorder %s19, 0
    %p150 = por %p148, %p149
    %s151 = ssub.s32 %s13, %s20
    %p152 = scmp.eq.s32.totalorder %s151, 0
    %s154 = sadd.s32 %s153, 1
    %s155 = scalar_select %p152, %s153, %s154
    %p158 = pneg %p152
    %p159 = scmp.eq.s32.totalorder %s13, 1
    %p160 = por %p158, %p159
    %p161 = scmp.ne.s32.totalorder %s153, %s156
    %p162 = scmp.eq.s32.totalorder %s13, 0
    %p163 = por %p161, %p162
    %p164 = scmp.ne.s32.totalorder %s153, %s156
    %p165 = scmp.eq.s32.totalorder %s18, 1
    %p166 = por %p164, %p165
    %p167 = scmp.ne.s32.totalorder %s156, %s157
    %p168 = scmp.eq.s32.totalorder %s18, 0
    %p169 = por %p167, %p168
    %p170 = scmp.ne.s32.totalorder %s156, %s157
    %p171 = scmp.eq.s32.totalorder %s19, 1
    %p172 = por %p170, %p171
    %p174 = scmp.ne.s32.totalorder %s157, %s173
    %p175 = scmp.eq.s32.totalorder %s19, 0
    %p176 = por %p174, %p175
    %s178 = sadd.s32 %s177, 1
    %p181 = scmp.eq.s32.totalorder %s13, 1
    %p182 = scmp.ne.s32.totalorder %s177, %s179
    %p183 = scmp.eq.s32.totalorder %s13, 0
    %p184 = por %p182, %p183
    %p185 = scmp.ne.s32.totalorder %s177, %s179
    %p186 = scmp.eq.s32.totalorder %s18, 1
    %p187 = por %p185, %p186
    %p188 = scmp.ne.s32.totalorder %s179, %s180
    %p189 = scmp.eq.s32.totalorder %s18, 0
    %p190 = por %p188, %p189
    %p191 = scmp.ne.s32.totalorder %s179, %s180
    %p192 = scmp.eq.s32.totalorder %s19, 1
    %p193 = por %p191, %p192
    %p195 = scmp.ne.s32.totalorder %s180, %s194
    %p196 = scmp.eq.s32.totalorder %s19, 0
    %p197 = por %p195, %p196
    %s198 = ssub.s32 %s13, %s20
    %p199 = scmp.eq.s32.totalorder %s198, 0
    %s201 = sadd.s32 %s200, 1
    %s202 = scalar_select %p199, %s200, %s201
    %p205 = pneg %p199
    %p206 = scmp.eq.s32.totalorder %s13, 1
    %p207 = por %p205, %p206
    %p208 = scmp.ne.s32.totalorder %s200, %s203
    %p209 = scmp.eq.s32.totalorder %s13, 0
    %p210 = por %p208, %p209
    %p211 = scmp.ne.s32.totalorder %s200, %s203
    %p212 = scmp.eq.s32.totalorder %s18, 1
    %p213 = por %p211, %p212
    %p214 = scmp.ne.s32.totalorder %s203, %s204
    %p215 = scmp.eq.s32.totalorder %s18, 0
    %p216 = por %p214, %p215
    %p217 = scmp.ne.s32.totalorder %s203, %s204
    %p218 = scmp.eq.s32.totalorder %s19, 1
    %p219 = por %p217, %p218
    %p221 = scmp.ne.s32.totalorder %s204, %s220
    %p222 = scmp.eq.s32.totalorder %s19, 0
    %p223 = por %p221, %p222
    %p224 = scmp.le.s32.totalorder 1, %s13
    %p225 = scmp.lt.s32.totalorder %s13, 3
    %p226 = pnand %p224, %p225
    %p227 = pneg %p226
    // Predicated region
    $region9: #{effn_forward.13} parent=5 // pred_check
      _
    $region10: #{effn_forward.13} parent=5 // pred_check_branch
      %229 = sbr.rel (%p226) target = $region12
    $region11: #{effn_forward.13} parent=5 // pred_region
      %s230 = ssub.s32 %s13, 1
      // Predicated region
      $region13: #{effn_forward.13} parent=11 // pred_check
        %p231 = pneg %p190
      $region14: #{effn_forward.13} parent=11 // pred_check_branch
        %233 = sbr.rel (%p231) target = $region16
      $region15: #{effn_forward.13} parent=11 // pred_region
        _
      $region16: #{effn_forward.13} parent=11 // pred_fallthru
        _
    $region12: #{effn_forward.13} parent=5 // pred_fallthru
      _
    %p234 = scmp.lt.s32.totalorder %s13, 2
    // Predicated region
    $region17: #{effn_forward.13} parent=5 // pred_check
      %p235 = pneg %p234
    $region18: #{effn_forward.13} parent=5 // pred_check_branch
      %237 = sbr.rel (%p235) target = $region20
    $region19: #{effn_forward.13} parent=5 // pred_region
      // Predicated region
      $region21: #{effn_forward.13} parent=19 // pred_check
        %p238 = pneg %p33
      $region22: #{effn_forward.13} parent=19 // pred_check_branch
        %240 = sbr.rel (%p238) target = $region24
      $region23: #{effn_forward.13} parent=19 // pred_region
        %s241 = smul.u32 8, %s13
        %p242 = scmp.lt.s32.totalorder %s241, 15
        %s243 = scalar_select %p242, %s241, 15
        %s244 = smul.addr %s243, 8
        %s245 = scalar_lea.vmem %s0, %s244
        %s246 = smul.u32 8, %s13
      $region24: #{effn_forward.13} parent=19 // pred_fallthru
        _
      // Predicated region
      $region25: #{effn_forward.13} parent=19 // pred_check
        %p247 = pneg %p59
      $region26: #{effn_forward.13} parent=19 // pred_check_branch
        %249 = sbr.rel (%p247) target = $region28
      $region27: #{effn_forward.13} parent=19 // pred_region
        %s250 = smul.u32 8, %s13
        %p251 = scmp.lt.s32.totalorder %s250, 15
        %s252 = scalar_select %p251, %s250, 15
        %s253 = smul.addr %s252, 8
        %s254 = scalar_lea.vmem %s1, %s253
        %s255 = smul.u32 8, %s13
      $region28: #{effn_forward.13} parent=19 // pred_fallthru
        _
      // Predicated region
      $region29: #{effn_forward.13} parent=19 // pred_check
        %p256 = pneg %p85
      $region30: #{effn_forward.13} parent=19 // pred_check_branch
        %258 = sbr.rel (%p256) target = $region32
      $region31: #{effn_forward.13} parent=19 // pred_region
        %s259 = smul.u32 8, %s13
        %p260 = scmp.lt.s32.totalorder %s259, 15
        %s261 = scalar_select %p260, %s259, 15
        %s262 = smul.addr %s261, 8
        %s263 = scalar_lea.vmem %s2, %s262
        %s264 = smul.u32 8, %s13
      $region32: #{effn_forward.13} parent=19 // pred_fallthru
        _
      // Predicated region
      $region33: #{effn_forward.13} parent=19 // pred_check
        %p265 = pneg %p111
      $region34: #{effn_forward.13} parent=19 // pred_check_branch
        %267 = sbr.rel (%p265) target = $region36
      $region35: #{effn_forward.13} parent=19 // pred_region
        %s268 = smul.u32 8, %s13
        %p269 = scmp.lt.s32.totalorder %s268, 15
        %s270 = scalar_select %p269, %s268, 15
        %s271 = smul.addr %s270, 8
        %s272 = scalar_lea.vmem %s3, %s271
        %s273 = smul.u32 8, %s13
      $region36: #{effn_forward.13} parent=19 // pred_fallthru
        _
      // Predicated region
      $region37: #{effn_forward.13} parent=19 // pred_check
        %p274 = pneg %p137
      $region38: #{effn_forward.13} parent=19 // pred_check_branch
        %276 = sbr.rel (%p274) target = $region40
      $region39: #{effn_forward.13} parent=19 // pred_region
        %s277 = smul.u32 8, %s13
        %p278 = scmp.lt.s32.totalorder %s277, 15
        %s279 = scalar_select %p278, %s277, 15
        %s280 = smul.addr %s279, 8
        %s281 = scalar_lea.vmem %s4, %s280
        %s282 = smul.u32 8, %s13
      $region40: #{effn_forward.13} parent=19 // pred_fallthru
        _
      // Predicated region
      $region41: #{effn_forward.13} parent=19 // pred_check
        %p283 = pneg %p163
      $region42: #{effn_forward.13} parent=19 // pred_check_branch
        %285 = sbr.rel (%p283) target = $region44
      $region43: #{effn_forward.13} parent=19 // pred_region
        %s286 = smul.u32 8, %s13
        %p287 = scmp.lt.s32.totalorder %s286, 15
        %s288 = scalar_select %p287, %s286, 15
        %s289 = smul.addr %s288, 8
        %s290 = scalar_lea.vmem %s5, %s289
        %s291 = smul.u32 8, %s13
      $region44: #{effn_forward.13} parent=19 // pred_fallthru
        _
    $region20: #{effn_forward.13} parent=5 // pred_fallthru
      _
    %p292 = scmp.le.s32.totalorder 1, %s13
    %p293 = scmp.lt.s32.totalorder %s13, 3
    %p294 = pnand %p292, %p293
    %p295 = pneg %p294
    // Predicated region
    $region45: #{effn_forward.13} parent=5 // pred_check
      _
    $region46: #{effn_forward.13} parent=5 // pred_check_branch
      %297 = sbr.rel (%p294) target = $region48
    $region47: #{effn_forward.13} parent=5 // pred_region
      %s298 = ssub.s32 %s13, 1
      %s299 = smul.u32 8, %s18
      %p300 = scmp.lt.s32.totalorder %s299, 15
      %s301 = scalar_select %p300, %s299, 15
      %s302 = smul.addr %s301, 8
      %s303 = scalar_lea.vmem %s0, %s302
      %p304 = pneg %p39
      %p305 = pneg %p36
      %s306 = smul.u32 8, %s18
      %p307 = scmp.lt.s32.totalorder %s306, 15
      %s308 = scalar_select %p307, %s306, 15
      %s309 = smul.addr %s308, 8
      %s310 = scalar_lea.vmem %s1, %s309
      %p311 = pneg %p65
      %p312 = pneg %p62
      %s313 = smul.u32 8, %s18
      %p314 = scmp.lt.s32.totalorder %s313, 15
      %s315 = scalar_select %p314, %s313, 15
      %s316 = smul.addr %s315, 8
      %s317 = scalar_lea.vmem %s2, %s316
      %p318 = pneg %p91
      %p319 = pneg %p88
      %s320 = smul.u32 8, %s18
      %p321 = scmp.lt.s32.totalorder %s320, 15
      %s322 = scalar_select %p321, %s320, 15
      %s323 = smul.addr %s322, 8
      %s324 = scalar_lea.vmem %s3, %s323
      %p325 = pneg %p117
      %p326 = pneg %p114
      %s327 = smul.u32 8, %s18
      %p328 = scmp.lt.s32.totalorder %s327, 15
      %s329 = scalar_select %p328, %s327, 15
      %s330 = smul.addr %s329, 8
      %s331 = scalar_lea.vmem %s4, %s330
      %p332 = pneg %p143
      %p333 = pneg %p140
      %s334 = smul.u32 8, %s18
      %p335 = scmp.lt.s32.totalorder %s334, 15
      %s336 = scalar_select %p335, %s334, 15
      %s337 = smul.addr %s336, 8
      %s338 = scalar_lea.vmem %s5, %s337
      %p339 = pneg %p169
      %p340 = pneg %p166
      %p341 = pneg %p190
      %p342 = pneg %p187
      %p343 = pneg %p216
      %p344 = pneg %p213
      %s345 = smul.u32 8, %s18
      %p346 = scmp.lt.s32.totalorder %s345, 15
      %s347 = scalar_select %p346, %s345, 15
      %s348 = smul.addr %s347, 8
      %s349 = scalar_lea.vmem %s7, %s348
      %s350 = smul.u32 8, %s18
      %p351 = scmp.lt.s32.totalorder %s350, 15
      %s352 = scalar_select %p351, %s350, 15
      %s353 = smul.addr %s352, 8
      %s354 = scalar_lea.vmem %s0, %s353
      %s355 = smul.u32 8, %s18
      %s356 = smul.u32 8, %s18
      %p357 = scmp.lt.s32.totalorder %s356, 15
      %s358 = scalar_select %p357, %s356, 15
      %s359 = smul.addr %s358, 8
      %s360 = scalar_lea.vmem %s1, %s359
      %s361 = smul.u32 8, %s18
      %s362 = smul.u32 8, %s18
      %p363 = scmp.lt.s32.totalorder %s362, 15
      %s364 = scalar_select %p363, %s362, 15
      %s365 = smul.addr %s364, 8
      %s366 = scalar_lea.vmem %s2, %s365
      %s367 = smul.u32 8, %s18
      %s368 = smul.u32 8, %s18
      %p369 = scmp.lt.s32.totalorder %s368, 15
      %s370 = scalar_select %p369, %s368, 15
      %s371 = smul.addr %s370, 8
      %s372 = scalar_lea.vmem %s3, %s371
      %s373 = smul.u32 8, %s18
      %s374 = smul.u32 8, %s18
      %p375 = scmp.lt.s32.totalorder %s374, 15
      %s376 = scalar_select %p375, %s374, 15
      %s377 = smul.addr %s376, 8
      %s378 = scalar_lea.vmem %s4, %s377
      %s379 = smul.u32 8, %s18
      %s380 = smul.u32 8, %s18
      %p381 = scmp.lt.s32.totalorder %s380, 15
      %s382 = scalar_select %p381, %s380, 15
      %s383 = smul.addr %s382, 8
      %s384 = scalar_lea.vmem %s5, %s383
      %s385 = smul.u32 8, %s18
      %s386 = smul.u32 8, %s18
      %p387 = scmp.lt.s32.totalorder %s386, 15
      %s388 = scalar_select %p387, %s386, 15
      %s389 = smul.addr %s388, 8
      %s390 = scalar_lea.vmem %s7, %s389
      %s391 = smul.u32 8, %s18
      %v392 = vld [vmem:[%s354] sm:$0xff]
      %v393 = vld [vmem:[%s354 + $0x8] sm:$0xff]
      %v394 = vld [vmem:[%s354 + $0x10] sm:$0xff]
      %v395 = vld [vmem:[%s354 + $0x18] sm:$0xff]
      %v396 = vld [vmem:[%s354 + $0x20] sm:$0xff]
      %v397 = vld [vmem:[%s354 + $0x28] sm:$0xff]
      %v398 = vld [vmem:[%s354 + $0x30] sm:$0xff]
      %v399 = vld [vmem:[%s354 + $0x38] sm:$0xff]
      %v400 = vld [vmem:[%s360] sm:$0xff]
      %v401 = vld [vmem:[%s360 + $0x8] sm:$0xff]
      %v402 = vld [vmem:[%s360 + $0x10] sm:$0xff]
      %v403 = vld [vmem:[%s360 + $0x18] sm:$0xff]
      %v404 = vld [vmem:[%s360 + $0x20] sm:$0xff]
      %v405 = vld [vmem:[%s360 + $0x28] sm:$0xff]
      %v406 = vld [vmem:[%s360 + $0x30] sm:$0xff]
      %v407 = vld [vmem:[%s360 + $0x38] sm:$0xff]
      %v408 = vld [vmem:[%s366] sm:$0xff]
      %v409 = vld [vmem:[%s366 + $0x8] sm:$0xff]
      %v410 = vld [vmem:[%s366 + $0x10] sm:$0xff]
      %v411 = vld [vmem:[%s366 + $0x18] sm:$0xff]
      %v412 = vld [vmem:[%s366 + $0x20] sm:$0xff]
      %v413 = vld [vmem:[%s366 + $0x28] sm:$0xff]
      %v414 = vld [vmem:[%s366 + $0x30] sm:$0xff]
      %v415 = vld [vmem:[%s366 + $0x38] sm:$0xff]
      %v416 = vld [vmem:[%s372] sm:$0xff]
      %v417 = vld [vmem:[%s372 + $0x8] sm:$0xff]
      %v418 = vld [vmem:[%s372 + $0x10] sm:$0xff]
      %v419 = vld [vmem:[%s372 + $0x18] sm:$0xff]
      %v420 = vld [vmem:[%s372 + $0x20] sm:$0xff]
      %v421 = vld [vmem:[%s372 + $0x28] sm:$0xff]
      %v422 = vld [vmem:[%s372 + $0x30] sm:$0xff]
      %v423 = vld [vmem:[%s372 + $0x38] sm:$0xff]
      %v424 = vmul.f32 %v392, %v392
      %v425 = vmul.f32 %v393, %v393
      %v426 = vmul.f32 %v394, %v394
      %v427 = vmul.f32 %v395, %v395
      %v428 = vmul.f32 %v396, %v396
      %v429 = vmul.f32 %v397, %v397
      %v430 = vmul.f32 %v398, %v398
      %v431 = vmul.f32 %v399, %v399
      %v432 = vmul.f32 %v400, %v400
      %v433 = vmul.f32 %v401, %v401
      %v434 = vmul.f32 %v402, %v402
      %v435 = vmul.f32 %v403, %v403
      %v436 = vmul.f32 %v404, %v404
      %v437 = vmul.f32 %v405, %v405
      %v438 = vmul.f32 %v406, %v406
      %v439 = vmul.f32 %v407, %v407
      %v440 = vadd.f32 %v424, %v432
      %v441 = vadd.f32 %v425, %v433
      %v442 = vadd.f32 %v426, %v434
      %v443 = vadd.f32 %v427, %v435
      %v444 = vadd.f32 %v428, %v436
      %v445 = vadd.f32 %v429, %v437
      %v446 = vadd.f32 %v430, %v438
      %v447 = vadd.f32 %v431, %v439
      %v448 = vrsqrt.pop %v440
      %v449 = vmul.f32 %v448, %v440
      %v450 = vmul.f32 %v449, %v448
      %v451 = vmul.f32 0.5, %v450
      %v452 = vsub.f32 1.5, %v451
      %v453 = vmul.f32 %v448, %v452
      %v454 = vmul.f32 %v440, %v453
      %vm455 = vcmp.eq.f32.partialorder %v440, inf
      %v456 = vsel %vm455, %v440, %v454
      %vm457 = vcmp.eq.f32.partialorder %v440, 0.0
      %v458 = vand.u32 %v440, 2147483648
      %v459 = vsel %vm457, %v458, %v456
      %v460 = vrsqrt.pop %v441
      %v461 = vmul.f32 %v460, %v441
      %v462 = vmul.f32 %v461, %v460
      %v463 = vmul.f32 0.5, %v462
      %v464 = vsub.f32 1.5, %v463
      %v465 = vmul.f32 %v460, %v464
      %v466 = vmul.f32 %v441, %v465
      %vm467 = vcmp.eq.f32.partialorder %v441, inf
      %v468 = vsel %vm467, %v441, %v466
      %vm469 = vcmp.eq.f32.partialorder %v441, 0.0
      %v470 = vand.u32 %v441, 2147483648
      %v471 = vsel %vm469, %v470, %v468
      %v472 = vrsqrt.pop %v442
      %v473 = vmul.f32 %v472, %v442
      %v474 = vmul.f32 %v473, %v472
      %v475 = vmul.f32 0.5, %v474
      %v476 = vsub.f32 1.5, %v475
      %v477 = vmul.f32 %v472, %v476
      %v478 = vmul.f32 %v442, %v477
      %vm479 = vcmp.eq.f32.partialorder %v442, inf
      %v480 = vsel %vm479, %v442, %v478
      %vm481 = vcmp.eq.f32.partialorder %v442, 0.0
      %v482 = vand.u32 %v442, 2147483648
      %v483 = vsel %vm481, %v482, %v480
      %v484 = vrsqrt.pop %v443
      %v485 = vmul.f32 %v484, %v443
      %v486 = vmul.f32 %v485, %v484
      %v487 = vmul.f32 0.5, %v486
      %v488 = vsub.f32 1.5, %v487
      %v489 = vmul.f32 %v484, %v488
      %v490 = vmul.f32 %v443, %v489
      %vm491 = vcmp.eq.f32.partialorder %v443, inf
      %v492 = vsel %vm491, %v443, %v490
      %vm493 = vcmp.eq.f32.partialorder %v443, 0.0
      %v494 = vand.u32 %v443, 2147483648
      %v495 = vsel %vm493, %v494, %v492
      %v496 = vrsqrt.pop %v444
      %v497 = vmul.f32 %v496, %v444
      %v498 = vmul.f32 %v497, %v496
      %v499 = vmul.f32 0.5, %v498
      %v500 = vsub.f32 1.5, %v499
      %v501 = vmul.f32 %v496, %v500
      %v502 = vmul.f32 %v444, %v501
      %vm503 = vcmp.eq.f32.partialorder %v444, inf
      %v504 = vsel %vm503, %v444, %v502
      %vm505 = vcmp.eq.f32.partialorder %v444, 0.0
      %v506 = vand.u32 %v444, 2147483648
      %v507 = vsel %vm505, %v506, %v504
      %v508 = vrsqrt.pop %v445
      %v509 = vmul.f32 %v508, %v445
      %v510 = vmul.f32 %v509, %v508
      %v511 = vmul.f32 0.5, %v510
      %v512 = vsub.f32 1.5, %v511
      %v513 = vmul.f32 %v508, %v512
      %v514 = vmul.f32 %v445, %v513
      %vm515 = vcmp.eq.f32.partialorder %v445, inf
      %v516 = vsel %vm515, %v445, %v514
      %vm517 = vcmp.eq.f32.partialorder %v445, 0.0
      %v518 = vand.u32 %v445, 2147483648
      %v519 = vsel %vm517, %v518, %v516
      %v520 = vrsqrt.pop %v446
      %v521 = vmul.f32 %v520, %v446
      %v522 = vmul.f32 %v521, %v520
      %v523 = vmul.f32 0.5, %v522
      %v524 = vsub.f32 1.5, %v523
      %v525 = vmul.f32 %v520, %v524
      %v526 = vmul.f32 %v446, %v525
      %vm527 = vcmp.eq.f32.partialorder %v446, inf
      %v528 = vsel %vm527, %v446, %v526
      %vm529 = vcmp.eq.f32.partialorder %v446, 0.0
      %v530 = vand.u32 %v446, 2147483648
      %v531 = vsel %vm529, %v530, %v528
      %v532 = vrsqrt.pop %v447
      %v533 = vmul.f32 %v532, %v447
      %v534 = vmul.f32 %v533, %v532
      %v535 = vmul.f32 0.5, %v534
      %v536 = vsub.f32 1.5, %v535
      %v537 = vmul.f32 %v532, %v536
      %v538 = vmul.f32 %v447, %v537
      %vm539 = vcmp.eq.f32.partialorder %v447, inf
      %v540 = vsel %vm539, %v447, %v538
      %vm541 = vcmp.eq.f32.partialorder %v447, 0.0
      %v542 = vand.u32 %v447, 2147483648
      %v543 = vsel %vm541, %v542, %v540
      %v544 = vpack.c.bf16 %v459, %v459
      %v545 = vpack.c.bf16 %v471, %v471
      %v546 = vpack.c.bf16 %v483, %v483
      %v547 = vpack.c.bf16 %v495, %v495
      %v548 = vpack.c.bf16 %v507, %v507
      %v549 = vpack.c.bf16 %v519, %v519
      %v550 = vpack.c.bf16 %v531, %v531
      %v551 = vpack.c.bf16 %v543, %v543
      %v552 = vmul.f32 %v408, %v408
      %v553 = vmul.f32 %v409, %v409
      %v554 = vmul.f32 %v410, %v410
      %v555 = vmul.f32 %v411, %v411
      %v556 = vmul.f32 %v412, %v412
      %v557 = vmul.f32 %v413, %v413
      %v558 = vmul.f32 %v414, %v414
      %v559 = vmul.f32 %v415, %v415
      %v560 = vmul.f32 %v416, %v416
      %v561 = vmul.f32 %v417, %v417
      %v562 = vmul.f32 %v418, %v418
      %v563 = vmul.f32 %v419, %v419
      %v564 = vmul.f32 %v420, %v420
      %v565 = vmul.f32 %v421, %v421
      %v566 = vmul.f32 %v422, %v422
      %v567 = vmul.f32 %v423, %v423
      %v568 = vadd.f32 %v552, %v560
      %v569 = vadd.f32 %v553, %v561
      %v570 = vadd.f32 %v554, %v562
      %v571 = vadd.f32 %v555, %v563
      %v572 = vadd.f32 %v556, %v564
      %v573 = vadd.f32 %v557, %v565
      %v574 = vadd.f32 %v558, %v566
      %v575 = vadd.f32 %v559, %v567
      %v576 = vrsqrt.pop %v568
      %v577 = vmul.f32 %v576, %v568
      %v578 = vmul.f32 %v577, %v576
      %v579 = vmul.f32 0.5, %v578
      %v580 = vsub.f32 1.5, %v579
      %v581 = vmul.f32 %v576, %v580
      %v582 = vmul.f32 %v568, %v581
      %vm583 = vcmp.eq.f32.partialorder %v568, inf
      %v584 = vsel %vm583, %v568, %v582
      %vm585 = vcmp.eq.f32.partialorder %v568, 0.0
      %v586 = vand.u32 %v568, 2147483648
      %v587 = vsel %vm585, %v586, %v584
      %v588 = vrsqrt.pop %v569
      %v589 = vmul.f32 %v588, %v569
      %v590 = vmul.f32 %v589, %v588
      %v591 = vmul.f32 0.5, %v590
      %v592 = vsub.f32 1.5, %v591
      %v593 = vmul.f32 %v588, %v592
      %v594 = vmul.f32 %v569, %v593
      %vm595 = vcmp.eq.f32.partialorder %v569, inf
      %v596 = vsel %vm595, %v569, %v594
      %vm597 = vcmp.eq.f32.partialorder %v569, 0.0
      %v598 = vand.u32 %v569, 2147483648
      %v599 = vsel %vm597, %v598, %v596
      %v600 = vrsqrt.pop %v570
      %v601 = vmul.f32 %v600, %v570
      %v602 = vmul.f32 %v601, %v600
      %v603 = vmul.f32 0.5, %v602
      %v604 = vsub.f32 1.5, %v603
      %v605 = vmul.f32 %v600, %v604
      %v606 = vmul.f32 %v570, %v605
      %vm607 = vcmp.eq.f32.partialorder %v570, inf
      %v608 = vsel %vm607, %v570, %v606
      %vm609 = vcmp.eq.f32.partialorder %v570, 0.0
      %v610 = vand.u32 %v570, 2147483648
      %v611 = vsel %vm609, %v610, %v608
      %v612 = vrsqrt.pop %v571
      %v613 = vmul.f32 %v612, %v571
      %v614 = vmul.f32 %v613, %v612
      %v615 = vmul.f32 0.5, %v614
      %v616 = vsub.f32 1.5, %v615
      %v617 = vmul.f32 %v612, %v616
      %v618 = vmul.f32 %v571, %v617
      %vm619 = vcmp.eq.f32.partialorder %v571, inf
      %v620 = vsel %vm619, %v571, %v618
      %vm621 = vcmp.eq.f32.partialorder %v571, 0.0
      %v622 = vand.u32 %v571, 2147483648
      %v623 = vsel %vm621, %v622, %v620
      %v624 = vrsqrt.pop %v572
      %v625 = vmul.f32 %v624, %v572
      %v626 = vmul.f32 %v625, %v624
      %v627 = vmul.f32 0.5, %v626
      %v628 = vsub.f32 1.5, %v627
      %v629 = vmul.f32 %v624, %v628
      %v630 = vmul.f32 %v572, %v629
      %vm631 = vcmp.eq.f32.partialorder %v572, inf
      %v632 = vsel %vm631, %v572, %v630
      %vm633 = vcmp.eq.f32.partialorder %v572, 0.0
      %v634 = vand.u32 %v572, 2147483648
      %v635 = vsel %vm633, %v634, %v632
      %v636 = vrsqrt.pop %v573
      %v637 = vmul.f32 %v636, %v573
      %v638 = vmul.f32 %v637, %v636
      %v639 = vmul.f32 0.5, %v638
      %v640 = vsub.f32 1.5, %v639
      %v641 = vmul.f32 %v636, %v640
      %v642 = vmul.f32 %v573, %v641
      %vm643 = vcmp.eq.f32.partialorder %v573, inf
      %v644 = vsel %vm643, %v573, %v642
      %vm645 = vcmp.eq.f32.partialorder %v573, 0.0
      %v646 = vand.u32 %v573, 2147483648
      %v647 = vsel %vm645, %v646, %v644
      %v648 = vrsqrt.pop %v574
      %v649 = vmul.f32 %v648, %v574
      %v650 = vmul.f32 %v649, %v648
      %v651 = vmul.f32 0.5, %v650
      %v652 = vsub.f32 1.5, %v651
      %v653 = vmul.f32 %v648, %v652
      %v654 = vmul.f32 %v574, %v653
      %vm655 = vcmp.eq.f32.partialorder %v574, inf
      %v656 = vsel %vm655, %v574, %v654
      %vm657 = vcmp.eq.f32.partialorder %v574, 0.0
      %v658 = vand.u32 %v574, 2147483648
      %v659 = vsel %vm657, %v658, %v656
      %v660 = vrsqrt.pop %v575
      %v661 = vmul.f32 %v660, %v575
      %v662 = vmul.f32 %v661, %v660
      %v663 = vmul.f32 0.5, %v662
      %v664 = vsub.f32 1.5, %v663
      %v665 = vmul.f32 %v660, %v664
      %v666 = vmul.f32 %v575, %v665
      %vm667 = vcmp.eq.f32.partialorder %v575, inf
      %v668 = vsel %vm667, %v575, %v666
      %vm669 = vcmp.eq.f32.partialorder %v575, 0.0
      %v670 = vand.u32 %v575, 2147483648
      %v671 = vsel %vm669, %v670, %v668
      %v672 = vpack.c.bf16 %v587, %v587
      %v673 = vpack.c.bf16 %v599, %v599
      %v674 = vpack.c.bf16 %v611, %v611
      %v675 = vpack.c.bf16 %v623, %v623
      %v676 = vpack.c.bf16 %v635, %v635
      %v677 = vpack.c.bf16 %v647, %v647
      %v678 = vpack.c.bf16 %v659, %v659
      %v679 = vpack.c.bf16 %v671, %v671
      %v680 = vld [vmem:[%s378] sm:$0xff]
      %v681 = vld [vmem:[%s378 + $0x8] sm:$0xff]
      %v682 = vld [vmem:[%s378 + $0x10] sm:$0xff]
      %v683 = vld [vmem:[%s378 + $0x18] sm:$0xff]
      %v684 = vld [vmem:[%s378 + $0x20] sm:$0xff]
      %v685 = vld [vmem:[%s378 + $0x28] sm:$0xff]
      %v686 = vld [vmem:[%s378 + $0x30] sm:$0xff]
      %v687 = vld [vmem:[%s378 + $0x38] sm:$0xff]
      %v688 = vpack.c.bf16 %v680, %v680
      %v689 = vpack.c.bf16 %v681, %v681
      %v690 = vpack.c.bf16 %v682, %v682
      %v691 = vpack.c.bf16 %v683, %v683
      %v692 = vpack.c.bf16 %v684, %v684
      %v693 = vpack.c.bf16 %v685, %v685
      %v694 = vpack.c.bf16 %v686, %v686
      %v695 = vpack.c.bf16 %v687, %v687
      %v696 = vld [vmem:[%s384] sm:$0xff]
      %v697 = vld [vmem:[%s384 + $0x8] sm:$0xff]
      %v698 = vld [vmem:[%s384 + $0x10] sm:$0xff]
      %v699 = vld [vmem:[%s384 + $0x18] sm:$0xff]
      %v700 = vld [vmem:[%s384 + $0x20] sm:$0xff]
      %v701 = vld [vmem:[%s384 + $0x28] sm:$0xff]
      %v702 = vld [vmem:[%s384 + $0x30] sm:$0xff]
      %v703 = vld [vmem:[%s384 + $0x38] sm:$0xff]
      %v704 = vpack.c.bf16 %v696, %v696
      %v705 = vpack.c.bf16 %v697, %v697
      %v706 = vpack.c.bf16 %v698, %v698
      %v707 = vpack.c.bf16 %v699, %v699
      %v708 = vpack.c.bf16 %v700, %v700
      %v709 = vpack.c.bf16 %v701, %v701
      %v710 = vpack.c.bf16 %v702, %v702
      %v711 = vpack.c.bf16 %v703, %v703
      %v720 = vunpack.c.l.b16 %v544
      %v721 = vunpack.c.l.b16 %v545
      %v722 = vunpack.c.l.b16 %v546
      %v723 = vunpack.c.l.b16 %v547
      %v724 = vunpack.c.l.b16 %v548
      %v725 = vunpack.c.l.b16 %v549
      %v726 = vunpack.c.l.b16 %v550
      %v727 = vunpack.c.l.b16 %v551
      %v728 = vpack.c.b16 %v721, %v720
      %v729 = vpack.c.b16 %v723, %v722
      %v730 = vpack.c.b16 %v725, %v724
      %v731 = vpack.c.b16 %v727, %v726
      %v744 = vunpack.c.l.b16 %v672
      %v745 = vunpack.c.l.b16 %v673
      %v746 = vunpack.c.l.b16 %v674
      %v747 = vunpack.c.l.b16 %v675
      %v748 = vunpack.c.l.b16 %v676
      %v749 = vunpack.c.l.b16 %v677
      %v750 = vunpack.c.l.b16 %v678
      %v751 = vunpack.c.l.b16 %v679
      %v752 = vpack.c.b16 %v745, %v744
      %v753 = vpack.c.b16 %v747, %v746
      %v754 = vpack.c.b16 %v749, %v748
      %v755 = vpack.c.b16 %v751, %v750
      %v768 = vunpack.c.l.b16 %v688
      %v769 = vunpack.c.l.b16 %v689
      %v770 = vunpack.c.l.b16 %v690
      %v771 = vunpack.c.l.b16 %v691
      %v772 = vunpack.c.l.b16 %v692
      %v773 = vunpack.c.l.b16 %v693
      %v774 = vunpack.c.l.b16 %v694
      %v775 = vunpack.c.l.b16 %v695
      %v776 = vpack.c.b16 %v769, %v768
      %v777 = vpack.c.b16 %v771, %v770
      %v778 = vpack.c.b16 %v773, %v772
      %v779 = vpack.c.b16 %v775, %v774
      %v792 = vunpack.c.l.b16 %v704
      %v793 = vunpack.c.l.b16 %v705
      %v794 = vunpack.c.l.b16 %v706
      %v795 = vunpack.c.l.b16 %v707
      %v796 = vunpack.c.l.b16 %v708
      %v797 = vunpack.c.l.b16 %v709
      %v798 = vunpack.c.l.b16 %v710
      %v799 = vunpack.c.l.b16 %v711
      %v800 = vpack.c.b16 %v793, %v792
      %v801 = vpack.c.b16 %v795, %v794
      %v802 = vpack.c.b16 %v797, %v796
      %v803 = vpack.c.b16 %v799, %v798
      %v808 = vld [vmem:[%s6] sm:$0xf]
      %v809 = vld [vmem:[%s6 + $0x4] sm:$0xf]
      %v810 = vld [vmem:[%s6 + $0x8] sm:$0xf]
      %v811 = vld [vmem:[%s6 + $0xc] sm:$0xf]
      %v812 = vld [vmem:[%s6 + $0x10] sm:$0xf]
      %v813 = vld [vmem:[%s6 + $0x14] sm:$0xf]
      %v814 = vld [vmem:[%s6 + $0x18] sm:$0xf]
      %v815 = vld [vmem:[%s6 + $0x1c] sm:$0xf]
      %v816 = vld [vmem:[%s6 + $0x20] sm:$0xf]
      %v817 = vld [vmem:[%s6 + $0x24] sm:$0xf]
      %v818 = vld [vmem:[%s6 + $0x28] sm:$0xf]
      %v819 = vld [vmem:[%s6 + $0x2c] sm:$0xf]
      %v820 = vld [vmem:[%s6 + $0x30] sm:$0xf]
      %v821 = vld [vmem:[%s6 + $0x34] sm:$0xf]
      %v822 = vld [vmem:[%s6 + $0x38] sm:$0xf]
      %v823 = vld [vmem:[%s6 + $0x3c] sm:$0xf]
      %v824 = vld [vmem:[%s6 + $0x40] sm:$0xf]
      %v825 = vld [vmem:[%s6 + $0x44] sm:$0xf]
      %v826 = vld [vmem:[%s6 + $0x48] sm:$0xf]
      %v827 = vld [vmem:[%s6 + $0x4c] sm:$0xf]
      %v828 = vld [vmem:[%s6 + $0x50] sm:$0xf]
      %v829 = vld [vmem:[%s6 + $0x54] sm:$0xf]
      %v830 = vld [vmem:[%s6 + $0x58] sm:$0xf]
      %v831 = vld [vmem:[%s6 + $0x5c] sm:$0xf]
      %v832 = vld [vmem:[%s6 + $0x60] sm:$0xf]
      %v833 = vld [vmem:[%s6 + $0x64] sm:$0xf]
      %v834 = vld [vmem:[%s6 + $0x68] sm:$0xf]
      %v835 = vld [vmem:[%s6 + $0x6c] sm:$0xf]
      %v836 = vld [vmem:[%s6 + $0x70] sm:$0xf]
      %v837 = vld [vmem:[%s6 + $0x74] sm:$0xf]
      %v838 = vld [vmem:[%s6 + $0x78] sm:$0xf]
      %v839 = vld [vmem:[%s6 + $0x7c] sm:$0xf]
      %v840 = vld [vmem:[%s6 + $0x80] sm:$0xf]
      %v841 = vld [vmem:[%s6 + $0x84] sm:$0xf]
      %v842 = vld [vmem:[%s6 + $0x88] sm:$0xf]
      %v843 = vld [vmem:[%s6 + $0x8c] sm:$0xf]
      %v844 = vld [vmem:[%s6 + $0x90] sm:$0xf]
      %v845 = vld [vmem:[%s6 + $0x94] sm:$0xf]
      %v846 = vld [vmem:[%s6 + $0x98] sm:$0xf]
      %v847 = vld [vmem:[%s6 + $0x9c] sm:$0xf]
      %v848 = vld [vmem:[%s6 + $0xa0] sm:$0xf]
      %v849 = vld [vmem:[%s6 + $0xa4] sm:$0xf]
      %v850 = vld [vmem:[%s6 + $0xa8] sm:$0xf]
      %v851 = vld [vmem:[%s6 + $0xac] sm:$0xf]
      %v852 = vld [vmem:[%s6 + $0xb0] sm:$0xf]
      %v853 = vld [vmem:[%s6 + $0xb4] sm:$0xf]
      %v854 = vld [vmem:[%s6 + $0xb8] sm:$0xf]
      %v855 = vld [vmem:[%s6 + $0xbc] sm:$0xf]
      %v856 = vld [vmem:[%s6 + $0xc0] sm:$0xf]
      %v857 = vld [vmem:[%s6 + $0xc4] sm:$0xf]
      %v858 = vld [vmem:[%s6 + $0xc8] sm:$0xf]
      %v859 = vld [vmem:[%s6 + $0xcc] sm:$0xf]
      %v860 = vld [vmem:[%s6 + $0xd0] sm:$0xf]
      %v861 = vld [vmem:[%s6 + $0xd4] sm:$0xf]
      %v862 = vld [vmem:[%s6 + $0xd8] sm:$0xf]
      %v863 = vld [vmem:[%s6 + $0xdc] sm:$0xf]
      %v864 = vld [vmem:[%s6 + $0xe0] sm:$0xf]
      %v865 = vld [vmem:[%s6 + $0xe4] sm:$0xf]
      %v866 = vld [vmem:[%s6 + $0xe8] sm:$0xf]
      %v867 = vld [vmem:[%s6 + $0xec] sm:$0xf]
      %v868 = vld [vmem:[%s6 + $0xf0] sm:$0xf]
      %v869 = vld [vmem:[%s6 + $0xf4] sm:$0xf]
      %v870 = vld [vmem:[%s6 + $0xf8] sm:$0xf]
      %v871 = vld [vmem:[%s6 + $0xfc] sm:$0xf]
      %v936 = vunpack.c.l.b16 %v808
      %v937 = vunpack.c.l.b16 %v809
      %v938 = vunpack.c.l.b16 %v810
      %v939 = vunpack.c.l.b16 %v811
      %v940 = vunpack.c.l.b16 %v812
      %v941 = vunpack.c.l.b16 %v813
      %v942 = vunpack.c.l.b16 %v814
      %v943 = vunpack.c.l.b16 %v815
      %v944 = vunpack.c.l.b16 %v816
      %v945 = vunpack.c.l.b16 %v817
      %v946 = vunpack.c.l.b16 %v818
      %v947 = vunpack.c.l.b16 %v819
      %v948 = vunpack.c.l.b16 %v820
      %v949 = vunpack.c.l.b16 %v821
      %v950 = vunpack.c.l.b16 %v822
      %v951 = vunpack.c.l.b16 %v823
      %v952 = vunpack.c.l.b16 %v824
      %v953 = vunpack.c.l.b16 %v825
      %v954 = vunpack.c.l.b16 %v826
      %v955 = vunpack.c.l.b16 %v827
      %v956 = vunpack.c.l.b16 %v828
      %v957 = vunpack.c.l.b16 %v829
      %v958 = vunpack.c.l.b16 %v830
      %v959 = vunpack.c.l.b16 %v831
      %v960 = vunpack.c.l.b16 %v832
      %v961 = vunpack.c.l.b16 %v833
      %v962 = vunpack.c.l.b16 %v834
      %v963 = vunpack.c.l.b16 %v835
      %v964 = vunpack.c.l.b16 %v836
      %v965 = vunpack.c.l.b16 %v837
      %v966 = vunpack.c.l.b16 %v838
      %v967 = vunpack.c.l.b16 %v839
      %v968 = vunpack.c.l.b16 %v840
      %v969 = vunpack.c.l.b16 %v841
      %v970 = vunpack.c.l.b16 %v842
      %v971 = vunpack.c.l.b16 %v843
      %v972 = vunpack.c.l.b16 %v844
      %v973 = vunpack.c.l.b16 %v845
      %v974 = vunpack.c.l.b16 %v846
      %v975 = vunpack.c.l.b16 %v847
      %v976 = vunpack.c.l.b16 %v848
      %v977 = vunpack.c.l.b16 %v849
      %v978 = vunpack.c.l.b16 %v850
      %v979 = vunpack.c.l.b16 %v851
      %v980 = vunpack.c.l.b16 %v852
      %v981 = vunpack.c.l.b16 %v853
      %v982 = vunpack.c.l.b16 %v854
      %v983 = vunpack.c.l.b16 %v855
      %v984 = vunpack.c.l.b16 %v856
      %v985 = vunpack.c.l.b16 %v857
      %v986 = vunpack.c.l.b16 %v858
      %v987 = vunpack.c.l.b16 %v859
      %v988 = vunpack.c.l.b16 %v860
      %v989 = vunpack.c.l.b16 %v861
      %v990 = vunpack.c.l.b16 %v862
      %v991 = vunpack.c.l.b16 %v863
      %v992 = vunpack.c.l.b16 %v864
      %v993 = vunpack.c.l.b16 %v865
      %v994 = vunpack.c.l.b16 %v866
      %v995 = vunpack.c.l.b16 %v867
      %v996 = vunpack.c.l.b16 %v868
      %v997 = vunpack.c.l.b16 %v869
      %v998 = vunpack.c.l.b16 %v870
      %v999 = vunpack.c.l.b16 %v871
      %v1000 = vpack.c.b16 %v937, %v936
      %v1001 = vpack.c.b16 %v939, %v938
      %v1002 = vpack.c.b16 %v941, %v940
      %v1003 = vpack.c.b16 %v943, %v942
      %v1004 = vpack.c.b16 %v945, %v944
      %v1005 = vpack.c.b16 %v947, %v946
      %v1006 = vpack.c.b16 %v949, %v948
      %v1007 = vpack.c.b16 %v951, %v950
      %v1008 = vpack.c.b16 %v953, %v952
      %v1009 = vpack.c.b16 %v955, %v954
      %v1010 = vpack.c.b16 %v957, %v956
      %v1011 = vpack.c.b16 %v959, %v958
      %v1012 = vpack.c.b16 %v961, %v960
      %v1013 = vpack.c.b16 %v963, %v962
      %v1014 = vpack.c.b16 %v965, %v964
      %v1015 = vpack.c.b16 %v967, %v966
      %v1016 = vpack.c.b16 %v969, %v968
      %v1017 = vpack.c.b16 %v971, %v970
      %v1018 = vpack.c.b16 %v973, %v972
      %v1019 = vpack.c.b16 %v975, %v974
      %v1020 = vpack.c.b16 %v977, %v976
      %v1021 = vpack.c.b16 %v979, %v978
      %v1022 = vpack.c.b16 %v981, %v980
      %v1023 = vpack.c.b16 %v983, %v982
      %v1024 = vpack.c.b16 %v985, %v984
      %v1025 = vpack.c.b16 %v987, %v986
      %v1026 = vpack.c.b16 %v989, %v988
      %v1027 = vpack.c.b16 %v991, %v990
      %v1028 = vpack.c.b16 %v993, %v992
      %v1029 = vpack.c.b16 %v995, %v994
      %v1030 = vpack.c.b16 %v997, %v996
      %v1031 = vpack.c.b16 %v999, %v998
      %1064 = vmatpush.bf16.msra.mxu0 %v1007
      %1065 = vmatpush.bf16.msra.mxu0 %v1006
      %1066 = vmatpush.bf16.msra.mxu0 %v1005
      %1067 = vmatpush.bf16.msra.mxu0 %v1004
      %1068 = vmatpush.bf16.msra.mxu0 %v1003
      %1069 = vmatpush.bf16.msra.mxu0 %v1002
      %1070 = vmatpush.bf16.msra.mxu0 %v1001
      %1071 = vmatpush.bf16.msra.mxu0 %v1000
      %1072 = vmatmul.bf16.gmra.mxu0 %v728
      %v1073 = vpop.f32.mrf.mxu0
      %v1074 = vadd.f32 0.0, %v1073
      %v1075 = vpop.f32.mrf.mxu0
      %v1076 = vadd.f32 0.0, %v1075
      %1077 = vmatmul.bf16.gmra.mxu0 %v729
      %v1078 = vpop.f32.mrf.mxu0
      %v1079 = vadd.f32 0.0, %v1078
      %v1080 = vpop.f32.mrf.mxu0
      %v1081 = vadd.f32 0.0, %v1080
      %1082 = vmatmul.bf16.gmra.mxu0 %v730
      %v1083 = vpop.f32.mrf.mxu0
      %v1084 = vadd.f32 0.0, %v1083
      %v1085 = vpop.f32.mrf.mxu0
      %v1086 = vadd.f32 0.0, %v1085
      %1087 = vmatmul.bf16.gmra.mxu0 %v731
      %v1088 = vpop.f32.mrf.mxu0
      %v1089 = vadd.f32 0.0, %v1088
      %v1090 = vpop.f32.mrf.mxu0
      %v1091 = vadd.f32 0.0, %v1090
      %1092 = vdwg.mxu0
      %1093 = vmatpush.bf16.msra.mxu0 %v1015
      %1094 = vmatpush.bf16.msra.mxu0 %v1014
      %1095 = vmatpush.bf16.msra.mxu0 %v1013
      %1096 = vmatpush.bf16.msra.mxu0 %v1012
      %1097 = vmatpush.bf16.msra.mxu0 %v1011
      %1098 = vmatpush.bf16.msra.mxu0 %v1010
      %1099 = vmatpush.bf16.msra.mxu0 %v1009
      %1100 = vmatpush.bf16.msra.mxu0 %v1008
      %1101 = vmatmul.bf16.gmra.mxu0 %v752
      %v1102 = vpop.f32.mrf.mxu0
      %v1103 = vadd.f32 %v1074, %v1102
      %v1104 = vpop.f32.mrf.mxu0
      %v1105 = vadd.f32 %v1076, %v1104
      %1106 = vmatmul.bf16.gmra.mxu0 %v753
      %v1107 = vpop.f32.mrf.mxu0
      %v1108 = vadd.f32 %v1079, %v1107
      %v1109 = vpop.f32.mrf.mxu0
      %v1110 = vadd.f32 %v1081, %v1109
      %1111 = vmatmul.bf16.gmra.mxu0 %v754
      %v1112 = vpop.f32.mrf.mxu0
      %v1113 = vadd.f32 %v1084, %v1112
      %v1114 = vpop.f32.mrf.mxu0
      %v1115 = vadd.f32 %v1086, %v1114
      %1116 = vmatmul.bf16.gmra.mxu0 %v755
      %v1117 = vpop.f32.mrf.mxu0
      %v1118 = vadd.f32 %v1089, %v1117
      %v1119 = vpop.f32.mrf.mxu0
      %v1120 = vadd.f32 %v1091, %v1119
      %1121 = vdwg.mxu0
      %1122 = vmatpush.bf16.msra.mxu0 %v1023
      %1123 = vmatpush.bf16.msra.mxu0 %v1022
      %1124 = vmatpush.bf16.msra.mxu0 %v1021
      %1125 = vmatpush.bf16.msra.mxu0 %v1020
      %1126 = vmatpush.bf16.msra.mxu0 %v1019
      %1127 = vmatpush.bf16.msra.mxu0 %v1018
      %1128 = vmatpush.bf16.msra.mxu0 %v1017
      %1129 = vmatpush.bf16.msra.mxu0 %v1016
      %1130 = vmatmul.bf16.gmra.mxu0 %v776
      %v1131 = vpop.f32.mrf.mxu0
      %v1132 = vadd.f32 %v1103, %v1131
      %v1133 = vpop.f32.mrf.mxu0
      %v1134 = vadd.f32 %v1105, %v1133
      %1135 = vmatmul.bf16.gmra.mxu0 %v777
      %v1136 = vpop.f32.mrf.mxu0
      %v1137 = vadd.f32 %v1108, %v1136
      %v1138 = vpop.f32.mrf.mxu0
      %v1139 = vadd.f32 %v1110, %v1138
      %1140 = vmatmul.bf16.gmra.mxu0 %v778
      %v1141 = vpop.f32.mrf.mxu0
      %v1142 = vadd.f32 %v1113, %v1141
      %v1143 = vpop.f32.mrf.mxu0
      %v1144 = vadd.f32 %v1115, %v1143
      %1145 = vmatmul.bf16.gmra.mxu0 %v779
      %v1146 = vpop.f32.mrf.mxu0
      %v1147 = vadd.f32 %v1118, %v1146
      %v1148 = vpop.f32.mrf.mxu0
      %v1149 = vadd.f32 %v1120, %v1148
      %1150 = vdwg.mxu0
      %1151 = vmatpush.bf16.msra.mxu0 %v1031
      %1152 = vmatpush.bf16.msra.mxu0 %v1030
      %1153 = vmatpush.bf16.msra.mxu0 %v1029
      %1154 = vmatpush.bf16.msra.mxu0 %v1028
      %1155 = vmatpush.bf16.msra.mxu0 %v1027
      %1156 = vmatpush.bf16.msra.mxu0 %v1026
      %1157 = vmatpush.bf16.msra.mxu0 %v1025
      %1158 = vmatpush.bf16.msra.mxu0 %v1024
      %1159 = vmatmul.bf16.gmra.mxu0 %v800
      %v1160 = vpop.f32.mrf.mxu0
      %v1161 = vadd.f32 %v1132, %v1160
      %v1162 = vpop.f32.mrf.mxu0
      %v1163 = vadd.f32 %v1134, %v1162
      %1164 = vmatmul.bf16.gmra.mxu0 %v801
      %v1165 = vpop.f32.mrf.mxu0
      %v1166 = vadd.f32 %v1137, %v1165
      %v1167 = vpop.f32.mrf.mxu0
      %v1168 = vadd.f32 %v1139, %v1167
      %1169 = vmatmul.bf16.gmra.mxu0 %v802
      %v1170 = vpop.f32.mrf.mxu0
      %v1171 = vadd.f32 %v1142, %v1170
      %v1172 = vpop.f32.mrf.mxu0
      %v1173 = vadd.f32 %v1144, %v1172
      %1174 = vmatmul.bf16.gmra.mxu0 %v803
      %v1175 = vpop.f32.mrf.mxu0
      %v1176 = vadd.f32 %v1147, %v1175
      %v1177 = vpop.f32.mrf.mxu0
      %v1178 = vadd.f32 %v1149, %v1177
      %1179 = vdwg.mxu0
      %1180 = vst [vmem:[%s390] sm:$0xff] %v1161
      %1181 = vst [vmem:[%s390 + $0x8] sm:$0xff] %v1163
      %1182 = vst [vmem:[%s390 + $0x10] sm:$0xff] %v1166
      %1183 = vst [vmem:[%s390 + $0x18] sm:$0xff] %v1168
      %1184 = vst [vmem:[%s390 + $0x20] sm:$0xff] %v1171
      %1185 = vst [vmem:[%s390 + $0x28] sm:$0xff] %v1173
      %1186 = vst [vmem:[%s390 + $0x30] sm:$0xff] %v1176
      %1187 = vst [vmem:[%s390 + $0x38] sm:$0xff] %v1178
      %s1188 = smul.u32 8, %s18
      %p1189 = scmp.lt.s32.totalorder %s1188, 15
      %s1190 = scalar_select %p1189, %s1188, 15
      %s1191 = smul.addr %s1190, 8
      %s1192 = scalar_lea.vmem %s7, %s1191
      // Predicated region
      $region49: #{effn_forward.13} parent=47 // pred_check
        %p1193 = pneg %p213
      $region50: #{effn_forward.13} parent=47 // pred_check_branch
        %1195 = sbr.rel (%p1193) target = $region52
      $region51: #{effn_forward.13} parent=47 // pred_region
        %s1196 = smul.u32 8, %s18
      $region52: #{effn_forward.13} parent=47 // pred_fallthru
        _
    $region48: #{effn_forward.13} parent=5 // pred_fallthru
      _
    %p1197 = scmp.le.s32.totalorder 2, %s13
    // Predicated region
    $region53: #{effn_forward.13} parent=5 // pred_check
      %p1198 = pneg %p1197
    $region54: #{effn_forward.13} parent=5 // pred_check_branch
      %1200 = sbr.rel (%p1198) target = $region56
    $region55: #{effn_forward.13} parent=5 // pred_region
      %s1201 = ssub.s32 %s13, 2
      // Predicated region
      $region57: #{effn_forward.13} parent=55 // pred_check
        %p1202 = pneg %p219
      $region58: #{effn_forward.13} parent=55 // pred_check_branch
        %1204 = sbr.rel (%p1202) target = $region60
      $region59: #{effn_forward.13} parent=55 // pred_region
        %s1205 = smul.u32 8, %s19
        %p1206 = scmp.lt.s32.totalorder %s1205, 15
        %s1207 = scalar_select %p1206, %s1205, 15
        %s1208 = smul.addr %s1207, 8
        %s1209 = scalar_lea.vmem %s7, %s1208
      $region60: #{effn_forward.13} parent=55 // pred_fallthru
        _
    $region56: #{effn_forward.13} parent=5 // pred_fallthru
      _
  $region6: #{effn_forward.13} parent=0 // loop_footer
    %s17 = sadd.s32 1, %s13
  $region7: #{effn_forward.13} parent=0 // loop_footer_branch
    %12 = sbr.rel target = $region3
  $region8: #{effn_forward.13} parent=0 // loop_exit
    _

// kernel: effn_forward.11
$region0: #{effn_forward.11}
  #allocation0 [shape = 'u32[]', space=smem, size = 0x4, offset = 0x4, fixed_abs, tag = 'smem constant byte address 0x4 - core index']
  #allocation1 [shape = 'u32[72,128]{1,0:T(1,128)}', space=vmem, size = 0x9000, scoped, tag = 'internal scratch']
  %s0 = inlined_call_operand.vmem [shape: f32[2,16,512], index: 0, kind: input, shape index: {}]
  %s1 = inlined_call_operand.vmem [shape: f32[9,512], index: 1, kind: input, shape index: {}]
  %s2 = inlined_call_operand.vmem [shape: f32[9,512], index: 2, kind: input, shape index: {}]
  %s3 = inlined_call_operand.vmem [shape: f32[9,512], index: 3, kind: input, shape index: {}]
  %s4 = inlined_call_operand.vmem [shape: f32[1,512], index: 4, kind: input, shape index: {}]
  %s5 = inlined_call_operand.vmem [shape: f32[2,16,512], index: 5, kind: output, shape index: {}]
  %s6 = sld [smem:[#allocation0]]
  $region53: #{effn_forward.11} parent=0
    _
  %s8 = ssub.s32 1, %s6
  %s9 = scalar_select 0, %s8, %s6
  loop: start=0, step=1, limit=4
  $region2: #{effn_forward.11} parent=0 // loop_pre_header
    _
  $region3: #{effn_forward.11} parent=0 // loop_header
    %s11 = sphi 0, %s15
    %p12 = scmp.ge.s32.totalorder %s11, 4
    %s21 = sphi 0, %s23
    %s24 = sphi 0, %s21
    %s25 = sphi 0, %s24
    %s41 = sphi 0, %s25
    %s45 = sphi 0, %s45
    %s47 = sphi 0, %s45
    %s48 = sphi 0, %s47
    %s62 = sphi 0, %s48
    %s66 = sphi 0, %s66
    %s68 = sphi 0, %s66
    %s69 = sphi 0, %s68
    %s83 = sphi 0, %s69
    %s87 = sphi 0, %s87
    %s89 = sphi 0, %s87
    %s90 = sphi 0, %s89
    %s104 = sphi 0, %s90
    %s108 = sphi 0, %s108
    %s110 = sphi 0, %s108
    %s111 = sphi 0, %s110
    %s125 = sphi 0, %s111
    %s131 = sphi 0, %s133
    %s134 = sphi 0, %s131
    %s135 = sphi 0, %s134
    %s151 = sphi 0, %s135
  $region4: #{effn_forward.11} parent=0 // loop_header_branch
    %14 = sbr.rel (%p12) target = $region8
  $region5: #{effn_forward.11} parent=0 // loop_body
    %s16 = ssub.s32 %s11, 1
    %s17 = ssub.s32 %s11, 2
    %s18 = sadd.s32 %s11, 1
    %s19 = ssub.s32 %s11, %s18
    %p20 = scmp.eq.s32.totalorder %s19, 0
    %s22 = sadd.s32 %s21, 1
    %s23 = scalar_select %p20, %s21, %s22
    %p26 = pneg %p20
    %p27 = scmp.eq.s32.totalorder %s11, 1
    %p28 = por %p26, %p27
    %p29 = scmp.ne.s32.totalorder %s21, %s24
    %p30 = scmp.eq.s32.totalorder %s11, 0
    %p31 = por %p29, %p30
    %p32 = scmp.ne.s32.totalorder %s21, %s24
    %p33 = scmp.eq.s32.totalorder %s16, 1
    %p34 = por %p32, %p33
    %p35 = scmp.ne.s32.totalorder %s24, %s25
    %p36 = scmp.eq.s32.totalorder %s16, 0
    %p37 = por %p35, %p36
    %p38 = scmp.ne.s32.totalorder %s24, %s25
    %p39 = scmp.eq.s32.totalorder %s17, 1
    %p40 = por %p38, %p39
    %p42 = scmp.ne.s32.totalorder %s25, %s41
    %p43 = scmp.eq.s32.totalorder %s17, 0
    %p44 = por %p42, %p43
    %s46 = sadd.s32 %s45, 1
    %p49 = scmp.eq.s32.totalorder %s11, 1
    %p50 = scmp.ne.s32.totalorder %s45, %s47
    %p51 = scmp.eq.s32.totalorder %s11, 0
    %p52 = por %p50, %p51
    %p53 = scmp.ne.s32.totalorder %s45, %s47
    %p54 = scmp.eq.s32.totalorder %s16, 1
    %p55 = por %p53, %p54
    %p56 = scmp.ne.s32.totalorder %s47, %s48
    %p57 = scmp.eq.s32.totalorder %s16, 0
    %p58 = por %p56, %p57
    %p59 = scmp.ne.s32.totalorder %s47, %s48
    %p60 = scmp.eq.s32.totalorder %s17, 1
    %p61 = por %p59, %p60
    %p63 = scmp.ne.s32.totalorder %s48, %s62
    %p64 = scmp.eq.s32.totalorder %s17, 0
    %p65 = por %p63, %p64
    %s67 = sadd.s32 %s66, 1
    %p70 = scmp.eq.s32.totalorder %s11, 1
    %p71 = scmp.ne.s32.totalorder %s66, %s68
    %p72 = scmp.eq.s32.totalorder %s11, 0
    %p73 = por %p71, %p72
    %p74 = scmp.ne.s32.totalorder %s66, %s68
    %p75 = scmp.eq.s32.totalorder %s16, 1
    %p76 = por %p74, %p75
    %p77 = scmp.ne.s32.totalorder %s68, %s69
    %p78 = scmp.eq.s32.totalorder %s16, 0
    %p79 = por %p77, %p78
    %p80 = scmp.ne.s32.totalorder %s68, %s69
    %p81 = scmp.eq.s32.totalorder %s17, 1
    %p82 = por %p80, %p81
    %p84 = scmp.ne.s32.totalorder %s69, %s83
    %p85 = scmp.eq.s32.totalorder %s17, 0
    %p86 = por %p84, %p85
    %s88 = sadd.s32 %s87, 1
    %p91 = scmp.eq.s32.totalorder %s11, 1
    %p92 = scmp.ne.s32.totalorder %s87, %s89
    %p93 = scmp.eq.s32.totalorder %s11, 0
    %p94 = por %p92, %p93
    %p95 = scmp.ne.s32.totalorder %s87, %s89
    %p96 = scmp.eq.s32.totalorder %s16, 1
    %p97 = por %p95, %p96
    %p98 = scmp.ne.s32.totalorder %s89, %s90
    %p99 = scmp.eq.s32.totalorder %s16, 0
    %p100 = por %p98, %p99
    %p101 = scmp.ne.s32.totalorder %s89, %s90
    %p102 = scmp.eq.s32.totalorder %s17, 1
    %p103 = por %p101, %p102
    %p105 = scmp.ne.s32.totalorder %s90, %s104
    %p106 = scmp.eq.s32.totalorder %s17, 0
    %p107 = por %p105, %p106
    %s109 = sadd.s32 %s108, 1
    %p112 = scmp.eq.s32.totalorder %s11, 1
    %p113 = scmp.ne.s32.totalorder %s108, %s110
    %p114 = scmp.eq.s32.totalorder %s11, 0
    %p115 = por %p113, %p114
    %p116 = scmp.ne.s32.totalorder %s108, %s110
    %p117 = scmp.eq.s32.totalorder %s16, 1
    %p118 = por %p116, %p117
    %p119 = scmp.ne.s32.totalorder %s110, %s111
    %p120 = scmp.eq.s32.totalorder %s16, 0
    %p121 = por %p119, %p120
    %p122 = scmp.ne.s32.totalorder %s110, %s111
    %p123 = scmp.eq.s32.totalorder %s17, 1
    %p124 = por %p122, %p123
    %p126 = scmp.ne.s32.totalorder %s111, %s125
    %p127 = scmp.eq.s32.totalorder %s17, 0
    %p128 = por %p126, %p127
    %s129 = ssub.s32 %s11, %s18
    %p130 = scmp.eq.s32.totalorder %s129, 0
    %s132 = sadd.s32 %s131, 1
    %s133 = scalar_select %p130, %s131, %s132
    %p136 = pneg %p130
    %p137 = scmp.eq.s32.totalorder %s11, 1
    %p138 = por %p136, %p137
    %p139 = scmp.ne.s32.totalorder %s131, %s134
    %p140 = scmp.eq.s32.totalorder %s11, 0
    %p141 = por %p139, %p140
    %p142 = scmp.ne.s32.totalorder %s131, %s134
    %p143 = scmp.eq.s32.totalorder %s16, 1
    %p144 = por %p142, %p143
    %p145 = scmp.ne.s32.totalorder %s134, %s135
    %p146 = scmp.eq.s32.totalorder %s16, 0
    %p147 = por %p145, %p146
    %p148 = scmp.ne.s32.totalorder %s134, %s135
    %p149 = scmp.eq.s32.totalorder %s17, 1
    %p150 = por %p148, %p149
    %p152 = scmp.ne.s32.totalorder %s135, %s151
    %p153 = scmp.eq.s32.totalorder %s17, 0
    %p154 = por %p152, %p153
    %p155 = scmp.le.s32.totalorder 1, %s11
    %p156 = scmp.lt.s32.totalorder %s11, 3
    %p157 = pnand %p155, %p156
    %p158 = pneg %p157
    // Predicated region
    $region9: #{effn_forward.11} parent=5 // pred_check
      _
    $region10: #{effn_forward.11} parent=5 // pred_check_branch
      %160 = sbr.rel (%p157) target = $region12
    $region11: #{effn_forward.11} parent=5 // pred_region
      %s161 = ssub.s32 %s11, 1
      // Predicated region
      $region13: #{effn_forward.11} parent=11 // pred_check
        %p162 = pneg %p58
      $region14: #{effn_forward.11} parent=11 // pred_check_branch
        %164 = sbr.rel (%p162) target = $region16
      $region15: #{effn_forward.11} parent=11 // pred_region
        _
      $region16: #{effn_forward.11} parent=11 // pred_fallthru
        _
      // Predicated region
      $region17: #{effn_forward.11} parent=11 // pred_check
        %p165 = pneg %p79
      $region18: #{effn_forward.11} parent=11 // pred_check_branch
        %167 = sbr.rel (%p165) target = $region20
      $region19: #{effn_forward.11} parent=11 // pred_region
        _
      $region20: #{effn_forward.11} parent=11 // pred_fallthru
        _
      // Predicated region
      $region21: #{effn_forward.11} parent=11 // pred_check
        %p168 = pneg %p100
      $region22: #{effn_forward.11} parent=11 // pred_check_branch
        %170 = sbr.rel (%p168) target = $region24
      $region23: #{effn_forward.11} parent=11 // pred_region
        _
      $region24: #{effn_forward.11} parent=11 // pred_fallthru
        _
      // Predicated region
      $region25: #{effn_forward.11} parent=11 // pred_check
        %p171 = pneg %p121
      $region26: #{effn_forward.11} parent=11 // pred_check_branch
        %173 = sbr.rel (%p171) target = $region28
      $region27: #{effn_forward.11} parent=11 // pred_region
        _
      $region28: #{effn_forward.11} parent=11 // pred_fallthru
        _
    $region12: #{effn_forward.11} parent=5 // pred_fallthru
      _
    %p174 = scmp.lt.s32.totalorder %s11, 2
    // Predicated region
    $region29: #{effn_forward.11} parent=5 // pred_check
      %p175 = pneg %p174
    $region30: #{effn_forward.11} parent=5 // pred_check_branch
      %177 = sbr.rel (%p175) target = $region32
    $region31: #{effn_forward.11} parent=5 // pred_region
      // Predicated region
      $region33: #{effn_forward.11} parent=31 // pred_check
        %p178 = pneg %p31
      $region34: #{effn_forward.11} parent=31 // pred_check_branch
        %180 = sbr.rel (%p178) target = $region36
      $region35: #{effn_forward.11} parent=31 // pred_region
        %p181 = scmp.lt.s32.totalorder %s11, 1
        %s182 = scalar_select %p181, %s11, 1
        %s183 = smul.addr %s182, 8
        %s184 = smul.addr %s183, 8
        %s185 = scalar_lea.vmem %s0, %s184
      $region36: #{effn_forward.11} parent=31 // pred_fallthru
        _
    $region32: #{effn_forward.11} parent=5 // pred_fallthru
      _
    %p186 = scmp.le.s32.totalorder 1, %s11
    %p187 = scmp.lt.s32.totalorder %s11, 3
    %p188 = pnand %p186, %p187
    %p189 = pneg %p188
    // Predicated region
    $region37: #{effn_forward.11} parent=5 // pred_check
      _
    $region38: #{effn_forward.11} parent=5 // pred_check_branch
      %191 = sbr.rel (%p188) target = $region40
    $region39: #{effn_forward.11} parent=5 // pred_region
      %s192 = ssub.s32 %s11, 1
      %p193 = scmp.lt.s32.totalorder %s16, 1
      %s194 = scalar_select %p193, %s16, 1
      %s195 = smul.addr %s194, 8
      %s196 = smul.addr %s195, 8
      %s197 = scalar_lea.vmem %s0, %s196
      %p198 = pneg %p37
      %p199 = pneg %p34
      %p200 = pneg %p58
      %p201 = pneg %p55
      %p202 = pneg %p79
      %p203 = pneg %p76
      %p204 = pneg %p100
      %p205 = pneg %p97
      %p206 = pneg %p121
      %p207 = pneg %p118
      %p208 = pneg %p147
      %p209 = pneg %p144
      %p210 = scmp.lt.s32.totalorder %s16, 1
      %s211 = scalar_select %p210, %s16, 1
      %s212 = smul.addr %s211, 8
      %s213 = smul.addr %s212, 8
      %s214 = scalar_lea.vmem %s5, %s213
      %p215 = scmp.lt.s32.totalorder %s16, 1
      %s216 = scalar_select %p215, %s16, 1
      %s217 = smul.addr %s216, 8
      %s218 = smul.addr %s217, 8
      %s219 = scalar_lea.vmem %s0, %s218
      %p220 = scmp.lt.s32.totalorder %s16, 1
      %s221 = scalar_select %p220, %s16, 1
      %s222 = smul.addr %s221, 8
      %s223 = smul.addr %s222, 8
      %s224 = scalar_lea.vmem %s5, %s223
      %v225 = vld [vmem:[%s219] sm:$0xff]
      %v226 = vld [vmem:[%s219 + $0x8] sm:$0xff]
      %v227 = vld [vmem:[%s219 + $0x10] sm:$0xff]
      %v228 = vld [vmem:[%s219 + $0x18] sm:$0xff]
      %v229 = vld [vmem:[%s219 + $0x20] sm:$0xff]
      %v230 = vld [vmem:[%s219 + $0x28] sm:$0xff]
      %v231 = vld [vmem:[%s219 + $0x30] sm:$0xff]
      %v232 = vld [vmem:[%s219 + $0x38] sm:$0xff]
      %vm241 = vcmask 1040384
      %v242 = vrot.slane %v225, 7
      %v243 = vrot.slane %v226, 7
      %v244 = vrot.slane %v227, 7
      %v245 = vrot.slane %v228, 7
      %v246 = vrot.slane %v229, 7
      %v247 = vsel %vm241, %v242, %v246
      %v248 = vrot.slane %v230, 7
      %v249 = vsel %vm241, %v243, %v248
      %v250 = vrot.slane %v231, 7
      %v251 = vsel %vm241, %v244, %v250
      %v252 = vrot.slane %v232, 7
      %v253 = vsel %vm241, %v245, %v252
      %v266 = vsel %vm241, 0.0, %v242
      %v267 = vsel %vm241, 0.0, %v243
      %v268 = vsel %vm241, 0.0, %v244
      %v269 = vsel %vm241, 0.0, %v245
      %v270 = vsel %vm241, %v246, 0.0
      %v271 = vsel %vm241, %v248, 0.0
      %v272 = vsel %vm241, %v250, 0.0
      %v273 = vsel %vm241, %v252, 0.0
      %v274 = vld [vmem:[%s1] sm:$0xff]
      %v275 = vld [vmem:[%s1 + $0x8] sm:$0xff]
      %v276 = vld [vmem:[%s1 + $0x10] sm:$0xff]
      %v277 = vld [vmem:[%s1 + $0x18] sm:$0xff]
      %v278 = vld [vmem:[%s1 + $0x20] sm:$0x1]
      %v279 = vld [vmem:[%s1 + $0x28] sm:$0x1]
      %v280 = vld [vmem:[%s1 + $0x30] sm:$0x1]
      %v281 = vld [vmem:[%s1 + $0x38] sm:$0x1]
      %v282 = vld [vmem:[%s2] sm:$0xff]
      %v283 = vld [vmem:[%s2 + $0x8] sm:$0xff]
      %v284 = vld [vmem:[%s2 + $0x10] sm:$0xff]
      %v285 = vld [vmem:[%s2 + $0x18] sm:$0xff]
      %v286 = vld [vmem:[%s2 + $0x20] sm:$0x1]
      %v287 = vld [vmem:[%s2 + $0x28] sm:$0x1]
      %v288 = vld [vmem:[%s2 + $0x30] sm:$0x1]
      %v289 = vld [vmem:[%s2 + $0x38] sm:$0x1]
      %v290 = vld [vmem:[%s3] sm:$0xff]
      %v291 = vld [vmem:[%s3 + $0x8] sm:$0xff]
      %v292 = vld [vmem:[%s3 + $0x10] sm:$0xff]
      %v293 = vld [vmem:[%s3 + $0x18] sm:$0xff]
      %v294 = vld [vmem:[%s3 + $0x20] sm:$0x1]
      %v295 = vld [vmem:[%s3 + $0x28] sm:$0x1]
      %v296 = vld [vmem:[%s3 + $0x30] sm:$0x1]
      %v297 = vld [vmem:[%s3 + $0x38] sm:$0x1]
      %v298 = vld [vmem:[%s4] sm:$0xf]
      %v300 = vperm.slane %v298, 0
      %v301 = vperm.slane %v298, 1
      %v302 = vperm.slane %v298, 2
      %v303 = vperm.slane %v298, 3
      %v308 = vadd.f32 %v300, 0.0
      %v309 = vadd.f32 %v301, 0.0
      %v310 = vadd.f32 %v302, 0.0
      %v311 = vadd.f32 %v303, 0.0
      %v312 = vperm.slane %v274, 0
      %v313 = vperm.slane %v275, 0
      %v314 = vperm.slane %v276, 0
      %v315 = vperm.slane %v277, 0
      %320 = vrot.lane.b32.xlu0 %v312, 96
      %v321 = vpop.permute.xlu0 %320
      %322 = vrot.lane.b32.xlu0 %v313, 96
      %v323 = vpop.permute.xlu0 %322
      %324 = vrot.lane.b32.xlu0 %v314, 96
      %v325 = vpop.permute.xlu0 %324
      %326 = vrot.lane.b32.xlu0 %v315, 96
      %v327 = vpop.permute.xlu0 %326
      %vm328 = vcmask 785408
      %v329 = vsel %vm328, %v321, %v323
      %v330 = vsel %vm328, %v323, %v325
      %v331 = vsel %vm328, %v325, %v327
      %v337 = vmul.f32 %v321, 0.0
      %v338 = vmul.f32 %v266, %v329
      %v339 = vmul.f32 %v267, %v330
      %v340 = vmul.f32 %v268, %v331
      %v341 = vmul.f32 %v269, %v327
      %v342 = vmul.f32 %v247, %v329
      %v343 = vmul.f32 %v249, %v330
      %v344 = vmul.f32 %v251, %v331
      %v345 = vmul.f32 %v253, %v327
      %355 = vrot.lane.b32.xlu0 %v337, 32
      %v356 = vpop.permute.xlu0 %355
      %357 = vrot.lane.b32.xlu0 %v338, 32
      %v358 = vpop.permute.xlu0 %357
      %359 = vrot.lane.b32.xlu0 %v339, 32
      %v360 = vpop.permute.xlu0 %359
      %361 = vrot.lane.b32.xlu0 %v340, 32
      %v362 = vpop.permute.xlu0 %361
      %363 = vrot.lane.b32.xlu0 %v341, 32
      %v364 = vpop.permute.xlu0 %363
      %365 = vrot.lane.b32.xlu0 %v342, 32
      %v366 = vpop.permute.xlu0 %365
      %367 = vrot.lane.b32.xlu0 %v343, 32
      %v368 = vpop.permute.xlu0 %367
      %369 = vrot.lane.b32.xlu0 %v344, 32
      %v370 = vpop.permute.xlu0 %369
      %371 = vrot.lane.b32.xlu0 %v345, 32
      %v372 = vpop.permute.xlu0 %371
      %vm373 = vcmask 261120
      %v374 = vsel %vm373, %v356, %v358
      %v375 = vsel %vm373, %v358, %v360
      %v376 = vsel %vm373, %v360, %v362
      %v377 = vsel %vm373, %v362, %v364
      %v378 = vsel %vm373, %v356, %v366
      %v379 = vsel %vm373, %v366, %v368
      %v380 = vsel %vm373, %v368, %v370
      %v381 = vsel %vm373, %v370, %v372
      %v390 = vadd.f32 %v308, %v374
      %v391 = vadd.f32 %v309, %v375
      %v392 = vadd.f32 %v310, %v376
      %v393 = vadd.f32 %v311, %v377
      %v394 = vadd.f32 %v308, %v378
      %v395 = vadd.f32 %v309, %v379
      %v396 = vadd.f32 %v310, %v380
      %v397 = vadd.f32 %v311, %v381
      %v398 = vperm.slane %v282, 0
      %v399 = vperm.slane %v283, 0
      %v400 = vperm.slane %v284, 0
      %v401 = vperm.slane %v285, 0
      %406 = vrot.lane.b32.xlu0 %v398, 97
      %v407 = vpop.permute.xlu0 %406
      %408 = vrot.lane.b32.xlu0 %v399, 97
      %v409 = vpop.permute.xlu0 %408
      %410 = vrot.lane.b32.xlu0 %v400, 97
      %v411 = vpop.permute.xlu0 %410
      %412 = vrot.lane.b32.xlu0 %v401, 97
      %v413 = vpop.permute.xlu0 %412
      %vm414 = vcmask 793600
      %v415 = vsel %vm414, %v407, %v409
      %v416 = vsel %vm414, %v409, %v411
      %v417 = vsel %vm414, %v411, %v413
      %v423 = vmul.f32 %v407, 0.0
      %v424 = vmul.f32 %v266, %v415
      %v425 = vmul.f32 %v267, %v416
      %v426 = vmul.f32 %v268, %v417
      %v427 = vmul.f32 %v269, %v413
      %v428 = vmul.f32 %v247, %v415
      %v429 = vmul.f32 %v249, %v416
      %v430 = vmul.f32 %v251, %v417
      %v431 = vmul.f32 %v253, %v413
      %441 = vrot.lane.b32.xlu0 %v423, 31
      %v442 = vpop.permute.xlu0 %441
      %443 = vrot.lane.b32.xlu0 %v424, 31
      %v444 = vpop.permute.xlu0 %443
      %445 = vrot.lane.b32.xlu0 %v425, 31
      %v446 = vpop.permute.xlu0 %445
      %447 = vrot.lane.b32.xlu0 %v426, 31
      %v448 = vpop.permute.xlu0 %447
      %449 = vrot.lane.b32.xlu0 %v427, 31
      %v450 = vpop.permute.xlu0 %449
      %451 = vrot.lane.b32.xlu0 %v428, 31
      %v452 = vpop.permute.xlu0 %451
      %453 = vrot.lane.b32.xlu0 %v429, 31
      %v454 = vpop.permute.xlu0 %453
      %455 = vrot.lane.b32.xlu0 %v430, 31
      %v456 = vpop.permute.xlu0 %455
      %457 = vrot.lane.b32.xlu0 %v431, 31
      %v458 = vpop.permute.xlu0 %457
      %vm459 = vcmask 252928
      %v460 = vsel %vm459, %v442, %v444
      %v461 = vsel %vm459, %v444, %v446
      %v462 = vsel %vm459, %v446, %v448
      %v463 = vsel %vm459, %v448, %v450
      %v464 = vsel %vm459, %v442, %v452
      %v465 = vsel %vm459, %v452, %v454
      %v466 = vsel %vm459, %v454, %v456
      %v467 = vsel %vm459, %v456, %v458
      %v476 = vadd.f32 %v390, %v460
      %v477 = vadd.f32 %v391, %v461
      %v478 = vadd.f32 %v392, %v462
      %v479 = vadd.f32 %v393, %v463
      %v480 = vadd.f32 %v394, %v464
      %v481 = vadd.f32 %v395, %v465
      %v482 = vadd.f32 %v396, %v466
      %v483 = vadd.f32 %v397, %v467
      %v484 = vperm.slane %v290, 0
      %v485 = vperm.slane %v291, 0
      %v486 = vperm.slane %v292, 0
      %v487 = vperm.slane %v293, 0
      %492 = vrot.lane.b32.xlu0 %v484, 95
      %v493 = vpop.permute.xlu0 %492
      %494 = vrot.lane.b32.xlu0 %v485, 95
      %v495 = vpop.permute.xlu0 %494
      %496 = vrot.lane.b32.xlu0 %v486, 95
      %v497 = vpop.permute.xlu0 %496
      %498 = vrot.lane.b32.xlu0 %v487, 95
      %v499 = vpop.permute.xlu0 %498
      %vm500 = vcmask 777216
      %v501 = vsel %vm500, %v493, %v495
      %v502 = vsel %vm500, %v495, %v497
      %v503 = vsel %vm500, %v497, %v499
      %v509 = vmul.f32 %v493, 0.0
      %v510 = vmul.f32 %v266, %v501
      %v511 = vmul.f32 %v267, %v502
      %v512 = vmul.f32 %v268, %v503
      %v513 = vmul.f32 %v269, %v499
      %v514 = vmul.f32 %v247, %v501
      %v515 = vmul.f32 %v249, %v502
      %v516 = vmul.f32 %v251, %v503
      %v517 = vmul.f32 %v253, %v499
      %527 = vrot.lane.b32.xlu0 %v509, 33
      %v528 = vpop.permute.xlu0 %527
      %529 = vrot.lane.b32.xlu0 %v510, 33
      %v530 = vpop.permute.xlu0 %529
      %531 = vrot.lane.b32.xlu0 %v511, 33
      %v532 = vpop.permute.xlu0 %531
      %533 = vrot.lane.b32.xlu0 %v512, 33
      %v534 = vpop.permute.xlu0 %533
      %535 = vrot.lane.b32.xlu0 %v513, 33
      %v536 = vpop.permute.xlu0 %535
      %537 = vrot.lane.b32.xlu0 %v514, 33
      %v538 = vpop.permute.xlu0 %537
      %539 = vrot.lane.b32.xlu0 %v515, 33
      %v540 = vpop.permute.xlu0 %539
      %541 = vrot.lane.b32.xlu0 %v516, 33
      %v542 = vpop.permute.xlu0 %541
      %543 = vrot.lane.b32.xlu0 %v517, 33
      %v544 = vpop.permute.xlu0 %543
      %vm545 = vcmask 269312
      %v546 = vsel %vm545, %v528, %v530
      %v547 = vsel %vm545, %v530, %v532
      %v548 = vsel %vm545, %v532, %v534
      %v549 = vsel %vm545, %v534, %v536
      %v550 = vsel %vm545, %v528, %v538
      %v551 = vsel %vm545, %v538, %v540
      %v552 = vsel %vm545, %v540, %v542
      %v553 = vsel %vm545, %v542, %v544
      %v562 = vadd.f32 %v476, %v546
      %v563 = vadd.f32 %v477, %v547
      %v564 = vadd.f32 %v478, %v548
      %v565 = vadd.f32 %v479, %v549
      %v566 = vadd.f32 %v480, %v550
      %v567 = vadd.f32 %v481, %v551
      %v568 = vadd.f32 %v482, %v552
      %v569 = vadd.f32 %v483, %v553
      %v570 = vperm.slane %v274, 3
      %v571 = vperm.slane %v275, 3
      %v572 = vperm.slane %v276, 3
      %v573 = vperm.slane %v277, 3
      %578 = vrot.lane.b32.xlu0 %v570, 96
      %v579 = vpop.permute.xlu0 %578
      %580 = vrot.lane.b32.xlu0 %v571, 96
      %v581 = vpop.permute.xlu0 %580
      %582 = vrot.lane.b32.xlu0 %v572, 96
      %v583 = vpop.permute.xlu0 %582
      %584 = vrot.lane.b32.xlu0 %v573, 96
      %v585 = vpop.permute.xlu0 %584
      %v586 = vsel %vm328, %v579, %v581
      %v587 = vsel %vm328, %v581, %v583
      %v588 = vsel %vm328, %v583, %v585
      %v594 = vmul.f32 %v579, 0.0
      %v595 = vmul.f32 %v266, %v586
      %v596 = vmul.f32 %v267, %v587
      %v597 = vmul.f32 %v268, %v588
      %v598 = vmul.f32 %v269, %v585
      %v599 = vmul.f32 %v247, %v586
      %v600 = vmul.f32 %v249, %v587
      %v601 = vmul.f32 %v251, %v588
      %v602 = vmul.f32 %v253, %v585
      %v603 = vmul.f32 %v270, %v586
      %v604 = vmul.f32 %v271, %v587
      %v605 = vmul.f32 %v272, %v588
      %v606 = vmul.f32 %v273, %v585
      %vm620 = vcmask 1046528
      %v621 = vrot.slane %v594, 1
      %v622 = vsel %vm620, %v621, %v621
      %v623 = vrot.slane %v595, 1
      %v624 = vrot.slane %v599, 1
      %v625 = vsel %vm620, %v623, %v624
      %v626 = vrot.slane %v596, 1
      %v627 = vrot.slane %v600, 1
      %v628 = vsel %vm620, %v626, %v627
      %v629 = vrot.slane %v597, 1
      %v630 = vrot.slane %v601, 1
      %v631 = vsel %vm620, %v629, %v630
      %v632 = vrot.slane %v598, 1
      %v633 = vrot.slane %v602, 1
      %v634 = vsel %vm620, %v632, %v633
      %v635 = vrot.slane %v603, 1
      %v636 = vsel %vm620, %v624, %v635
      %v637 = vrot.slane %v604, 1
      %v638 = vsel %vm620, %v627, %v637
      %v639 = vrot.slane %v605, 1
      %v640 = vsel %vm620, %v630, %v639
      %v641 = vrot.slane %v606, 1
      %v642 = vsel %vm620, %v633, %v641
      %643 = vrot.lane.b32.xlu0 %v622, 32
      %v644 = vpop.permute.xlu0 %643
      %645 = vrot.lane.b32.xlu0 %v625, 32
      %v646 = vpop.permute.xlu0 %645
      %647 = vrot.lane.b32.xlu0 %v628, 32
      %v648 = vpop.permute.xlu0 %647
      %649 = vrot.lane.b32.xlu0 %v631, 32
      %v650 = vpop.permute.xlu0 %649
      %651 = vrot.lane.b32.xlu0 %v634, 32
      %v652 = vpop.permute.xlu0 %651
      %653 = vrot.lane.b32.xlu0 %v636, 32
      %v654 = vpop.permute.xlu0 %653
      %655 = vrot.lane.b32.xlu0 %v638, 32
      %v656 = vpop.permute.xlu0 %655
      %657 = vrot.lane.b32.xlu0 %v640, 32
      %v658 = vpop.permute.xlu0 %657
      %659 = vrot.lane.b32.xlu0 %v642, 32
      %v660 = vpop.permute.xlu0 %659
      %v661 = vsel %vm373, %v644, %v646
      %v662 = vsel %vm373, %v646, %v648
      %v663 = vsel %vm373, %v648, %v650
      %v664 = vsel %vm373, %v650, %v652
      %v665 = vsel %vm373, %v644, %v654
      %v666 = vsel %vm373, %v654, %v656
      %v667 = vsel %vm373, %v656, %v658
      %v668 = vsel %vm373, %v658, %v660
      %v677 = vadd.f32 %v562, %v661
      %v678 = vadd.f32 %v563, %v662
      %v679 = vadd.f32 %v564, %v663
      %v680 = vadd.f32 %v565, %v664
      %v681 = vadd.f32 %v566, %v665
      %v682 = vadd.f32 %v567, %v666
      %v683 = vadd.f32 %v568, %v667
      %v684 = vadd.f32 %v569, %v668
      %v685 = vperm.slane %v282, 3
      %v686 = vperm.slane %v283, 3
      %v687 = vperm.slane %v284, 3
      %v688 = vperm.slane %v285, 3
      %693 = vrot.lane.b32.xlu0 %v685, 97
      %v694 = vpop.permute.xlu0 %693
      %695 = vrot.lane.b32.xlu0 %v686, 97
      %v696 = vpop.permute.xlu0 %695
      %697 = vrot.lane.b32.xlu0 %v687, 97
      %v698 = vpop.permute.xlu0 %697
      %699 = vrot.lane.b32.xlu0 %v688, 97
      %v700 = vpop.permute.xlu0 %699
      %v701 = vsel %vm414, %v694, %v696
      %v702 = vsel %vm414, %v696, %v698
      %v703 = vsel %vm414, %v698, %v700
      %v709 = vmul.f32 %v694, 0.0
      %v710 = vmul.f32 %v266, %v701
      %v711 = vmul.f32 %v267, %v702
      %v712 = vmul.f32 %v268, %v703
      %v713 = vmul.f32 %v269, %v700
      %v714 = vmul.f32 %v247, %v701
      %v715 = vmul.f32 %v249, %v702
      %v716 = vmul.f32 %v251, %v703
      %v717 = vmul.f32 %v253, %v700
      %v718 = vmul.f32 %v270, %v701
      %v719 = vmul.f32 %v271, %v702
      %v720 = vmul.f32 %v272, %v703
      %v721 = vmul.f32 %v273, %v700
      %v735 = vrot.slane %v709, 1
      %v736 = vsel %vm620, %v735, %v735
      %v737 = vrot.slane %v710, 1
      %v738 = vrot.slane %v714, 1
      %v739 = vsel %vm620, %v737, %v738
      %v740 = vrot.slane %v711, 1
      %v741 = vrot.slane %v715, 1
      %v742 = vsel %vm620, %v740, %v741
      %v743 = vrot.slane %v712, 1
      %v744 = vrot.slane %v716, 1
      %v745 = vsel %vm620, %v743, %v744
      %v746 = vrot.slane %v713, 1
      %v747 = vrot.slane %v717, 1
      %v748 = vsel %vm620, %v746, %v747
      %v749 = vrot.slane %v718, 1
      %v750 = vsel %vm620, %v738, %v749
      %v751 = vrot.slane %v719, 1
      %v752 = vsel %vm620, %v741, %v751
      %v753 = vrot.slane %v720, 1
      %v754 = vsel %vm620, %v744, %v753
      %v755 = vrot.slane %v721, 1
      %v756 = vsel %vm620, %v747, %v755
      %757 = vrot.lane.b32.xlu0 %v736, 31
      %v758 = vpop.permute.xlu0 %757
      %759 = vrot.lane.b32.xlu0 %v739, 31
      %v760 = vpop.permute.xlu0 %759
      %761 = vrot.lane.b32.xlu0 %v742, 31
      %v762 = vpop.permute.xlu0 %761
      %763 = vrot.lane.b32.xlu0 %v745, 31
      %v764 = vpop.permute.xlu0 %763
      %765 = vrot.lane.b32.xlu0 %v748, 31
      %v766 = vpop.permute.xlu0 %765
      %767 = vrot.lane.b32.xlu0 %v750, 31
      %v768 = vpop.permute.xlu0 %767
      %769 = vrot.lane.b32.xlu0 %v752, 31
      %v770 = vpop.permute.xlu0 %769
      %771 = vrot.lane.b32.xlu0 %v754, 31
      %v772 = vpop.permute.xlu0 %771
      %773 = vrot.lane.b32.xlu0 %v756, 31
      %v774 = vpop.permute.xlu0 %773
      %v775 = vsel %vm459, %v758, %v760
      %v776 = vsel %vm459, %v760, %v762
      %v777 = vsel %vm459, %v762, %v764
      %v778 = vsel %vm459, %v764, %v766
      %v779 = vsel %vm459, %v758, %v768
      %v780 = vsel %vm459, %v768, %v770
      %v781 = vsel %vm459, %v770, %v772
      %v782 = vsel %vm459, %v772, %v774
      %v791 = vadd.f32 %v677, %v775
      %v792 = vadd.f32 %v678, %v776
      %v793 = vadd.f32 %v679, %v777
      %v794 = vadd.f32 %v680, %v778
      %v795 = vadd.f32 %v681, %v779
      %v796 = vadd.f32 %v682, %v780
      %v797 = vadd.f32 %v683, %v781
      %v798 = vadd.f32 %v684, %v782
      %v799 = vperm.slane %v290, 3
      %v800 = vperm.slane %v291, 3
      %v801 = vperm.slane %v292, 3
      %v802 = vperm.slane %v293, 3
      %807 = vrot.lane.b32.xlu0 %v799, 95
      %v808 = vpop.permute.xlu0 %807
      %809 = vrot.lane.b32.xlu0 %v800, 95
      %v810 = vpop.permute.xlu0 %809
      %811 = vrot.lane.b32.xlu0 %v801, 95
      %v812 = vpop.permute.xlu0 %811
      %813 = vrot.lane.b32.xlu0 %v802, 95
      %v814 = vpop.permute.xlu0 %813
      %v815 = vsel %vm500, %v808, %v810
      %v816 = vsel %vm500, %v810, %v812
      %v817 = vsel %vm500, %v812, %v814
      %v823 = vmul.f32 %v808, 0.0
      %v824 = vmul.f32 %v266, %v815
      %v825 = vmul.f32 %v267, %v816
      %v826 = vmul.f32 %v268, %v817
      %v827 = vmul.f32 %v269, %v814
      %v828 = vmul.f32 %v247, %v815
      %v829 = vmul.f32 %v249, %v816
      %v830 = vmul.f32 %v251, %v817
      %v831 = vmul.f32 %v253, %v814
      %v832 = vmul.f32 %v270, %v815
      %v833 = vmul.f32 %v271, %v816
      %v834 = vmul.f32 %v272, %v817
      %v835 = vmul.f32 %v273, %v814
      %v849 = vrot.slane %v823, 1
      %v850 = vsel %vm620, %v849, %v849
      %v851 = vrot.slane %v824, 1
      %v852 = vrot.slane %v828, 1
      %v853 = vsel %vm620, %v851, %v852
      %v854 = vrot.slane %v825, 1
      %v855 = vrot.slane %v829, 1
      %v856 = vsel %vm620, %v854, %v855
      %v857 = vrot.slane %v826, 1
      %v858 = vrot.slane %v830, 1
      %v859 = vsel %vm620, %v857, %v858
      %v860 = vrot.slane %v827, 1
      %v861 = vrot.slane %v831, 1
      %v862 = vsel %vm620, %v860, %v861
      %v863 = vrot.slane %v832, 1
      %v864 = vsel %vm620, %v852, %v863
      %v865 = vrot.slane %v833, 1
      %v866 = vsel %vm620, %v855, %v865
      %v867 = vrot.slane %v834, 1
      %v868 = vsel %vm620, %v858, %v867
      %v869 = vrot.slane %v835, 1
      %v870 = vsel %vm620, %v861, %v869
      %871 = vrot.lane.b32.xlu0 %v850, 33
      %v872 = vpop.permute.xlu0 %871
      %873 = vrot.lane.b32.xlu0 %v853, 33
      %v874 = vpop.permute.xlu0 %873
      %875 = vrot.lane.b32.xlu0 %v856, 33
      %v876 = vpop.permute.xlu0 %875
      %877 = vrot.lane.b32.xlu0 %v859, 33
      %v878 = vpop.permute.xlu0 %877
      %879 = vrot.lane.b32.xlu0 %v862, 33
      %v880 = vpop.permute.xlu0 %879
      %881 = vrot.lane.b32.xlu0 %v864, 33
      %v882 = vpop.permute.xlu0 %881
      %883 = vrot.lane.b32.xlu0 %v866, 33
      %v884 = vpop.permute.xlu0 %883
      %885 = vrot.lane.b32.xlu0 %v868, 33
      %v886 = vpop.permute.xlu0 %885
      %887 = vrot.lane.b32.xlu0 %v870, 33
      %v888 = vpop.permute.xlu0 %887
      %v889 = vsel %vm545, %v872, %v874
      %v890 = vsel %vm545, %v874, %v876
      %v891 = vsel %vm545, %v876, %v878
      %v892 = vsel %vm545, %v878, %v880
      %v893 = vsel %vm545, %v872, %v882
      %v894 = vsel %vm545, %v882, %v884
      %v895 = vsel %vm545, %v884, %v886
      %v896 = vsel %vm545, %v886, %v888
      %v905 = vadd.f32 %v791, %v889
      %v906 = vadd.f32 %v792, %v890
      %v907 = vadd.f32 %v793, %v891
      %v908 = vadd.f32 %v794, %v892
      %v909 = vadd.f32 %v795, %v893
      %v910 = vadd.f32 %v796, %v894
      %v911 = vadd.f32 %v797, %v895
      %v912 = vadd.f32 %v798, %v896
      %v913 = vperm.slane %v274, 6
      %v914 = vperm.slane %v275, 6
      %v915 = vperm.slane %v276, 6
      %v916 = vperm.slane %v277, 6
      %921 = vrot.lane.b32.xlu0 %v913, 96
      %v922 = vpop.permute.xlu0 %921
      %923 = vrot.lane.b32.xlu0 %v914, 96
      %v924 = vpop.permute.xlu0 %923
      %925 = vrot.lane.b32.xlu0 %v915, 96
      %v926 = vpop.permute.xlu0 %925
      %927 = vrot.lane.b32.xlu0 %v916, 96
      %v928 = vpop.permute.xlu0 %927
      %v929 = vsel %vm328, %v922, %v924
      %v930 = vsel %vm328, %v924, %v926
      %v931 = vsel %vm328, %v926, %v928
      %v937 = vmul.f32 %v922, 0.0
      %v938 = vmul.f32 %v266, %v929
      %v939 = vmul.f32 %v267, %v930
      %v940 = vmul.f32 %v268, %v931
      %v941 = vmul.f32 %v269, %v928
      %v942 = vmul.f32 %v247, %v929
      %v943 = vmul.f32 %v249, %v930
      %v944 = vmul.f32 %v251, %v931
      %v945 = vmul.f32 %v253, %v928
      %v946 = vmul.f32 %v270, %v929
      %v947 = vmul.f32 %v271, %v930
      %v948 = vmul.f32 %v272, %v931
      %v949 = vmul.f32 %v273, %v928
      %vm963 = vcmask 1045504
      %v964 = vrot.slane %v937, 2
      %v965 = vsel %vm963, %v964, %v964
      %v966 = vrot.slane %v938, 2
      %v967 = vrot.slane %v942, 2
      %v968 = vsel %vm963, %v966, %v967
      %v969 = vrot.slane %v939, 2
      %v970 = vrot.slane %v943, 2
      %v971 = vsel %vm963, %v969, %v970
      %v972 = vrot.slane %v940, 2
      %v973 = vrot.slane %v944, 2
      %v974 = vsel %vm963, %v972, %v973
      %v975 = vrot.slane %v941, 2
      %v976 = vrot.slane %v945, 2
      %v977 = vsel %vm963, %v975, %v976
      %v978 = vrot.slane %v946, 2
      %v979 = vsel %vm963, %v967, %v978
      %v980 = vrot.slane %v947, 2
      %v981 = vsel %vm963, %v970, %v980
      %v982 = vrot.slane %v948, 2
      %v983 = vsel %vm963, %v973, %v982
      %v984 = vrot.slane %v949, 2
      %v985 = vsel %vm963, %v976, %v984
      %986 = vrot.lane.b32.xlu0 %v965, 32
      %v987 = vpop.permute.xlu0 %986
      %988 = vrot.lane.b32.xlu0 %v968, 32
      %v989 = vpop.permute.xlu0 %988
      %990 = vrot.lane.b32.xlu0 %v971, 32
      %v991 = vpop.permute.xlu0 %990
      %992 = vrot.lane.b32.xlu0 %v974, 32
      %v993 = vpop.permute.xlu0 %992
      %994 = vrot.lane.b32.xlu0 %v977, 32
      %v995 = vpop.permute.xlu0 %994
      %996 = vrot.lane.b32.xlu0 %v979, 32
      %v997 = vpop.permute.xlu0 %996
      %998 = vrot.lane.b32.xlu0 %v981, 32
      %v999 = vpop.permute.xlu0 %998
      %1000 = vrot.lane.b32.xlu0 %v983, 32
      %v1001 = vpop.permute.xlu0 %1000
      %1002 = vrot.lane.b32.xlu0 %v985, 32
      %v1003 = vpop.permute.xlu0 %1002
      %v1004 = vsel %vm373, %v987, %v989
      %v1005 = vsel %vm373, %v989, %v991
      %v1006 = vsel %vm373, %v991, %v993
      %v1007 = vsel %vm373, %v993, %v995
      %v1008 = vsel %vm373, %v987, %v997
      %v1009 = vsel %vm373, %v997, %v999
      %v1010 = vsel %vm373, %v999, %v1001
      %v1011 = vsel %vm373, %v1001, %v1003
      %v1020 = vadd.f32 %v905, %v1004
      %v1021 = vadd.f32 %v906, %v1005
      %v1022 = vadd.f32 %v907, %v1006
      %v1023 = vadd.f32 %v908, %v1007
      %v1024 = vadd.f32 %v909, %v1008
      %v1025 = vadd.f32 %v910, %v1009
      %v1026 = vadd.f32 %v911, %v1010
      %v1027 = vadd.f32 %v912, %v1011
      %v1028 = vperm.slane %v282, 6
      %v1029 = vperm.slane %v283, 6
      %v1030 = vperm.slane %v284, 6
      %v1031 = vperm.slane %v285, 6
      %1036 = vrot.lane.b32.xlu0 %v1028, 97
      %v1037 = vpop.permute.xlu0 %1036
      %1038 = vrot.lane.b32.xlu0 %v1029, 97
      %v1039 = vpop.permute.xlu0 %1038
      %1040 = vrot.lane.b32.xlu0 %v1030, 97
      %v1041 = vpop.permute.xlu0 %1040
      %1042 = vrot.lane.b32.xlu0 %v1031, 97
      %v1043 = vpop.permute.xlu0 %1042
      %v1044 = vsel %vm414, %v1037, %v1039
      %v1045 = vsel %vm414, %v1039, %v1041
      %v1046 = vsel %vm414, %v1041, %v1043
      %v1052 = vmul.f32 %v1037, 0.0
      %v1053 = vmul.f32 %v266, %v1044
      %v1054 = vmul.f32 %v267, %v1045
      %v1055 = vmul.f32 %v268, %v1046
      %v1056 = vmul.f32 %v269, %v1043
      %v1057 = vmul.f32 %v247, %v1044
      %v1058 = vmul.f32 %v249, %v1045
      %v1059 = vmul.f32 %v251, %v1046
      %v1060 = vmul.f32 %v253, %v1043
      %v1061 = vmul.f32 %v270, %v1044
      %v1062 = vmul.f32 %v271, %v1045
      %v1063 = vmul.f32 %v272, %v1046
      %v1064 = vmul.f32 %v273, %v1043
      %v1078 = vrot.slane %v1052, 2
      %v1079 = vsel %vm963, %v1078, %v1078
      %v1080 = vrot.slane %v1053, 2
      %v1081 = vrot.slane %v1057, 2
      %v1082 = vsel %vm963, %v1080, %v1081
      %v1083 = vrot.slane %v1054, 2
      %v1084 = vrot.slane %v1058, 2
      %v1085 = vsel %vm963, %v1083, %v1084
      %v1086 = vrot.slane %v1055, 2
      %v1087 = vrot.slane %v1059, 2
      %v1088 = vsel %vm963, %v1086, %v1087
      %v1089 = vrot.slane %v1056, 2
      %v1090 = vrot.slane %v1060, 2
      %v1091 = vsel %vm963, %v1089, %v1090
      %v1092 = vrot.slane %v1061, 2
      %v1093 = vsel %vm963, %v1081, %v1092
      %v1094 = vrot.slane %v1062, 2
      %v1095 = vsel %vm963, %v1084, %v1094
      %v1096 = vrot.slane %v1063, 2
      %v1097 = vsel %vm963, %v1087, %v1096
      %v1098 = vrot.slane %v1064, 2
      %v1099 = vsel %vm963, %v1090, %v1098
      %1100 = vrot.lane.b32.xlu0 %v1079, 31
      %v1101 = vpop.permute.xlu0 %1100
      %1102 = vrot.lane.b32.xlu0 %v1082, 31
      %v1103 = vpop.permute.xlu0 %1102
      %1104 = vrot.lane.b32.xlu0 %v1085, 31
      %v1105 = vpop.permute.xlu0 %1104
      %1106 = vrot.lane.b32.xlu0 %v1088, 31
      %v1107 = vpop.permute.xlu0 %1106
      %1108 = vrot.lane.b32.xlu0 %v1091, 31
      %v1109 = vpop.permute.xlu0 %1108
      %1110 = vrot.lane.b32.xlu0 %v1093, 31
      %v1111 = vpop.permute.xlu0 %1110
      %1112 = vrot.lane.b32.xlu0 %v1095, 31
      %v1113 = vpop.permute.xlu0 %1112
      %1114 = vrot.lane.b32.xlu0 %v1097, 31
      %v1115 = vpop.permute.xlu0 %1114
      %1116 = vrot.lane.b32.xlu0 %v1099, 31
      %v1117 = vpop.permute.xlu0 %1116
      %v1118 = vsel %vm459, %v1101, %v1103
      %v1119 = vsel %vm459, %v1103, %v1105
      %v1120 = vsel %vm459, %v1105, %v1107
      %v1121 = vsel %vm459, %v1107, %v1109
      %v1122 = vsel %vm459, %v1101, %v1111
      %v1123 = vsel %vm459, %v1111, %v1113
      %v1124 = vsel %vm459, %v1113, %v1115
      %v1125 = vsel %vm459, %v1115, %v1117
      %v1134 = vadd.f32 %v1020, %v1118
      %v1135 = vadd.f32 %v1021, %v1119
      %v1136 = vadd.f32 %v1022, %v1120
      %v1137 = vadd.f32 %v1023, %v1121
      %v1138 = vadd.f32 %v1024, %v1122
      %v1139 = vadd.f32 %v1025, %v1123
      %v1140 = vadd.f32 %v1026, %v1124
      %v1141 = vadd.f32 %v1027, %v1125
      %v1142 = vperm.slane %v290, 6
      %v1143 = vperm.slane %v291, 6
      %v1144 = vperm.slane %v292, 6
      %v1145 = vperm.slane %v293, 6
      %1150 = vrot.lane.b32.xlu0 %v1142, 95
      %v1151 = vpop.permute.xlu0 %1150
      %1152 = vrot.lane.b32.xlu0 %v1143, 95
      %v1153 = vpop.permute.xlu0 %1152
      %1154 = vrot.lane.b32.xlu0 %v1144, 95
      %v1155 = vpop.permute.xlu0 %1154
      %1156 = vrot.lane.b32.xlu0 %v1145, 95
      %v1157 = vpop.permute.xlu0 %1156
      %v1158 = vsel %vm500, %v1151, %v1153
      %v1159 = vsel %vm500, %v1153, %v1155
      %v1160 = vsel %vm500, %v1155, %v1157
      %v1166 = vmul.f32 %v1151, 0.0
      %v1167 = vmul.f32 %v266, %v1158
      %v1168 = vmul.f32 %v267, %v1159
      %v1169 = vmul.f32 %v268, %v1160
      %v1170 = vmul.f32 %v269, %v1157
      %v1171 = vmul.f32 %v247, %v1158
      %v1172 = vmul.f32 %v249, %v1159
      %v1173 = vmul.f32 %v251, %v1160
      %v1174 = vmul.f32 %v253, %v1157
      %v1175 = vmul.f32 %v270, %v1158
      %v1176 = vmul.f32 %v271, %v1159
      %v1177 = vmul.f32 %v272, %v1160
      %v1178 = vmul.f32 %v273, %v1157
      %v1192 = vrot.slane %v1166, 2
      %v1193 = vsel %vm963, %v1192, %v1192
      %v1194 = vrot.slane %v1167, 2
      %v1195 = vrot.slane %v1171, 2
      %v1196 = vsel %vm963, %v1194, %v1195
      %v1197 = vrot.slane %v1168, 2
      %v1198 = vrot.slane %v1172, 2
      %v1199 = vsel %vm963, %v1197, %v1198
      %v1200 = vrot.slane %v1169, 2
      %v1201 = vrot.slane %v1173, 2
      %v1202 = vsel %vm963, %v1200, %v1201
      %v1203 = vrot.slane %v1170, 2
      %v1204 = vrot.slane %v1174, 2
      %v1205 = vsel %vm963, %v1203, %v1204
      %v1206 = vrot.slane %v1175, 2
      %v1207 = vsel %vm963, %v1195, %v1206
      %v1208 = vrot.slane %v1176, 2
      %v1209 = vsel %vm963, %v1198, %v1208
      %v1210 = vrot.slane %v1177, 2
      %v1211 = vsel %vm963, %v1201, %v1210
      %v1212 = vrot.slane %v1178, 2
      %v1213 = vsel %vm963, %v1204, %v1212
      %1214 = vrot.lane.b32.xlu0 %v1193, 33
      %v1215 = vpop.permute.xlu0 %1214
      %1216 = vrot.lane.b32.xlu0 %v1196, 33
      %v1217 = vpop.permute.xlu0 %1216
      %1218 = vrot.lane.b32.xlu0 %v1199, 33
      %v1219 = vpop.permute.xlu0 %1218
      %1220 = vrot.lane.b32.xlu0 %v1202, 33
      %v1221 = vpop.permute.xlu0 %1220
      %1222 = vrot.lane.b32.xlu0 %v1205, 33
      %v1223 = vpop.permute.xlu0 %1222
      %1224 = vrot.lane.b32.xlu0 %v1207, 33
      %v1225 = vpop.permute.xlu0 %1224
      %1226 = vrot.lane.b32.xlu0 %v1209, 33
      %v1227 = vpop.permute.xlu0 %1226
      %1228 = vrot.lane.b32.xlu0 %v1211, 33
      %v1229 = vpop.permute.xlu0 %1228
      %1230 = vrot.lane.b32.xlu0 %v1213, 33
      %v1231 = vpop.permute.xlu0 %1230
      %v1232 = vsel %vm545, %v1215, %v1217
      %v1233 = vsel %vm545, %v1217, %v1219
      %v1234 = vsel %vm545, %v1219, %v1221
      %v1235 = vsel %vm545, %v1221, %v1223
      %v1236 = vsel %vm545, %v1215, %v1225
      %v1237 = vsel %vm545, %v1225, %v1227
      %v1238 = vsel %vm545, %v1227, %v1229
      %v1239 = vsel %vm545, %v1229, %v1231
      %v1248 = vadd.f32 %v1134, %v1232
      %v1249 = vadd.f32 %v1135, %v1233
      %v1250 = vadd.f32 %v1136, %v1234
      %v1251 = vadd.f32 %v1137, %v1235
      %v1252 = vadd.f32 %v1138, %v1236
      %v1253 = vadd.f32 %v1139, %v1237
      %v1254 = vadd.f32 %v1140, %v1238
      %v1255 = vadd.f32 %v1141, %v1239
      %v1256 = vperm.slane %v274, 1
      %v1257 = vperm.slane %v275, 1
      %v1258 = vperm.slane %v276, 1
      %v1259 = vperm.slane %v277, 1
      %v1260 = vmul.f32 %v266, %v1256
      %v1261 = vmul.f32 %v267, %v1257
      %v1262 = vmul.f32 %v268, %v1258
      %v1263 = vmul.f32 %v269, %v1259
      %v1264 = vmul.f32 %v247, %v1256
      %v1265 = vmul.f32 %v249, %v1257
      %v1266 = vmul.f32 %v251, %v1258
      %v1267 = vmul.f32 %v253, %v1259
      %v1268 = vadd.f32 %v1248, %v1260
      %v1269 = vadd.f32 %v1249, %v1261
      %v1270 = vadd.f32 %v1250, %v1262
      %v1271 = vadd.f32 %v1251, %v1263
      %v1272 = vadd.f32 %v1252, %v1264
      %v1273 = vadd.f32 %v1253, %v1265
      %v1274 = vadd.f32 %v1254, %v1266
      %v1275 = vadd.f32 %v1255, %v1267
      %v1276 = vperm.slane %v282, 1
      %v1277 = vperm.slane %v283, 1
      %v1278 = vperm.slane %v284, 1
      %v1279 = vperm.slane %v285, 1
      %1284 = vrot.lane.b32.xlu0 %v1276, 1
      %v1285 = vpop.permute.xlu0 %1284
      %1286 = vrot.lane.b32.xlu0 %v1277, 1
      %v1287 = vpop.permute.xlu0 %1286
      %1288 = vrot.lane.b32.xlu0 %v1278, 1
      %v1289 = vpop.permute.xlu0 %1288
      %1290 = vrot.lane.b32.xlu0 %v1279, 1
      %v1291 = vpop.permute.xlu0 %1290
      %vm1292 = vcmask 7168
      %v1293 = vsel %vm1292, %v1285, %v1287
      %v1294 = vsel %vm1292, %v1287, %v1289
      %v1295 = vsel %vm1292, %v1289, %v1291
      %v1301 = vmul.f32 %v266, %v1285
      %v1302 = vmul.f32 %v267, %v1293
      %v1303 = vmul.f32 %v268, %v1294
      %v1304 = vmul.f32 %v269, %v1295
      %v1305 = vmul.f32 %v1291, 0.0
      %v1306 = vmul.f32 %v247, %v1285
      %v1307 = vmul.f32 %v249, %v1293
      %v1308 = vmul.f32 %v251, %v1294
      %v1309 = vmul.f32 %v253, %v1295
      %1319 = vrot.lane.b32.xlu0 %v1301, 127
      %v1320 = vpop.permute.xlu0 %1319
      %1321 = vrot.lane.b32.xlu0 %v1302, 127
      %v1322 = vpop.permute.xlu0 %1321
      %1323 = vrot.lane.b32.xlu0 %v1303, 127
      %v1324 = vpop.permute.xlu0 %1323
      %1325 = vrot.lane.b32.xlu0 %v1304, 127
      %v1326 = vpop.permute.xlu0 %1325
      %1327 = vrot.lane.b32.xlu0 %v1305, 127
      %v1328 = vpop.permute.xlu0 %1327
      %1329 = vrot.lane.b32.xlu0 %v1306, 127
      %v1330 = vpop.permute.xlu0 %1329
      %1331 = vrot.lane.b32.xlu0 %v1307, 127
      %v1332 = vpop.permute.xlu0 %1331
      %1333 = vrot.lane.b32.xlu0 %v1308, 127
      %v1334 = vpop.permute.xlu0 %1333
      %1335 = vrot.lane.b32.xlu0 %v1309, 127
      %v1336 = vpop.permute.xlu0 %1335
      %vm1337 = vcmask 1039360
      %v1338 = vsel %vm1337, %v1320, %v1322
      %v1339 = vsel %vm1337, %v1322, %v1324
      %v1340 = vsel %vm1337, %v1324, %v1326
      %v1341 = vsel %vm1337, %v1326, %v1328
      %v1342 = vsel %vm1337, %v1330, %v1332
      %v1343 = vsel %vm1337, %v1332, %v1334
      %v1344 = vsel %vm1337, %v1334, %v1336
      %v1345 = vsel %vm1337, %v1336, %v1328
      %v1354 = vadd.f32 %v1268, %v1338
      %v1355 = vadd.f32 %v1269, %v1339
      %v1356 = vadd.f32 %v1270, %v1340
      %v1357 = vadd.f32 %v1271, %v1341
      %v1358 = vadd.f32 %v1272, %v1342
      %v1359 = vadd.f32 %v1273, %v1343
      %v1360 = vadd.f32 %v1274, %v1344
      %v1361 = vadd.f32 %v1275, %v1345
      %v1362 = vperm.slane %v290, 1
      %v1363 = vperm.slane %v291, 1
      %v1364 = vperm.slane %v292, 1
      %v1365 = vperm.slane %v293, 1
      %1370 = vrot.lane.b32.xlu0 %v1362, 127
      %v1371 = vpop.permute.xlu0 %1370
      %1372 = vrot.lane.b32.xlu0 %v1363, 127
      %v1373 = vpop.permute.xlu0 %1372
      %1374 = vrot.lane.b32.xlu0 %v1364, 127
      %v1375 = vpop.permute.xlu0 %1374
      %1376 = vrot.lane.b32.xlu0 %v1365, 127
      %v1377 = vpop.permute.xlu0 %1376
      %v1378 = vsel %vm1337, %v1371, %v1373
      %v1379 = vsel %vm1337, %v1373, %v1375
      %v1380 = vsel %vm1337, %v1375, %v1377
      %v1386 = vmul.f32 %v1371, 0.0
      %v1387 = vmul.f32 %v266, %v1378
      %v1388 = vmul.f32 %v267, %v1379
      %v1389 = vmul.f32 %v268, %v1380
      %v1390 = vmul.f32 %v269, %v1377
      %v1391 = vmul.f32 %v247, %v1378
      %v1392 = vmul.f32 %v249, %v1379
      %v1393 = vmul.f32 %v251, %v1380
      %v1394 = vmul.f32 %v253, %v1377
      %1404 = vrot.lane.b32.xlu0 %v1386, 1
      %v1405 = vpop.permute.xlu0 %1404
      %1406 = vrot.lane.b32.xlu0 %v1387, 1
      %v1407 = vpop.permute.xlu0 %1406
      %1408 = vrot.lane.b32.xlu0 %v1388, 1
      %v1409 = vpop.permute.xlu0 %1408
      %1410 = vrot.lane.b32.xlu0 %v1389, 1
      %v1411 = vpop.permute.xlu0 %1410
      %1412 = vrot.lane.b32.xlu0 %v1390, 1
      %v1413 = vpop.permute.xlu0 %1412
      %1414 = vrot.lane.b32.xlu0 %v1391, 1
      %v1415 = vpop.permute.xlu0 %1414
      %1416 = vrot.lane.b32.xlu0 %v1392, 1
      %v1417 = vpop.permute.xlu0 %1416
      %1418 = vrot.lane.b32.xlu0 %v1393, 1
      %v1419 = vpop.permute.xlu0 %1418
      %1420 = vrot.lane.b32.xlu0 %v1394, 1
      %v1421 = vpop.permute.xlu0 %1420
      %v1422 = vsel %vm1292, %v1405, %v1407
      %v1423 = vsel %vm1292, %v1407, %v1409
      %v1424 = vsel %vm1292, %v1409, %v1411
      %v1425 = vsel %vm1292, %v1411, %v1413
      %v1426 = vsel %vm1292, %v1405, %v1415
      %v1427 = vsel %vm1292, %v1415, %v1417
      %v1428 = vsel %vm1292, %v1417, %v1419
      %v1429 = vsel %vm1292, %v1419, %v1421
      %v1438 = vadd.f32 %v1354, %v1422
      %v1439 = vadd.f32 %v1355, %v1423
      %v1440 = vadd.f32 %v1356, %v1424
      %v1441 = vadd.f32 %v1357, %v1425
      %v1442 = vadd.f32 %v1358, %v1426
      %v1443 = vadd.f32 %v1359, %v1427
      %v1444 = vadd.f32 %v1360, %v1428
      %v1445 = vadd.f32 %v1361, %v1429
      %v1446 = vperm.slane %v274, 4
      %v1447 = vperm.slane %v275, 4
      %v1448 = vperm.slane %v276, 4
      %v1449 = vperm.slane %v277, 4
      %v1450 = vmul.f32 %v266, %v1446
      %v1451 = vmul.f32 %v267, %v1447
      %v1452 = vmul.f32 %v268, %v1448
      %v1453 = vmul.f32 %v269, %v1449
      %v1454 = vmul.f32 %v247, %v1446
      %v1455 = vmul.f32 %v249, %v1447
      %v1456 = vmul.f32 %v251, %v1448
      %v1457 = vmul.f32 %v253, %v1449
      %v1458 = vmul.f32 %v270, %v1446
      %v1459 = vmul.f32 %v271, %v1447
      %v1460 = vmul.f32 %v272, %v1448
      %v1461 = vmul.f32 %v273, %v1449
      %v1474 = vrot.slane %v1450, 1
      %v1475 = vrot.slane %v1454, 1
      %v1476 = vsel %vm620, %v1474, %v1475
      %v1477 = vrot.slane %v1451, 1
      %v1478 = vrot.slane %v1455, 1
      %v1479 = vsel %vm620, %v1477, %v1478
      %v1480 = vrot.slane %v1452, 1
      %v1481 = vrot.slane %v1456, 1
      %v1482 = vsel %vm620, %v1480, %v1481
      %v1483 = vrot.slane %v1453, 1
      %v1484 = vrot.slane %v1457, 1
      %v1485 = vsel %vm620, %v1483, %v1484
      %v1486 = vrot.slane %v1458, 1
      %v1487 = vsel %vm620, %v1475, %v1486
      %v1488 = vrot.slane %v1459, 1
      %v1489 = vsel %vm620, %v1478, %v1488
      %v1490 = vrot.slane %v1460, 1
      %v1491 = vsel %vm620, %v1481, %v1490
      %v1492 = vrot.slane %v1461, 1
      %v1493 = vsel %vm620, %v1484, %v1492
      %v1502 = vadd.f32 %v1438, %v1476
      %v1503 = vadd.f32 %v1439, %v1479
      %v1504 = vadd.f32 %v1440, %v1482
      %v1505 = vadd.f32 %v1441, %v1485
      %v1506 = vadd.f32 %v1442, %v1487
      %v1507 = vadd.f32 %v1443, %v1489
      %v1508 = vadd.f32 %v1444, %v1491
      %v1509 = vadd.f32 %v1445, %v1493
      %v1510 = vperm.slane %v282, 4
      %v1511 = vperm.slane %v283, 4
      %v1512 = vperm.slane %v284, 4
      %v1513 = vperm.slane %v285, 4
      %1518 = vrot.lane.b32.xlu0 %v1510, 1
      %v1519 = vpop.permute.xlu0 %1518
      %1520 = vrot.lane.b32.xlu0 %v1511, 1
      %v1521 = vpop.permute.xlu0 %1520
      %1522 = vrot.lane.b32.xlu0 %v1512, 1
      %v1523 = vpop.permute.xlu0 %1522
      %1524 = vrot.lane.b32.xlu0 %v1513, 1
      %v1525 = vpop.permute.xlu0 %1524
      %v1526 = vsel %vm1292, %v1519, %v1521
      %v1527 = vsel %vm1292, %v1521, %v1523
      %v1528 = vsel %vm1292, %v1523, %v1525
      %v1534 = vmul.f32 %v266, %v1519
      %v1535 = vmul.f32 %v267, %v1526
      %v1536 = vmul.f32 %v268, %v1527
      %v1537 = vmul.f32 %v269, %v1528
      %v1538 = vmul.f32 %v1525, 0.0
      %v1539 = vmul.f32 %v247, %v1519
      %v1540 = vmul.f32 %v249, %v1526
      %v1541 = vmul.f32 %v251, %v1527
      %v1542 = vmul.f32 %v253, %v1528
      %v1543 = vmul.f32 %v270, %v1519
      %v1544 = vmul.f32 %v271, %v1526
      %v1545 = vmul.f32 %v272, %v1527
      %v1546 = vmul.f32 %v273, %v1528
      %v1560 = vrot.slane %v1534, 1
      %v1561 = vrot.slane %v1539, 1
      %v1562 = vsel %vm620, %v1560, %v1561
      %v1563 = vrot.slane %v1535, 1
      %v1564 = vrot.slane %v1540, 1
      %v1565 = vsel %vm620, %v1563, %v1564
      %v1566 = vrot.slane %v1536, 1
      %v1567 = vrot.slane %v1541, 1
      %v1568 = vsel %vm620, %v1566, %v1567
      %v1569 = vrot.slane %v1537, 1
      %v1570 = vrot.slane %v1542, 1
      %v1571 = vsel %vm620, %v1569, %v1570
      %v1572 = vrot.slane %v1538, 1
      %v1573 = vsel %vm620, %v1572, %v1572
      %v1574 = vrot.slane %v1543, 1
      %v1575 = vsel %vm620, %v1561, %v1574
      %v1576 = vrot.slane %v1544, 1
      %v1577 = vsel %vm620, %v1564, %v1576
      %v1578 = vrot.slane %v1545, 1
      %v1579 = vsel %vm620, %v1567, %v1578
      %v1580 = vrot.slane %v1546, 1
      %v1581 = vsel %vm620, %v1570, %v1580
      %1582 = vrot.lane.b32.xlu0 %v1562, 127
      %v1583 = vpop.permute.xlu0 %1582
      %1584 = vrot.lane.b32.xlu0 %v1565, 127
      %v1585 = vpop.permute.xlu0 %1584
      %1586 = vrot.lane.b32.xlu0 %v1568, 127
      %v1587 = vpop.permute.xlu0 %1586
      %1588 = vrot.lane.b32.xlu0 %v1571, 127
      %v1589 = vpop.permute.xlu0 %1588
      %1590 = vrot.lane.b32.xlu0 %v1573, 127
      %v1591 = vpop.permute.xlu0 %1590
      %1592 = vrot.lane.b32.xlu0 %v1575, 127
      %v1593 = vpop.permute.xlu0 %1592
      %1594 = vrot.lane.b32.xlu0 %v1577, 127
      %v1595 = vpop.permute.xlu0 %1594
      %1596 = vrot.lane.b32.xlu0 %v1579, 127
      %v1597 = vpop.permute.xlu0 %1596
      %1598 = vrot.lane.b32.xlu0 %v1581, 127
      %v1599 = vpop.permute.xlu0 %1598
      %v1600 = vsel %vm1337, %v1583, %v1585
      %v1601 = vsel %vm1337, %v1585, %v1587
      %v1602 = vsel %vm1337, %v1587, %v1589
      %v1603 = vsel %vm1337, %v1589, %v1591
      %v1604 = vsel %vm1337, %v1593, %v1595
      %v1605 = vsel %vm1337, %v1595, %v1597
      %v1606 = vsel %vm1337, %v1597, %v1599
      %v1607 = vsel %vm1337, %v1599, %v1591
      %v1616 = vadd.f32 %v1502, %v1600
      %v1617 = vadd.f32 %v1503, %v1601
      %v1618 = vadd.f32 %v1504, %v1602
      %v1619 = vadd.f32 %v1505, %v1603
      %v1620 = vadd.f32 %v1506, %v1604
      %v1621 = vadd.f32 %v1507, %v1605
      %v1622 = vadd.f32 %v1508, %v1606
      %v1623 = vadd.f32 %v1509, %v1607
      %v1624 = vperm.slane %v290, 4
      %v1625 = vperm.slane %v291, 4
      %v1626 = vperm.slane %v292, 4
      %v1627 = vperm.slane %v293, 4
      %1632 = vrot.lane.b32.xlu0 %v1624, 127
      %v1633 = vpop.permute.xlu0 %1632
      %1634 = vrot.lane.b32.xlu0 %v1625, 127
      %v1635 = vpop.permute.xlu0 %1634
      %1636 = vrot.lane.b32.xlu0 %v1626, 127
      %v1637 = vpop.permute.xlu0 %1636
      %1638 = vrot.lane.b32.xlu0 %v1627, 127
      %v1639 = vpop.permute.xlu0 %1638
      %v1640 = vsel %vm1337, %v1633, %v1635
      %v1641 = vsel %vm1337, %v1635, %v1637
      %v1642 = vsel %vm1337, %v1637, %v1639
      %v1648 = vmul.f32 %v1633, 0.0
      %v1649 = vmul.f32 %v266, %v1640
      %v1650 = vmul.f32 %v267, %v1641
      %v1651 = vmul.f32 %v268, %v1642
      %v1652 = vmul.f32 %v269, %v1639
      %v1653 = vmul.f32 %v247, %v1640
      %v1654 = vmul.f32 %v249, %v1641
      %v1655 = vmul.f32 %v251, %v1642
      %v1656 = vmul.f32 %v253, %v1639
      %v1657 = vmul.f32 %v270, %v1640
      %v1658 = vmul.f32 %v271, %v1641
      %v1659 = vmul.f32 %v272, %v1642
      %v1660 = vmul.f32 %v273, %v1639
      %v1674 = vrot.slane %v1648, 1
      %v1675 = vsel %vm620, %v1674, %v1674
      %v1676 = vrot.slane %v1649, 1
      %v1677 = vrot.slane %v1653, 1
      %v1678 = vsel %vm620, %v1676, %v1677
      %v1679 = vrot.slane %v1650, 1
      %v1680 = vrot.slane %v1654, 1
      %v1681 = vsel %vm620, %v1679, %v1680
      %v1682 = vrot.slane %v1651, 1
      %v1683 = vrot.slane %v1655, 1
      %v1684 = vsel %vm620, %v1682, %v1683
      %v1685 = vrot.slane %v1652, 1
      %v1686 = vrot.slane %v1656, 1
      %v1687 = vsel %vm620, %v1685, %v1686
      %v1688 = vrot.slane %v1657, 1
      %v1689 = vsel %vm620, %v1677, %v1688
      %v1690 = vrot.slane %v1658, 1
      %v1691 = vsel %vm620, %v1680, %v1690
      %v1692 = vrot.slane %v1659, 1
      %v1693 = vsel %vm620, %v1683, %v1692
      %v1694 = vrot.slane %v1660, 1
      %v1695 = vsel %vm620, %v1686, %v1694
      %1696 = vrot.lane.b32.xlu0 %v1675, 1
      %v1697 = vpop.permute.xlu0 %1696
      %1698 = vrot.lane.b32.xlu0 %v1678, 1
      %v1699 = vpop.permute.xlu0 %1698
      %1700 = vrot.lane.b32.xlu0 %v1681, 1
      %v1701 = vpop.permute.xlu0 %1700
      %1702 = vrot.lane.b32.xlu0 %v1684, 1
      %v1703 = vpop.permute.xlu0 %1702
      %1704 = vrot.lane.b32.xlu0 %v1687, 1
      %v1705 = vpop.permute.xlu0 %1704
      %1706 = vrot.lane.b32.xlu0 %v1689, 1
      %v1707 = vpop.permute.xlu0 %1706
      %1708 = vrot.lane.b32.xlu0 %v1691, 1
      %v1709 = vpop.permute.xlu0 %1708
      %1710 = vrot.lane.b32.xlu0 %v1693, 1
      %v1711 = vpop.permute.xlu0 %1710
      %1712 = vrot.lane.b32.xlu0 %v1695, 1
      %v1713 = vpop.permute.xlu0 %1712
      %v1714 = vsel %vm1292, %v1697, %v1699
      %v1715 = vsel %vm1292, %v1699, %v1701
      %v1716 = vsel %vm1292, %v1701, %v1703
      %v1717 = vsel %vm1292, %v1703, %v1705
      %v1718 = vsel %vm1292, %v1697, %v1707
      %v1719 = vsel %vm1292, %v1707, %v1709
      %v1720 = vsel %vm1292, %v1709, %v1711
      %v1721 = vsel %vm1292, %v1711, %v1713
      %v1730 = vadd.f32 %v1616, %v1714
      %v1731 = vadd.f32 %v1617, %v1715
      %v1732 = vadd.f32 %v1618, %v1716
      %v1733 = vadd.f32 %v1619, %v1717
      %v1734 = vadd.f32 %v1620, %v1718
      %v1735 = vadd.f32 %v1621, %v1719
      %v1736 = vadd.f32 %v1622, %v1720
      %v1737 = vadd.f32 %v1623, %v1721
      %v1738 = vperm.slane %v274, 7
      %v1739 = vperm.slane %v275, 7
      %v1740 = vperm.slane %v276, 7
      %v1741 = vperm.slane %v277, 7
      %v1742 = vmul.f32 %v266, %v1738
      %v1743 = vmul.f32 %v267, %v1739
      %v1744 = vmul.f32 %v268, %v1740
      %v1745 = vmul.f32 %v269, %v1741
      %v1746 = vmul.f32 %v247, %v1738
      %v1747 = vmul.f32 %v249, %v1739
      %v1748 = vmul.f32 %v251, %v1740
      %v1749 = vmul.f32 %v253, %v1741
      %v1750 = vmul.f32 %v270, %v1738
      %v1751 = vmul.f32 %v271, %v1739
      %v1752 = vmul.f32 %v272, %v1740
      %v1753 = vmul.f32 %v273, %v1741
      %v1766 = vrot.slane %v1742, 2
      %v1767 = vrot.slane %v1746, 2
      %v1768 = vsel %vm963, %v1766, %v1767
      %v1769 = vrot.slane %v1743, 2
      %v1770 = vrot.slane %v1747, 2
      %v1771 = vsel %vm963, %v1769, %v1770
      %v1772 = vrot.slane %v1744, 2
      %v1773 = vrot.slane %v1748, 2
      %v1774 = vsel %vm963, %v1772, %v1773
      %v1775 = vrot.slane %v1745, 2
      %v1776 = vrot.slane %v1749, 2
      %v1777 = vsel %vm963, %v1775, %v1776
      %v1778 = vrot.slane %v1750, 2
      %v1779 = vsel %vm963, %v1767, %v1778
      %v1780 = vrot.slane %v1751, 2
      %v1781 = vsel %vm963, %v1770, %v1780
      %v1782 = vrot.slane %v1752, 2
      %v1783 = vsel %vm963, %v1773, %v1782
      %v1784 = vrot.slane %v1753, 2
      %v1785 = vsel %vm963, %v1776, %v1784
      %v1794 = vadd.f32 %v1730, %v1768
      %v1795 = vadd.f32 %v1731, %v1771
      %v1796 = vadd.f32 %v1732, %v1774
      %v1797 = vadd.f32 %v1733, %v1777
      %v1798 = vadd.f32 %v1734, %v1779
      %v1799 = vadd.f32 %v1735, %v1781
      %v1800 = vadd.f32 %v1736, %v1783
      %v1801 = vadd.f32 %v1737, %v1785
      %v1802 = vperm.slane %v282, 7
      %v1803 = vperm.slane %v283, 7
      %v1804 = vperm.slane %v284, 7
      %v1805 = vperm.slane %v285, 7
      %1810 = vrot.lane.b32.xlu0 %v1802, 1
      %v1811 = vpop.permute.xlu0 %1810
      %1812 = vrot.lane.b32.xlu0 %v1803, 1
      %v1813 = vpop.permute.xlu0 %1812
      %1814 = vrot.lane.b32.xlu0 %v1804, 1
      %v1815 = vpop.permute.xlu0 %1814
      %1816 = vrot.lane.b32.xlu0 %v1805, 1
      %v1817 = vpop.permute.xlu0 %1816
      %v1818 = vsel %vm1292, %v1811, %v1813
      %v1819 = vsel %vm1292, %v1813, %v1815
      %v1820 = vsel %vm1292, %v1815, %v1817
      %v1826 = vmul.f32 %v266, %v1811
      %v1827 = vmul.f32 %v267, %v1818
      %v1828 = vmul.f32 %v268, %v1819
      %v1829 = vmul.f32 %v269, %v1820
      %v1830 = vmul.f32 %v1817, 0.0
      %v1831 = vmul.f32 %v247, %v1811
      %v1832 = vmul.f32 %v249, %v1818
      %v1833 = vmul.f32 %v251, %v1819
      %v1834 = vmul.f32 %v253, %v1820
      %v1835 = vmul.f32 %v270, %v1811
      %v1836 = vmul.f32 %v271, %v1818
      %v1837 = vmul.f32 %v272, %v1819
      %v1838 = vmul.f32 %v273, %v1820
      %v1852 = vrot.slane %v1826, 2
      %v1853 = vrot.slane %v1831, 2
      %v1854 = vsel %vm963, %v1852, %v1853
      %v1855 = vrot.slane %v1827, 2
      %v1856 = vrot.slane %v1832, 2
      %v1857 = vsel %vm963, %v1855, %v1856
      %v1858 = vrot.slane %v1828, 2
      %v1859 = vrot.slane %v1833, 2
      %v1860 = vsel %vm963, %v1858, %v1859
      %v1861 = vrot.slane %v1829, 2
      %v1862 = vrot.slane %v1834, 2
      %v1863 = vsel %vm963, %v1861, %v1862
      %v1864 = vrot.slane %v1830, 2
      %v1865 = vsel %vm963, %v1864, %v1864
      %v1866 = vrot.slane %v1835, 2
      %v1867 = vsel %vm963, %v1853, %v1866
      %v1868 = vrot.slane %v1836, 2
      %v1869 = vsel %vm963, %v1856, %v1868
      %v1870 = vrot.slane %v1837, 2
      %v1871 = vsel %vm963, %v1859, %v1870
      %v1872 = vrot.slane %v1838, 2
      %v1873 = vsel %vm963, %v1862, %v1872
      %1874 = vrot.lane.b32.xlu0 %v1854, 127
      %v1875 = vpop.permute.xlu0 %1874
      %1876 = vrot.lane.b32.xlu0 %v1857, 127
      %v1877 = vpop.permute.xlu0 %1876
      %1878 = vrot.lane.b32.xlu0 %v1860, 127
      %v1879 = vpop.permute.xlu0 %1878
      %1880 = vrot.lane.b32.xlu0 %v1863, 127
      %v1881 = vpop.permute.xlu0 %1880
      %1882 = vrot.lane.b32.xlu0 %v1865, 127
      %v1883 = vpop.permute.xlu0 %1882
      %1884 = vrot.lane.b32.xlu0 %v1867, 127
      %v1885 = vpop.permute.xlu0 %1884
      %1886 = vrot.lane.b32.xlu0 %v1869, 127
      %v1887 = vpop.permute.xlu0 %1886
      %1888 = vrot.lane.b32.xlu0 %v1871, 127
      %v1889 = vpop.permute.xlu0 %1888
      %1890 = vrot.lane.b32.xlu0 %v1873, 127
      %v1891 = vpop.permute.xlu0 %1890
      %v1892 = vsel %vm1337, %v1875, %v1877
      %v1893 = vsel %vm1337, %v1877, %v1879
      %v1894 = vsel %vm1337, %v1879, %v1881
      %v1895 = vsel %vm1337, %v1881, %v1883
      %v1896 = vsel %vm1337, %v1885, %v1887
      %v1897 = vsel %vm1337, %v1887, %v1889
      %v1898 = vsel %vm1337, %v1889, %v1891
      %v1899 = vsel %vm1337, %v1891, %v1883
      %v1908 = vadd.f32 %v1794, %v1892
      %v1909 = vadd.f32 %v1795, %v1893
      %v1910 = vadd.f32 %v1796, %v1894
      %v1911 = vadd.f32 %v1797, %v1895
      %v1912 = vadd.f32 %v1798, %v1896
      %v1913 = vadd.f32 %v1799, %v1897
      %v1914 = vadd.f32 %v1800, %v1898
      %v1915 = vadd.f32 %v1801, %v1899
      %v1916 = vperm.slane %v290, 7
      %v1917 = vperm.slane %v291, 7
      %v1918 = vperm.slane %v292, 7
      %v1919 = vperm.slane %v293, 7
      %1924 = vrot.lane.b32.xlu0 %v1916, 127
      %v1925 = vpop.permute.xlu0 %1924
      %1926 = vrot.lane.b32.xlu0 %v1917, 127
      %v1927 = vpop.permute.xlu0 %1926
      %1928 = vrot.lane.b32.xlu0 %v1918, 127
      %v1929 = vpop.permute.xlu0 %1928
      %1930 = vrot.lane.b32.xlu0 %v1919, 127
      %v1931 = vpop.permute.xlu0 %1930
      %v1932 = vsel %vm1337, %v1925, %v1927
      %v1933 = vsel %vm1337, %v1927, %v1929
      %v1934 = vsel %vm1337, %v1929, %v1931
      %v1940 = vmul.f32 %v1925, 0.0
      %v1941 = vmul.f32 %v266, %v1932
      %v1942 = vmul.f32 %v267, %v1933
      %v1943 = vmul.f32 %v268, %v1934
      %v1944 = vmul.f32 %v269, %v1931
      %v1945 = vmul.f32 %v247, %v1932
      %v1946 = vmul.f32 %v249, %v1933
      %v1947 = vmul.f32 %v251, %v1934
      %v1948 = vmul.f32 %v253, %v1931
      %v1949 = vmul.f32 %v270, %v1932
      %v1950 = vmul.f32 %v271, %v1933
      %v1951 = vmul.f32 %v272, %v1934
      %v1952 = vmul.f32 %v273, %v1931
      %v1966 = vrot.slane %v1940, 2
      %v1967 = vsel %vm963, %v1966, %v1966
      %v1968 = vrot.slane %v1941, 2
      %v1969 = vrot.slane %v1945, 2
      %v1970 = vsel %vm963, %v1968, %v1969
      %v1971 = vrot.slane %v1942, 2
      %v1972 = vrot.slane %v1946, 2
      %v1973 = vsel %vm963, %v1971, %v1972
      %v1974 = vrot.slane %v1943, 2
      %v1975 = vrot.slane %v1947, 2
      %v1976 = vsel %vm963, %v1974, %v1975
      %v1977 = vrot.slane %v1944, 2
      %v1978 = vrot.slane %v1948, 2
      %v1979 = vsel %vm963, %v1977, %v1978
      %v1980 = vrot.slane %v1949, 2
      %v1981 = vsel %vm963, %v1969, %v1980
      %v1982 = vrot.slane %v1950, 2
      %v1983 = vsel %vm963, %v1972, %v1982
      %v1984 = vrot.slane %v1951, 2
      %v1985 = vsel %vm963, %v1975, %v1984
      %v1986 = vrot.slane %v1952, 2
      %v1987 = vsel %vm963, %v1978, %v1986
      %1988 = vrot.lane.b32.xlu0 %v1967, 1
      %v1989 = vpop.permute.xlu0 %1988
      %1990 = vrot.lane.b32.xlu0 %v1970, 1
      %v1991 = vpop.permute.xlu0 %1990
      %1992 = vrot.lane.b32.xlu0 %v1973, 1
      %v1993 = vpop.permute.xlu0 %1992
      %1994 = vrot.lane.b32.xlu0 %v1976, 1
      %v1995 = vpop.permute.xlu0 %1994
      %1996 = vrot.lane.b32.xlu0 %v1979, 1
      %v1997 = vpop.permute.xlu0 %1996
      %1998 = vrot.lane.b32.xlu0 %v1981, 1
      %v1999 = vpop.permute.xlu0 %1998
      %2000 = vrot.lane.b32.xlu0 %v1983, 1
      %v2001 = vpop.permute.xlu0 %2000
      %2002 = vrot.lane.b32.xlu0 %v1985, 1
      %v2003 = vpop.permute.xlu0 %2002
      %2004 = vrot.lane.b32.xlu0 %v1987, 1
      %v2005 = vpop.permute.xlu0 %2004
      %v2006 = vsel %vm1292, %v1989, %v1991
      %v2007 = vsel %vm1292, %v1991, %v1993
      %v2008 = vsel %vm1292, %v1993, %v1995
      %v2009 = vsel %vm1292, %v1995, %v1997
      %v2010 = vsel %vm1292, %v1989, %v1999
      %v2011 = vsel %vm1292, %v1999, %v2001
      %v2012 = vsel %vm1292, %v2001, %v2003
      %v2013 = vsel %vm1292, %v2003, %v2005
      %v2022 = vadd.f32 %v1908, %v2006
      %v2023 = vadd.f32 %v1909, %v2007
      %v2024 = vadd.f32 %v1910, %v2008
      %v2025 = vadd.f32 %v1911, %v2009
      %v2026 = vadd.f32 %v1912, %v2010
      %v2027 = vadd.f32 %v1913, %v2011
      %v2028 = vadd.f32 %v1914, %v2012
      %v2029 = vadd.f32 %v1915, %v2013
      %v2030 = vperm.slane %v274, 2
      %v2031 = vperm.slane %v275, 2
      %v2032 = vperm.slane %v276, 2
      %v2033 = vperm.slane %v277, 2
      %2038 = vrot.lane.b32.xlu0 %v2030, 32
      %v2039 = vpop.permute.xlu0 %2038
      %2040 = vrot.lane.b32.xlu0 %v2031, 32
      %v2041 = vpop.permute.xlu0 %2040
      %2042 = vrot.lane.b32.xlu0 %v2032, 32
      %v2043 = vpop.permute.xlu0 %2042
      %2044 = vrot.lane.b32.xlu0 %v2033, 32
      %v2045 = vpop.permute.xlu0 %2044
      %v2046 = vsel %vm373, %v2039, %v2041
      %v2047 = vsel %vm373, %v2041, %v2043
      %v2048 = vsel %vm373, %v2043, %v2045
      %v2054 = vmul.f32 %v266, %v2039
      %v2055 = vmul.f32 %v267, %v2046
      %v2056 = vmul.f32 %v268, %v2047
      %v2057 = vmul.f32 %v269, %v2048
      %v2058 = vmul.f32 %v2045, 0.0
      %v2059 = vmul.f32 %v247, %v2039
      %v2060 = vmul.f32 %v249, %v2046
      %v2061 = vmul.f32 %v251, %v2047
      %v2062 = vmul.f32 %v253, %v2048
      %2072 = vrot.lane.b32.xlu0 %v2054, 96
      %v2073 = vpop.permute.xlu0 %2072
      %2074 = vrot.lane.b32.xlu0 %v2055, 96
      %v2075 = vpop.permute.xlu0 %2074
      %2076 = vrot.lane.b32.xlu0 %v2056, 96
      %v2077 = vpop.permute.xlu0 %2076
      %2078 = vrot.lane.b32.xlu0 %v2057, 96
      %v2079 = vpop.permute.xlu0 %2078
      %2080 = vrot.lane.b32.xlu0 %v2058, 96
      %v2081 = vpop.permute.xlu0 %2080
      %2082 = vrot.lane.b32.xlu0 %v2059, 96
      %v2083 = vpop.permute.xlu0 %2082
      %2084 = vrot.lane.b32.xlu0 %v2060, 96
      %v2085 = vpop.permute.xlu0 %2084
      %2086 = vrot.lane.b32.xlu0 %v2061, 96
      %v2087 = vpop.permute.xlu0 %2086
      %2088 = vrot.lane.b32.xlu0 %v2062, 96
      %v2089 = vpop.permute.xlu0 %2088
      %v2090 = vsel %vm328, %v2073, %v2075
      %v2091 = vsel %vm328, %v2075, %v2077
      %v2092 = vsel %vm328, %v2077, %v2079
      %v2093 = vsel %vm328, %v2079, %v2081
      %v2094 = vsel %vm328, %v2083, %v2085
      %v2095 = vsel %vm328, %v2085, %v2087
      %v2096 = vsel %vm328, %v2087, %v2089
      %v2097 = vsel %vm328, %v2089, %v2081
      %v2106 = vadd.f32 %v2022, %v2090
      %v2107 = vadd.f32 %v2023, %v2091
      %v2108 = vadd.f32 %v2024, %v2092
      %v2109 = vadd.f32 %v2025, %v2093
      %v2110 = vadd.f32 %v2026, %v2094
      %v2111 = vadd.f32 %v2027, %v2095
      %v2112 = vadd.f32 %v2028, %v2096
      %v2113 = vadd.f32 %v2029, %v2097
      %v2114 = vperm.slane %v282, 2
      %v2115 = vperm.slane %v283, 2
      %v2116 = vperm.slane %v284, 2
      %v2117 = vperm.slane %v285, 2
      %2122 = vrot.lane.b32.xlu0 %v2114, 33
      %v2123 = vpop.permute.xlu0 %2122
      %2124 = vrot.lane.b32.xlu0 %v2115, 33
      %v2125 = vpop.permute.xlu0 %2124
      %2126 = vrot.lane.b32.xlu0 %v2116, 33
      %v2127 = vpop.permute.xlu0 %2126
      %2128 = vrot.lane.b32.xlu0 %v2117, 33
      %v2129 = vpop.permute.xlu0 %2128
      %v2130 = vsel %vm545, %v2123, %v2125
      %v2131 = vsel %vm545, %v2125, %v2127
      %v2132 = vsel %vm545, %v2127, %v2129
      %v2138 = vmul.f32 %v266, %v2123
      %v2139 = vmul.f32 %v267, %v2130
      %v2140 = vmul.f32 %v268, %v2131
      %v2141 = vmul.f32 %v269, %v2132
      %v2142 = vmul.f32 %v2129, 0.0
      %v2143 = vmul.f32 %v247, %v2123
      %v2144 = vmul.f32 %v249, %v2130
      %v2145 = vmul.f32 %v251, %v2131
      %v2146 = vmul.f32 %v253, %v2132
      %2156 = vrot.lane.b32.xlu0 %v2138, 95
      %v2157 = vpop.permute.xlu0 %2156
      %2158 = vrot.lane.b32.xlu0 %v2139, 95
      %v2159 = vpop.permute.xlu0 %2158
      %2160 = vrot.lane.b32.xlu0 %v2140, 95
      %v2161 = vpop.permute.xlu0 %2160
      %2162 = vrot.lane.b32.xlu0 %v2141, 95
      %v2163 = vpop.permute.xlu0 %2162
      %2164 = vrot.lane.b32.xlu0 %v2142, 95
      %v2165 = vpop.permute.xlu0 %2164
      %2166 = vrot.lane.b32.xlu0 %v2143, 95
      %v2167 = vpop.permute.xlu0 %2166
      %2168 = vrot.lane.b32.xlu0 %v2144, 95
      %v2169 = vpop.permute.xlu0 %2168
      %2170 = vrot.lane.b32.xlu0 %v2145, 95
      %v2171 = vpop.permute.xlu0 %2170
      %2172 = vrot.lane.b32.xlu0 %v2146, 95
      %v2173 = vpop.permute.xlu0 %2172
      %v2174 = vsel %vm500, %v2157, %v2159
      %v2175 = vsel %vm500, %v2159, %v2161
      %v2176 = vsel %vm500, %v2161, %v2163
      %v2177 = vsel %vm500, %v2163, %v2165
      %v2178 = vsel %vm500, %v2167, %v2169
      %v2179 = vsel %vm500, %v2169, %v2171
      %v2180 = vsel %vm500, %v2171, %v2173
      %v2181 = vsel %vm500, %v2173, %v2165
      %v2190 = vadd.f32 %v2106, %v2174
      %v2191 = vadd.f32 %v2107, %v2175
      %v2192 = vadd.f32 %v2108, %v2176
      %v2193 = vadd.f32 %v2109, %v2177
      %v2194 = vadd.f32 %v2110, %v2178
      %v2195 = vadd.f32 %v2111, %v2179
      %v2196 = vadd.f32 %v2112, %v2180
      %v2197 = vadd.f32 %v2113, %v2181
      %v2198 = vperm.slane %v290, 2
      %v2199 = vperm.slane %v291, 2
      %v2200 = vperm.slane %v292, 2
      %v2201 = vperm.slane %v293, 2
      %2206 = vrot.lane.b32.xlu0 %v2198, 31
      %v2207 = vpop.permute.xlu0 %2206
      %2208 = vrot.lane.b32.xlu0 %v2199, 31
      %v2209 = vpop.permute.xlu0 %2208
      %2210 = vrot.lane.b32.xlu0 %v2200, 31
      %v2211 = vpop.permute.xlu0 %2210
      %2212 = vrot.lane.b32.xlu0 %v2201, 31
      %v2213 = vpop.permute.xlu0 %2212
      %v2214 = vsel %vm459, %v2207, %v2209
      %v2215 = vsel %vm459, %v2209, %v2211
      %v2216 = vsel %vm459, %v2211, %v2213
      %v2222 = vmul.f32 %v266, %v2207
      %v2223 = vmul.f32 %v267, %v2214
      %v2224 = vmul.f32 %v268, %v2215
      %v2225 = vmul.f32 %v269, %v2216
      %v2226 = vmul.f32 %v2213, 0.0
      %v2227 = vmul.f32 %v247, %v2207
      %v2228 = vmul.f32 %v249, %v2214
      %v2229 = vmul.f32 %v251, %v2215
      %v2230 = vmul.f32 %v253, %v2216
      %2240 = vrot.lane.b32.xlu0 %v2222, 97
      %v2241 = vpop.permute.xlu0 %2240
      %2242 = vrot.lane.b32.xlu0 %v2223, 97
      %v2243 = vpop.permute.xlu0 %2242
      %2244 = vrot.lane.b32.xlu0 %v2224, 97
      %v2245 = vpop.permute.xlu0 %2244
      %2246 = vrot.lane.b32.xlu0 %v2225, 97
      %v2247 = vpop.permute.xlu0 %2246
      %2248 = vrot.lane.b32.xlu0 %v2226, 97
      %v2249 = vpop.permute.xlu0 %2248
      %2250 = vrot.lane.b32.xlu0 %v2227, 97
      %v2251 = vpop.permute.xlu0 %2250
      %2252 = vrot.lane.b32.xlu0 %v2228, 97
      %v2253 = vpop.permute.xlu0 %2252
      %2254 = vrot.lane.b32.xlu0 %v2229, 97
      %v2255 = vpop.permute.xlu0 %2254
      %2256 = vrot.lane.b32.xlu0 %v2230, 97
      %v2257 = vpop.permute.xlu0 %2256
      %v2258 = vsel %vm414, %v2241, %v2243
      %v2259 = vsel %vm414, %v2243, %v2245
      %v2260 = vsel %vm414, %v2245, %v2247
      %v2261 = vsel %vm414, %v2247, %v2249
      %v2262 = vsel %vm414, %v2251, %v2253
      %v2263 = vsel %vm414, %v2253, %v2255
      %v2264 = vsel %vm414, %v2255, %v2257
      %v2265 = vsel %vm414, %v2257, %v2249
      %v2274 = vadd.f32 %v2190, %v2258
      %v2275 = vadd.f32 %v2191, %v2259
      %v2276 = vadd.f32 %v2192, %v2260
      %v2277 = vadd.f32 %v2193, %v2261
      %v2278 = vadd.f32 %v2194, %v2262
      %v2279 = vadd.f32 %v2195, %v2263
      %v2280 = vadd.f32 %v2196, %v2264
      %v2281 = vadd.f32 %v2197, %v2265
      %v2282 = vperm.slane %v274, 5
      %v2283 = vperm.slane %v275, 5
      %v2284 = vperm.slane %v276, 5
      %v2285 = vperm.slane %v277, 5
      %2290 = vrot.lane.b32.xlu0 %v2282, 32
      %v2291 = vpop.permute.xlu0 %2290
      %2292 = vrot.lane.b32.xlu0 %v2283, 32
      %v2293 = vpop.permute.xlu0 %2292
      %2294 = vrot.lane.b32.xlu0 %v2284, 32
      %v2295 = vpop.permute.xlu0 %2294
      %2296 = vrot.lane.b32.xlu0 %v2285, 32
      %v2297 = vpop.permute.xlu0 %2296
      %v2298 = vsel %vm373, %v2291, %v2293
      %v2299 = vsel %vm373, %v2293, %v2295
      %v2300 = vsel %vm373, %v2295, %v2297
      %v2306 = vmul.f32 %v266, %v2291
      %v2307 = vmul.f32 %v267, %v2298
      %v2308 = vmul.f32 %v268, %v2299
      %v2309 = vmul.f32 %v269, %v2300
      %v2310 = vmul.f32 %v2297, 0.0
      %v2311 = vmul.f32 %v247, %v2291
      %v2312 = vmul.f32 %v249, %v2298
      %v2313 = vmul.f32 %v251, %v2299
      %v2314 = vmul.f32 %v253, %v2300
      %v2315 = vmul.f32 %v270, %v2291
      %v2316 = vmul.f32 %v271, %v2298
      %v2317 = vmul.f32 %v272, %v2299
      %v2318 = vmul.f32 %v273, %v2300
      %v2332 = vrot.slane %v2306, 1
      %v2333 = vrot.slane %v2311, 1
      %v2334 = vsel %vm620, %v2332, %v2333
      %v2335 = vrot.slane %v2307, 1
      %v2336 = vrot.slane %v2312, 1
      %v2337 = vsel %vm620, %v2335, %v2336
      %v2338 = vrot.slane %v2308, 1
      %v2339 = vrot.slane %v2313, 1
      %v2340 = vsel %vm620, %v2338, %v2339
      %v2341 = vrot.slane %v2309, 1
      %v2342 = vrot.slane %v2314, 1
      %v2343 = vsel %vm620, %v2341, %v2342
      %v2344 = vrot.slane %v2310, 1
      %v2345 = vsel %vm620, %v2344, %v2344
      %v2346 = vrot.slane %v2315, 1
      %v2347 = vsel %vm620, %v2333, %v2346
      %v2348 = vrot.slane %v2316, 1
      %v2349 = vsel %vm620, %v2336, %v2348
      %v2350 = vrot.slane %v2317, 1
      %v2351 = vsel %vm620, %v2339, %v2350
      %v2352 = vrot.slane %v2318, 1
      %v2353 = vsel %vm620, %v2342, %v2352
      %2354 = vrot.lane.b32.xlu0 %v2334, 96
      %v2355 = vpop.permute.xlu0 %2354
      %2356 = vrot.lane.b32.xlu0 %v2337, 96
      %v2357 = vpop.permute.xlu0 %2356
      %2358 = vrot.lane.b32.xlu0 %v2340, 96
      %v2359 = vpop.permute.xlu0 %2358
      %2360 = vrot.lane.b32.xlu0 %v2343, 96
      %v2361 = vpop.permute.xlu0 %2360
      %2362 = vrot.lane.b32.xlu0 %v2345, 96
      %v2363 = vpop.permute.xlu0 %2362
      %2364 = vrot.lane.b32.xlu0 %v2347, 96
      %v2365 = vpop.permute.xlu0 %2364
      %2366 = vrot.lane.b32.xlu0 %v2349, 96
      %v2367 = vpop.permute.xlu0 %2366
      %2368 = vrot.lane.b32.xlu0 %v2351, 96
      %v2369 = vpop.permute.xlu0 %2368
      %2370 = vrot.lane.b32.xlu0 %v2353, 96
      %v2371 = vpop.permute.xlu0 %2370
      %v2372 = vsel %vm328, %v2355, %v2357
      %v2373 = vsel %vm328, %v2357, %v2359
      %v2374 = vsel %vm328, %v2359, %v2361
      %v2375 = vsel %vm328, %v2361, %v2363
      %v2376 = vsel %vm328, %v2365, %v2367
      %v2377 = vsel %vm328, %v2367, %v2369
      %v2378 = vsel %vm328, %v2369, %v2371
      %v2379 = vsel %vm328, %v2371, %v2363
      %v2388 = vadd.f32 %v2274, %v2372
      %v2389 = vadd.f32 %v2275, %v2373
      %v2390 = vadd.f32 %v2276, %v2374
      %v2391 = vadd.f32 %v2277, %v2375
      %v2392 = vadd.f32 %v2278, %v2376
      %v2393 = vadd.f32 %v2279, %v2377
      %v2394 = vadd.f32 %v2280, %v2378
      %v2395 = vadd.f32 %v2281, %v2379
      %v2396 = vperm.slane %v282, 5
      %v2397 = vperm.slane %v283, 5
      %v2398 = vperm.slane %v284, 5
      %v2399 = vperm.slane %v285, 5
      %2404 = vrot.lane.b32.xlu0 %v2396, 33
      %v2405 = vpop.permute.xlu0 %2404
      %2406 = vrot.lane.b32.xlu0 %v2397, 33
      %v2407 = vpop.permute.xlu0 %2406
      %2408 = vrot.lane.b32.xlu0 %v2398, 33
      %v2409 = vpop.permute.xlu0 %2408
      %2410 = vrot.lane.b32.xlu0 %v2399, 33
      %v2411 = vpop.permute.xlu0 %2410
      %v2412 = vsel %vm545, %v2405, %v2407
      %v2413 = vsel %vm545, %v2407, %v2409
      %v2414 = vsel %vm545, %v2409, %v2411
      %v2420 = vmul.f32 %v266, %v2405
      %v2421 = vmul.f32 %v267, %v2412
      %v2422 = vmul.f32 %v268, %v2413
      %v2423 = vmul.f32 %v269, %v2414
      %v2424 = vmul.f32 %v2411, 0.0
      %v2425 = vmul.f32 %v247, %v2405
      %v2426 = vmul.f32 %v249, %v2412
      %v2427 = vmul.f32 %v251, %v2413
      %v2428 = vmul.f32 %v253, %v2414
      %v2429 = vmul.f32 %v270, %v2405
      %v2430 = vmul.f32 %v271, %v2412
      %v2431 = vmul.f32 %v272, %v2413
      %v2432 = vmul.f32 %v273, %v2414
      %v2446 = vrot.slane %v2420, 1
      %v2447 = vrot.slane %v2425, 1
      %v2448 = vsel %vm620, %v2446, %v2447
      %v2449 = vrot.slane %v2421, 1
      %v2450 = vrot.slane %v2426, 1
      %v2451 = vsel %vm620, %v2449, %v2450
      %v2452 = vrot.slane %v2422, 1
      %v2453 = vrot.slane %v2427, 1
      %v2454 = vsel %vm620, %v2452, %v2453
      %v2455 = vrot.slane %v2423, 1
      %v2456 = vrot.slane %v2428, 1
      %v2457 = vsel %vm620, %v2455, %v2456
      %v2458 = vrot.slane %v2424, 1
      %v2459 = vsel %vm620, %v2458, %v2458
      %v2460 = vrot.slane %v2429, 1
      %v2461 = vsel %vm620, %v2447, %v2460
      %v2462 = vrot.slane %v2430, 1
      %v2463 = vsel %vm620, %v2450, %v2462
      %v2464 = vrot.slane %v2431, 1
      %v2465 = vsel %vm620, %v2453, %v2464
      %v2466 = vrot.slane %v2432, 1
      %v2467 = vsel %vm620, %v2456, %v2466
      %2468 = vrot.lane.b32.xlu0 %v2448, 95
      %v2469 = vpop.permute.xlu0 %2468
      %2470 = vrot.lane.b32.xlu0 %v2451, 95
      %v2471 = vpop.permute.xlu0 %2470
      %2472 = vrot.lane.b32.xlu0 %v2454, 95
      %v2473 = vpop.permute.xlu0 %2472
      %2474 = vrot.lane.b32.xlu0 %v2457, 95
      %v2475 = vpop.permute.xlu0 %2474
      %2476 = vrot.lane.b32.xlu0 %v2459, 95
      %v2477 = vpop.permute.xlu0 %2476
      %2478 = vrot.lane.b32.xlu0 %v2461, 95
      %v2479 = vpop.permute.xlu0 %2478
      %2480 = vrot.lane.b32.xlu0 %v2463, 95
      %v2481 = vpop.permute.xlu0 %2480
      %2482 = vrot.lane.b32.xlu0 %v2465, 95
      %v2483 = vpop.permute.xlu0 %2482
      %2484 = vrot.lane.b32.xlu0 %v2467, 95
      %v2485 = vpop.permute.xlu0 %2484
      %v2486 = vsel %vm500, %v2469, %v2471
      %v2487 = vsel %vm500, %v2471, %v2473
      %v2488 = vsel %vm500, %v2473, %v2475
      %v2489 = vsel %vm500, %v2475, %v2477
      %v2490 = vsel %vm500, %v2479, %v2481
      %v2491 = vsel %vm500, %v2481, %v2483
      %v2492 = vsel %vm500, %v2483, %v2485
      %v2493 = vsel %vm500, %v2485, %v2477
      %v2502 = vadd.f32 %v2388, %v2486
      %v2503 = vadd.f32 %v2389, %v2487
      %v2504 = vadd.f32 %v2390, %v2488
      %v2505 = vadd.f32 %v2391, %v2489
      %v2506 = vadd.f32 %v2392, %v2490
      %v2507 = vadd.f32 %v2393, %v2491
      %v2508 = vadd.f32 %v2394, %v2492
      %v2509 = vadd.f32 %v2395, %v2493
      %v2510 = vperm.slane %v290, 5
      %v2511 = vperm.slane %v291, 5
      %v2512 = vperm.slane %v292, 5
      %v2513 = vperm.slane %v293, 5
      %2518 = vrot.lane.b32.xlu0 %v2510, 31
      %v2519 = vpop.permute.xlu0 %2518
      %2520 = vrot.lane.b32.xlu0 %v2511, 31
      %v2521 = vpop.permute.xlu0 %2520
      %2522 = vrot.lane.b32.xlu0 %v2512, 31
      %v2523 = vpop.permute.xlu0 %2522
      %2524 = vrot.lane.b32.xlu0 %v2513, 31
      %v2525 = vpop.permute.xlu0 %2524
      %v2526 = vsel %vm459, %v2519, %v2521
      %v2527 = vsel %vm459, %v2521, %v2523
      %v2528 = vsel %vm459, %v2523, %v2525
      %v2534 = vmul.f32 %v266, %v2519
      %v2535 = vmul.f32 %v267, %v2526
      %v2536 = vmul.f32 %v268, %v2527
      %v2537 = vmul.f32 %v269, %v2528
      %v2538 = vmul.f32 %v2525, 0.0
      %v2539 = vmul.f32 %v247, %v2519
      %v2540 = vmul.f32 %v249, %v2526
      %v2541 = vmul.f32 %v251, %v2527
      %v2542 = vmul.f32 %v253, %v2528
      %v2543 = vmul.f32 %v270, %v2519
      %v2544 = vmul.f32 %v271, %v2526
      %v2545 = vmul.f32 %v272, %v2527
      %v2546 = vmul.f32 %v273, %v2528
      %v2560 = vrot.slane %v2534, 1
      %v2561 = vrot.slane %v2539, 1
      %v2562 = vsel %vm620, %v2560, %v2561
      %v2563 = vrot.slane %v2535, 1
      %v2564 = vrot.slane %v2540, 1
      %v2565 = vsel %vm620, %v2563, %v2564
      %v2566 = vrot.slane %v2536, 1
      %v2567 = vrot.slane %v2541, 1
      %v2568 = vsel %vm620, %v2566, %v2567
      %v2569 = vrot.slane %v2537, 1
      %v2570 = vrot.slane %v2542, 1
      %v2571 = vsel %vm620, %v2569, %v2570
      %v2572 = vrot.slane %v2538, 1
      %v2573 = vsel %vm620, %v2572, %v2572
      %v2574 = vrot.slane %v2543, 1
      %v2575 = vsel %vm620, %v2561, %v2574
      %v2576 = vrot.slane %v2544, 1
      %v2577 = vsel %vm620, %v2564, %v2576
      %v2578 = vrot.slane %v2545, 1
      %v2579 = vsel %vm620, %v2567, %v2578
      %v2580 = vrot.slane %v2546, 1
      %v2581 = vsel %vm620, %v2570, %v2580
      %2582 = vrot.lane.b32.xlu0 %v2562, 97
      %v2583 = vpop.permute.xlu0 %2582
      %2584 = vrot.lane.b32.xlu0 %v2565, 97
      %v2585 = vpop.permute.xlu0 %2584
      %2586 = vrot.lane.b32.xlu0 %v2568, 97
      %v2587 = vpop.permute.xlu0 %2586
      %2588 = vrot.lane.b32.xlu0 %v2571, 97
      %v2589 = vpop.permute.xlu0 %2588
      %2590 = vrot.lane.b32.xlu0 %v2573, 97
      %v2591 = vpop.permute.xlu0 %2590
      %2592 = vrot.lane.b32.xlu0 %v2575, 97
      %v2593 = vpop.permute.xlu0 %2592
      %2594 = vrot.lane.b32.xlu0 %v2577, 97
      %v2595 = vpop.permute.xlu0 %2594
      %2596 = vrot.lane.b32.xlu0 %v2579, 97
      %v2597 = vpop.permute.xlu0 %2596
      %2598 = vrot.lane.b32.xlu0 %v2581, 97
      %v2599 = vpop.permute.xlu0 %2598
      %v2600 = vsel %vm414, %v2583, %v2585
      %v2601 = vsel %vm414, %v2585, %v2587
      %v2602 = vsel %vm414, %v2587, %v2589
      %v2603 = vsel %vm414, %v2589, %v2591
      %v2604 = vsel %vm414, %v2593, %v2595
      %v2605 = vsel %vm414, %v2595, %v2597
      %v2606 = vsel %vm414, %v2597, %v2599
      %v2607 = vsel %vm414, %v2599, %v2591
      %v2616 = vadd.f32 %v2502, %v2600
      %v2617 = vadd.f32 %v2503, %v2601
      %v2618 = vadd.f32 %v2504, %v2602
      %v2619 = vadd.f32 %v2505, %v2603
      %v2620 = vadd.f32 %v2506, %v2604
      %v2621 = vadd.f32 %v2507, %v2605
      %v2622 = vadd.f32 %v2508, %v2606
      %v2623 = vadd.f32 %v2509, %v2607
      %v2624 = vperm.slane %v278, 0
      %v2625 = vperm.slane %v279, 0
      %v2626 = vperm.slane %v280, 0
      %v2627 = vperm.slane %v281, 0
      %2632 = vrot.lane.b32.xlu0 %v2624, 32
      %v2633 = vpop.permute.xlu0 %2632
      %2634 = vrot.lane.b32.xlu0 %v2625, 32
      %v2635 = vpop.permute.xlu0 %2634
      %2636 = vrot.lane.b32.xlu0 %v2626, 32
      %v2637 = vpop.permute.xlu0 %2636
      %2638 = vrot.lane.b32.xlu0 %v2627, 32
      %v2639 = vpop.permute.xlu0 %2638
      %v2640 = vsel %vm373, %v2633, %v2635
      %v2641 = vsel %vm373, %v2635, %v2637
      %v2642 = vsel %vm373, %v2637, %v2639
      %v2648 = vmul.f32 %v266, %v2633
      %v2649 = vmul.f32 %v267, %v2640
      %v2650 = vmul.f32 %v268, %v2641
      %v2651 = vmul.f32 %v269, %v2642
      %v2652 = vmul.f32 %v2639, 0.0
      %v2653 = vmul.f32 %v247, %v2633
      %v2654 = vmul.f32 %v249, %v2640
      %v2655 = vmul.f32 %v251, %v2641
      %v2656 = vmul.f32 %v253, %v2642
      %v2657 = vmul.f32 %v270, %v2633
      %v2658 = vmul.f32 %v271, %v2640
      %v2659 = vmul.f32 %v272, %v2641
      %v2660 = vmul.f32 %v273, %v2642
      %v2674 = vrot.slane %v2648, 2
      %v2675 = vrot.slane %v2653, 2
      %v2676 = vsel %vm963, %v2674, %v2675
      %v2677 = vrot.slane %v2649, 2
      %v2678 = vrot.slane %v2654, 2
      %v2679 = vsel %vm963, %v2677, %v2678
      %v2680 = vrot.slane %v2650, 2
      %v2681 = vrot.slane %v2655, 2
      %v2682 = vsel %vm963, %v2680, %v2681
      %v2683 = vrot.slane %v2651, 2
      %v2684 = vrot.slane %v2656, 2
      %v2685 = vsel %vm963, %v2683, %v2684
      %v2686 = vrot.slane %v2652, 2
      %v2687 = vsel %vm963, %v2686, %v2686
      %v2688 = vrot.slane %v2657, 2
      %v2689 = vsel %vm963, %v2675, %v2688
      %v2690 = vrot.slane %v2658, 2
      %v2691 = vsel %vm963, %v2678, %v2690
      %v2692 = vrot.slane %v2659, 2
      %v2693 = vsel %vm963, %v2681, %v2692
      %v2694 = vrot.slane %v2660, 2
      %v2695 = vsel %vm963, %v2684, %v2694
      %2696 = vrot.lane.b32.xlu0 %v2676, 96
      %v2697 = vpop.permute.xlu0 %2696
      %2698 = vrot.lane.b32.xlu0 %v2679, 96
      %v2699 = vpop.permute.xlu0 %2698
      %2700 = vrot.lane.b32.xlu0 %v2682, 96
      %v2701 = vpop.permute.xlu0 %2700
      %2702 = vrot.lane.b32.xlu0 %v2685, 96
      %v2703 = vpop.permute.xlu0 %2702
      %2704 = vrot.lane.b32.xlu0 %v2687, 96
      %v2705 = vpop.permute.xlu0 %2704
      %2706 = vrot.lane.b32.xlu0 %v2689, 96
      %v2707 = vpop.permute.xlu0 %2706
      %2708 = vrot.lane.b32.xlu0 %v2691, 96
      %v2709 = vpop.permute.xlu0 %2708
      %2710 = vrot.lane.b32.xlu0 %v2693, 96
      %v2711 = vpop.permute.xlu0 %2710
      %2712 = vrot.lane.b32.xlu0 %v2695, 96
      %v2713 = vpop.permute.xlu0 %2712
      %v2714 = vsel %vm328, %v2697, %v2699
      %v2715 = vsel %vm328, %v2699, %v2701
      %v2716 = vsel %vm328, %v2701, %v2703
      %v2717 = vsel %vm328, %v2703, %v2705
      %v2718 = vsel %vm328, %v2707, %v2709
      %v2719 = vsel %vm328, %v2709, %v2711
      %v2720 = vsel %vm328, %v2711, %v2713
      %v2721 = vsel %vm328, %v2713, %v2705
      %v2730 = vadd.f32 %v2616, %v2714
      %v2731 = vadd.f32 %v2617, %v2715
      %v2732 = vadd.f32 %v2618, %v2716
      %v2733 = vadd.f32 %v2619, %v2717
      %v2734 = vadd.f32 %v2620, %v2718
      %v2735 = vadd.f32 %v2621, %v2719
      %v2736 = vadd.f32 %v2622, %v2720
      %v2737 = vadd.f32 %v2623, %v2721
      %v2738 = vperm.slane %v286, 0
      %v2739 = vperm.slane %v287, 0
      %v2740 = vperm.slane %v288, 0
      %v2741 = vperm.slane %v289, 0
      %2746 = vrot.lane.b32.xlu0 %v2738, 33
      %v2747 = vpop.permute.xlu0 %2746
      %2748 = vrot.lane.b32.xlu0 %v2739, 33
      %v2749 = vpop.permute.xlu0 %2748
      %2750 = vrot.lane.b32.xlu0 %v2740, 33
      %v2751 = vpop.permute.xlu0 %2750
      %2752 = vrot.lane.b32.xlu0 %v2741, 33
      %v2753 = vpop.permute.xlu0 %2752
      %v2754 = vsel %vm545, %v2747, %v2749
      %v2755 = vsel %vm545, %v2749, %v2751
      %v2756 = vsel %vm545, %v2751, %v2753
      %v2762 = vmul.f32 %v266, %v2747
      %v2763 = vmul.f32 %v267, %v2754
      %v2764 = vmul.f32 %v268, %v2755
      %v2765 = vmul.f32 %v269, %v2756
      %v2766 = vmul.f32 %v2753, 0.0
      %v2767 = vmul.f32 %v247, %v2747
      %v2768 = vmul.f32 %v249, %v2754
      %v2769 = vmul.f32 %v251, %v2755
      %v2770 = vmul.f32 %v253, %v2756
      %v2771 = vmul.f32 %v270, %v2747
      %v2772 = vmul.f32 %v271, %v2754
      %v2773 = vmul.f32 %v272, %v2755
      %v2774 = vmul.f32 %v273, %v2756
      %v2788 = vrot.slane %v2762, 2
      %v2789 = vrot.slane %v2767, 2
      %v2790 = vsel %vm963, %v2788, %v2789
      %v2791 = vrot.slane %v2763, 2
      %v2792 = vrot.slane %v2768, 2
      %v2793 = vsel %vm963, %v2791, %v2792
      %v2794 = vrot.slane %v2764, 2
      %v2795 = vrot.slane %v2769, 2
      %v2796 = vsel %vm963, %v2794, %v2795
      %v2797 = vrot.slane %v2765, 2
      %v2798 = vrot.slane %v2770, 2
      %v2799 = vsel %vm963, %v2797, %v2798
      %v2800 = vrot.slane %v2766, 2
      %v2801 = vsel %vm963, %v2800, %v2800
      %v2802 = vrot.slane %v2771, 2
      %v2803 = vsel %vm963, %v2789, %v2802
      %v2804 = vrot.slane %v2772, 2
      %v2805 = vsel %vm963, %v2792, %v2804
      %v2806 = vrot.slane %v2773, 2
      %v2807 = vsel %vm963, %v2795, %v2806
      %v2808 = vrot.slane %v2774, 2
      %v2809 = vsel %vm963, %v2798, %v2808
      %2810 = vrot.lane.b32.xlu0 %v2790, 95
      %v2811 = vpop.permute.xlu0 %2810
      %2812 = vrot.lane.b32.xlu0 %v2793, 95
      %v2813 = vpop.permute.xlu0 %2812
      %2814 = vrot.lane.b32.xlu0 %v2796, 95
      %v2815 = vpop.permute.xlu0 %2814
      %2816 = vrot.lane.b32.xlu0 %v2799, 95
      %v2817 = vpop.permute.xlu0 %2816
      %2818 = vrot.lane.b32.xlu0 %v2801, 95
      %v2819 = vpop.permute.xlu0 %2818
      %2820 = vrot.lane.b32.xlu0 %v2803, 95
      %v2821 = vpop.permute.xlu0 %2820
      %2822 = vrot.lane.b32.xlu0 %v2805, 95
      %v2823 = vpop.permute.xlu0 %2822
      %2824 = vrot.lane.b32.xlu0 %v2807, 95
      %v2825 = vpop.permute.xlu0 %2824
      %2826 = vrot.lane.b32.xlu0 %v2809, 95
      %v2827 = vpop.permute.xlu0 %2826
      %v2828 = vsel %vm500, %v2811, %v2813
      %v2829 = vsel %vm500, %v2813, %v2815
      %v2830 = vsel %vm500, %v2815, %v2817
      %v2831 = vsel %vm500, %v2817, %v2819
      %v2832 = vsel %vm500, %v2821, %v2823
      %v2833 = vsel %vm500, %v2823, %v2825
      %v2834 = vsel %vm500, %v2825, %v2827
      %v2835 = vsel %vm500, %v2827, %v2819
      %v2844 = vadd.f32 %v2730, %v2828
      %v2845 = vadd.f32 %v2731, %v2829
      %v2846 = vadd.f32 %v2732, %v2830
      %v2847 = vadd.f32 %v2733, %v2831
      %v2848 = vadd.f32 %v2734, %v2832
      %v2849 = vadd.f32 %v2735, %v2833
      %v2850 = vadd.f32 %v2736, %v2834
      %v2851 = vadd.f32 %v2737, %v2835
      %v2852 = vperm.slane %v294, 0
      %v2853 = vperm.slane %v295, 0
      %v2854 = vperm.slane %v296, 0
      %v2855 = vperm.slane %v297, 0
      %2860 = vrot.lane.b32.xlu0 %v2852, 31
      %v2861 = vpop.permute.xlu0 %2860
      %2862 = vrot.lane.b32.xlu0 %v2853, 31
      %v2863 = vpop.permute.xlu0 %2862
      %2864 = vrot.lane.b32.xlu0 %v2854, 31
      %v2865 = vpop.permute.xlu0 %2864
      %2866 = vrot.lane.b32.xlu0 %v2855, 31
      %v2867 = vpop.permute.xlu0 %2866
      %v2868 = vsel %vm459, %v2861, %v2863
      %v2869 = vsel %vm459, %v2863, %v2865
      %v2870 = vsel %vm459, %v2865, %v2867
      %v2876 = vmul.f32 %v266, %v2861
      %v2877 = vmul.f32 %v267, %v2868
      %v2878 = vmul.f32 %v268, %v2869
      %v2879 = vmul.f32 %v269, %v2870
      %v2880 = vmul.f32 %v2867, 0.0
      %v2881 = vmul.f32 %v247, %v2861
      %v2882 = vmul.f32 %v249, %v2868
      %v2883 = vmul.f32 %v251, %v2869
      %v2884 = vmul.f32 %v253, %v2870
      %v2885 = vmul.f32 %v270, %v2861
      %v2886 = vmul.f32 %v271, %v2868
      %v2887 = vmul.f32 %v272, %v2869
      %v2888 = vmul.f32 %v273, %v2870
      %v2902 = vrot.slane %v2876, 2
      %v2903 = vrot.slane %v2881, 2
      %v2904 = vsel %vm963, %v2902, %v2903
      %v2905 = vrot.slane %v2877, 2
      %v2906 = vrot.slane %v2882, 2
      %v2907 = vsel %vm963, %v2905, %v2906
      %v2908 = vrot.slane %v2878, 2
      %v2909 = vrot.slane %v2883, 2
      %v2910 = vsel %vm963, %v2908, %v2909
      %v2911 = vrot.slane %v2879, 2
      %v2912 = vrot.slane %v2884, 2
      %v2913 = vsel %vm963, %v2911, %v2912
      %v2914 = vrot.slane %v2880, 2
      %v2915 = vsel %vm963, %v2914, %v2914
      %v2916 = vrot.slane %v2885, 2
      %v2917 = vsel %vm963, %v2903, %v2916
      %v2918 = vrot.slane %v2886, 2
      %v2919 = vsel %vm963, %v2906, %v2918
      %v2920 = vrot.slane %v2887, 2
      %v2921 = vsel %vm963, %v2909, %v2920
      %v2922 = vrot.slane %v2888, 2
      %v2923 = vsel %vm963, %v2912, %v2922
      %2924 = vrot.lane.b32.xlu0 %v2904, 97
      %v2925 = vpop.permute.xlu0 %2924
      %2926 = vrot.lane.b32.xlu0 %v2907, 97
      %v2927 = vpop.permute.xlu0 %2926
      %2928 = vrot.lane.b32.xlu0 %v2910, 97
      %v2929 = vpop.permute.xlu0 %2928
      %2930 = vrot.lane.b32.xlu0 %v2913, 97
      %v2931 = vpop.permute.xlu0 %2930
      %2932 = vrot.lane.b32.xlu0 %v2915, 97
      %v2933 = vpop.permute.xlu0 %2932
      %2934 = vrot.lane.b32.xlu0 %v2917, 97
      %v2935 = vpop.permute.xlu0 %2934
      %2936 = vrot.lane.b32.xlu0 %v2919, 97
      %v2937 = vpop.permute.xlu0 %2936
      %2938 = vrot.lane.b32.xlu0 %v2921, 97
      %v2939 = vpop.permute.xlu0 %2938
      %2940 = vrot.lane.b32.xlu0 %v2923, 97
      %v2941 = vpop.permute.xlu0 %2940
      %v2942 = vsel %vm414, %v2925, %v2927
      %v2943 = vsel %vm414, %v2927, %v2929
      %v2944 = vsel %vm414, %v2929, %v2931
      %v2945 = vsel %vm414, %v2931, %v2933
      %v2946 = vsel %vm414, %v2935, %v2937
      %v2947 = vsel %vm414, %v2937, %v2939
      %v2948 = vsel %vm414, %v2939, %v2941
      %v2949 = vsel %vm414, %v2941, %v2933
      %v2958 = vadd.f32 %v2844, %v2942
      %v2959 = vadd.f32 %v2845, %v2943
      %v2960 = vadd.f32 %v2846, %v2944
      %v2961 = vadd.f32 %v2847, %v2945
      %v2962 = vadd.f32 %v2848, %v2946
      %v2963 = vadd.f32 %v2849, %v2947
      %v2964 = vadd.f32 %v2850, %v2948
      %v2965 = vadd.f32 %v2851, %v2949
      %2966 = vst [vmem:[%s224] sm:$0xff] %v2958
      %2967 = vst [vmem:[%s224 + $0x8] sm:$0xff] %v2959
      %2968 = vst [vmem:[%s224 + $0x10] sm:$0xff] %v2960
      %2969 = vst [vmem:[%s224 + $0x18] sm:$0xff] %v2961
      %2970 = vst [vmem:[%s224 + $0x20] sm:$0xff] %v2962
      %2971 = vst [vmem:[%s224 + $0x28] sm:$0xff] %v2963
      %2972 = vst [vmem:[%s224 + $0x30] sm:$0xff] %v2964
      %2973 = vst [vmem:[%s224 + $0x38] sm:$0xff] %v2965
      %p2974 = scmp.lt.s32.totalorder %s16, 1
      %s2975 = scalar_select %p2974, %s16, 1
      %s2976 = smul.addr %s2975, 8
      %s2977 = smul.addr %s2976, 8
      %s2978 = scalar_lea.vmem %s5, %s2977
      // Predicated region
      $region41: #{effn_forward.11} parent=39 // pred_check
        %p2979 = pneg %p144
      $region42: #{effn_forward.11} parent=39 // pred_check_branch
        %2981 = sbr.rel (%p2979) target = $region44
      $region43: #{effn_forward.11} parent=39 // pred_region
        _
      $region44: #{effn_forward.11} parent=39 // pred_fallthru
        _
    $region40: #{effn_forward.11} parent=5 // pred_fallthru
      _
    %p2982 = scmp.le.s32.totalorder 2, %s11
    // Predicated region
    $region45: #{effn_forward.11} parent=5 // pred_check
      %p2983 = pneg %p2982
    $region46: #{effn_forward.11} parent=5 // pred_check_branch
      %2985 = sbr.rel (%p2983) target = $region48
    $region47: #{effn_forward.11} parent=5 // pred_region
      %s2986 = ssub.s32 %s11, 2
      // Predicated region
      $region49: #{effn_forward.11} parent=47 // pred_check
        %p2987 = pneg %p150
      $region50: #{effn_forward.11} parent=47 // pred_check_branch
        %2989 = sbr.rel (%p2987) target = $region52
      $region51: #{effn_forward.11} parent=47 // pred_region
        %p2990 = scmp.lt.s32.totalorder %s17, 1
        %s2991 = scalar_select %p2990, %s17, 1
        %s2992 = smul.addr %s2991, 8
        %s2993 = smul.addr %s2992, 8
        %s2994 = scalar_lea.vmem %s5, %s2993
      $region52: #{effn_forward.11} parent=47 // pred_fallthru
        _
    $region48: #{effn_forward.11} parent=5 // pred_fallthru
      _
  $region6: #{effn_forward.11} parent=0 // loop_footer
    %s15 = sadd.s32 1, %s11
  $region7: #{effn_forward.11} parent=0 // loop_footer_branch
    %10 = sbr.rel target = $region3
  $region8: #{effn_forward.11} parent=0 // loop_exit
    _

</llo_original>
